<compile_context>
chip_gen: v5e
topology: v5e:2x2
jax: 0.10.0
libtpu: 0.0.40
codegen_flags: <defaults>
</compile_context>

<pallas_src>
import math

import jax
import jax.numpy as jnp
from jax.experimental import pallas as pl
from jax.experimental.pallas import tpu as pltpu

# ----------------------------- config (small) --------------------------------
B = 2          # batch
N_POS = 16     # n_position (sequence length of visual features)
D = 32         # n_dim (d_model)
H = 4          # n_head
D_FF = 64      # dim_feedforward
MAX_TEXT = 25  # max_text_length (embedding table rows)

VMEM_LIMIT = 32 * 1024 * 1024
VMEM_SPEC = pl.BlockSpec(memory_space=pltpu.MemorySpace.VMEM)
SMEM_SPEC = pl.BlockSpec(memory_space=pltpu.MemorySpace.SMEM)

LAYER_PARAM_COUNT = 12  # wqkv,bqkv,wo,bo,ln1_g,ln1_b,w1,b1,w2,b2,ln2_g,ln2_b


# ------------------------- in-kernel building blocks --------------------------
def _layer_norm(x2d, g, b, eps):
    mu = jnp.mean(x2d, axis=-1, keepdims=True)
    c = x2d - mu
    var = jnp.mean(c * c, axis=-1, keepdims=True)
    return c * jax.lax.rsqrt(var + eps) * g + b


def _load_layer(refs):
    keys = ("wqkv", "bqkv", "wo", "bo", "ln1_g", "ln1_b",
            "w1", "b1", "w2", "b2", "ln2_g", "ln2_b")
    return dict(zip(keys, (r[...] for r in refs)))


def _transformer_layer_2d(x2, w, nblk, n):
    """Post-LN block: fused-QKV MHA -> add&norm -> FFN(relu) -> add&norm.

    x2: (nblk*n, d) activations; each n-row block is an independent sequence.
    All ops stay 2D (no split-head transposes through HBM).
    """
    d = x2.shape[-1]
    dk = d // H
    scale = 1.0 / math.sqrt(dk)

    # One fused MXU matmul for Q, K, V.
    qkv = jnp.dot(x2, w["wqkv"], preferred_element_type=jnp.float32) + w["bqkv"]

    attn_rows = []
    for bb in range(nblk):                    # tiny static loops (<= 16 blocks)
        rows = slice(bb * n, (bb + 1) * n)
        head_outs = []
        for h in range(H):
            qh = qkv[rows, 0 * d + h * dk:0 * d + (h + 1) * dk]   # (n, dk)
            kh = qkv[rows, 1 * d + h * dk:1 * d + (h + 1) * dk]   # (n, dk)
            vh = qkv[rows, 2 * d + h * dk:2 * d + (h + 1) * dk]   # (n, dk)
            # q @ k^T without materializing a transpose.
            s = jax.lax.dot_general(qh, kh, (((1,), (1,)), ((), ())),
                                    preferred_element_type=jnp.float32) * scale
            m = jnp.max(s, axis=-1, keepdims=True)
            e = jnp.exp(s - m)
            p = e * pl.reciprocal(jnp.sum(e, axis=-1, keepdims=True), approx=True)
            head_outs.append(jnp.dot(p, vh, preferred_element_type=jnp.float32))
        attn_rows.append(jnp.concatenate(head_outs, axis=1))       # (n, d)
    attn = jnp.concatenate(attn_rows, axis=0)                      # (nblk*n, d)

    proj = jnp.dot(attn, w["wo"], preferred_element_type=jnp.float32) + w["bo"]
    x2 = _layer_norm(proj + x2, w["ln1_g"], w["ln1_b"], 1e-5)

    hid = jnp.maximum(
        jnp.dot(x2, w["w1"], preferred_element_type=jnp.float32) + w["b1"], 0.0)
    ffn = jnp.dot(hid, w["w2"], preferred_element_type=jnp.float32) + w["b2"]
    x2 = _layer_norm(ffn + x2, w["ln2_g"], w["ln2_b"], 1e-5)
    return x2


# ------------------------------ fused Pallas kernel ----------------------------
def _mlm_fused_kernel(*refs):
    """PE + 2-layer mask encoder + MLM attention split + shared WCL encoder."""
    label_ref = refs[0]                    # SMEM (B,) int32 character positions
    x_ref = refs[1]                        # (B*N, D) original MLM input
    pe_mask_ref = refs[2]                  # (N, D) positional encoding (mask enc)
    idx = 3
    l0_refs = refs[idx:idx + LAYER_PARAM_COUNT]; idx += LAYER_PARAM_COUNT
    l1_refs = refs[idx:idx + LAYER_PARAM_COUNT]; idx += LAYER_PARAM_COUNT
    lnm_g_ref, lnm_b_ref = refs[idx], refs[idx + 1]; idx += 2
    pos_tab_ref = refs[idx]; idx += 1      # (MAX_TEXT, D) nn.Embedding table
    w0w_ref, w0b_ref = refs[idx], refs[idx + 1]; idx += 2   # (N, 1) each
    wvw_ref, wvb_ref = refs[idx], refs[idx + 1]; idx += 2   # (D, D), (1, D)
    wew_ref, web_ref = refs[idx], refs[idx + 1]; idx += 2   # (1, D), (1, 1)
    pe_wcl_ref = refs[idx]; idx += 1       # (N, D) positional encoding (WCL enc)
    wl_refs = refs[idx:idx + LAYER_PARAM_COUNT]; idx += LAYER_PARAM_COUNT
    lnw_g_ref, lnw_b_ref = refs[idx], refs[idx + 1]; idx += 2
    branches_ref = refs[idx]               # out (2*B*N, D): [f_res ; f_sub]
    att_ref = refs[idx + 1]                # out (B*N, 1)

    bn, d = x_ref.shape
    n = N_POS
    b = bn // n

    x_in = x_ref[...]

    # ---- MLM_SequenceModeling_mask: PE + 2 layers + final LayerNorm ----------
    pe_mask = pe_mask_ref[...]
    enc = x_in + jnp.concatenate([pe_mask] * b, axis=0)
    enc = _transformer_layer_2d(enc, _load_layer(l0_refs), b, n)
    enc = _transformer_layer_2d(enc, _load_layer(l1_refs), b, n)
    feat = _layer_norm(enc, lnm_g_ref[...], lnm_b_ref[...], 1e-6)

    # ---- wv(feature_v_seq) ----------------------------------------------------
    wv_out = (jnp.dot(feat, wvw_ref[...], preferred_element_type=jnp.float32)
              + wvb_ref[...])                                          # (B*N, D)

    # ---- pos_embedding gather (one-hot matmul, indices live in SMEM) ----------
    tab = pos_tab_ref[...]                                             # (MAX_TEXT, D)
    row_ids = jax.lax.broadcasted_iota(jnp.int32, (MAX_TEXT, 1), 0)
    w0w = w0w_ref[...]                                                 # (N, 1)
    w0b = w0b_ref[...]                                                 # (N, 1)
    wew = wew_ref[...]                                                 # (1, D)
    web = web_ref[...]                                                 # (1, 1)

    att_rows, fres_rows, fsub_rows = [], [], []
    for bb in range(b):
        rows = slice(bb * n, (bb + 1) * n)
        onehot = (row_ids == label_ref[bb]).astype(jnp.float32)        # (MAX_TEXT, 1)
        pe_b = jnp.sum(onehot * tab, axis=0, keepdims=True)            # (1, D)
        # w0_linear(pos_emb.unsqueeze(2)).transpose(1, 2) row block:
        pos_exp = w0w * pe_b + w0b                                     # (N, D)
        t = jnp.tanh(pos_exp + wv_out[rows])                           # (N, D)
        logit = jnp.sum(t * wew, axis=-1, keepdims=True) + web         # (N, 1)
        att_b = jax.nn.sigmoid(logit)                                  # (N, 1)
        x_b = x_in[rows]                                               # (N, D)
        att_rows.append(att_b)
        fres_rows.append(x_b * (1.0 - att_b))
        fsub_rows.append(x_b * att_b)

    att_ref[...] = jnp.concatenate(att_rows, axis=0)                   # (B*N, 1)

    # ---- MLM_SequenceModeling_WCL on both branches, stacked (shared weights) --
    stacked = jnp.concatenate(fres_rows + fsub_rows, axis=0)           # (2*B*N, D)
    pe_wcl = pe_wcl_ref[...]
    wcl = stacked + jnp.concatenate([pe_wcl] * (2 * b), axis=0)
    wcl = _transformer_layer_2d(wcl, _load_layer(wl_refs), 2 * b, n)
    wcl = _layer_norm(wcl, lnw_g_ref[...], lnw_b_ref[...], 1e-6)
    branches_ref[...] = wcl                                            # one dense store


# ----------------------------- host-side wrapper -------------------------------
def _layer_flat(lp):
    return [lp["wqkv"], lp["bqkv"], lp["wo"], lp["bo"],
            lp["ln1_g"], lp["ln1_b"], lp["w1"], lp["b1"],
            lp["w2"], lp["b2"], lp["ln2_g"], lp["ln2_b"]]


def mlm_forward(params, x, label_pos):
    b, n, d = x.shape
    enc_m = params["enc_mask"]
    enc_w = params["enc_wcl"]

    x2d = x.reshape(b * n, d)                       # contiguous, free

    inputs = [label_pos.astype(jnp.int32), x2d, enc_m["pe"]]
    for lp in enc_m["layers"]:
        inputs += _layer_flat(lp)
    inputs += [enc_m["ln_g"], enc_m["ln_b"],
               params["pos_embedding"], params["w0_w"], params["w0_b"],
               params["wv_w"], params["wv_b"], params["we_w"], params["we_b"],
               enc_w["pe"]]
    for lp in enc_w["layers"]:
        inputs += _layer_flat(lp)
    inputs += [enc_w["ln_g"], enc_w["ln_b"]]

    branches, att = pl.pallas_call(
        _mlm_fused_kernel,
        out_shape=(jax.ShapeDtypeStruct((2 * b * n, d), jnp.float32),
                   jax.ShapeDtypeStruct((b * n, 1), jnp.float32)),
        in_specs=[SMEM_SPEC] + [VMEM_SPEC] * (len(inputs) - 1),
        out_specs=(VMEM_SPEC, VMEM_SPEC),
        compiler_params=pltpu.CompilerParams(vmem_limit_bytes=VMEM_LIMIT),
    )(*inputs)

    f_res = branches[:b * n].reshape(b, n, d)
    f_sub = branches[b * n:].reshape(b, n, d)
    att_map_sub = att.reshape(b, 1, n)              # (B*N,1) -> (B,1,N), same order
    return f_res, f_sub, att_map_sub


# ------------------------------- parameter init --------------------------------
def sinusoidal_pe(max_len, dim):
    position = jnp.arange(max_len, dtype=jnp.float32)[:, None]
    div_term = jnp.exp(jnp.arange(0, dim, 2, dtype=jnp.float32)
                       * -(math.log(10000.0) / dim))
    ang = position * div_term[None, :]
    pe = jnp.zeros((max_len, dim), jnp.float32)
    pe = pe.at[:, 0::2].set(jnp.sin(ang))
    pe = pe.at[:, 1::2].set(jnp.cos(ang))
    return pe                                       # (max_len, dim)


def _w(key, shape):
    return 0.02 * jax.random.normal(key, shape, jnp.float32)


def init_layer(key, d, dff):
    ks = jax.random.split(key, 6)
    wq, wk, wv, wo = (_w(ks[0], (d, d)), _w(ks[1], (d, d)),
                      _w(ks[2], (d, d)), _w(ks[3], (d, d)))
    return dict(
        wqkv=jnp.concatenate([wq, wk, wv], axis=1),           # fused (d, 3d)
        bqkv=jnp.zeros((1, 3 * d), jnp.float32),
        wo=wo, bo=jnp.zeros((1, d), jnp.float32),
        ln1_g=jnp.ones((1, d), jnp.float32), ln1_b=jnp.zeros((1, d), jnp.float32),
        w1=_w(ks[4], (d, dff)), b1=jnp.zeros((1, dff), jnp.float32),
        w2=_w(ks[5], (dff, d)), b2=jnp.zeros((1, d), jnp.float32),
        ln2_g=jnp.ones((1, d), jnp.float32), ln2_b=jnp.zeros((1, d), jnp.float32),
    )


def init_encoder(key, n_layers, d, dff, n_position):
    ks = jax.random.split(key, n_layers)
    return dict(
        pe=sinusoidal_pe(n_position, d),
        layers=[init_layer(ks[i], d, dff) for i in range(n_layers)],
        ln_g=jnp.ones((1, d), jnp.float32),
        ln_b=jnp.zeros((1, d), jnp.float32),
    )


def init_mlm(key):
    ks = jax.random.split(key, 6)
    return dict(
        enc_mask=init_encoder(ks[0], 2, D, D_FF, N_POS),
        enc_wcl=init_encoder(ks[1], 1, D, D_FF, N_POS),
        pos_embedding=_w(ks[2], (MAX_TEXT, D)),               # nn.Embedding table
        w0_w=_w(ks[3], (N_POS, 1)),                           # nn.Linear(1, n_position)
        w0_b=jnp.zeros((N_POS, 1), jnp.float32),
        wv_w=_w(ks[4], (D, D)), wv_b=jnp.zeros((1, D), jnp.float32),
        we_w=_w(ks[5], (1, D)), we_b=jnp.zeros((1, 1), jnp.float32),
    )


# ------------------------------------- main -------------------------------------
if __name__ == "__main__":
    key = jax.random.PRNGKey(0)
    kp, kx, kl = jax.random.split(key, 3)

    params = init_mlm(kp)
    x = jax.random.normal(kx, (B, N_POS, D), jnp.float32)            # MLM input
    label_pos = jax.random.randint(kl, (B,), 0, MAX_TEXT, jnp.int32)  # position ids

    fwd = jax.jit(mlm_forward)
    f_res, f_sub, att_map_sub = fwd(params, x, label_pos)
    jax.block_until_ready((f_res, f_sub, att_map_sub))

    assert f_res.shape == (B, N_POS, D)
    assert f_sub.shape == (B, N_POS, D)
    assert att_map_sub.shape == (B, 1, N_POS)
    print("KERNEL_OK")
</pallas_src>

<mosaic_0001>
module attributes {stable_mosaic.version = 11 : i64} {
  func.func @_mlm_fused_kernel(%arg0: memref<2xi32, #tpu.memory_space<smem>>, %arg1: memref<32x32xf32, #tpu.memory_space<vmem>>, %arg2: memref<16x32xf32, #tpu.memory_space<vmem>>, %arg3: memref<32x96xf32, #tpu.memory_space<vmem>>, %arg4: memref<1x96xf32, #tpu.memory_space<vmem>>, %arg5: memref<32x32xf32, #tpu.memory_space<vmem>>, %arg6: memref<1x32xf32, #tpu.memory_space<vmem>>, %arg7: memref<1x32xf32, #tpu.memory_space<vmem>>, %arg8: memref<1x32xf32, #tpu.memory_space<vmem>>, %arg9: memref<32x64xf32, #tpu.memory_space<vmem>>, %arg10: memref<1x64xf32, #tpu.memory_space<vmem>>, %arg11: memref<64x32xf32, #tpu.memory_space<vmem>>, %arg12: memref<1x32xf32, #tpu.memory_space<vmem>>, %arg13: memref<1x32xf32, #tpu.memory_space<vmem>>, %arg14: memref<1x32xf32, #tpu.memory_space<vmem>>, %arg15: memref<32x96xf32, #tpu.memory_space<vmem>>, %arg16: memref<1x96xf32, #tpu.memory_space<vmem>>, %arg17: memref<32x32xf32, #tpu.memory_space<vmem>>, %arg18: memref<1x32xf32, #tpu.memory_space<vmem>>, %arg19: memref<1x32xf32, #tpu.memory_space<vmem>>, %arg20: memref<1x32xf32, #tpu.memory_space<vmem>>, %arg21: memref<32x64xf32, #tpu.memory_space<vmem>>, %arg22: memref<1x64xf32, #tpu.memory_space<vmem>>, %arg23: memref<64x32xf32, #tpu.memory_space<vmem>>, %arg24: memref<1x32xf32, #tpu.memory_space<vmem>>, %arg25: memref<1x32xf32, #tpu.memory_space<vmem>>, %arg26: memref<1x32xf32, #tpu.memory_space<vmem>>, %arg27: memref<1x32xf32, #tpu.memory_space<vmem>>, %arg28: memref<1x32xf32, #tpu.memory_space<vmem>>, %arg29: memref<25x32xf32, #tpu.memory_space<vmem>>, %arg30: memref<16x1xf32, #tpu.memory_space<vmem>>, %arg31: memref<16x1xf32, #tpu.memory_space<vmem>>, %arg32: memref<32x32xf32, #tpu.memory_space<vmem>>, %arg33: memref<1x32xf32, #tpu.memory_space<vmem>>, %arg34: memref<1x32xf32, #tpu.memory_space<vmem>>, %arg35: memref<1x1xf32, #tpu.memory_space<vmem>>, %arg36: memref<16x32xf32, #tpu.memory_space<vmem>>, %arg37: memref<32x96xf32, #tpu.memory_space<vmem>>, %arg38: memref<1x96xf32, #tpu.memory_space<vmem>>, %arg39: memref<32x32xf32, #tpu.memory_space<vmem>>, %arg40: memref<1x32xf32, #tpu.memory_space<vmem>>, %arg41: memref<1x32xf32, #tpu.memory_space<vmem>>, %arg42: memref<1x32xf32, #tpu.memory_space<vmem>>, %arg43: memref<32x64xf32, #tpu.memory_space<vmem>>, %arg44: memref<1x64xf32, #tpu.memory_space<vmem>>, %arg45: memref<64x32xf32, #tpu.memory_space<vmem>>, %arg46: memref<1x32xf32, #tpu.memory_space<vmem>>, %arg47: memref<1x32xf32, #tpu.memory_space<vmem>>, %arg48: memref<1x32xf32, #tpu.memory_space<vmem>>, %arg49: memref<1x32xf32, #tpu.memory_space<vmem>>, %arg50: memref<1x32xf32, #tpu.memory_space<vmem>>, %arg51: memref<64x32xf32, #tpu.memory_space<vmem>>, %arg52: memref<32x1xf32, #tpu.memory_space<vmem>>) attributes {dimension_semantics = [], scalar_prefetch = 0 : i64, scratch_operands = 0 : i64, tpu.core_type = #tpu.core_type<tc>} {
    %c0 = arith.constant 0 : index
    %c0_0 = arith.constant 0 : index
    %0 = vector.load %arg1[%c0, %c0_0] : memref<32x32xf32, #tpu.memory_space<vmem>>, vector<32x32xf32>
    %c0_1 = arith.constant 0 : index
    %c0_2 = arith.constant 0 : index
    %1 = vector.load %arg2[%c0_1, %c0_2] : memref<16x32xf32, #tpu.memory_space<vmem>>, vector<16x32xf32>
    %2 = tpu.concatenate %1, %1 in 0 : vector<16x32xf32>, vector<16x32xf32> -> vector<32x32xf32>
    %3 = arith.addf %0, %2 : vector<32x32xf32>
    %c0_3 = arith.constant 0 : index
    %c0_4 = arith.constant 0 : index
    %4 = vector.load %arg3[%c0_3, %c0_4] : memref<32x96xf32, #tpu.memory_space<vmem>>, vector<32x96xf32>
    %c0_5 = arith.constant 0 : index
    %c0_6 = arith.constant 0 : index
    %5 = vector.load %arg4[%c0_5, %c0_6] : memref<1x96xf32, #tpu.memory_space<vmem>>, vector<1x96xf32>
    %c0_7 = arith.constant 0 : index
    %c0_8 = arith.constant 0 : index
    %6 = vector.load %arg5[%c0_7, %c0_8] : memref<32x32xf32, #tpu.memory_space<vmem>>, vector<32x32xf32>
    %c0_9 = arith.constant 0 : index
    %c0_10 = arith.constant 0 : index
    %7 = vector.load %arg6[%c0_9, %c0_10] : memref<1x32xf32, #tpu.memory_space<vmem>>, vector<1x32xf32>
    %c0_11 = arith.constant 0 : index
    %c0_12 = arith.constant 0 : index
    %8 = vector.load %arg7[%c0_11, %c0_12] : memref<1x32xf32, #tpu.memory_space<vmem>>, vector<1x32xf32>
    %c0_13 = arith.constant 0 : index
    %c0_14 = arith.constant 0 : index
    %9 = vector.load %arg8[%c0_13, %c0_14] : memref<1x32xf32, #tpu.memory_space<vmem>>, vector<1x32xf32>
    %c0_15 = arith.constant 0 : index
    %c0_16 = arith.constant 0 : index
    %10 = vector.load %arg9[%c0_15, %c0_16] : memref<32x64xf32, #tpu.memory_space<vmem>>, vector<32x64xf32>
    %c0_17 = arith.constant 0 : index
    %c0_18 = arith.constant 0 : index
    %11 = vector.load %arg10[%c0_17, %c0_18] : memref<1x64xf32, #tpu.memory_space<vmem>>, vector<1x64xf32>
    %c0_19 = arith.constant 0 : index
    %c0_20 = arith.constant 0 : index
    %12 = vector.load %arg11[%c0_19, %c0_20] : memref<64x32xf32, #tpu.memory_space<vmem>>, vector<64x32xf32>
    %c0_21 = arith.constant 0 : index
    %c0_22 = arith.constant 0 : index
    %13 = vector.load %arg12[%c0_21, %c0_22] : memref<1x32xf32, #tpu.memory_space<vmem>>, vector<1x32xf32>
    %c0_23 = arith.constant 0 : index
    %c0_24 = arith.constant 0 : index
    %14 = vector.load %arg13[%c0_23, %c0_24] : memref<1x32xf32, #tpu.memory_space<vmem>>, vector<1x32xf32>
    %c0_25 = arith.constant 0 : index
    %c0_26 = arith.constant 0 : index
    %15 = vector.load %arg14[%c0_25, %c0_26] : memref<1x32xf32, #tpu.memory_space<vmem>>, vector<1x32xf32>
    %cst = arith.constant dense<0.000000e+00> : vector<32x96xf32>
    %16 = tpu.matmul %3, %4, %cst {dimension_numbers = #tpu.dot_dimension_numbers<[1], [0], [0], [1], [0, 0, 1, 1], [], []>} : vector<32x32xf32>, vector<32x96xf32>, vector<32x96xf32> -> vector<32x96xf32>
    %17 = vector.broadcast %5 : vector<1x96xf32> to vector<32x96xf32>
    %18 = arith.addf %16, %17 : vector<32x96xf32>
    %19 = vector.extract_strided_slice %18 {offsets = [0, 0], sizes = [16, 8], strides = [1, 1]} : vector<32x96xf32> to vector<16x8xf32>
    %20 = vector.extract_strided_slice %18 {offsets = [0, 32], sizes = [16, 8], strides = [1, 1]} : vector<32x96xf32> to vector<16x8xf32>
    %21 = vector.extract_strided_slice %18 {offsets = [0, 64], sizes = [16, 8], strides = [1, 1]} : vector<32x96xf32> to vector<16x8xf32>
    %cst_27 = arith.constant dense<0.000000e+00> : vector<16x16xf32>
    %22 = tpu.matmul %19, %20, %cst_27 {dimension_numbers = #tpu.dot_dimension_numbers<[1], [1], [0], [0], [0, 0, 1, 0], [], []>} : vector<16x8xf32>, vector<16x8xf32>, vector<16x16xf32> -> vector<16x16xf32>
    %cst_28 = arith.constant 0.353553385 : f32
    %23 = vector.broadcast %cst_28 : f32 to vector<16x16xf32>
    %24 = arith.mulf %22, %23 : vector<16x16xf32>
    %cst_29 = arith.constant dense<0xFF800000> : vector<16xf32>
    %25 = vector.multi_reduction <maximumf>, %24, %cst_29 [1] : vector<16x16xf32> to vector<16xf32>
    %26 = vector.shape_cast %25 : vector<16xf32> to vector<16x1xf32>
    %27 = vector.broadcast %26 : vector<16x1xf32> to vector<16x16xf32>
    %28 = arith.subf %24, %27 : vector<16x16xf32>
    %29 = math.exp %28 : vector<16x16xf32>
    %cst_30 = arith.constant dense<0.000000e+00> : vector<16xf32>
    %30 = vector.multi_reduction <add>, %29, %cst_30 [1] : vector<16x16xf32> to vector<16xf32>
    %31 = vector.shape_cast %30 : vector<16xf32> to vector<16x1xf32>
    %32 = tpu.reciprocal %31 {approx = true} : vector<16x1xf32> -> vector<16x1xf32>
    %33 = vector.broadcast %32 : vector<16x1xf32> to vector<16x16xf32>
    %34 = arith.mulf %29, %33 : vector<16x16xf32>
    %cst_31 = arith.constant dense<0.000000e+00> : vector<16x8xf32>
    %35 = tpu.matmul %34, %21, %cst_31 {dimension_numbers = #tpu.dot_dimension_numbers<[1], [0], [0], [1], [0, 0, 1, 1], [], []>} : vector<16x16xf32>, vector<16x8xf32>, vector<16x8xf32> -> vector<16x8xf32>
    %36 = vector.extract_strided_slice %18 {offsets = [0, 8], sizes = [16, 8], strides = [1, 1]} : vector<32x96xf32> to vector<16x8xf32>
    %37 = vector.extract_strided_slice %18 {offsets = [0, 40], sizes = [16, 8], strides = [1, 1]} : vector<32x96xf32> to vector<16x8xf32>
    %38 = vector.extract_strided_slice %18 {offsets = [0, 72], sizes = [16, 8], strides = [1, 1]} : vector<32x96xf32> to vector<16x8xf32>
    %cst_32 = arith.constant dense<0.000000e+00> : vector<16x16xf32>
    %39 = tpu.matmul %36, %37, %cst_32 {dimension_numbers = #tpu.dot_dimension_numbers<[1], [1], [0], [0], [0, 0, 1, 0], [], []>} : vector<16x8xf32>, vector<16x8xf32>, vector<16x16xf32> -> vector<16x16xf32>
    %cst_33 = arith.constant 0.353553385 : f32
    %40 = vector.broadcast %cst_33 : f32 to vector<16x16xf32>
    %41 = arith.mulf %39, %40 : vector<16x16xf32>
    %cst_34 = arith.constant dense<0xFF800000> : vector<16xf32>
    %42 = vector.multi_reduction <maximumf>, %41, %cst_34 [1] : vector<16x16xf32> to vector<16xf32>
    %43 = vector.shape_cast %42 : vector<16xf32> to vector<16x1xf32>
    %44 = vector.broadcast %43 : vector<16x1xf32> to vector<16x16xf32>
    %45 = arith.subf %41, %44 : vector<16x16xf32>
    %46 = math.exp %45 : vector<16x16xf32>
    %cst_35 = arith.constant dense<0.000000e+00> : vector<16xf32>
    %47 = vector.multi_reduction <add>, %46, %cst_35 [1] : vector<16x16xf32> to vector<16xf32>
    %48 = vector.shape_cast %47 : vector<16xf32> to vector<16x1xf32>
    %49 = tpu.reciprocal %48 {approx = true} : vector<16x1xf32> -> vector<16x1xf32>
    %50 = vector.broadcast %49 : vector<16x1xf32> to vector<16x16xf32>
    %51 = arith.mulf %46, %50 : vector<16x16xf32>
    %cst_36 = arith.constant dense<0.000000e+00> : vector<16x8xf32>
    %52 = tpu.matmul %51, %38, %cst_36 {dimension_numbers = #tpu.dot_dimension_numbers<[1], [0], [0], [1], [0, 0, 1, 1], [], []>} : vector<16x16xf32>, vector<16x8xf32>, vector<16x8xf32> -> vector<16x8xf32>
    %53 = vector.extract_strided_slice %18 {offsets = [0, 16], sizes = [16, 8], strides = [1, 1]} : vector<32x96xf32> to vector<16x8xf32>
    %54 = vector.extract_strided_slice %18 {offsets = [0, 48], sizes = [16, 8], strides = [1, 1]} : vector<32x96xf32> to vector<16x8xf32>
    %55 = vector.extract_strided_slice %18 {offsets = [0, 80], sizes = [16, 8], strides = [1, 1]} : vector<32x96xf32> to vector<16x8xf32>
    %cst_37 = arith.constant dense<0.000000e+00> : vector<16x16xf32>
    %56 = tpu.matmul %53, %54, %cst_37 {dimension_numbers = #tpu.dot_dimension_numbers<[1], [1], [0], [0], [0, 0, 1, 0], [], []>} : vector<16x8xf32>, vector<16x8xf32>, vector<16x16xf32> -> vector<16x16xf32>
    %cst_38 = arith.constant 0.353553385 : f32
    %57 = vector.broadcast %cst_38 : f32 to vector<16x16xf32>
    %58 = arith.mulf %56, %57 : vector<16x16xf32>
    %cst_39 = arith.constant dense<0xFF800000> : vector<16xf32>
    %59 = vector.multi_reduction <maximumf>, %58, %cst_39 [1] : vector<16x16xf32> to vector<16xf32>
    %60 = vector.shape_cast %59 : vector<16xf32> to vector<16x1xf32>
    %61 = vector.broadcast %60 : vector<16x1xf32> to vector<16x16xf32>
    %62 = arith.subf %58, %61 : vector<16x16xf32>
    %63 = math.exp %62 : vector<16x16xf32>
    %cst_40 = arith.constant dense<0.000000e+00> : vector<16xf32>
    %64 = vector.multi_reduction <add>, %63, %cst_40 [1] : vector<16x16xf32> to vector<16xf32>
    %65 = vector.shape_cast %64 : vector<16xf32> to vector<16x1xf32>
    %66 = tpu.reciprocal %65 {approx = true} : vector<16x1xf32> -> vector<16x1xf32>
    %67 = vector.broadcast %66 : vector<16x1xf32> to vector<16x16xf32>
    %68 = arith.mulf %63, %67 : vector<16x16xf32>
    %cst_41 = arith.constant dense<0.000000e+00> : vector<16x8xf32>
    %69 = tpu.matmul %68, %55, %cst_41 {dimension_numbers = #tpu.dot_dimension_numbers<[1], [0], [0], [1], [0, 0, 1, 1], [], []>} : vector<16x16xf32>, vector<16x8xf32>, vector<16x8xf32> -> vector<16x8xf32>
    %70 = vector.extract_strided_slice %18 {offsets = [0, 24], sizes = [16, 8], strides = [1, 1]} : vector<32x96xf32> to vector<16x8xf32>
    %71 = vector.extract_strided_slice %18 {offsets = [0, 56], sizes = [16, 8], strides = [1, 1]} : vector<32x96xf32> to vector<16x8xf32>
    %72 = vector.extract_strided_slice %18 {offsets = [0, 88], sizes = [16, 8], strides = [1, 1]} : vector<32x96xf32> to vector<16x8xf32>
    %cst_42 = arith.constant dense<0.000000e+00> : vector<16x16xf32>
    %73 = tpu.matmul %70, %71, %cst_42 {dimension_numbers = #tpu.dot_dimension_numbers<[1], [1], [0], [0], [0, 0, 1, 0], [], []>} : vector<16x8xf32>, vector<16x8xf32>, vector<16x16xf32> -> vector<16x16xf32>
    %cst_43 = arith.constant 0.353553385 : f32
    %74 = vector.broadcast %cst_43 : f32 to vector<16x16xf32>
    %75 = arith.mulf %73, %74 : vector<16x16xf32>
    %cst_44 = arith.constant dense<0xFF800000> : vector<16xf32>
    %76 = vector.multi_reduction <maximumf>, %75, %cst_44 [1] : vector<16x16xf32> to vector<16xf32>
    %77 = vector.shape_cast %76 : vector<16xf32> to vector<16x1xf32>
    %78 = vector.broadcast %77 : vector<16x1xf32> to vector<16x16xf32>
    %79 = arith.subf %75, %78 : vector<16x16xf32>
    %80 = math.exp %79 : vector<16x16xf32>
    %cst_45 = arith.constant dense<0.000000e+00> : vector<16xf32>
    %81 = vector.multi_reduction <add>, %80, %cst_45 [1] : vector<16x16xf32> to vector<16xf32>
    %82 = vector.shape_cast %81 : vector<16xf32> to vector<16x1xf32>
    %83 = tpu.reciprocal %82 {approx = true} : vector<16x1xf32> -> vector<16x1xf32>
    %84 = vector.broadcast %83 : vector<16x1xf32> to vector<16x16xf32>
    %85 = arith.mulf %80, %84 : vector<16x16xf32>
    %cst_46 = arith.constant dense<0.000000e+00> : vector<16x8xf32>
    %86 = tpu.matmul %85, %72, %cst_46 {dimension_numbers = #tpu.dot_dimension_numbers<[1], [0], [0], [1], [0, 0, 1, 1], [], []>} : vector<16x16xf32>, vector<16x8xf32>, vector<16x8xf32> -> vector<16x8xf32>
    %87 = tpu.concatenate %35, %52, %69, %86 in 1 : vector<16x8xf32>, vector<16x8xf32>, vector<16x8xf32>, vector<16x8xf32> -> vector<16x32xf32>
    %88 = vector.extract_strided_slice %18 {offsets = [16, 0], sizes = [16, 8], strides = [1, 1]} : vector<32x96xf32> to vector<16x8xf32>
    %89 = vector.extract_strided_slice %18 {offsets = [16, 32], sizes = [16, 8], strides = [1, 1]} : vector<32x96xf32> to vector<16x8xf32>
    %90 = vector.extract_strided_slice %18 {offsets = [16, 64], sizes = [16, 8], strides = [1, 1]} : vector<32x96xf32> to vector<16x8xf32>
    %cst_47 = arith.constant dense<0.000000e+00> : vector<16x16xf32>
    %91 = tpu.matmul %88, %89, %cst_47 {dimension_numbers = #tpu.dot_dimension_numbers<[1], [1], [0], [0], [0, 0, 1, 0], [], []>} : vector<16x8xf32>, vector<16x8xf32>, vector<16x16xf32> -> vector<16x16xf32>
    %cst_48 = arith.constant 0.353553385 : f32
    %92 = vector.broadcast %cst_48 : f32 to vector<16x16xf32>
    %93 = arith.mulf %91, %92 : vector<16x16xf32>
    %cst_49 = arith.constant dense<0xFF800000> : vector<16xf32>
    %94 = vector.multi_reduction <maximumf>, %93, %cst_49 [1] : vector<16x16xf32> to vector<16xf32>
    %95 = vector.shape_cast %94 : vector<16xf32> to vector<16x1xf32>
    %96 = vector.broadcast %95 : vector<16x1xf32> to vector<16x16xf32>
    %97 = arith.subf %93, %96 : vector<16x16xf32>
    %98 = math.exp %97 : vector<16x16xf32>
    %cst_50 = arith.constant dense<0.000000e+00> : vector<16xf32>
    %99 = vector.multi_reduction <add>, %98, %cst_50 [1] : vector<16x16xf32> to vector<16xf32>
    %100 = vector.shape_cast %99 : vector<16xf32> to vector<16x1xf32>
    %101 = tpu.reciprocal %100 {approx = true} : vector<16x1xf32> -> vector<16x1xf32>
    %102 = vector.broadcast %101 : vector<16x1xf32> to vector<16x16xf32>
    %103 = arith.mulf %98, %102 : vector<16x16xf32>
    %cst_51 = arith.constant dense<0.000000e+00> : vector<16x8xf32>
    %104 = tpu.matmul %103, %90, %cst_51 {dimension_numbers = #tpu.dot_dimension_numbers<[1], [0], [0], [1], [0, 0, 1, 1], [], []>} : vector<16x16xf32>, vector<16x8xf32>, vector<16x8xf32> -> vector<16x8xf32>
    %105 = vector.extract_strided_slice %18 {offsets = [16, 8], sizes = [16, 8], strides = [1, 1]} : vector<32x96xf32> to vector<16x8xf32>
    %106 = vector.extract_strided_slice %18 {offsets = [16, 40], sizes = [16, 8], strides = [1, 1]} : vector<32x96xf32> to vector<16x8xf32>
    %107 = vector.extract_strided_slice %18 {offsets = [16, 72], sizes = [16, 8], strides = [1, 1]} : vector<32x96xf32> to vector<16x8xf32>
    %cst_52 = arith.constant dense<0.000000e+00> : vector<16x16xf32>
    %108 = tpu.matmul %105, %106, %cst_52 {dimension_numbers = #tpu.dot_dimension_numbers<[1], [1], [0], [0], [0, 0, 1, 0], [], []>} : vector<16x8xf32>, vector<16x8xf32>, vector<16x16xf32> -> vector<16x16xf32>
    %cst_53 = arith.constant 0.353553385 : f32
    %109 = vector.broadcast %cst_53 : f32 to vector<16x16xf32>
    %110 = arith.mulf %108, %109 : vector<16x16xf32>
    %cst_54 = arith.constant dense<0xFF800000> : vector<16xf32>
    %111 = vector.multi_reduction <maximumf>, %110, %cst_54 [1] : vector<16x16xf32> to vector<16xf32>
    %112 = vector.shape_cast %111 : vector<16xf32> to vector<16x1xf32>
    %113 = vector.broadcast %112 : vector<16x1xf32> to vector<16x16xf32>
    %114 = arith.subf %110, %113 : vector<16x16xf32>
    %115 = math.exp %114 : vector<16x16xf32>
    %cst_55 = arith.constant dense<0.000000e+00> : vector<16xf32>
    %116 = vector.multi_reduction <add>, %115, %cst_55 [1] : vector<16x16xf32> to vector<16xf32>
    %117 = vector.shape_cast %116 : vector<16xf32> to vector<16x1xf32>
    %118 = tpu.reciprocal %117 {approx = true} : vector<16x1xf32> -> vector<16x1xf32>
    %119 = vector.broadcast %118 : vector<16x1xf32> to vector<16x16xf32>
    %120 = arith.mulf %115, %119 : vector<16x16xf32>
    %cst_56 = arith.constant dense<0.000000e+00> : vector<16x8xf32>
    %121 = tpu.matmul %120, %107, %cst_56 {dimension_numbers = #tpu.dot_dimension_numbers<[1], [0], [0], [1], [0, 0, 1, 1], [], []>} : vector<16x16xf32>, vector<16x8xf32>, vector<16x8xf32> -> vector<16x8xf32>
    %122 = vector.extract_strided_slice %18 {offsets = [16, 16], sizes = [16, 8], strides = [1, 1]} : vector<32x96xf32> to vector<16x8xf32>
    %123 = vector.extract_strided_slice %18 {offsets = [16, 48], sizes = [16, 8], strides = [1, 1]} : vector<32x96xf32> to vector<16x8xf32>
    %124 = vector.extract_strided_slice %18 {offsets = [16, 80], sizes = [16, 8], strides = [1, 1]} : vector<32x96xf32> to vector<16x8xf32>
    %cst_57 = arith.constant dense<0.000000e+00> : vector<16x16xf32>
    %125 = tpu.matmul %122, %123, %cst_57 {dimension_numbers = #tpu.dot_dimension_numbers<[1], [1], [0], [0], [0, 0, 1, 0], [], []>} : vector<16x8xf32>, vector<16x8xf32>, vector<16x16xf32> -> vector<16x16xf32>
    %cst_58 = arith.constant 0.353553385 : f32
    %126 = vector.broadcast %cst_58 : f32 to vector<16x16xf32>
    %127 = arith.mulf %125, %126 : vector<16x16xf32>
    %cst_59 = arith.constant dense<0xFF800000> : vector<16xf32>
    %128 = vector.multi_reduction <maximumf>, %127, %cst_59 [1] : vector<16x16xf32> to vector<16xf32>
    %129 = vector.shape_cast %128 : vector<16xf32> to vector<16x1xf32>
    %130 = vector.broadcast %129 : vector<16x1xf32> to vector<16x16xf32>
    %131 = arith.subf %127, %130 : vector<16x16xf32>
    %132 = math.exp %131 : vector<16x16xf32>
    %cst_60 = arith.constant dense<0.000000e+00> : vector<16xf32>
    %133 = vector.multi_reduction <add>, %132, %cst_60 [1] : vector<16x16xf32> to vector<16xf32>
    %134 = vector.shape_cast %133 : vector<16xf32> to vector<16x1xf32>
    %135 = tpu.reciprocal %134 {approx = true} : vector<16x1xf32> -> vector<16x1xf32>
    %136 = vector.broadcast %135 : vector<16x1xf32> to vector<16x16xf32>
    %137 = arith.mulf %132, %136 : vector<16x16xf32>
    %cst_61 = arith.constant dense<0.000000e+00> : vector<16x8xf32>
    %138 = tpu.matmul %137, %124, %cst_61 {dimension_numbers = #tpu.dot_dimension_numbers<[1], [0], [0], [1], [0, 0, 1, 1], [], []>} : vector<16x16xf32>, vector<16x8xf32>, vector<16x8xf32> -> vector<16x8xf32>
    %139 = vector.extract_strided_slice %18 {offsets = [16, 24], sizes = [16, 8], strides = [1, 1]} : vector<32x96xf32> to vector<16x8xf32>
    %140 = vector.extract_strided_slice %18 {offsets = [16, 56], sizes = [16, 8], strides = [1, 1]} : vector<32x96xf32> to vector<16x8xf32>
    %141 = vector.extract_strided_slice %18 {offsets = [16, 88], sizes = [16, 8], strides = [1, 1]} : vector<32x96xf32> to vector<16x8xf32>
    %cst_62 = arith.constant dense<0.000000e+00> : vector<16x16xf32>
    %142 = tpu.matmul %139, %140, %cst_62 {dimension_numbers = #tpu.dot_dimension_numbers<[1], [1], [0], [0], [0, 0, 1, 0], [], []>} : vector<16x8xf32>, vector<16x8xf32>, vector<16x16xf32> -> vector<16x16xf32>
    %cst_63 = arith.constant 0.353553385 : f32
    %143 = vector.broadcast %cst_63 : f32 to vector<16x16xf32>
    %144 = arith.mulf %142, %143 : vector<16x16xf32>
    %cst_64 = arith.constant dense<0xFF800000> : vector<16xf32>
    %145 = vector.multi_reduction <maximumf>, %144, %cst_64 [1] : vector<16x16xf32> to vector<16xf32>
    %146 = vector.shape_cast %145 : vector<16xf32> to vector<16x1xf32>
    %147 = vector.broadcast %146 : vector<16x1xf32> to vector<16x16xf32>
    %148 = arith.subf %144, %147 : vector<16x16xf32>
    %149 = math.exp %148 : vector<16x16xf32>
    %cst_65 = arith.constant dense<0.000000e+00> : vector<16xf32>
    %150 = vector.multi_reduction <add>, %149, %cst_65 [1] : vector<16x16xf32> to vector<16xf32>
    %151 = vector.shape_cast %150 : vector<16xf32> to vector<16x1xf32>
    %152 = tpu.reciprocal %151 {approx = true} : vector<16x1xf32> -> vector<16x1xf32>
    %153 = vector.broadcast %152 : vector<16x1xf32> to vector<16x16xf32>
    %154 = arith.mulf %149, %153 : vector<16x16xf32>
    %cst_66 = arith.constant dense<0.000000e+00> : vector<16x8xf32>
    %155 = tpu.matmul %154, %141, %cst_66 {dimension_numbers = #tpu.dot_dimension_numbers<[1], [0], [0], [1], [0, 0, 1, 1], [], []>} : vector<16x16xf32>, vector<16x8xf32>, vector<16x8xf32> -> vector<16x8xf32>
    %156 = tpu.concatenate %104, %121, %138, %155 in 1 : vector<16x8xf32>, vector<16x8xf32>, vector<16x8xf32>, vector<16x8xf32> -> vector<16x32xf32>
    %157 = tpu.concatenate %87, %156 in 0 : vector<16x32xf32>, vector<16x32xf32> -> vector<32x32xf32>
    %cst_67 = arith.constant dense<0.000000e+00> : vector<32x32xf32>
    %158 = tpu.matmul %157, %6, %cst_67 {dimension_numbers = #tpu.dot_dimension_numbers<[1], [0], [0], [1], [0, 0, 1, 1], [], []>} : vector<32x32xf32>, vector<32x32xf32>, vector<32x32xf32> -> vector<32x32xf32>
    %159 = vector.broadcast %7 : vector<1x32xf32> to vector<32x32xf32>
    %160 = arith.addf %158, %159 : vector<32x32xf32>
    %161 = arith.addf %160, %3 : vector<32x32xf32>
    %cst_68 = arith.constant dense<0.000000e+00> : vector<32xf32>
    %162 = vector.multi_reduction <add>, %161, %cst_68 [1] : vector<32x32xf32> to vector<32xf32>
    %163 = vector.shape_cast %162 : vector<32xf32> to vector<32x1xf32>
    %cst_69 = arith.constant 3.200000e+01 : f32
    %164 = vector.broadcast %cst_69 : f32 to vector<32x1xf32>
    %165 = arith.divf %163, %164 : vector<32x1xf32>
    %166 = vector.broadcast %165 : vector<32x1xf32> to vector<32x32xf32>
    %167 = arith.subf %161, %166 : vector<32x32xf32>
    %168 = arith.mulf %167, %167 : vector<32x32xf32>
    %cst_70 = arith.constant dense<0.000000e+00> : vector<32xf32>
    %169 = vector.multi_reduction <add>, %168, %cst_70 [1] : vector<32x32xf32> to vector<32xf32>
    %170 = vector.shape_cast %169 : vector<32xf32> to vector<32x1xf32>
    %cst_71 = arith.constant 3.200000e+01 : f32
    %171 = vector.broadcast %cst_71 : f32 to vector<32x1xf32>
    %172 = arith.divf %170, %171 : vector<32x1xf32>
    %cst_72 = arith.constant 9.99999974E-6 : f32
    %173 = vector.broadcast %cst_72 : f32 to vector<32x1xf32>
    %174 = arith.addf %172, %173 : vector<32x1xf32>
    %175 = math.rsqrt %174 : vector<32x1xf32>
    %176 = vector.broadcast %175 : vector<32x1xf32> to vector<32x32xf32>
    %177 = arith.mulf %167, %176 : vector<32x32xf32>
    %178 = vector.broadcast %8 : vector<1x32xf32> to vector<32x32xf32>
    %179 = arith.mulf %177, %178 : vector<32x32xf32>
    %180 = vector.broadcast %9 : vector<1x32xf32> to vector<32x32xf32>
    %181 = arith.addf %179, %180 : vector<32x32xf32>
    %cst_73 = arith.constant dense<0.000000e+00> : vector<32x64xf32>
    %182 = tpu.matmul %181, %10, %cst_73 {dimension_numbers = #tpu.dot_dimension_numbers<[1], [0], [0], [1], [0, 0, 1, 1], [], []>} : vector<32x32xf32>, vector<32x64xf32>, vector<32x64xf32> -> vector<32x64xf32>
    %183 = vector.broadcast %11 : vector<1x64xf32> to vector<32x64xf32>
    %184 = arith.addf %182, %183 : vector<32x64xf32>
    %cst_74 = arith.constant 0.000000e+00 : f32
    %185 = vector.broadcast %cst_74 : f32 to vector<32x64xf32>
    %186 = arith.maximumf %184, %185 : vector<32x64xf32>
    %cst_75 = arith.constant dense<0.000000e+00> : vector<32x32xf32>
    %187 = tpu.matmul %186, %12, %cst_75 {dimension_numbers = #tpu.dot_dimension_numbers<[1], [0], [0], [1], [0, 0, 1, 1], [], []>} : vector<32x64xf32>, vector<64x32xf32>, vector<32x32xf32> -> vector<32x32xf32>
    %188 = vector.broadcast %13 : vector<1x32xf32> to vector<32x32xf32>
    %189 = arith.addf %187, %188 : vector<32x32xf32>
    %190 = arith.addf %189, %181 : vector<32x32xf32>
    %cst_76 = arith.constant dense<0.000000e+00> : vector<32xf32>
    %191 = vector.multi_reduction <add>, %190, %cst_76 [1] : vector<32x32xf32> to vector<32xf32>
    %192 = vector.shape_cast %191 : vector<32xf32> to vector<32x1xf32>
    %cst_77 = arith.constant 3.200000e+01 : f32
    %193 = vector.broadcast %cst_77 : f32 to vector<32x1xf32>
    %194 = arith.divf %192, %193 : vector<32x1xf32>
    %195 = vector.broadcast %194 : vector<32x1xf32> to vector<32x32xf32>
    %196 = arith.subf %190, %195 : vector<32x32xf32>
    %197 = arith.mulf %196, %196 : vector<32x32xf32>
    %cst_78 = arith.constant dense<0.000000e+00> : vector<32xf32>
    %198 = vector.multi_reduction <add>, %197, %cst_78 [1] : vector<32x32xf32> to vector<32xf32>
    %199 = vector.shape_cast %198 : vector<32xf32> to vector<32x1xf32>
    %cst_79 = arith.constant 3.200000e+01 : f32
    %200 = vector.broadcast %cst_79 : f32 to vector<32x1xf32>
    %201 = arith.divf %199, %200 : vector<32x1xf32>
    %cst_80 = arith.constant 9.99999974E-6 : f32
    %202 = vector.broadcast %cst_80 : f32 to vector<32x1xf32>
    %203 = arith.addf %201, %202 : vector<32x1xf32>
    %204 = math.rsqrt %203 : vector<32x1xf32>
    %205 = vector.broadcast %204 : vector<32x1xf32> to vector<32x32xf32>
    %206 = arith.mulf %196, %205 : vector<32x32xf32>
    %207 = vector.broadcast %14 : vector<1x32xf32> to vector<32x32xf32>
    %208 = arith.mulf %206, %207 : vector<32x32xf32>
    %209 = vector.broadcast %15 : vector<1x32xf32> to vector<32x32xf32>
    %210 = arith.addf %208, %209 : vector<32x32xf32>
    %c0_81 = arith.constant 0 : index
    %c0_82 = arith.constant 0 : index
    %211 = vector.load %arg15[%c0_81, %c0_82] : memref<32x96xf32, #tpu.memory_space<vmem>>, vector<32x96xf32>
    %c0_83 = arith.constant 0 : index
    %c0_84 = arith.constant 0 : index
    %212 = vector.load %arg16[%c0_83, %c0_84] : memref<1x96xf32, #tpu.memory_space<vmem>>, vector<1x96xf32>
    %c0_85 = arith.constant 0 : index
    %c0_86 = arith.constant 0 : index
    %213 = vector.load %arg17[%c0_85, %c0_86] : memref<32x32xf32, #tpu.memory_space<vmem>>, vector<32x32xf32>
    %c0_87 = arith.constant 0 : index
    %c0_88 = arith.constant 0 : index
    %214 = vector.load %arg18[%c0_87, %c0_88] : memref<1x32xf32, #tpu.memory_space<vmem>>, vector<1x32xf32>
    %c0_89 = arith.constant 0 : index
    %c0_90 = arith.constant 0 : index
    %215 = vector.load %arg19[%c0_89, %c0_90] : memref<1x32xf32, #tpu.memory_space<vmem>>, vector<1x32xf32>
    %c0_91 = arith.constant 0 : index
    %c0_92 = arith.constant 0 : index
    %216 = vector.load %arg20[%c0_91, %c0_92] : memref<1x32xf32, #tpu.memory_space<vmem>>, vector<1x32xf32>
    %c0_93 = arith.constant 0 : index
    %c0_94 = arith.constant 0 : index
    %217 = vector.load %arg21[%c0_93, %c0_94] : memref<32x64xf32, #tpu.memory_space<vmem>>, vector<32x64xf32>
    %c0_95 = arith.constant 0 : index
    %c0_96 = arith.constant 0 : index
    %218 = vector.load %arg22[%c0_95, %c0_96] : memref<1x64xf32, #tpu.memory_space<vmem>>, vector<1x64xf32>
    %c0_97 = arith.constant 0 : index
    %c0_98 = arith.constant 0 : index
    %219 = vector.load %arg23[%c0_97, %c0_98] : memref<64x32xf32, #tpu.memory_space<vmem>>, vector<64x32xf32>
    %c0_99 = arith.constant 0 : index
    %c0_100 = arith.constant 0 : index
    %220 = vector.load %arg24[%c0_99, %c0_100] : memref<1x32xf32, #tpu.memory_space<vmem>>, vector<1x32xf32>
    %c0_101 = arith.constant 0 : index
    %c0_102 = arith.constant 0 : index
    %221 = vector.load %arg25[%c0_101, %c0_102] : memref<1x32xf32, #tpu.memory_space<vmem>>, vector<1x32xf32>
    %c0_103 = arith.constant 0 : index
    %c0_104 = arith.constant 0 : index
    %222 = vector.load %arg26[%c0_103, %c0_104] : memref<1x32xf32, #tpu.memory_space<vmem>>, vector<1x32xf32>
    %cst_105 = arith.constant dense<0.000000e+00> : vector<32x96xf32>
    %223 = tpu.matmul %210, %211, %cst_105 {dimension_numbers = #tpu.dot_dimension_numbers<[1], [0], [0], [1], [0, 0, 1, 1], [], []>} : vector<32x32xf32>, vector<32x96xf32>, vector<32x96xf32> -> vector<32x96xf32>
    %224 = vector.broadcast %212 : vector<1x96xf32> to vector<32x96xf32>
    %225 = arith.addf %223, %224 : vector<32x96xf32>
    %226 = vector.extract_strided_slice %225 {offsets = [0, 0], sizes = [16, 8], strides = [1, 1]} : vector<32x96xf32> to vector<16x8xf32>
    %227 = vector.extract_strided_slice %225 {offsets = [0, 32], sizes = [16, 8], strides = [1, 1]} : vector<32x96xf32> to vector<16x8xf32>
    %228 = vector.extract_strided_slice %225 {offsets = [0, 64], sizes = [16, 8], strides = [1, 1]} : vector<32x96xf32> to vector<16x8xf32>
    %cst_106 = arith.constant dense<0.000000e+00> : vector<16x16xf32>
    %229 = tpu.matmul %226, %227, %cst_106 {dimension_numbers = #tpu.dot_dimension_numbers<[1], [1], [0], [0], [0, 0, 1, 0], [], []>} : vector<16x8xf32>, vector<16x8xf32>, vector<16x16xf32> -> vector<16x16xf32>
    %cst_107 = arith.constant 0.353553385 : f32
    %230 = vector.broadcast %cst_107 : f32 to vector<16x16xf32>
    %231 = arith.mulf %229, %230 : vector<16x16xf32>
    %cst_108 = arith.constant dense<0xFF800000> : vector<16xf32>
    %232 = vector.multi_reduction <maximumf>, %231, %cst_108 [1] : vector<16x16xf32> to vector<16xf32>
    %233 = vector.shape_cast %232 : vector<16xf32> to vector<16x1xf32>
    %234 = vector.broadcast %233 : vector<16x1xf32> to vector<16x16xf32>
    %235 = arith.subf %231, %234 : vector<16x16xf32>
    %236 = math.exp %235 : vector<16x16xf32>
    %cst_109 = arith.constant dense<0.000000e+00> : vector<16xf32>
    %237 = vector.multi_reduction <add>, %236, %cst_109 [1] : vector<16x16xf32> to vector<16xf32>
    %238 = vector.shape_cast %237 : vector<16xf32> to vector<16x1xf32>
    %239 = tpu.reciprocal %238 {approx = true} : vector<16x1xf32> -> vector<16x1xf32>
    %240 = vector.broadcast %239 : vector<16x1xf32> to vector<16x16xf32>
    %241 = arith.mulf %236, %240 : vector<16x16xf32>
    %cst_110 = arith.constant dense<0.000000e+00> : vector<16x8xf32>
    %242 = tpu.matmul %241, %228, %cst_110 {dimension_numbers = #tpu.dot_dimension_numbers<[1], [0], [0], [1], [0, 0, 1, 1], [], []>} : vector<16x16xf32>, vector<16x8xf32>, vector<16x8xf32> -> vector<16x8xf32>
    %243 = vector.extract_strided_slice %225 {offsets = [0, 8], sizes = [16, 8], strides = [1, 1]} : vector<32x96xf32> to vector<16x8xf32>
    %244 = vector.extract_strided_slice %225 {offsets = [0, 40], sizes = [16, 8], strides = [1, 1]} : vector<32x96xf32> to vector<16x8xf32>
    %245 = vector.extract_strided_slice %225 {offsets = [0, 72], sizes = [16, 8], strides = [1, 1]} : vector<32x96xf32> to vector<16x8xf32>
    %cst_111 = arith.constant dense<0.000000e+00> : vector<16x16xf32>
    %246 = tpu.matmul %243, %244, %cst_111 {dimension_numbers = #tpu.dot_dimension_numbers<[1], [1], [0], [0], [0, 0, 1, 0], [], []>} : vector<16x8xf32>, vector<16x8xf32>, vector<16x16xf32> -> vector<16x16xf32>
    %cst_112 = arith.constant 0.353553385 : f32
    %247 = vector.broadcast %cst_112 : f32 to vector<16x16xf32>
    %248 = arith.mulf %246, %247 : vector<16x16xf32>
    %cst_113 = arith.constant dense<0xFF800000> : vector<16xf32>
    %249 = vector.multi_reduction <maximumf>, %248, %cst_113 [1] : vector<16x16xf32> to vector<16xf32>
    %250 = vector.shape_cast %249 : vector<16xf32> to vector<16x1xf32>
    %251 = vector.broadcast %250 : vector<16x1xf32> to vector<16x16xf32>
    %252 = arith.subf %248, %251 : vector<16x16xf32>
    %253 = math.exp %252 : vector<16x16xf32>
    %cst_114 = arith.constant dense<0.000000e+00> : vector<16xf32>
    %254 = vector.multi_reduction <add>, %253, %cst_114 [1] : vector<16x16xf32> to vector<16xf32>
    %255 = vector.shape_cast %254 : vector<16xf32> to vector<16x1xf32>
    %256 = tpu.reciprocal %255 {approx = true} : vector<16x1xf32> -> vector<16x1xf32>
    %257 = vector.broadcast %256 : vector<16x1xf32> to vector<16x16xf32>
    %258 = arith.mulf %253, %257 : vector<16x16xf32>
    %cst_115 = arith.constant dense<0.000000e+00> : vector<16x8xf32>
    %259 = tpu.matmul %258, %245, %cst_115 {dimension_numbers = #tpu.dot_dimension_numbers<[1], [0], [0], [1], [0, 0, 1, 1], [], []>} : vector<16x16xf32>, vector<16x8xf32>, vector<16x8xf32> -> vector<16x8xf32>
    %260 = vector.extract_strided_slice %225 {offsets = [0, 16], sizes = [16, 8], strides = [1, 1]} : vector<32x96xf32> to vector<16x8xf32>
    %261 = vector.extract_strided_slice %225 {offsets = [0, 48], sizes = [16, 8], strides = [1, 1]} : vector<32x96xf32> to vector<16x8xf32>
    %262 = vector.extract_strided_slice %225 {offsets = [0, 80], sizes = [16, 8], strides = [1, 1]} : vector<32x96xf32> to vector<16x8xf32>
    %cst_116 = arith.constant dense<0.000000e+00> : vector<16x16xf32>
    %263 = tpu.matmul %260, %261, %cst_116 {dimension_numbers = #tpu.dot_dimension_numbers<[1], [1], [0], [0], [0, 0, 1, 0], [], []>} : vector<16x8xf32>, vector<16x8xf32>, vector<16x16xf32> -> vector<16x16xf32>
    %cst_117 = arith.constant 0.353553385 : f32
    %264 = vector.broadcast %cst_117 : f32 to vector<16x16xf32>
    %265 = arith.mulf %263, %264 : vector<16x16xf32>
    %cst_118 = arith.constant dense<0xFF800000> : vector<16xf32>
    %266 = vector.multi_reduction <maximumf>, %265, %cst_118 [1] : vector<16x16xf32> to vector<16xf32>
    %267 = vector.shape_cast %266 : vector<16xf32> to vector<16x1xf32>
    %268 = vector.broadcast %267 : vector<16x1xf32> to vector<16x16xf32>
    %269 = arith.subf %265, %268 : vector<16x16xf32>
    %270 = math.exp %269 : vector<16x16xf32>
    %cst_119 = arith.constant dense<0.000000e+00> : vector<16xf32>
    %271 = vector.multi_reduction <add>, %270, %cst_119 [1] : vector<16x16xf32> to vector<16xf32>
    %272 = vector.shape_cast %271 : vector<16xf32> to vector<16x1xf32>
    %273 = tpu.reciprocal %272 {approx = true} : vector<16x1xf32> -> vector<16x1xf32>
    %274 = vector.broadcast %273 : vector<16x1xf32> to vector<16x16xf32>
    %275 = arith.mulf %270, %274 : vector<16x16xf32>
    %cst_120 = arith.constant dense<0.000000e+00> : vector<16x8xf32>
    %276 = tpu.matmul %275, %262, %cst_120 {dimension_numbers = #tpu.dot_dimension_numbers<[1], [0], [0], [1], [0, 0, 1, 1], [], []>} : vector<16x16xf32>, vector<16x8xf32>, vector<16x8xf32> -> vector<16x8xf32>
    %277 = vector.extract_strided_slice %225 {offsets = [0, 24], sizes = [16, 8], strides = [1, 1]} : vector<32x96xf32> to vector<16x8xf32>
    %278 = vector.extract_strided_slice %225 {offsets = [0, 56], sizes = [16, 8], strides = [1, 1]} : vector<32x96xf32> to vector<16x8xf32>
    %279 = vector.extract_strided_slice %225 {offsets = [0, 88], sizes = [16, 8], strides = [1, 1]} : vector<32x96xf32> to vector<16x8xf32>
    %cst_121 = arith.constant dense<0.000000e+00> : vector<16x16xf32>
    %280 = tpu.matmul %277, %278, %cst_121 {dimension_numbers = #tpu.dot_dimension_numbers<[1], [1], [0], [0], [0, 0, 1, 0], [], []>} : vector<16x8xf32>, vector<16x8xf32>, vector<16x16xf32> -> vector<16x16xf32>
    %cst_122 = arith.constant 0.353553385 : f32
    %281 = vector.broadcast %cst_122 : f32 to vector<16x16xf32>
    %282 = arith.mulf %280, %281 : vector<16x16xf32>
    %cst_123 = arith.constant dense<0xFF800000> : vector<16xf32>
    %283 = vector.multi_reduction <maximumf>, %282, %cst_123 [1] : vector<16x16xf32> to vector<16xf32>
    %284 = vector.shape_cast %283 : vector<16xf32> to vector<16x1xf32>
    %285 = vector.broadcast %284 : vector<16x1xf32> to vector<16x16xf32>
    %286 = arith.subf %282, %285 : vector<16x16xf32>
    %287 = math.exp %286 : vector<16x16xf32>
    %cst_124 = arith.constant dense<0.000000e+00> : vector<16xf32>
    %288 = vector.multi_reduction <add>, %287, %cst_124 [1] : vector<16x16xf32> to vector<16xf32>
    %289 = vector.shape_cast %288 : vector<16xf32> to vector<16x1xf32>
    %290 = tpu.reciprocal %289 {approx = true} : vector<16x1xf32> -> vector<16x1xf32>
    %291 = vector.broadcast %290 : vector<16x1xf32> to vector<16x16xf32>
    %292 = arith.mulf %287, %291 : vector<16x16xf32>
    %cst_125 = arith.constant dense<0.000000e+00> : vector<16x8xf32>
    %293 = tpu.matmul %292, %279, %cst_125 {dimension_numbers = #tpu.dot_dimension_numbers<[1], [0], [0], [1], [0, 0, 1, 1], [], []>} : vector<16x16xf32>, vector<16x8xf32>, vector<16x8xf32> -> vector<16x8xf32>
    %294 = tpu.concatenate %242, %259, %276, %293 in 1 : vector<16x8xf32>, vector<16x8xf32>, vector<16x8xf32>, vector<16x8xf32> -> vector<16x32xf32>
    %295 = vector.extract_strided_slice %225 {offsets = [16, 0], sizes = [16, 8], strides = [1, 1]} : vector<32x96xf32> to vector<16x8xf32>
    %296 = vector.extract_strided_slice %225 {offsets = [16, 32], sizes = [16, 8], strides = [1, 1]} : vector<32x96xf32> to vector<16x8xf32>
    %297 = vector.extract_strided_slice %225 {offsets = [16, 64], sizes = [16, 8], strides = [1, 1]} : vector<32x96xf32> to vector<16x8xf32>
    %cst_126 = arith.constant dense<0.000000e+00> : vector<16x16xf32>
    %298 = tpu.matmul %295, %296, %cst_126 {dimension_numbers = #tpu.dot_dimension_numbers<[1], [1], [0], [0], [0, 0, 1, 0], [], []>} : vector<16x8xf32>, vector<16x8xf32>, vector<16x16xf32> -> vector<16x16xf32>
    %cst_127 = arith.constant 0.353553385 : f32
    %299 = vector.broadcast %cst_127 : f32 to vector<16x16xf32>
    %300 = arith.mulf %298, %299 : vector<16x16xf32>
    %cst_128 = arith.constant dense<0xFF800000> : vector<16xf32>
    %301 = vector.multi_reduction <maximumf>, %300, %cst_128 [1] : vector<16x16xf32> to vector<16xf32>
    %302 = vector.shape_cast %301 : vector<16xf32> to vector<16x1xf32>
    %303 = vector.broadcast %302 : vector<16x1xf32> to vector<16x16xf32>
    %304 = arith.subf %300, %303 : vector<16x16xf32>
    %305 = math.exp %304 : vector<16x16xf32>
    %cst_129 = arith.constant dense<0.000000e+00> : vector<16xf32>
    %306 = vector.multi_reduction <add>, %305, %cst_129 [1] : vector<16x16xf32> to vector<16xf32>
    %307 = vector.shape_cast %306 : vector<16xf32> to vector<16x1xf32>
    %308 = tpu.reciprocal %307 {approx = true} : vector<16x1xf32> -> vector<16x1xf32>
    %309 = vector.broadcast %308 : vector<16x1xf32> to vector<16x16xf32>
    %310 = arith.mulf %305, %309 : vector<16x16xf32>
    %cst_130 = arith.constant dense<0.000000e+00> : vector<16x8xf32>
    %311 = tpu.matmul %310, %297, %cst_130 {dimension_numbers = #tpu.dot_dimension_numbers<[1], [0], [0], [1], [0, 0, 1, 1], [], []>} : vector<16x16xf32>, vector<16x8xf32>, vector<16x8xf32> -> vector<16x8xf32>
    %312 = vector.extract_strided_slice %225 {offsets = [16, 8], sizes = [16, 8], strides = [1, 1]} : vector<32x96xf32> to vector<16x8xf32>
    %313 = vector.extract_strided_slice %225 {offsets = [16, 40], sizes = [16, 8], strides = [1, 1]} : vector<32x96xf32> to vector<16x8xf32>
    %314 = vector.extract_strided_slice %225 {offsets = [16, 72], sizes = [16, 8], strides = [1, 1]} : vector<32x96xf32> to vector<16x8xf32>
    %cst_131 = arith.constant dense<0.000000e+00> : vector<16x16xf32>
    %315 = tpu.matmul %312, %313, %cst_131 {dimension_numbers = #tpu.dot_dimension_numbers<[1], [1], [0], [0], [0, 0, 1, 0], [], []>} : vector<16x8xf32>, vector<16x8xf32>, vector<16x16xf32> -> vector<16x16xf32>
    %cst_132 = arith.constant 0.353553385 : f32
    %316 = vector.broadcast %cst_132 : f32 to vector<16x16xf32>
    %317 = arith.mulf %315, %316 : vector<16x16xf32>
    %cst_133 = arith.constant dense<0xFF800000> : vector<16xf32>
    %318 = vector.multi_reduction <maximumf>, %317, %cst_133 [1] : vector<16x16xf32> to vector<16xf32>
    %319 = vector.shape_cast %318 : vector<16xf32> to vector<16x1xf32>
    %320 = vector.broadcast %319 : vector<16x1xf32> to vector<16x16xf32>
    %321 = arith.subf %317, %320 : vector<16x16xf32>
    %322 = math.exp %321 : vector<16x16xf32>
    %cst_134 = arith.constant dense<0.000000e+00> : vector<16xf32>
    %323 = vector.multi_reduction <add>, %322, %cst_134 [1] : vector<16x16xf32> to vector<16xf32>
    %324 = vector.shape_cast %323 : vector<16xf32> to vector<16x1xf32>
    %325 = tpu.reciprocal %324 {approx = true} : vector<16x1xf32> -> vector<16x1xf32>
    %326 = vector.broadcast %325 : vector<16x1xf32> to vector<16x16xf32>
    %327 = arith.mulf %322, %326 : vector<16x16xf32>
    %cst_135 = arith.constant dense<0.000000e+00> : vector<16x8xf32>
    %328 = tpu.matmul %327, %314, %cst_135 {dimension_numbers = #tpu.dot_dimension_numbers<[1], [0], [0], [1], [0, 0, 1, 1], [], []>} : vector<16x16xf32>, vector<16x8xf32>, vector<16x8xf32> -> vector<16x8xf32>
    %329 = vector.extract_strided_slice %225 {offsets = [16, 16], sizes = [16, 8], strides = [1, 1]} : vector<32x96xf32> to vector<16x8xf32>
    %330 = vector.extract_strided_slice %225 {offsets = [16, 48], sizes = [16, 8], strides = [1, 1]} : vector<32x96xf32> to vector<16x8xf32>
    %331 = vector.extract_strided_slice %225 {offsets = [16, 80], sizes = [16, 8], strides = [1, 1]} : vector<32x96xf32> to vector<16x8xf32>
    %cst_136 = arith.constant dense<0.000000e+00> : vector<16x16xf32>
    %332 = tpu.matmul %329, %330, %cst_136 {dimension_numbers = #tpu.dot_dimension_numbers<[1], [1], [0], [0], [0, 0, 1, 0], [], []>} : vector<16x8xf32>, vector<16x8xf32>, vector<16x16xf32> -> vector<16x16xf32>
    %cst_137 = arith.constant 0.353553385 : f32
    %333 = vector.broadcast %cst_137 : f32 to vector<16x16xf32>
    %334 = arith.mulf %332, %333 : vector<16x16xf32>
    %cst_138 = arith.constant dense<0xFF800000> : vector<16xf32>
    %335 = vector.multi_reduction <maximumf>, %334, %cst_138 [1] : vector<16x16xf32> to vector<16xf32>
    %336 = vector.shape_cast %335 : vector<16xf32> to vector<16x1xf32>
    %337 = vector.broadcast %336 : vector<16x1xf32> to vector<16x16xf32>
    %338 = arith.subf %334, %337 : vector<16x16xf32>
    %339 = math.exp %338 : vector<16x16xf32>
    %cst_139 = arith.constant dense<0.000000e+00> : vector<16xf32>
    %340 = vector.multi_reduction <add>, %339, %cst_139 [1] : vector<16x16xf32> to vector<16xf32>
    %341 = vector.shape_cast %340 : vector<16xf32> to vector<16x1xf32>
    %342 = tpu.reciprocal %341 {approx = true} : vector<16x1xf32> -> vector<16x1xf32>
    %343 = vector.broadcast %342 : vector<16x1xf32> to vector<16x16xf32>
    %344 = arith.mulf %339, %343 : vector<16x16xf32>
    %cst_140 = arith.constant dense<0.000000e+00> : vector<16x8xf32>
    %345 = tpu.matmul %344, %331, %cst_140 {dimension_numbers = #tpu.dot_dimension_numbers<[1], [0], [0], [1], [0, 0, 1, 1], [], []>} : vector<16x16xf32>, vector<16x8xf32>, vector<16x8xf32> -> vector<16x8xf32>
    %346 = vector.extract_strided_slice %225 {offsets = [16, 24], sizes = [16, 8], strides = [1, 1]} : vector<32x96xf32> to vector<16x8xf32>
    %347 = vector.extract_strided_slice %225 {offsets = [16, 56], sizes = [16, 8], strides = [1, 1]} : vector<32x96xf32> to vector<16x8xf32>
    %348 = vector.extract_strided_slice %225 {offsets = [16, 88], sizes = [16, 8], strides = [1, 1]} : vector<32x96xf32> to vector<16x8xf32>
    %cst_141 = arith.constant dense<0.000000e+00> : vector<16x16xf32>
    %349 = tpu.matmul %346, %347, %cst_141 {dimension_numbers = #tpu.dot_dimension_numbers<[1], [1], [0], [0], [0, 0, 1, 0], [], []>} : vector<16x8xf32>, vector<16x8xf32>, vector<16x16xf32> -> vector<16x16xf32>
    %cst_142 = arith.constant 0.353553385 : f32
    %350 = vector.broadcast %cst_142 : f32 to vector<16x16xf32>
    %351 = arith.mulf %349, %350 : vector<16x16xf32>
    %cst_143 = arith.constant dense<0xFF800000> : vector<16xf32>
    %352 = vector.multi_reduction <maximumf>, %351, %cst_143 [1] : vector<16x16xf32> to vector<16xf32>
    %353 = vector.shape_cast %352 : vector<16xf32> to vector<16x1xf32>
    %354 = vector.broadcast %353 : vector<16x1xf32> to vector<16x16xf32>
    %355 = arith.subf %351, %354 : vector<16x16xf32>
    %356 = math.exp %355 : vector<16x16xf32>
    %cst_144 = arith.constant dense<0.000000e+00> : vector<16xf32>
    %357 = vector.multi_reduction <add>, %356, %cst_144 [1] : vector<16x16xf32> to vector<16xf32>
    %358 = vector.shape_cast %357 : vector<16xf32> to vector<16x1xf32>
    %359 = tpu.reciprocal %358 {approx = true} : vector<16x1xf32> -> vector<16x1xf32>
    %360 = vector.broadcast %359 : vector<16x1xf32> to vector<16x16xf32>
    %361 = arith.mulf %356, %360 : vector<16x16xf32>
    %cst_145 = arith.constant dense<0.000000e+00> : vector<16x8xf32>
    %362 = tpu.matmul %361, %348, %cst_145 {dimension_numbers = #tpu.dot_dimension_numbers<[1], [0], [0], [1], [0, 0, 1, 1], [], []>} : vector<16x16xf32>, vector<16x8xf32>, vector<16x8xf32> -> vector<16x8xf32>
    %363 = tpu.concatenate %311, %328, %345, %362 in 1 : vector<16x8xf32>, vector<16x8xf32>, vector<16x8xf32>, vector<16x8xf32> -> vector<16x32xf32>
    %364 = tpu.concatenate %294, %363 in 0 : vector<16x32xf32>, vector<16x32xf32> -> vector<32x32xf32>
    %cst_146 = arith.constant dense<0.000000e+00> : vector<32x32xf32>
    %365 = tpu.matmul %364, %213, %cst_146 {dimension_numbers = #tpu.dot_dimension_numbers<[1], [0], [0], [1], [0, 0, 1, 1], [], []>} : vector<32x32xf32>, vector<32x32xf32>, vector<32x32xf32> -> vector<32x32xf32>
    %366 = vector.broadcast %214 : vector<1x32xf32> to vector<32x32xf32>
    %367 = arith.addf %365, %366 : vector<32x32xf32>
    %368 = arith.addf %367, %210 : vector<32x32xf32>
    %cst_147 = arith.constant dense<0.000000e+00> : vector<32xf32>
    %369 = vector.multi_reduction <add>, %368, %cst_147 [1] : vector<32x32xf32> to vector<32xf32>
    %370 = vector.shape_cast %369 : vector<32xf32> to vector<32x1xf32>
    %cst_148 = arith.constant 3.200000e+01 : f32
    %371 = vector.broadcast %cst_148 : f32 to vector<32x1xf32>
    %372 = arith.divf %370, %371 : vector<32x1xf32>
    %373 = vector.broadcast %372 : vector<32x1xf32> to vector<32x32xf32>
    %374 = arith.subf %368, %373 : vector<32x32xf32>
    %375 = arith.mulf %374, %374 : vector<32x32xf32>
    %cst_149 = arith.constant dense<0.000000e+00> : vector<32xf32>
    %376 = vector.multi_reduction <add>, %375, %cst_149 [1] : vector<32x32xf32> to vector<32xf32>
    %377 = vector.shape_cast %376 : vector<32xf32> to vector<32x1xf32>
    %cst_150 = arith.constant 3.200000e+01 : f32
    %378 = vector.broadcast %cst_150 : f32 to vector<32x1xf32>
    %379 = arith.divf %377, %378 : vector<32x1xf32>
    %cst_151 = arith.constant 9.99999974E-6 : f32
    %380 = vector.broadcast %cst_151 : f32 to vector<32x1xf32>
    %381 = arith.addf %379, %380 : vector<32x1xf32>
    %382 = math.rsqrt %381 : vector<32x1xf32>
    %383 = vector.broadcast %382 : vector<32x1xf32> to vector<32x32xf32>
    %384 = arith.mulf %374, %383 : vector<32x32xf32>
    %385 = vector.broadcast %215 : vector<1x32xf32> to vector<32x32xf32>
    %386 = arith.mulf %384, %385 : vector<32x32xf32>
    %387 = vector.broadcast %216 : vector<1x32xf32> to vector<32x32xf32>
    %388 = arith.addf %386, %387 : vector<32x32xf32>
    %cst_152 = arith.constant dense<0.000000e+00> : vector<32x64xf32>
    %389 = tpu.matmul %388, %217, %cst_152 {dimension_numbers = #tpu.dot_dimension_numbers<[1], [0], [0], [1], [0, 0, 1, 1], [], []>} : vector<32x32xf32>, vector<32x64xf32>, vector<32x64xf32> -> vector<32x64xf32>
    %390 = vector.broadcast %218 : vector<1x64xf32> to vector<32x64xf32>
    %391 = arith.addf %389, %390 : vector<32x64xf32>
    %cst_153 = arith.constant 0.000000e+00 : f32
    %392 = vector.broadcast %cst_153 : f32 to vector<32x64xf32>
    %393 = arith.maximumf %391, %392 : vector<32x64xf32>
    %cst_154 = arith.constant dense<0.000000e+00> : vector<32x32xf32>
    %394 = tpu.matmul %393, %219, %cst_154 {dimension_numbers = #tpu.dot_dimension_numbers<[1], [0], [0], [1], [0, 0, 1, 1], [], []>} : vector<32x64xf32>, vector<64x32xf32>, vector<32x32xf32> -> vector<32x32xf32>
    %395 = vector.broadcast %220 : vector<1x32xf32> to vector<32x32xf32>
    %396 = arith.addf %394, %395 : vector<32x32xf32>
    %397 = arith.addf %396, %388 : vector<32x32xf32>
    %cst_155 = arith.constant dense<0.000000e+00> : vector<32xf32>
    %398 = vector.multi_reduction <add>, %397, %cst_155 [1] : vector<32x32xf32> to vector<32xf32>
    %399 = vector.shape_cast %398 : vector<32xf32> to vector<32x1xf32>
    %cst_156 = arith.constant 3.200000e+01 : f32
    %400 = vector.broadcast %cst_156 : f32 to vector<32x1xf32>
    %401 = arith.divf %399, %400 : vector<32x1xf32>
    %402 = vector.broadcast %401 : vector<32x1xf32> to vector<32x32xf32>
    %403 = arith.subf %397, %402 : vector<32x32xf32>
    %404 = arith.mulf %403, %403 : vector<32x32xf32>
    %cst_157 = arith.constant dense<0.000000e+00> : vector<32xf32>
    %405 = vector.multi_reduction <add>, %404, %cst_157 [1] : vector<32x32xf32> to vector<32xf32>
    %406 = vector.shape_cast %405 : vector<32xf32> to vector<32x1xf32>
    %cst_158 = arith.constant 3.200000e+01 : f32
    %407 = vector.broadcast %cst_158 : f32 to vector<32x1xf32>
    %408 = arith.divf %406, %407 : vector<32x1xf32>
    %cst_159 = arith.constant 9.99999974E-6 : f32
    %409 = vector.broadcast %cst_159 : f32 to vector<32x1xf32>
    %410 = arith.addf %408, %409 : vector<32x1xf32>
    %411 = math.rsqrt %410 : vector<32x1xf32>
    %412 = vector.broadcast %411 : vector<32x1xf32> to vector<32x32xf32>
    %413 = arith.mulf %403, %412 : vector<32x32xf32>
    %414 = vector.broadcast %221 : vector<1x32xf32> to vector<32x32xf32>
    %415 = arith.mulf %413, %414 : vector<32x32xf32>
    %416 = vector.broadcast %222 : vector<1x32xf32> to vector<32x32xf32>
    %417 = arith.addf %415, %416 : vector<32x32xf32>
    %c0_160 = arith.constant 0 : index
    %c0_161 = arith.constant 0 : index
    %418 = vector.load %arg27[%c0_160, %c0_161] : memref<1x32xf32, #tpu.memory_space<vmem>>, vector<1x32xf32>
    %c0_162 = arith.constant 0 : index
    %c0_163 = arith.constant 0 : index
    %419 = vector.load %arg28[%c0_162, %c0_163] : memref<1x32xf32, #tpu.memory_space<vmem>>, vector<1x32xf32>
    %cst_164 = arith.constant dense<0.000000e+00> : vector<32xf32>
    %420 = vector.multi_reduction <add>, %417, %cst_164 [1] : vector<32x32xf32> to vector<32xf32>
    %421 = vector.shape_cast %420 : vector<32xf32> to vector<32x1xf32>
    %cst_165 = arith.constant 3.200000e+01 : f32
    %422 = vector.broadcast %cst_165 : f32 to vector<32x1xf32>
    %423 = arith.divf %421, %422 : vector<32x1xf32>
    %424 = vector.broadcast %423 : vector<32x1xf32> to vector<32x32xf32>
    %425 = arith.subf %417, %424 : vector<32x32xf32>
    %426 = arith.mulf %425, %425 : vector<32x32xf32>
    %cst_166 = arith.constant dense<0.000000e+00> : vector<32xf32>
    %427 = vector.multi_reduction <add>, %426, %cst_166 [1] : vector<32x32xf32> to vector<32xf32>
    %428 = vector.shape_cast %427 : vector<32xf32> to vector<32x1xf32>
    %cst_167 = arith.constant 3.200000e+01 : f32
    %429 = vector.broadcast %cst_167 : f32 to vector<32x1xf32>
    %430 = arith.divf %428, %429 : vector<32x1xf32>
    %cst_168 = arith.constant 9.99999997E-7 : f32
    %431 = vector.broadcast %cst_168 : f32 to vector<32x1xf32>
    %432 = arith.addf %430, %431 : vector<32x1xf32>
    %433 = math.rsqrt %432 : vector<32x1xf32>
    %434 = vector.broadcast %433 : vector<32x1xf32> to vector<32x32xf32>
    %435 = arith.mulf %425, %434 : vector<32x32xf32>
    %436 = vector.broadcast %418 : vector<1x32xf32> to vector<32x32xf32>
    %437 = arith.mulf %435, %436 : vector<32x32xf32>
    %438 = vector.broadcast %419 : vector<1x32xf32> to vector<32x32xf32>
    %439 = arith.addf %437, %438 : vector<32x32xf32>
    %c0_169 = arith.constant 0 : index
    %c0_170 = arith.constant 0 : index
    %440 = vector.load %arg32[%c0_169, %c0_170] : memref<32x32xf32, #tpu.memory_space<vmem>>, vector<32x32xf32>
    %cst_171 = arith.constant dense<0.000000e+00> : vector<32x32xf32>
    %441 = tpu.matmul %439, %440, %cst_171 {dimension_numbers = #tpu.dot_dimension_numbers<[1], [0], [0], [1], [0, 0, 1, 1], [], []>} : vector<32x32xf32>, vector<32x32xf32>, vector<32x32xf32> -> vector<32x32xf32>
    %c0_172 = arith.constant 0 : index
    %c0_173 = arith.constant 0 : index
    %442 = vector.load %arg33[%c0_172, %c0_173] : memref<1x32xf32, #tpu.memory_space<vmem>>, vector<1x32xf32>
    %443 = vector.broadcast %442 : vector<1x32xf32> to vector<32x32xf32>
    %444 = arith.addf %441, %443 : vector<32x32xf32>
    %c0_174 = arith.constant 0 : index
    %c0_175 = arith.constant 0 : index
    %445 = vector.load %arg29[%c0_174, %c0_175] : memref<25x32xf32, #tpu.memory_space<vmem>>, vector<25x32xf32>
    %446 = tpu.iota {dimensions = array<i32: 0>} : vector<25x1xi32>
    %c0_176 = arith.constant 0 : index
    %c0_177 = arith.constant 0 : index
    %447 = vector.load %arg30[%c0_176, %c0_177] : memref<16x1xf32, #tpu.memory_space<vmem>>, vector<16x1xf32>
    %c0_178 = arith.constant 0 : index
    %c0_179 = arith.constant 0 : index
    %448 = vector.load %arg31[%c0_178, %c0_179] : memref<16x1xf32, #tpu.memory_space<vmem>>, vector<16x1xf32>
    %c0_180 = arith.constant 0 : index
    %c0_181 = arith.constant 0 : index
    %449 = vector.load %arg34[%c0_180, %c0_181] : memref<1x32xf32, #tpu.memory_space<vmem>>, vector<1x32xf32>
    %c0_182 = arith.constant 0 : index
    %c0_183 = arith.constant 0 : index
    %450 = vector.load %arg35[%c0_182, %c0_183] : memref<1x1xf32, #tpu.memory_space<vmem>>, vector<1x1xf32>
    %c0_184 = arith.constant 0 : index
    %451 = memref.load %arg0[%c0_184] : memref<2xi32, #tpu.memory_space<smem>>
    %452 = vector.broadcast %451 : i32 to vector<25x1xi32>
    %453 = arith.cmpi eq, %446, %452 : vector<25x1xi32>
    %454 = arith.extui %453 : vector<25x1xi1> to vector<25x1xi32>
    %455 = arith.sitofp %454 : vector<25x1xi32> to vector<25x1xf32>
    %456 = vector.broadcast %455 : vector<25x1xf32> to vector<25x32xf32>
    %457 = arith.mulf %456, %445 : vector<25x32xf32>
    %cst_185 = arith.constant dense<0.000000e+00> : vector<32xf32>
    %458 = vector.multi_reduction <add>, %457, %cst_185 [0] : vector<25x32xf32> to vector<32xf32>
    %459 = vector.shape_cast %458 : vector<32xf32> to vector<1x32xf32>
    %460 = vector.broadcast %447 : vector<16x1xf32> to vector<16x32xf32>
    %461 = vector.broadcast %459 : vector<1x32xf32> to vector<16x32xf32>
    %462 = arith.mulf %460, %461 : vector<16x32xf32>
    %463 = vector.broadcast %448 : vector<16x1xf32> to vector<16x32xf32>
    %464 = arith.addf %462, %463 : vector<16x32xf32>
    %465 = vector.extract_strided_slice %444 {offsets = [0, 0], sizes = [16, 32], strides = [1, 1]} : vector<32x32xf32> to vector<16x32xf32>
    %466 = arith.addf %464, %465 : vector<16x32xf32>
    %467 = math.tanh %466 : vector<16x32xf32>
    %468 = vector.broadcast %449 : vector<1x32xf32> to vector<16x32xf32>
    %469 = arith.mulf %467, %468 : vector<16x32xf32>
    %cst_186 = arith.constant dense<0.000000e+00> : vector<16xf32>
    %470 = vector.multi_reduction <add>, %469, %cst_186 [1] : vector<16x32xf32> to vector<16xf32>
    %471 = vector.shape_cast %470 : vector<16xf32> to vector<16x1xf32>
    %472 = vector.broadcast %450 : vector<1x1xf32> to vector<16x1xf32>
    %473 = arith.addf %471, %472 : vector<16x1xf32>
    %474 = arith.negf %473 : vector<16x1xf32>
    %475 = math.exp %474 : vector<16x1xf32>
    %cst_187 = arith.constant 1.000000e+00 : f32
    %476 = vector.broadcast %cst_187 : f32 to vector<16x1xf32>
    %477 = arith.addf %476, %475 : vector<16x1xf32>
    %478 = arith.divf %476, %477 : vector<16x1xf32>
    %479 = vector.extract_strided_slice %0 {offsets = [0, 0], sizes = [16, 32], strides = [1, 1]} : vector<32x32xf32> to vector<16x32xf32>
    %cst_188 = arith.constant 1.000000e+00 : f32
    %480 = vector.broadcast %cst_188 : f32 to vector<16x1xf32>
    %481 = arith.subf %480, %478 : vector<16x1xf32>
    %482 = vector.broadcast %481 : vector<16x1xf32> to vector<16x32xf32>
    %483 = arith.mulf %479, %482 : vector<16x32xf32>
    %484 = vector.broadcast %478 : vector<16x1xf32> to vector<16x32xf32>
    %485 = arith.mulf %479, %484 : vector<16x32xf32>
    %c1 = arith.constant 1 : index
    %486 = memref.load %arg0[%c1] : memref<2xi32, #tpu.memory_space<smem>>
    %487 = vector.broadcast %486 : i32 to vector<25x1xi32>
    %488 = arith.cmpi eq, %446, %487 : vector<25x1xi32>
    %489 = arith.extui %488 : vector<25x1xi1> to vector<25x1xi32>
    %490 = arith.sitofp %489 : vector<25x1xi32> to vector<25x1xf32>
    %491 = vector.broadcast %490 : vector<25x1xf32> to vector<25x32xf32>
    %492 = arith.mulf %491, %445 : vector<25x32xf32>
    %cst_189 = arith.constant dense<0.000000e+00> : vector<32xf32>
    %493 = vector.multi_reduction <add>, %492, %cst_189 [0] : vector<25x32xf32> to vector<32xf32>
    %494 = vector.shape_cast %493 : vector<32xf32> to vector<1x32xf32>
    %495 = vector.broadcast %447 : vector<16x1xf32> to vector<16x32xf32>
    %496 = vector.broadcast %494 : vector<1x32xf32> to vector<16x32xf32>
    %497 = arith.mulf %495, %496 : vector<16x32xf32>
    %498 = vector.broadcast %448 : vector<16x1xf32> to vector<16x32xf32>
    %499 = arith.addf %497, %498 : vector<16x32xf32>
    %500 = vector.extract_strided_slice %444 {offsets = [16, 0], sizes = [16, 32], strides = [1, 1]} : vector<32x32xf32> to vector<16x32xf32>
    %501 = arith.addf %499, %500 : vector<16x32xf32>
    %502 = math.tanh %501 : vector<16x32xf32>
    %503 = vector.broadcast %449 : vector<1x32xf32> to vector<16x32xf32>
    %504 = arith.mulf %502, %503 : vector<16x32xf32>
    %cst_190 = arith.constant dense<0.000000e+00> : vector<16xf32>
    %505 = vector.multi_reduction <add>, %504, %cst_190 [1] : vector<16x32xf32> to vector<16xf32>
    %506 = vector.shape_cast %505 : vector<16xf32> to vector<16x1xf32>
    %507 = vector.broadcast %450 : vector<1x1xf32> to vector<16x1xf32>
    %508 = arith.addf %506, %507 : vector<16x1xf32>
    %509 = arith.negf %508 : vector<16x1xf32>
    %510 = math.exp %509 : vector<16x1xf32>
    %cst_191 = arith.constant 1.000000e+00 : f32
    %511 = vector.broadcast %cst_191 : f32 to vector<16x1xf32>
    %512 = arith.addf %511, %510 : vector<16x1xf32>
    %513 = arith.divf %511, %512 : vector<16x1xf32>
    %514 = vector.extract_strided_slice %0 {offsets = [16, 0], sizes = [16, 32], strides = [1, 1]} : vector<32x32xf32> to vector<16x32xf32>
    %cst_192 = arith.constant 1.000000e+00 : f32
    %515 = vector.broadcast %cst_192 : f32 to vector<16x1xf32>
    %516 = arith.subf %515, %513 : vector<16x1xf32>
    %517 = vector.broadcast %516 : vector<16x1xf32> to vector<16x32xf32>
    %518 = arith.mulf %514, %517 : vector<16x32xf32>
    %519 = vector.broadcast %513 : vector<16x1xf32> to vector<16x32xf32>
    %520 = arith.mulf %514, %519 : vector<16x32xf32>
    %521 = tpu.concatenate %478, %513 in 0 : vector<16x1xf32>, vector<16x1xf32> -> vector<32x1xf32>
    %c0_193 = arith.constant 0 : index
    %c0_194 = arith.constant 0 : index
    %522 = vector.load %arg52[%c0_193, %c0_194] : memref<32x1xf32, #tpu.memory_space<vmem>>, vector<32x1xf32>
    tpu.vector_store %arg52[%c0_193, %c0_194], %521 {strides = array<i32>} : memref<32x1xf32, #tpu.memory_space<vmem>>, vector<32x1xf32>,
    %523 = tpu.concatenate %483, %518, %485, %520 in 0 : vector<16x32xf32>, vector<16x32xf32>, vector<16x32xf32>, vector<16x32xf32> -> vector<64x32xf32>
    %c0_195 = arith.constant 0 : index
    %c0_196 = arith.constant 0 : index
    %524 = vector.load %arg36[%c0_195, %c0_196] : memref<16x32xf32, #tpu.memory_space<vmem>>, vector<16x32xf32>
    %525 = tpu.concatenate %524, %524, %524, %524 in 0 : vector<16x32xf32>, vector<16x32xf32>, vector<16x32xf32>, vector<16x32xf32> -> vector<64x32xf32>
    %526 = arith.addf %523, %525 : vector<64x32xf32>
    %c0_197 = arith.constant 0 : index
    %c0_198 = arith.constant 0 : index
    %527 = vector.load %arg37[%c0_197, %c0_198] : memref<32x96xf32, #tpu.memory_space<vmem>>, vector<32x96xf32>
    %c0_199 = arith.constant 0 : index
    %c0_200 = arith.constant 0 : index
    %528 = vector.load %arg38[%c0_199, %c0_200] : memref<1x96xf32, #tpu.memory_space<vmem>>, vector<1x96xf32>
    %c0_201 = arith.constant 0 : index
    %c0_202 = arith.constant 0 : index
    %529 = vector.load %arg39[%c0_201, %c0_202] : memref<32x32xf32, #tpu.memory_space<vmem>>, vector<32x32xf32>
    %c0_203 = arith.constant 0 : index
    %c0_204 = arith.constant 0 : index
    %530 = vector.load %arg40[%c0_203, %c0_204] : memref<1x32xf32, #tpu.memory_space<vmem>>, vector<1x32xf32>
    %c0_205 = arith.constant 0 : index
    %c0_206 = arith.constant 0 : index
    %531 = vector.load %arg41[%c0_205, %c0_206] : memref<1x32xf32, #tpu.memory_space<vmem>>, vector<1x32xf32>
    %c0_207 = arith.constant 0 : index
    %c0_208 = arith.constant 0 : index
    %532 = vector.load %arg42[%c0_207, %c0_208] : memref<1x32xf32, #tpu.memory_space<vmem>>, vector<1x32xf32>
    %c0_209 = arith.constant 0 : index
    %c0_210 = arith.constant 0 : index
    %533 = vector.load %arg43[%c0_209, %c0_210] : memref<32x64xf32, #tpu.memory_space<vmem>>, vector<32x64xf32>
    %c0_211 = arith.constant 0 : index
    %c0_212 = arith.constant 0 : index
    %534 = vector.load %arg44[%c0_211, %c0_212] : memref<1x64xf32, #tpu.memory_space<vmem>>, vector<1x64xf32>
    %c0_213 = arith.constant 0 : index
    %c0_214 = arith.constant 0 : index
    %535 = vector.load %arg45[%c0_213, %c0_214] : memref<64x32xf32, #tpu.memory_space<vmem>>, vector<64x32xf32>
    %c0_215 = arith.constant 0 : index
    %c0_216 = arith.constant 0 : index
    %536 = vector.load %arg46[%c0_215, %c0_216] : memref<1x32xf32, #tpu.memory_space<vmem>>, vector<1x32xf32>
    %c0_217 = arith.constant 0 : index
    %c0_218 = arith.constant 0 : index
    %537 = vector.load %arg47[%c0_217, %c0_218] : memref<1x32xf32, #tpu.memory_space<vmem>>, vector<1x32xf32>
    %c0_219 = arith.constant 0 : index
    %c0_220 = arith.constant 0 : index
    %538 = vector.load %arg48[%c0_219, %c0_220] : memref<1x32xf32, #tpu.memory_space<vmem>>, vector<1x32xf32>
    %cst_221 = arith.constant dense<0.000000e+00> : vector<64x96xf32>
    %539 = tpu.matmul %526, %527, %cst_221 {dimension_numbers = #tpu.dot_dimension_numbers<[1], [0], [0], [1], [0, 0, 1, 1], [], []>} : vector<64x32xf32>, vector<32x96xf32>, vector<64x96xf32> -> vector<64x96xf32>
    %540 = vector.broadcast %528 : vector<1x96xf32> to vector<64x96xf32>
    %541 = arith.addf %539, %540 : vector<64x96xf32>
    %542 = vector.extract_strided_slice %541 {offsets = [0, 0], sizes = [16, 8], strides = [1, 1]} : vector<64x96xf32> to vector<16x8xf32>
    %543 = vector.extract_strided_slice %541 {offsets = [0, 32], sizes = [16, 8], strides = [1, 1]} : vector<64x96xf32> to vector<16x8xf32>
    %544 = vector.extract_strided_slice %541 {offsets = [0, 64], sizes = [16, 8], strides = [1, 1]} : vector<64x96xf32> to vector<16x8xf32>
    %cst_222 = arith.constant dense<0.000000e+00> : vector<16x16xf32>
    %545 = tpu.matmul %542, %543, %cst_222 {dimension_numbers = #tpu.dot_dimension_numbers<[1], [1], [0], [0], [0, 0, 1, 0], [], []>} : vector<16x8xf32>, vector<16x8xf32>, vector<16x16xf32> -> vector<16x16xf32>
    %cst_223 = arith.constant 0.353553385 : f32
    %546 = vector.broadcast %cst_223 : f32 to vector<16x16xf32>
    %547 = arith.mulf %545, %546 : vector<16x16xf32>
    %cst_224 = arith.constant dense<0xFF800000> : vector<16xf32>
    %548 = vector.multi_reduction <maximumf>, %547, %cst_224 [1] : vector<16x16xf32> to vector<16xf32>
    %549 = vector.shape_cast %548 : vector<16xf32> to vector<16x1xf32>
    %550 = vector.broadcast %549 : vector<16x1xf32> to vector<16x16xf32>
    %551 = arith.subf %547, %550 : vector<16x16xf32>
    %552 = math.exp %551 : vector<16x16xf32>
    %cst_225 = arith.constant dense<0.000000e+00> : vector<16xf32>
    %553 = vector.multi_reduction <add>, %552, %cst_225 [1] : vector<16x16xf32> to vector<16xf32>
    %554 = vector.shape_cast %553 : vector<16xf32> to vector<16x1xf32>
    %555 = tpu.reciprocal %554 {approx = true} : vector<16x1xf32> -> vector<16x1xf32>
    %556 = vector.broadcast %555 : vector<16x1xf32> to vector<16x16xf32>
    %557 = arith.mulf %552, %556 : vector<16x16xf32>
    %cst_226 = arith.constant dense<0.000000e+00> : vector<16x8xf32>
    %558 = tpu.matmul %557, %544, %cst_226 {dimension_numbers = #tpu.dot_dimension_numbers<[1], [0], [0], [1], [0, 0, 1, 1], [], []>} : vector<16x16xf32>, vector<16x8xf32>, vector<16x8xf32> -> vector<16x8xf32>
    %559 = vector.extract_strided_slice %541 {offsets = [0, 8], sizes = [16, 8], strides = [1, 1]} : vector<64x96xf32> to vector<16x8xf32>
    %560 = vector.extract_strided_slice %541 {offsets = [0, 40], sizes = [16, 8], strides = [1, 1]} : vector<64x96xf32> to vector<16x8xf32>
    %561 = vector.extract_strided_slice %541 {offsets = [0, 72], sizes = [16, 8], strides = [1, 1]} : vector<64x96xf32> to vector<16x8xf32>
    %cst_227 = arith.constant dense<0.000000e+00> : vector<16x16xf32>
    %562 = tpu.matmul %559, %560, %cst_227 {dimension_numbers = #tpu.dot_dimension_numbers<[1], [1], [0], [0], [0, 0, 1, 0], [], []>} : vector<16x8xf32>, vector<16x8xf32>, vector<16x16xf32> -> vector<16x16xf32>
    %cst_228 = arith.constant 0.353553385 : f32
    %563 = vector.broadcast %cst_228 : f32 to vector<16x16xf32>
    %564 = arith.mulf %562, %563 : vector<16x16xf32>
    %cst_229 = arith.constant dense<0xFF800000> : vector<16xf32>
    %565 = vector.multi_reduction <maximumf>, %564, %cst_229 [1] : vector<16x16xf32> to vector<16xf32>
    %566 = vector.shape_cast %565 : vector<16xf32> to vector<16x1xf32>
    %567 = vector.broadcast %566 : vector<16x1xf32> to vector<16x16xf32>
    %568 = arith.subf %564, %567 : vector<16x16xf32>
    %569 = math.exp %568 : vector<16x16xf32>
    %cst_230 = arith.constant dense<0.000000e+00> : vector<16xf32>
    %570 = vector.multi_reduction <add>, %569, %cst_230 [1] : vector<16x16xf32> to vector<16xf32>
    %571 = vector.shape_cast %570 : vector<16xf32> to vector<16x1xf32>
    %572 = tpu.reciprocal %571 {approx = true} : vector<16x1xf32> -> vector<16x1xf32>
    %573 = vector.broadcast %572 : vector<16x1xf32> to vector<16x16xf32>
    %574 = arith.mulf %569, %573 : vector<16x16xf32>
    %cst_231 = arith.constant dense<0.000000e+00> : vector<16x8xf32>
    %575 = tpu.matmul %574, %561, %cst_231 {dimension_numbers = #tpu.dot_dimension_numbers<[1], [0], [0], [1], [0, 0, 1, 1], [], []>} : vector<16x16xf32>, vector<16x8xf32>, vector<16x8xf32> -> vector<16x8xf32>
    %576 = vector.extract_strided_slice %541 {offsets = [0, 16], sizes = [16, 8], strides = [1, 1]} : vector<64x96xf32> to vector<16x8xf32>
    %577 = vector.extract_strided_slice %541 {offsets = [0, 48], sizes = [16, 8], strides = [1, 1]} : vector<64x96xf32> to vector<16x8xf32>
    %578 = vector.extract_strided_slice %541 {offsets = [0, 80], sizes = [16, 8], strides = [1, 1]} : vector<64x96xf32> to vector<16x8xf32>
    %cst_232 = arith.constant dense<0.000000e+00> : vector<16x16xf32>
    %579 = tpu.matmul %576, %577, %cst_232 {dimension_numbers = #tpu.dot_dimension_numbers<[1], [1], [0], [0], [0, 0, 1, 0], [], []>} : vector<16x8xf32>, vector<16x8xf32>, vector<16x16xf32> -> vector<16x16xf32>
    %cst_233 = arith.constant 0.353553385 : f32
    %580 = vector.broadcast %cst_233 : f32 to vector<16x16xf32>
    %581 = arith.mulf %579, %580 : vector<16x16xf32>
    %cst_234 = arith.constant dense<0xFF800000> : vector<16xf32>
    %582 = vector.multi_reduction <maximumf>, %581, %cst_234 [1] : vector<16x16xf32> to vector<16xf32>
    %583 = vector.shape_cast %582 : vector<16xf32> to vector<16x1xf32>
    %584 = vector.broadcast %583 : vector<16x1xf32> to vector<16x16xf32>
    %585 = arith.subf %581, %584 : vector<16x16xf32>
    %586 = math.exp %585 : vector<16x16xf32>
    %cst_235 = arith.constant dense<0.000000e+00> : vector<16xf32>
    %587 = vector.multi_reduction <add>, %586, %cst_235 [1] : vector<16x16xf32> to vector<16xf32>
    %588 = vector.shape_cast %587 : vector<16xf32> to vector<16x1xf32>
    %589 = tpu.reciprocal %588 {approx = true} : vector<16x1xf32> -> vector<16x1xf32>
    %590 = vector.broadcast %589 : vector<16x1xf32> to vector<16x16xf32>
    %591 = arith.mulf %586, %590 : vector<16x16xf32>
    %cst_236 = arith.constant dense<0.000000e+00> : vector<16x8xf32>
    %592 = tpu.matmul %591, %578, %cst_236 {dimension_numbers = #tpu.dot_dimension_numbers<[1], [0], [0], [1], [0, 0, 1, 1], [], []>} : vector<16x16xf32>, vector<16x8xf32>, vector<16x8xf32> -> vector<16x8xf32>
    %593 = vector.extract_strided_slice %541 {offsets = [0, 24], sizes = [16, 8], strides = [1, 1]} : vector<64x96xf32> to vector<16x8xf32>
    %594 = vector.extract_strided_slice %541 {offsets = [0, 56], sizes = [16, 8], strides = [1, 1]} : vector<64x96xf32> to vector<16x8xf32>
    %595 = vector.extract_strided_slice %541 {offsets = [0, 88], sizes = [16, 8], strides = [1, 1]} : vector<64x96xf32> to vector<16x8xf32>
    %cst_237 = arith.constant dense<0.000000e+00> : vector<16x16xf32>
    %596 = tpu.matmul %593, %594, %cst_237 {dimension_numbers = #tpu.dot_dimension_numbers<[1], [1], [0], [0], [0, 0, 1, 0], [], []>} : vector<16x8xf32>, vector<16x8xf32>, vector<16x16xf32> -> vector<16x16xf32>
    %cst_238 = arith.constant 0.353553385 : f32
    %597 = vector.broadcast %cst_238 : f32 to vector<16x16xf32>
    %598 = arith.mulf %596, %597 : vector<16x16xf32>
    %cst_239 = arith.constant dense<0xFF800000> : vector<16xf32>
    %599 = vector.multi_reduction <maximumf>, %598, %cst_239 [1] : vector<16x16xf32> to vector<16xf32>
    %600 = vector.shape_cast %599 : vector<16xf32> to vector<16x1xf32>
    %601 = vector.broadcast %600 : vector<16x1xf32> to vector<16x16xf32>
    %602 = arith.subf %598, %601 : vector<16x16xf32>
    %603 = math.exp %602 : vector<16x16xf32>
    %cst_240 = arith.constant dense<0.000000e+00> : vector<16xf32>
    %604 = vector.multi_reduction <add>, %603, %cst_240 [1] : vector<16x16xf32> to vector<16xf32>
    %605 = vector.shape_cast %604 : vector<16xf32> to vector<16x1xf32>
    %606 = tpu.reciprocal %605 {approx = true} : vector<16x1xf32> -> vector<16x1xf32>
    %607 = vector.broadcast %606 : vector<16x1xf32> to vector<16x16xf32>
    %608 = arith.mulf %603, %607 : vector<16x16xf32>
    %cst_241 = arith.constant dense<0.000000e+00> : vector<16x8xf32>
    %609 = tpu.matmul %608, %595, %cst_241 {dimension_numbers = #tpu.dot_dimension_numbers<[1], [0], [0], [1], [0, 0, 1, 1], [], []>} : vector<16x16xf32>, vector<16x8xf32>, vector<16x8xf32> -> vector<16x8xf32>
    %610 = tpu.concatenate %558, %575, %592, %609 in 1 : vector<16x8xf32>, vector<16x8xf32>, vector<16x8xf32>, vector<16x8xf32> -> vector<16x32xf32>
    %611 = vector.extract_strided_slice %541 {offsets = [16, 0], sizes = [16, 8], strides = [1, 1]} : vector<64x96xf32> to vector<16x8xf32>
    %612 = vector.extract_strided_slice %541 {offsets = [16, 32], sizes = [16, 8], strides = [1, 1]} : vector<64x96xf32> to vector<16x8xf32>
    %613 = vector.extract_strided_slice %541 {offsets = [16, 64], sizes = [16, 8], strides = [1, 1]} : vector<64x96xf32> to vector<16x8xf32>
    %cst_242 = arith.constant dense<0.000000e+00> : vector<16x16xf32>
    %614 = tpu.matmul %611, %612, %cst_242 {dimension_numbers = #tpu.dot_dimension_numbers<[1], [1], [0], [0], [0, 0, 1, 0], [], []>} : vector<16x8xf32>, vector<16x8xf32>, vector<16x16xf32> -> vector<16x16xf32>
    %cst_243 = arith.constant 0.353553385 : f32
    %615 = vector.broadcast %cst_243 : f32 to vector<16x16xf32>
    %616 = arith.mulf %614, %615 : vector<16x16xf32>
    %cst_244 = arith.constant dense<0xFF800000> : vector<16xf32>
    %617 = vector.multi_reduction <maximumf>, %616, %cst_244 [1] : vector<16x16xf32> to vector<16xf32>
    %618 = vector.shape_cast %617 : vector<16xf32> to vector<16x1xf32>
    %619 = vector.broadcast %618 : vector<16x1xf32> to vector<16x16xf32>
    %620 = arith.subf %616, %619 : vector<16x16xf32>
    %621 = math.exp %620 : vector<16x16xf32>
    %cst_245 = arith.constant dense<0.000000e+00> : vector<16xf32>
    %622 = vector.multi_reduction <add>, %621, %cst_245 [1] : vector<16x16xf32> to vector<16xf32>
    %623 = vector.shape_cast %622 : vector<16xf32> to vector<16x1xf32>
    %624 = tpu.reciprocal %623 {approx = true} : vector<16x1xf32> -> vector<16x1xf32>
    %625 = vector.broadcast %624 : vector<16x1xf32> to vector<16x16xf32>
    %626 = arith.mulf %621, %625 : vector<16x16xf32>
    %cst_246 = arith.constant dense<0.000000e+00> : vector<16x8xf32>
    %627 = tpu.matmul %626, %613, %cst_246 {dimension_numbers = #tpu.dot_dimension_numbers<[1], [0], [0], [1], [0, 0, 1, 1], [], []>} : vector<16x16xf32>, vector<16x8xf32>, vector<16x8xf32> -> vector<16x8xf32>
    %628 = vector.extract_strided_slice %541 {offsets = [16, 8], sizes = [16, 8], strides = [1, 1]} : vector<64x96xf32> to vector<16x8xf32>
    %629 = vector.extract_strided_slice %541 {offsets = [16, 40], sizes = [16, 8], strides = [1, 1]} : vector<64x96xf32> to vector<16x8xf32>
    %630 = vector.extract_strided_slice %541 {offsets = [16, 72], sizes = [16, 8], strides = [1, 1]} : vector<64x96xf32> to vector<16x8xf32>
    %cst_247 = arith.constant dense<0.000000e+00> : vector<16x16xf32>
    %631 = tpu.matmul %628, %629, %cst_247 {dimension_numbers = #tpu.dot_dimension_numbers<[1], [1], [0], [0], [0, 0, 1, 0], [], []>} : vector<16x8xf32>, vector<16x8xf32>, vector<16x16xf32> -> vector<16x16xf32>
    %cst_248 = arith.constant 0.353553385 : f32
    %632 = vector.broadcast %cst_248 : f32 to vector<16x16xf32>
    %633 = arith.mulf %631, %632 : vector<16x16xf32>
    %cst_249 = arith.constant dense<0xFF800000> : vector<16xf32>
    %634 = vector.multi_reduction <maximumf>, %633, %cst_249 [1] : vector<16x16xf32> to vector<16xf32>
    %635 = vector.shape_cast %634 : vector<16xf32> to vector<16x1xf32>
    %636 = vector.broadcast %635 : vector<16x1xf32> to vector<16x16xf32>
    %637 = arith.subf %633, %636 : vector<16x16xf32>
    %638 = math.exp %637 : vector<16x16xf32>
    %cst_250 = arith.constant dense<0.000000e+00> : vector<16xf32>
    %639 = vector.multi_reduction <add>, %638, %cst_250 [1] : vector<16x16xf32> to vector<16xf32>
    %640 = vector.shape_cast %639 : vector<16xf32> to vector<16x1xf32>
    %641 = tpu.reciprocal %640 {approx = true} : vector<16x1xf32> -> vector<16x1xf32>
    %642 = vector.broadcast %641 : vector<16x1xf32> to vector<16x16xf32>
    %643 = arith.mulf %638, %642 : vector<16x16xf32>
    %cst_251 = arith.constant dense<0.000000e+00> : vector<16x8xf32>
    %644 = tpu.matmul %643, %630, %cst_251 {dimension_numbers = #tpu.dot_dimension_numbers<[1], [0], [0], [1], [0, 0, 1, 1], [], []>} : vector<16x16xf32>, vector<16x8xf32>, vector<16x8xf32> -> vector<16x8xf32>
    %645 = vector.extract_strided_slice %541 {offsets = [16, 16], sizes = [16, 8], strides = [1, 1]} : vector<64x96xf32> to vector<16x8xf32>
    %646 = vector.extract_strided_slice %541 {offsets = [16, 48], sizes = [16, 8], strides = [1, 1]} : vector<64x96xf32> to vector<16x8xf32>
    %647 = vector.extract_strided_slice %541 {offsets = [16, 80], sizes = [16, 8], strides = [1, 1]} : vector<64x96xf32> to vector<16x8xf32>
    %cst_252 = arith.constant dense<0.000000e+00> : vector<16x16xf32>
    %648 = tpu.matmul %645, %646, %cst_252 {dimension_numbers = #tpu.dot_dimension_numbers<[1], [1], [0], [0], [0, 0, 1, 0], [], []>} : vector<16x8xf32>, vector<16x8xf32>, vector<16x16xf32> -> vector<16x16xf32>
    %cst_253 = arith.constant 0.353553385 : f32
    %649 = vector.broadcast %cst_253 : f32 to vector<16x16xf32>
    %650 = arith.mulf %648, %649 : vector<16x16xf32>
    %cst_254 = arith.constant dense<0xFF800000> : vector<16xf32>
    %651 = vector.multi_reduction <maximumf>, %650, %cst_254 [1] : vector<16x16xf32> to vector<16xf32>
    %652 = vector.shape_cast %651 : vector<16xf32> to vector<16x1xf32>
    %653 = vector.broadcast %652 : vector<16x1xf32> to vector<16x16xf32>
    %654 = arith.subf %650, %653 : vector<16x16xf32>
    %655 = math.exp %654 : vector<16x16xf32>
    %cst_255 = arith.constant dense<0.000000e+00> : vector<16xf32>
    %656 = vector.multi_reduction <add>, %655, %cst_255 [1] : vector<16x16xf32> to vector<16xf32>
    %657 = vector.shape_cast %656 : vector<16xf32> to vector<16x1xf32>
    %658 = tpu.reciprocal %657 {approx = true} : vector<16x1xf32> -> vector<16x1xf32>
    %659 = vector.broadcast %658 : vector<16x1xf32> to vector<16x16xf32>
    %660 = arith.mulf %655, %659 : vector<16x16xf32>
    %cst_256 = arith.constant dense<0.000000e+00> : vector<16x8xf32>
    %661 = tpu.matmul %660, %647, %cst_256 {dimension_numbers = #tpu.dot_dimension_numbers<[1], [0], [0], [1], [0, 0, 1, 1], [], []>} : vector<16x16xf32>, vector<16x8xf32>, vector<16x8xf32> -> vector<16x8xf32>
    %662 = vector.extract_strided_slice %541 {offsets = [16, 24], sizes = [16, 8], strides = [1, 1]} : vector<64x96xf32> to vector<16x8xf32>
    %663 = vector.extract_strided_slice %541 {offsets = [16, 56], sizes = [16, 8], strides = [1, 1]} : vector<64x96xf32> to vector<16x8xf32>
    %664 = vector.extract_strided_slice %541 {offsets = [16, 88], sizes = [16, 8], strides = [1, 1]} : vector<64x96xf32> to vector<16x8xf32>
    %cst_257 = arith.constant dense<0.000000e+00> : vector<16x16xf32>
    %665 = tpu.matmul %662, %663, %cst_257 {dimension_numbers = #tpu.dot_dimension_numbers<[1], [1], [0], [0], [0, 0, 1, 0], [], []>} : vector<16x8xf32>, vector<16x8xf32>, vector<16x16xf32> -> vector<16x16xf32>
    %cst_258 = arith.constant 0.353553385 : f32
    %666 = vector.broadcast %cst_258 : f32 to vector<16x16xf32>
    %667 = arith.mulf %665, %666 : vector<16x16xf32>
    %cst_259 = arith.constant dense<0xFF800000> : vector<16xf32>
    %668 = vector.multi_reduction <maximumf>, %667, %cst_259 [1] : vector<16x16xf32> to vector<16xf32>
    %669 = vector.shape_cast %668 : vector<16xf32> to vector<16x1xf32>
    %670 = vector.broadcast %669 : vector<16x1xf32> to vector<16x16xf32>
    %671 = arith.subf %667, %670 : vector<16x16xf32>
    %672 = math.exp %671 : vector<16x16xf32>
    %cst_260 = arith.constant dense<0.000000e+00> : vector<16xf32>
    %673 = vector.multi_reduction <add>, %672, %cst_260 [1] : vector<16x16xf32> to vector<16xf32>
    %674 = vector.shape_cast %673 : vector<16xf32> to vector<16x1xf32>
    %675 = tpu.reciprocal %674 {approx = true} : vector<16x1xf32> -> vector<16x1xf32>
    %676 = vector.broadcast %675 : vector<16x1xf32> to vector<16x16xf32>
    %677 = arith.mulf %672, %676 : vector<16x16xf32>
    %cst_261 = arith.constant dense<0.000000e+00> : vector<16x8xf32>
    %678 = tpu.matmul %677, %664, %cst_261 {dimension_numbers = #tpu.dot_dimension_numbers<[1], [0], [0], [1], [0, 0, 1, 1], [], []>} : vector<16x16xf32>, vector<16x8xf32>, vector<16x8xf32> -> vector<16x8xf32>
    %679 = tpu.concatenate %627, %644, %661, %678 in 1 : vector<16x8xf32>, vector<16x8xf32>, vector<16x8xf32>, vector<16x8xf32> -> vector<16x32xf32>
    %680 = vector.extract_strided_slice %541 {offsets = [32, 0], sizes = [16, 8], strides = [1, 1]} : vector<64x96xf32> to vector<16x8xf32>
    %681 = vector.extract_strided_slice %541 {offsets = [32, 32], sizes = [16, 8], strides = [1, 1]} : vector<64x96xf32> to vector<16x8xf32>
    %682 = vector.extract_strided_slice %541 {offsets = [32, 64], sizes = [16, 8], strides = [1, 1]} : vector<64x96xf32> to vector<16x8xf32>
    %cst_262 = arith.constant dense<0.000000e+00> : vector<16x16xf32>
    %683 = tpu.matmul %680, %681, %cst_262 {dimension_numbers = #tpu.dot_dimension_numbers<[1], [1], [0], [0], [0, 0, 1, 0], [], []>} : vector<16x8xf32>, vector<16x8xf32>, vector<16x16xf32> -> vector<16x16xf32>
    %cst_263 = arith.constant 0.353553385 : f32
    %684 = vector.broadcast %cst_263 : f32 to vector<16x16xf32>
    %685 = arith.mulf %683, %684 : vector<16x16xf32>
    %cst_264 = arith.constant dense<0xFF800000> : vector<16xf32>
    %686 = vector.multi_reduction <maximumf>, %685, %cst_264 [1] : vector<16x16xf32> to vector<16xf32>
    %687 = vector.shape_cast %686 : vector<16xf32> to vector<16x1xf32>
    %688 = vector.broadcast %687 : vector<16x1xf32> to vector<16x16xf32>
    %689 = arith.subf %685, %688 : vector<16x16xf32>
    %690 = math.exp %689 : vector<16x16xf32>
    %cst_265 = arith.constant dense<0.000000e+00> : vector<16xf32>
    %691 = vector.multi_reduction <add>, %690, %cst_265 [1] : vector<16x16xf32> to vector<16xf32>
    %692 = vector.shape_cast %691 : vector<16xf32> to vector<16x1xf32>
    %693 = tpu.reciprocal %692 {approx = true} : vector<16x1xf32> -> vector<16x1xf32>
    %694 = vector.broadcast %693 : vector<16x1xf32> to vector<16x16xf32>
    %695 = arith.mulf %690, %694 : vector<16x16xf32>
    %cst_266 = arith.constant dense<0.000000e+00> : vector<16x8xf32>
    %696 = tpu.matmul %695, %682, %cst_266 {dimension_numbers = #tpu.dot_dimension_numbers<[1], [0], [0], [1], [0, 0, 1, 1], [], []>} : vector<16x16xf32>, vector<16x8xf32>, vector<16x8xf32> -> vector<16x8xf32>
    %697 = vector.extract_strided_slice %541 {offsets = [32, 8], sizes = [16, 8], strides = [1, 1]} : vector<64x96xf32> to vector<16x8xf32>
    %698 = vector.extract_strided_slice %541 {offsets = [32, 40], sizes = [16, 8], strides = [1, 1]} : vector<64x96xf32> to vector<16x8xf32>
    %699 = vector.extract_strided_slice %541 {offsets = [32, 72], sizes = [16, 8], strides = [1, 1]} : vector<64x96xf32> to vector<16x8xf32>
    %cst_267 = arith.constant dense<0.000000e+00> : vector<16x16xf32>
    %700 = tpu.matmul %697, %698, %cst_267 {dimension_numbers = #tpu.dot_dimension_numbers<[1], [1], [0], [0], [0, 0, 1, 0], [], []>} : vector<16x8xf32>, vector<16x8xf32>, vector<16x16xf32> -> vector<16x16xf32>
    %cst_268 = arith.constant 0.353553385 : f32
    %701 = vector.broadcast %cst_268 : f32 to vector<16x16xf32>
    %702 = arith.mulf %700, %701 : vector<16x16xf32>
    %cst_269 = arith.constant dense<0xFF800000> : vector<16xf32>
    %703 = vector.multi_reduction <maximumf>, %702, %cst_269 [1] : vector<16x16xf32> to vector<16xf32>
    %704 = vector.shape_cast %703 : vector<16xf32> to vector<16x1xf32>
    %705 = vector.broadcast %704 : vector<16x1xf32> to vector<16x16xf32>
    %706 = arith.subf %702, %705 : vector<16x16xf32>
    %707 = math.exp %706 : vector<16x16xf32>
    %cst_270 = arith.constant dense<0.000000e+00> : vector<16xf32>
    %708 = vector.multi_reduction <add>, %707, %cst_270 [1] : vector<16x16xf32> to vector<16xf32>
    %709 = vector.shape_cast %708 : vector<16xf32> to vector<16x1xf32>
    %710 = tpu.reciprocal %709 {approx = true} : vector<16x1xf32> -> vector<16x1xf32>
    %711 = vector.broadcast %710 : vector<16x1xf32> to vector<16x16xf32>
    %712 = arith.mulf %707, %711 : vector<16x16xf32>
    %cst_271 = arith.constant dense<0.000000e+00> : vector<16x8xf32>
    %713 = tpu.matmul %712, %699, %cst_271 {dimension_numbers = #tpu.dot_dimension_numbers<[1], [0], [0], [1], [0, 0, 1, 1], [], []>} : vector<16x16xf32>, vector<16x8xf32>, vector<16x8xf32> -> vector<16x8xf32>
    %714 = vector.extract_strided_slice %541 {offsets = [32, 16], sizes = [16, 8], strides = [1, 1]} : vector<64x96xf32> to vector<16x8xf32>
    %715 = vector.extract_strided_slice %541 {offsets = [32, 48], sizes = [16, 8], strides = [1, 1]} : vector<64x96xf32> to vector<16x8xf32>
    %716 = vector.extract_strided_slice %541 {offsets = [32, 80], sizes = [16, 8], strides = [1, 1]} : vector<64x96xf32> to vector<16x8xf32>
    %cst_272 = arith.constant dense<0.000000e+00> : vector<16x16xf32>
    %717 = tpu.matmul %714, %715, %cst_272 {dimension_numbers = #tpu.dot_dimension_numbers<[1], [1], [0], [0], [0, 0, 1, 0], [], []>} : vector<16x8xf32>, vector<16x8xf32>, vector<16x16xf32> -> vector<16x16xf32>
    %cst_273 = arith.constant 0.353553385 : f32
    %718 = vector.broadcast %cst_273 : f32 to vector<16x16xf32>
    %719 = arith.mulf %717, %718 : vector<16x16xf32>
    %cst_274 = arith.constant dense<0xFF800000> : vector<16xf32>
    %720 = vector.multi_reduction <maximumf>, %719, %cst_274 [1] : vector<16x16xf32> to vector<16xf32>
    %721 = vector.shape_cast %720 : vector<16xf32> to vector<16x1xf32>
    %722 = vector.broadcast %721 : vector<16x1xf32> to vector<16x16xf32>
    %723 = arith.subf %719, %722 : vector<16x16xf32>
    %724 = math.exp %723 : vector<16x16xf32>
    %cst_275 = arith.constant dense<0.000000e+00> : vector<16xf32>
    %725 = vector.multi_reduction <add>, %724, %cst_275 [1] : vector<16x16xf32> to vector<16xf32>
    %726 = vector.shape_cast %725 : vector<16xf32> to vector<16x1xf32>
    %727 = tpu.reciprocal %726 {approx = true} : vector<16x1xf32> -> vector<16x1xf32>
    %728 = vector.broadcast %727 : vector<16x1xf32> to vector<16x16xf32>
    %729 = arith.mulf %724, %728 : vector<16x16xf32>
    %cst_276 = arith.constant dense<0.000000e+00> : vector<16x8xf32>
    %730 = tpu.matmul %729, %716, %cst_276 {dimension_numbers = #tpu.dot_dimension_numbers<[1], [0], [0], [1], [0, 0, 1, 1], [], []>} : vector<16x16xf32>, vector<16x8xf32>, vector<16x8xf32> -> vector<16x8xf32>
    %731 = vector.extract_strided_slice %541 {offsets = [32, 24], sizes = [16, 8], strides = [1, 1]} : vector<64x96xf32> to vector<16x8xf32>
    %732 = vector.extract_strided_slice %541 {offsets = [32, 56], sizes = [16, 8], strides = [1, 1]} : vector<64x96xf32> to vector<16x8xf32>
    %733 = vector.extract_strided_slice %541 {offsets = [32, 88], sizes = [16, 8], strides = [1, 1]} : vector<64x96xf32> to vector<16x8xf32>
    %cst_277 = arith.constant dense<0.000000e+00> : vector<16x16xf32>
    %734 = tpu.matmul %731, %732, %cst_277 {dimension_numbers = #tpu.dot_dimension_numbers<[1], [1], [0], [0], [0, 0, 1, 0], [], []>} : vector<16x8xf32>, vector<16x8xf32>, vector<16x16xf32> -> vector<16x16xf32>
    %cst_278 = arith.constant 0.353553385 : f32
    %735 = vector.broadcast %cst_278 : f32 to vector<16x16xf32>
    %736 = arith.mulf %734, %735 : vector<16x16xf32>
    %cst_279 = arith.constant dense<0xFF800000> : vector<16xf32>
    %737 = vector.multi_reduction <maximumf>, %736, %cst_279 [1] : vector<16x16xf32> to vector<16xf32>
    %738 = vector.shape_cast %737 : vector<16xf32> to vector<16x1xf32>
    %739 = vector.broadcast %738 : vector<16x1xf32> to vector<16x16xf32>
    %740 = arith.subf %736, %739 : vector<16x16xf32>
    %741 = math.exp %740 : vector<16x16xf32>
    %cst_280 = arith.constant dense<0.000000e+00> : vector<16xf32>
    %742 = vector.multi_reduction <add>, %741, %cst_280 [1] : vector<16x16xf32> to vector<16xf32>
    %743 = vector.shape_cast %742 : vector<16xf32> to vector<16x1xf32>
    %744 = tpu.reciprocal %743 {approx = true} : vector<16x1xf32> -> vector<16x1xf32>
    %745 = vector.broadcast %744 : vector<16x1xf32> to vector<16x16xf32>
    %746 = arith.mulf %741, %745 : vector<16x16xf32>
    %cst_281 = arith.constant dense<0.000000e+00> : vector<16x8xf32>
    %747 = tpu.matmul %746, %733, %cst_281 {dimension_numbers = #tpu.dot_dimension_numbers<[1], [0], [0], [1], [0, 0, 1, 1], [], []>} : vector<16x16xf32>, vector<16x8xf32>, vector<16x8xf32> -> vector<16x8xf32>
    %748 = tpu.concatenate %696, %713, %730, %747 in 1 : vector<16x8xf32>, vector<16x8xf32>, vector<16x8xf32>, vector<16x8xf32> -> vector<16x32xf32>
    %749 = vector.extract_strided_slice %541 {offsets = [48, 0], sizes = [16, 8], strides = [1, 1]} : vector<64x96xf32> to vector<16x8xf32>
    %750 = vector.extract_strided_slice %541 {offsets = [48, 32], sizes = [16, 8], strides = [1, 1]} : vector<64x96xf32> to vector<16x8xf32>
    %751 = vector.extract_strided_slice %541 {offsets = [48, 64], sizes = [16, 8], strides = [1, 1]} : vector<64x96xf32> to vector<16x8xf32>
    %cst_282 = arith.constant dense<0.000000e+00> : vector<16x16xf32>
    %752 = tpu.matmul %749, %750, %cst_282 {dimension_numbers = #tpu.dot_dimension_numbers<[1], [1], [0], [0], [0, 0, 1, 0], [], []>} : vector<16x8xf32>, vector<16x8xf32>, vector<16x16xf32> -> vector<16x16xf32>
    %cst_283 = arith.constant 0.353553385 : f32
    %753 = vector.broadcast %cst_283 : f32 to vector<16x16xf32>
    %754 = arith.mulf %752, %753 : vector<16x16xf32>
    %cst_284 = arith.constant dense<0xFF800000> : vector<16xf32>
    %755 = vector.multi_reduction <maximumf>, %754, %cst_284 [1] : vector<16x16xf32> to vector<16xf32>
    %756 = vector.shape_cast %755 : vector<16xf32> to vector<16x1xf32>
    %757 = vector.broadcast %756 : vector<16x1xf32> to vector<16x16xf32>
    %758 = arith.subf %754, %757 : vector<16x16xf32>
    %759 = math.exp %758 : vector<16x16xf32>
    %cst_285 = arith.constant dense<0.000000e+00> : vector<16xf32>
    %760 = vector.multi_reduction <add>, %759, %cst_285 [1] : vector<16x16xf32> to vector<16xf32>
    %761 = vector.shape_cast %760 : vector<16xf32> to vector<16x1xf32>
    %762 = tpu.reciprocal %761 {approx = true} : vector<16x1xf32> -> vector<16x1xf32>
    %763 = vector.broadcast %762 : vector<16x1xf32> to vector<16x16xf32>
    %764 = arith.mulf %759, %763 : vector<16x16xf32>
    %cst_286 = arith.constant dense<0.000000e+00> : vector<16x8xf32>
    %765 = tpu.matmul %764, %751, %cst_286 {dimension_numbers = #tpu.dot_dimension_numbers<[1], [0], [0], [1], [0, 0, 1, 1], [], []>} : vector<16x16xf32>, vector<16x8xf32>, vector<16x8xf32> -> vector<16x8xf32>
    %766 = vector.extract_strided_slice %541 {offsets = [48, 8], sizes = [16, 8], strides = [1, 1]} : vector<64x96xf32> to vector<16x8xf32>
    %767 = vector.extract_strided_slice %541 {offsets = [48, 40], sizes = [16, 8], strides = [1, 1]} : vector<64x96xf32> to vector<16x8xf32>
    %768 = vector.extract_strided_slice %541 {offsets = [48, 72], sizes = [16, 8], strides = [1, 1]} : vector<64x96xf32> to vector<16x8xf32>
    %cst_287 = arith.constant dense<0.000000e+00> : vector<16x16xf32>
    %769 = tpu.matmul %766, %767, %cst_287 {dimension_numbers = #tpu.dot_dimension_numbers<[1], [1], [0], [0], [0, 0, 1, 0], [], []>} : vector<16x8xf32>, vector<16x8xf32>, vector<16x16xf32> -> vector<16x16xf32>
    %cst_288 = arith.constant 0.353553385 : f32
    %770 = vector.broadcast %cst_288 : f32 to vector<16x16xf32>
    %771 = arith.mulf %769, %770 : vector<16x16xf32>
    %cst_289 = arith.constant dense<0xFF800000> : vector<16xf32>
    %772 = vector.multi_reduction <maximumf>, %771, %cst_289 [1] : vector<16x16xf32> to vector<16xf32>
    %773 = vector.shape_cast %772 : vector<16xf32> to vector<16x1xf32>
    %774 = vector.broadcast %773 : vector<16x1xf32> to vector<16x16xf32>
    %775 = arith.subf %771, %774 : vector<16x16xf32>
    %776 = math.exp %775 : vector<16x16xf32>
    %cst_290 = arith.constant dense<0.000000e+00> : vector<16xf32>
    %777 = vector.multi_reduction <add>, %776, %cst_290 [1] : vector<16x16xf32> to vector<16xf32>
    %778 = vector.shape_cast %777 : vector<16xf32> to vector<16x1xf32>
    %779 = tpu.reciprocal %778 {approx = true} : vector<16x1xf32> -> vector<16x1xf32>
    %780 = vector.broadcast %779 : vector<16x1xf32> to vector<16x16xf32>
    %781 = arith.mulf %776, %780 : vector<16x16xf32>
    %cst_291 = arith.constant dense<0.000000e+00> : vector<16x8xf32>
    %782 = tpu.matmul %781, %768, %cst_291 {dimension_numbers = #tpu.dot_dimension_numbers<[1], [0], [0], [1], [0, 0, 1, 1], [], []>} : vector<16x16xf32>, vector<16x8xf32>, vector<16x8xf32> -> vector<16x8xf32>
    %783 = vector.extract_strided_slice %541 {offsets = [48, 16], sizes = [16, 8], strides = [1, 1]} : vector<64x96xf32> to vector<16x8xf32>
    %784 = vector.extract_strided_slice %541 {offsets = [48, 48], sizes = [16, 8], strides = [1, 1]} : vector<64x96xf32> to vector<16x8xf32>
    %785 = vector.extract_strided_slice %541 {offsets = [48, 80], sizes = [16, 8], strides = [1, 1]} : vector<64x96xf32> to vector<16x8xf32>
    %cst_292 = arith.constant dense<0.000000e+00> : vector<16x16xf32>
    %786 = tpu.matmul %783, %784, %cst_292 {dimension_numbers = #tpu.dot_dimension_numbers<[1], [1], [0], [0], [0, 0, 1, 0], [], []>} : vector<16x8xf32>, vector<16x8xf32>, vector<16x16xf32> -> vector<16x16xf32>
    %cst_293 = arith.constant 0.353553385 : f32
    %787 = vector.broadcast %cst_293 : f32 to vector<16x16xf32>
    %788 = arith.mulf %786, %787 : vector<16x16xf32>
    %cst_294 = arith.constant dense<0xFF800000> : vector<16xf32>
    %789 = vector.multi_reduction <maximumf>, %788, %cst_294 [1] : vector<16x16xf32> to vector<16xf32>
    %790 = vector.shape_cast %789 : vector<16xf32> to vector<16x1xf32>
    %791 = vector.broadcast %790 : vector<16x1xf32> to vector<16x16xf32>
    %792 = arith.subf %788, %791 : vector<16x16xf32>
    %793 = math.exp %792 : vector<16x16xf32>
    %cst_295 = arith.constant dense<0.000000e+00> : vector<16xf32>
    %794 = vector.multi_reduction <add>, %793, %cst_295 [1] : vector<16x16xf32> to vector<16xf32>
    %795 = vector.shape_cast %794 : vector<16xf32> to vector<16x1xf32>
    %796 = tpu.reciprocal %795 {approx = true} : vector<16x1xf32> -> vector<16x1xf32>
    %797 = vector.broadcast %796 : vector<16x1xf32> to vector<16x16xf32>
    %798 = arith.mulf %793, %797 : vector<16x16xf32>
    %cst_296 = arith.constant dense<0.000000e+00> : vector<16x8xf32>
    %799 = tpu.matmul %798, %785, %cst_296 {dimension_numbers = #tpu.dot_dimension_numbers<[1], [0], [0], [1], [0, 0, 1, 1], [], []>} : vector<16x16xf32>, vector<16x8xf32>, vector<16x8xf32> -> vector<16x8xf32>
    %800 = vector.extract_strided_slice %541 {offsets = [48, 24], sizes = [16, 8], strides = [1, 1]} : vector<64x96xf32> to vector<16x8xf32>
    %801 = vector.extract_strided_slice %541 {offsets = [48, 56], sizes = [16, 8], strides = [1, 1]} : vector<64x96xf32> to vector<16x8xf32>
    %802 = vector.extract_strided_slice %541 {offsets = [48, 88], sizes = [16, 8], strides = [1, 1]} : vector<64x96xf32> to vector<16x8xf32>
    %cst_297 = arith.constant dense<0.000000e+00> : vector<16x16xf32>
    %803 = tpu.matmul %800, %801, %cst_297 {dimension_numbers = #tpu.dot_dimension_numbers<[1], [1], [0], [0], [0, 0, 1, 0], [], []>} : vector<16x8xf32>, vector<16x8xf32>, vector<16x16xf32> -> vector<16x16xf32>
    %cst_298 = arith.constant 0.353553385 : f32
    %804 = vector.broadcast %cst_298 : f32 to vector<16x16xf32>
    %805 = arith.mulf %803, %804 : vector<16x16xf32>
    %cst_299 = arith.constant dense<0xFF800000> : vector<16xf32>
    %806 = vector.multi_reduction <maximumf>, %805, %cst_299 [1] : vector<16x16xf32> to vector<16xf32>
    %807 = vector.shape_cast %806 : vector<16xf32> to vector<16x1xf32>
    %808 = vector.broadcast %807 : vector<16x1xf32> to vector<16x16xf32>
    %809 = arith.subf %805, %808 : vector<16x16xf32>
    %810 = math.exp %809 : vector<16x16xf32>
    %cst_300 = arith.constant dense<0.000000e+00> : vector<16xf32>
    %811 = vector.multi_reduction <add>, %810, %cst_300 [1] : vector<16x16xf32> to vector<16xf32>
    %812 = vector.shape_cast %811 : vector<16xf32> to vector<16x1xf32>
    %813 = tpu.reciprocal %812 {approx = true} : vector<16x1xf32> -> vector<16x1xf32>
    %814 = vector.broadcast %813 : vector<16x1xf32> to vector<16x16xf32>
    %815 = arith.mulf %810, %814 : vector<16x16xf32>
    %cst_301 = arith.constant dense<0.000000e+00> : vector<16x8xf32>
    %816 = tpu.matmul %815, %802, %cst_301 {dimension_numbers = #tpu.dot_dimension_numbers<[1], [0], [0], [1], [0, 0, 1, 1], [], []>} : vector<16x16xf32>, vector<16x8xf32>, vector<16x8xf32> -> vector<16x8xf32>
    %817 = tpu.concatenate %765, %782, %799, %816 in 1 : vector<16x8xf32>, vector<16x8xf32>, vector<16x8xf32>, vector<16x8xf32> -> vector<16x32xf32>
    %818 = tpu.concatenate %610, %679, %748, %817 in 0 : vector<16x32xf32>, vector<16x32xf32>, vector<16x32xf32>, vector<16x32xf32> -> vector<64x32xf32>
    %cst_302 = arith.constant dense<0.000000e+00> : vector<64x32xf32>
    %819 = tpu.matmul %818, %529, %cst_302 {dimension_numbers = #tpu.dot_dimension_numbers<[1], [0], [0], [1], [0, 0, 1, 1], [], []>} : vector<64x32xf32>, vector<32x32xf32>, vector<64x32xf32> -> vector<64x32xf32>
    %820 = vector.broadcast %530 : vector<1x32xf32> to vector<64x32xf32>
    %821 = arith.addf %819, %820 : vector<64x32xf32>
    %822 = arith.addf %821, %526 : vector<64x32xf32>
    %cst_303 = arith.constant dense<0.000000e+00> : vector<64xf32>
    %823 = vector.multi_reduction <add>, %822, %cst_303 [1] : vector<64x32xf32> to vector<64xf32>
    %824 = vector.shape_cast %823 : vector<64xf32> to vector<64x1xf32>
    %cst_304 = arith.constant 3.200000e+01 : f32
    %825 = vector.broadcast %cst_304 : f32 to vector<64x1xf32>
    %826 = arith.divf %824, %825 : vector<64x1xf32>
    %827 = vector.broadcast %826 : vector<64x1xf32> to vector<64x32xf32>
    %828 = arith.subf %822, %827 : vector<64x32xf32>
    %829 = arith.mulf %828, %828 : vector<64x32xf32>
    %cst_305 = arith.constant dense<0.000000e+00> : vector<64xf32>
    %830 = vector.multi_reduction <add>, %829, %cst_305 [1] : vector<64x32xf32> to vector<64xf32>
    %831 = vector.shape_cast %830 : vector<64xf32> to vector<64x1xf32>
    %cst_306 = arith.constant 3.200000e+01 : f32
    %832 = vector.broadcast %cst_306 : f32 to vector<64x1xf32>
    %833 = arith.divf %831, %832 : vector<64x1xf32>
    %cst_307 = arith.constant 9.99999974E-6 : f32
    %834 = vector.broadcast %cst_307 : f32 to vector<64x1xf32>
    %835 = arith.addf %833, %834 : vector<64x1xf32>
    %836 = math.rsqrt %835 : vector<64x1xf32>
    %837 = vector.broadcast %836 : vector<64x1xf32> to vector<64x32xf32>
    %838 = arith.mulf %828, %837 : vector<64x32xf32>
    %839 = vector.broadcast %531 : vector<1x32xf32> to vector<64x32xf32>
    %840 = arith.mulf %838, %839 : vector<64x32xf32>
    %841 = vector.broadcast %532 : vector<1x32xf32> to vector<64x32xf32>
    %842 = arith.addf %840, %841 : vector<64x32xf32>
    %cst_308 = arith.constant dense<0.000000e+00> : vector<64x64xf32>
    %843 = tpu.matmul %842, %533, %cst_308 {dimension_numbers = #tpu.dot_dimension_numbers<[1], [0], [0], [1], [0, 0, 1, 1], [], []>} : vector<64x32xf32>, vector<32x64xf32>, vector<64x64xf32> -> vector<64x64xf32>
    %844 = vector.broadcast %534 : vector<1x64xf32> to vector<64x64xf32>
    %845 = arith.addf %843, %844 : vector<64x64xf32>
    %cst_309 = arith.constant 0.000000e+00 : f32
    %846 = vector.broadcast %cst_309 : f32 to vector<64x64xf32>
    %847 = arith.maximumf %845, %846 : vector<64x64xf32>
    %cst_310 = arith.constant dense<0.000000e+00> : vector<64x32xf32>
    %848 = tpu.matmul %847, %535, %cst_310 {dimension_numbers = #tpu.dot_dimension_numbers<[1], [0], [0], [1], [0, 0, 1, 1], [], []>} : vector<64x64xf32>, vector<64x32xf32>, vector<64x32xf32> -> vector<64x32xf32>
    %849 = vector.broadcast %536 : vector<1x32xf32> to vector<64x32xf32>
    %850 = arith.addf %848, %849 : vector<64x32xf32>
    %851 = arith.addf %850, %842 : vector<64x32xf32>
    %cst_311 = arith.constant dense<0.000000e+00> : vector<64xf32>
    %852 = vector.multi_reduction <add>, %851, %cst_311 [1] : vector<64x32xf32> to vector<64xf32>
    %853 = vector.shape_cast %852 : vector<64xf32> to vector<64x1xf32>
    %cst_312 = arith.constant 3.200000e+01 : f32
    %854 = vector.broadcast %cst_312 : f32 to vector<64x1xf32>
    %855 = arith.divf %853, %854 : vector<64x1xf32>
    %856 = vector.broadcast %855 : vector<64x1xf32> to vector<64x32xf32>
    %857 = arith.subf %851, %856 : vector<64x32xf32>
    %858 = arith.mulf %857, %857 : vector<64x32xf32>
    %cst_313 = arith.constant dense<0.000000e+00> : vector<64xf32>
    %859 = vector.multi_reduction <add>, %858, %cst_313 [1] : vector<64x32xf32> to vector<64xf32>
    %860 = vector.shape_cast %859 : vector<64xf32> to vector<64x1xf32>
    %cst_314 = arith.constant 3.200000e+01 : f32
    %861 = vector.broadcast %cst_314 : f32 to vector<64x1xf32>
    %862 = arith.divf %860, %861 : vector<64x1xf32>
    %cst_315 = arith.constant 9.99999974E-6 : f32
    %863 = vector.broadcast %cst_315 : f32 to vector<64x1xf32>
    %864 = arith.addf %862, %863 : vector<64x1xf32>
    %865 = math.rsqrt %864 : vector<64x1xf32>
    %866 = vector.broadcast %865 : vector<64x1xf32> to vector<64x32xf32>
    %867 = arith.mulf %857, %866 : vector<64x32xf32>
    %868 = vector.broadcast %537 : vector<1x32xf32> to vector<64x32xf32>
    %869 = arith.mulf %867, %868 : vector<64x32xf32>
    %870 = vector.broadcast %538 : vector<1x32xf32> to vector<64x32xf32>
    %871 = arith.addf %869, %870 : vector<64x32xf32>
    %c0_316 = arith.constant 0 : index
    %c0_317 = arith.constant 0 : index
    %872 = vector.load %arg49[%c0_316, %c0_317] : memref<1x32xf32, #tpu.memory_space<vmem>>, vector<1x32xf32>
    %c0_318 = arith.constant 0 : index
    %c0_319 = arith.constant 0 : index
    %873 = vector.load %arg50[%c0_318, %c0_319] : memref<1x32xf32, #tpu.memory_space<vmem>>, vector<1x32xf32>
    %cst_320 = arith.constant dense<0.000000e+00> : vector<64xf32>
    %874 = vector.multi_reduction <add>, %871, %cst_320 [1] : vector<64x32xf32> to vector<64xf32>
    %875 = vector.shape_cast %874 : vector<64xf32> to vector<64x1xf32>
    %cst_321 = arith.constant 3.200000e+01 : f32
    %876 = vector.broadcast %cst_321 : f32 to vector<64x1xf32>
    %877 = arith.divf %875, %876 : vector<64x1xf32>
    %878 = vector.broadcast %877 : vector<64x1xf32> to vector<64x32xf32>
    %879 = arith.subf %871, %878 : vector<64x32xf32>
    %880 = arith.mulf %879, %879 : vector<64x32xf32>
    %cst_322 = arith.constant dense<0.000000e+00> : vector<64xf32>
    %881 = vector.multi_reduction <add>, %880, %cst_322 [1] : vector<64x32xf32> to vector<64xf32>
    %882 = vector.shape_cast %881 : vector<64xf32> to vector<64x1xf32>
    %cst_323 = arith.constant 3.200000e+01 : f32
    %883 = vector.broadcast %cst_323 : f32 to vector<64x1xf32>
    %884 = arith.divf %882, %883 : vector<64x1xf32>
    %cst_324 = arith.constant 9.99999997E-7 : f32
    %885 = vector.broadcast %cst_324 : f32 to vector<64x1xf32>
    %886 = arith.addf %884, %885 : vector<64x1xf32>
    %887 = math.rsqrt %886 : vector<64x1xf32>
    %888 = vector.broadcast %887 : vector<64x1xf32> to vector<64x32xf32>
    %889 = arith.mulf %879, %888 : vector<64x32xf32>
    %890 = vector.broadcast %872 : vector<1x32xf32> to vector<64x32xf32>
    %891 = arith.mulf %889, %890 : vector<64x32xf32>
    %892 = vector.broadcast %873 : vector<1x32xf32> to vector<64x32xf32>
    %893 = arith.addf %891, %892 : vector<64x32xf32>
    %c0_325 = arith.constant 0 : index
    %c0_326 = arith.constant 0 : index
    %894 = vector.load %arg51[%c0_325, %c0_326] : memref<64x32xf32, #tpu.memory_space<vmem>>, vector<64x32xf32>
    tpu.vector_store %arg51[%c0_325, %c0_326], %893 {strides = array<i32>} : memref<64x32xf32, #tpu.memory_space<vmem>>, vector<64x32xf32>,
    return
  }
}

</mosaic_0001>

<llo_original>
// kernel: mlm_forward.1
$region0: #{mlm_forward.1}
  #allocation0 [shape = 'u32[]', space=smem, size = 0x4, offset = 0x4, fixed_abs, tag = 'smem constant byte address 0x4 - core index']
  #allocation1 [shape = 'u32[72,128]{1,0:T(1,128)}', space=vmem, size = 0x9000, scoped, tag = 'internal scratch']
  #allocation2 [shape = 'f32[1,1]{1,0:T(1,128)S(1)}', space=vmem, size = 0x200, scoped, tag = 'scoped memory for mlm_forward.1']
  %s0 = inlined_call_operand.smem [shape: u32[53], index: -1, kind: input, shape index: {}]
  %s1 = sld [smem:[%s0]]
  %s2 = scalar_lea.smem %s0, 1
  %s3 = sld [smem:[%s2]]
  %s4 = scalar_lea.smem %s0, 2
  %s5 = sld [smem:[%s4]]
  %s6 = scalar_lea.smem %s0, 3
  %s7 = sld [smem:[%s6]]
  %s8 = scalar_lea.smem %s0, 4
  %s9 = sld [smem:[%s8]]
  %s10 = scalar_lea.smem %s0, 5
  %s11 = sld [smem:[%s10]]
  %s12 = scalar_lea.smem %s0, 6
  %s13 = sld [smem:[%s12]]
  %s14 = scalar_lea.smem %s0, 7
  %s15 = sld [smem:[%s14]]
  %s16 = scalar_lea.smem %s0, 8
  %s17 = sld [smem:[%s16]]
  %s18 = scalar_lea.smem %s0, 9
  %s19 = sld [smem:[%s18]]
  %s20 = scalar_lea.smem %s0, 10
  %s21 = sld [smem:[%s20]]
  %s22 = scalar_lea.smem %s0, 11
  %s23 = sld [smem:[%s22]]
  %s24 = scalar_lea.smem %s0, 12
  %s25 = sld [smem:[%s24]]
  %s26 = scalar_lea.smem %s0, 13
  %s27 = sld [smem:[%s26]]
  %s28 = scalar_lea.smem %s0, 14
  %s29 = sld [smem:[%s28]]
  %s30 = scalar_lea.smem %s0, 15
  %s31 = sld [smem:[%s30]]
  %s32 = scalar_lea.smem %s0, 16
  %s33 = sld [smem:[%s32]]
  %s34 = scalar_lea.smem %s0, 17
  %s35 = sld [smem:[%s34]]
  %s36 = scalar_lea.smem %s0, 18
  %s37 = sld [smem:[%s36]]
  %s38 = scalar_lea.smem %s0, 19
  %s39 = sld [smem:[%s38]]
  %s40 = scalar_lea.smem %s0, 20
  %s41 = sld [smem:[%s40]]
  %s42 = scalar_lea.smem %s0, 21
  %s43 = sld [smem:[%s42]]
  %s44 = scalar_lea.smem %s0, 22
  %s45 = sld [smem:[%s44]]
  %s46 = scalar_lea.smem %s0, 23
  %s47 = sld [smem:[%s46]]
  %s48 = scalar_lea.smem %s0, 24
  %s49 = sld [smem:[%s48]]
  %s50 = scalar_lea.smem %s0, 25
  %s51 = sld [smem:[%s50]]
  %s52 = scalar_lea.smem %s0, 26
  %s53 = sld [smem:[%s52]]
  %s54 = scalar_lea.smem %s0, 27
  %s55 = sld [smem:[%s54]]
  %s56 = scalar_lea.smem %s0, 28
  %s57 = sld [smem:[%s56]]
  %s58 = scalar_lea.smem %s0, 29
  %s59 = sld [smem:[%s58]]
  %s60 = scalar_lea.smem %s0, 30
  %s61 = sld [smem:[%s60]]
  %s62 = scalar_lea.smem %s0, 31
  %s63 = sld [smem:[%s62]]
  %s64 = scalar_lea.smem %s0, 32
  %s65 = sld [smem:[%s64]]
  %s66 = scalar_lea.smem %s0, 33
  %s67 = sld [smem:[%s66]]
  %s68 = scalar_lea.smem %s0, 34
  %s69 = sld [smem:[%s68]]
  %s70 = scalar_lea.smem %s0, 35
  %s71 = sld [smem:[%s70]]
  %s72 = scalar_lea.smem %s0, 36
  %s73 = sld [smem:[%s72]]
  %s74 = scalar_lea.smem %s0, 37
  %s75 = sld [smem:[%s74]]
  %s76 = scalar_lea.smem %s0, 38
  %s77 = sld [smem:[%s76]]
  %s78 = scalar_lea.smem %s0, 39
  %s79 = sld [smem:[%s78]]
  %s80 = scalar_lea.smem %s0, 40
  %s81 = sld [smem:[%s80]]
  %s82 = scalar_lea.smem %s0, 41
  %s83 = sld [smem:[%s82]]
  %s84 = scalar_lea.smem %s0, 42
  %s85 = sld [smem:[%s84]]
  %s86 = scalar_lea.smem %s0, 43
  %s87 = sld [smem:[%s86]]
  %s88 = scalar_lea.smem %s0, 44
  %s89 = sld [smem:[%s88]]
  %s90 = scalar_lea.smem %s0, 45
  %s91 = sld [smem:[%s90]]
  %s92 = scalar_lea.smem %s0, 46
  %s93 = sld [smem:[%s92]]
  %s94 = scalar_lea.smem %s0, 47
  %s95 = sld [smem:[%s94]]
  %s96 = scalar_lea.smem %s0, 48
  %s97 = sld [smem:[%s96]]
  %s98 = scalar_lea.smem %s0, 49
  %s99 = sld [smem:[%s98]]
  %s100 = scalar_lea.smem %s0, 50
  %s101 = sld [smem:[%s100]]
  %s102 = scalar_lea.smem %s0, 51
  %s103 = sld [smem:[%s102]]
  %s104 = scalar_lea.smem %s0, 52
  %s105 = sld [smem:[%s104]]
  %106 = xla_tuple %s103, %s105
  %s107 = sld [smem:[#allocation0]]
  $region350: #{mlm_forward.1} parent=0
    _
  %s109 = ssub.s32 1, %s107
  %s110 = scalar_select 0, %s109, %s107
  %v111 = vstv %s71
  %112 = vst [vmem:[#allocation2] sm:$0x1] %v111
  $region1: #{mlm_forward.1} parent=0
    #allocation3 [shape = 'u8[512]{0}', space=smem, size = 0x200, scoped, tag = 'input window, operand 0, single buffered']
    #allocation4 [shape = 's32[1]{0}', space=sflag, size = 0x4, scoped, tag = 'scoped memory for mlm_forward.1']
    #allocation5 [shape = 's32[1]{0}', space=sflag, size = 0x4, scoped, tag = 'scoped memory for mlm_forward.1']
    #allocation6 [shape = 'u8[8192]{0}', space=vmem, size = 0x2000, scoped, tag = 'input window, operand 2, single buffered']
    #allocation7 [shape = 'u8[512]{0}', space=vmem, size = 0x400, scoped, tag = 'input window, operand 6, single buffered']
    #allocation8 [shape = 's32[1]{0}', space=sflag, size = 0x4, scoped, tag = 'scoped memory for mlm_forward.1']
    #allocation9 [shape = 'u8[512]{0}', space=vmem, size = 0x400, scoped, tag = 'input window, operand 7, single buffered']
    #allocation10 [shape = 'u8[512]{0}', space=vmem, size = 0x400, scoped, tag = 'input window, operand 8, single buffered']
    #allocation11 [shape = 's32[1]{0}', space=sflag, size = 0x4, scoped, tag = 'scoped memory for mlm_forward.1']
    #allocation12 [shape = 'u8[512]{0}', space=vmem, size = 0x400, scoped, tag = 'input window, operand 10, single buffered']
    #allocation13 [shape = 'u8[512]{0}', space=vmem, size = 0x400, scoped, tag = 'input window, operand 12, single buffered']
    #allocation14 [shape = 's32[1]{0}', space=sflag, size = 0x4, scoped, tag = 'scoped memory for mlm_forward.1']
    #allocation15 [shape = 'u8[512]{0}', space=vmem, size = 0x400, scoped, tag = 'input window, operand 13, single buffered']
    #allocation16 [shape = 'u8[512]{0}', space=vmem, size = 0x400, scoped, tag = 'input window, operand 14, single buffered']
    #allocation17 [shape = 's32[1]{0}', space=sflag, size = 0x4, scoped, tag = 'scoped memory for mlm_forward.1']
    #allocation18 [shape = 'u8[512]{0}', space=vmem, size = 0x400, scoped, tag = 'input window, operand 16, single buffered']
    #allocation19 [shape = 'u8[512]{0}', space=vmem, size = 0x400, scoped, tag = 'input window, operand 18, single buffered']
    #allocation20 [shape = 's32[1]{0}', space=sflag, size = 0x4, scoped, tag = 'scoped memory for mlm_forward.1']
    #allocation21 [shape = 'u8[512]{0}', space=vmem, size = 0x400, scoped, tag = 'input window, operand 19, single buffered']
    #allocation22 [shape = 'u8[512]{0}', space=vmem, size = 0x400, scoped, tag = 'input window, operand 20, single buffered']
    #allocation23 [shape = 's32[1]{0}', space=sflag, size = 0x4, scoped, tag = 'scoped memory for mlm_forward.1']
    #allocation24 [shape = 'u8[512]{0}', space=vmem, size = 0x400, scoped, tag = 'input window, operand 22, single buffered']
    #allocation25 [shape = 'u8[512]{0}', space=vmem, size = 0x400, scoped, tag = 'input window, operand 24, single buffered']
    #allocation26 [shape = 's32[1]{0}', space=sflag, size = 0x4, scoped, tag = 'scoped memory for mlm_forward.1']
    #allocation27 [shape = 'u8[512]{0}', space=vmem, size = 0x400, scoped, tag = 'input window, operand 25, single buffered']
    #allocation28 [shape = 'u8[512]{0}', space=vmem, size = 0x400, scoped, tag = 'input window, operand 26, single buffered']
    #allocation29 [shape = 's32[1]{0}', space=sflag, size = 0x4, scoped, tag = 'scoped memory for mlm_forward.1']
    #allocation30 [shape = 'u8[512]{0}', space=vmem, size = 0x400, scoped, tag = 'input window, operand 27, single buffered']
    #allocation31 [shape = 'u8[512]{0}', space=vmem, size = 0x400, scoped, tag = 'input window, operand 28, single buffered']
    #allocation32 [shape = 's32[1]{0}', space=sflag, size = 0x4, scoped, tag = 'scoped memory for mlm_forward.1']
    #allocation33 [shape = 'u8[16384]{0}', space=vmem, size = 0x4000, scoped, tag = 'input window, operand 32, single buffered']
    #allocation34 [shape = 'u8[8192]{0}', space=vmem, size = 0x2000, scoped, tag = 'input window, operand 36, single buffered']
    #allocation35 [shape = 's32[1]{0}', space=sflag, size = 0x4, scoped, tag = 'scoped memory for mlm_forward.1']
    #allocation36 [shape = 'u8[16384]{0}', space=vmem, size = 0x4000, scoped, tag = 'input window, operand 37, single buffered']
    #allocation37 [shape = 'u8[512]{0}', space=vmem, size = 0x400, scoped, tag = 'input window, operand 38, single buffered']
    #allocation38 [shape = 's32[1]{0}', space=sflag, size = 0x4, scoped, tag = 'scoped memory for mlm_forward.1']
    #allocation39 [shape = 'u8[16384]{0}', space=vmem, size = 0x4000, scoped, tag = 'input window, operand 39, single buffered']
    #allocation40 [shape = 'u8[512]{0}', space=vmem, size = 0x400, scoped, tag = 'input window, operand 40, single buffered']
    #allocation41 [shape = 's32[1]{0}', space=sflag, size = 0x4, scoped, tag = 'scoped memory for mlm_forward.1']
    #allocation42 [shape = 'u8[512]{0}', space=vmem, size = 0x400, scoped, tag = 'input window, operand 41, single buffered']
    #allocation43 [shape = 'u8[512]{0}', space=vmem, size = 0x400, scoped, tag = 'input window, operand 42, single buffered']
    #allocation44 [shape = 's32[1]{0}', space=sflag, size = 0x4, scoped, tag = 'scoped memory for mlm_forward.1']
    #allocation45 [shape = 'u8[16384]{0}', space=vmem, size = 0x4000, scoped, tag = 'input window, operand 43, single buffered']
    #allocation46 [shape = 'u8[512]{0}', space=vmem, size = 0x400, scoped, tag = 'input window, operand 44, single buffered']
    #allocation47 [shape = 's32[1]{0}', space=sflag, size = 0x4, scoped, tag = 'scoped memory for mlm_forward.1']
    #allocation48 [shape = 'u8[512]{0}', space=vmem, size = 0x400, scoped, tag = 'input window, operand 46, single buffered']
    #allocation49 [shape = 'u8[512]{0}', space=vmem, size = 0x400, scoped, tag = 'input window, operand 47, single buffered']
    #allocation50 [shape = 's32[1]{0}', space=sflag, size = 0x4, scoped, tag = 'scoped memory for mlm_forward.1']
    #allocation51 [shape = 'u8[512]{0}', space=vmem, size = 0x400, scoped, tag = 'input window, operand 48, single buffered']
    %113 = vsyncpa [#allocation5], 0
    %114 = vsyncpa [#allocation4], 0
    %115 = vsyncpa [#allocation8], 0
    %116 = vsyncpa [#allocation11], 0
    %117 = vsyncpa [#allocation14], 0
    %118 = vsyncpa [#allocation17], 0
    %119 = vsyncpa [#allocation20], 0
    %120 = vsyncpa [#allocation23], 0
    %121 = vsyncpa [#allocation26], 0
    %122 = vsyncpa [#allocation29], 0
    %123 = vsyncpa [#allocation32], 0
    %124 = vsyncpa [#allocation35], 0
    %125 = vsyncpa [#allocation38], 0
    %126 = vsyncpa [#allocation41], 0
    %127 = vsyncpa [#allocation44], 0
    %128 = vsyncpa [#allocation47], 0
    %129 = vsyncpa [#allocation50], 0
    // Predicated region
    $region2: #{mlm_forward.1} parent=1 // pred_check
      _
    $region3: #{mlm_forward.1} parent=1 // pred_check_branch
      %131 = sbr.rel (0) target = $region5
    $region4: #{mlm_forward.1} parent=1 // pred_region
      %133 = vsyncadd [#allocation5], 0
      %s135 = sshll.u32 %s1, 4
      %s136 = int_to_ptr.vmem [resolvable:$true] %s135
      %138 = dma.vmem_to_smem %s136, 16, [#allocation3], [#allocation5]
    $region5: #{mlm_forward.1} parent=1 // pred_fallthru
      _
    // Predicated region
    $region6: #{mlm_forward.1} parent=1 // pred_check
      _
    $region7: #{mlm_forward.1} parent=1 // pred_check_branch
      %140 = sbr.rel (0) target = $region9
    $region8: #{mlm_forward.1} parent=1 // pred_region
      _
    $region9: #{mlm_forward.1} parent=1 // pred_fallthru
      _
    // Predicated region
    $region10: #{mlm_forward.1} parent=1 // pred_check
      _
    $region11: #{mlm_forward.1} parent=1 // pred_check_branch
      %142 = sbr.rel (0) target = $region13
    $region12: #{mlm_forward.1} parent=1 // pred_region
      %144 = vsyncadd [#allocation4], 0
      %s145 = sshll.u32 %s5, 4
      %s146 = int_to_ptr.hbm [resolvable:$true] %s145
      %s147 = sshll.u32 [#allocation6], 4
      %s148 = int_to_ptr.vmem [resolvable:$true] %s147
      %153 = dma.hbm_to_vmem [thread:$0]  %s146, 256, %s148, [#allocation4], 128, 128, 8
    $region13: #{mlm_forward.1} parent=1 // pred_fallthru
      _
    // Predicated region
    $region14: #{mlm_forward.1} parent=1 // pred_check
      _
    $region15: #{mlm_forward.1} parent=1 // pred_check_branch
      %155 = sbr.rel (0) target = $region17
    $region16: #{mlm_forward.1} parent=1 // pred_region
      _
    $region17: #{mlm_forward.1} parent=1 // pred_fallthru
      _
    // Predicated region
    $region18: #{mlm_forward.1} parent=1 // pred_check
      _
    $region19: #{mlm_forward.1} parent=1 // pred_check_branch
      %157 = sbr.rel (0) target = $region21
    $region20: #{mlm_forward.1} parent=1 // pred_region
      _
    $region21: #{mlm_forward.1} parent=1 // pred_fallthru
      _
    // Predicated region
    $region22: #{mlm_forward.1} parent=1 // pred_check
      _
    $region23: #{mlm_forward.1} parent=1 // pred_check_branch
      %159 = sbr.rel (0) target = $region25
    $region24: #{mlm_forward.1} parent=1 // pred_region
      _
    $region25: #{mlm_forward.1} parent=1 // pred_fallthru
      _
    // Predicated region
    $region26: #{mlm_forward.1} parent=1 // pred_check
      _
    $region27: #{mlm_forward.1} parent=1 // pred_check_branch
      %161 = sbr.rel (0) target = $region29
    $region28: #{mlm_forward.1} parent=1 // pred_region
      %163 = vsyncadd [#allocation8], 0
      %s165 = sshll.u32 %s13, 4
      %s166 = int_to_ptr.hbm [resolvable:$true] %s165
      %s167 = sshll.u32 [#allocation7], 4
      %s168 = int_to_ptr.vmem [resolvable:$true] %s167
      %170 = dma.hbm_to_vmem [thread:$0]  %s166, 16, %s168, [#allocation8]
    $region29: #{mlm_forward.1} parent=1 // pred_fallthru
      _
    // Predicated region
    $region30: #{mlm_forward.1} parent=1 // pred_check
      _
    $region31: #{mlm_forward.1} parent=1 // pred_check_branch
      %172 = sbr.rel (0) target = $region33
    $region32: #{mlm_forward.1} parent=1 // pred_region
      %174 = vsyncadd [#allocation8], 0
      %s176 = sshll.u32 %s15, 4
      %s177 = int_to_ptr.hbm [resolvable:$true] %s176
      %s178 = sshll.u32 [#allocation9], 4
      %s179 = int_to_ptr.vmem [resolvable:$true] %s178
      %181 = dma.hbm_to_vmem [thread:$0]  %s177, 16, %s179, [#allocation8]
    $region33: #{mlm_forward.1} parent=1 // pred_fallthru
      _
    // Predicated region
    $region34: #{mlm_forward.1} parent=1 // pred_check
      _
    $region35: #{mlm_forward.1} parent=1 // pred_check_branch
      %183 = sbr.rel (0) target = $region37
    $region36: #{mlm_forward.1} parent=1 // pred_region
      %185 = vsyncadd [#allocation11], 0
      %s187 = sshll.u32 %s17, 4
      %s188 = int_to_ptr.hbm [resolvable:$true] %s187
      %s189 = sshll.u32 [#allocation10], 4
      %s190 = int_to_ptr.vmem [resolvable:$true] %s189
      %192 = dma.hbm_to_vmem [thread:$0]  %s188, 16, %s190, [#allocation11]
    $region37: #{mlm_forward.1} parent=1 // pred_fallthru
      _
    // Predicated region
    $region38: #{mlm_forward.1} parent=1 // pred_check
      _
    $region39: #{mlm_forward.1} parent=1 // pred_check_branch
      %194 = sbr.rel (0) target = $region41
    $region40: #{mlm_forward.1} parent=1 // pred_region
      _
    $region41: #{mlm_forward.1} parent=1 // pred_fallthru
      _
    // Predicated region
    $region42: #{mlm_forward.1} parent=1 // pred_check
      _
    $region43: #{mlm_forward.1} parent=1 // pred_check_branch
      %196 = sbr.rel (0) target = $region45
    $region44: #{mlm_forward.1} parent=1 // pred_region
      %198 = vsyncadd [#allocation11], 0
      %s200 = sshll.u32 %s21, 4
      %s201 = int_to_ptr.hbm [resolvable:$true] %s200
      %s202 = sshll.u32 [#allocation12], 4
      %s203 = int_to_ptr.vmem [resolvable:$true] %s202
      %205 = dma.hbm_to_vmem [thread:$0]  %s201, 16, %s203, [#allocation11]
    $region45: #{mlm_forward.1} parent=1 // pred_fallthru
      _
    // Predicated region
    $region46: #{mlm_forward.1} parent=1 // pred_check
      _
    $region47: #{mlm_forward.1} parent=1 // pred_check_branch
      %207 = sbr.rel (0) target = $region49
    $region48: #{mlm_forward.1} parent=1 // pred_region
      _
    $region49: #{mlm_forward.1} parent=1 // pred_fallthru
      _
    // Predicated region
    $region50: #{mlm_forward.1} parent=1 // pred_check
      _
    $region51: #{mlm_forward.1} parent=1 // pred_check_branch
      %209 = sbr.rel (0) target = $region53
    $region52: #{mlm_forward.1} parent=1 // pred_region
      %211 = vsyncadd [#allocation14], 0
      %s213 = sshll.u32 %s25, 4
      %s214 = int_to_ptr.hbm [resolvable:$true] %s213
      %s215 = sshll.u32 [#allocation13], 4
      %s216 = int_to_ptr.vmem [resolvable:$true] %s215
      %218 = dma.hbm_to_vmem [thread:$0]  %s214, 16, %s216, [#allocation14]
    $region53: #{mlm_forward.1} parent=1 // pred_fallthru
      _
    // Predicated region
    $region54: #{mlm_forward.1} parent=1 // pred_check
      _
    $region55: #{mlm_forward.1} parent=1 // pred_check_branch
      %220 = sbr.rel (0) target = $region57
    $region56: #{mlm_forward.1} parent=1 // pred_region
      %222 = vsyncadd [#allocation14], 0
      %s224 = sshll.u32 %s27, 4
      %s225 = int_to_ptr.hbm [resolvable:$true] %s224
      %s226 = sshll.u32 [#allocation15], 4
      %s227 = int_to_ptr.vmem [resolvable:$true] %s226
      %229 = dma.hbm_to_vmem [thread:$0]  %s225, 16, %s227, [#allocation14]
    $region57: #{mlm_forward.1} parent=1 // pred_fallthru
      _
    // Predicated region
    $region58: #{mlm_forward.1} parent=1 // pred_check
      _
    $region59: #{mlm_forward.1} parent=1 // pred_check_branch
      %231 = sbr.rel (0) target = $region61
    $region60: #{mlm_forward.1} parent=1 // pred_region
      %233 = vsyncadd [#allocation17], 0
      %s235 = sshll.u32 %s29, 4
      %s236 = int_to_ptr.hbm [resolvable:$true] %s235
      %s237 = sshll.u32 [#allocation16], 4
      %s238 = int_to_ptr.vmem [resolvable:$true] %s237
      %240 = dma.hbm_to_vmem [thread:$0]  %s236, 16, %s238, [#allocation17]
    $region61: #{mlm_forward.1} parent=1 // pred_fallthru
      _
    // Predicated region
    $region62: #{mlm_forward.1} parent=1 // pred_check
      _
    $region63: #{mlm_forward.1} parent=1 // pred_check_branch
      %242 = sbr.rel (0) target = $region65
    $region64: #{mlm_forward.1} parent=1 // pred_region
      _
    $region65: #{mlm_forward.1} parent=1 // pred_fallthru
      _
    // Predicated region
    $region66: #{mlm_forward.1} parent=1 // pred_check
      _
    $region67: #{mlm_forward.1} parent=1 // pred_check_branch
      %244 = sbr.rel (0) target = $region69
    $region68: #{mlm_forward.1} parent=1 // pred_region
      %246 = vsyncadd [#allocation17], 0
      %s248 = sshll.u32 %s33, 4
      %s249 = int_to_ptr.hbm [resolvable:$true] %s248
      %s250 = sshll.u32 [#allocation18], 4
      %s251 = int_to_ptr.vmem [resolvable:$true] %s250
      %253 = dma.hbm_to_vmem [thread:$0]  %s249, 16, %s251, [#allocation17]
    $region69: #{mlm_forward.1} parent=1 // pred_fallthru
      _
    // Predicated region
    $region70: #{mlm_forward.1} parent=1 // pred_check
      _
    $region71: #{mlm_forward.1} parent=1 // pred_check_branch
      %255 = sbr.rel (0) target = $region73
    $region72: #{mlm_forward.1} parent=1 // pred_region
      _
    $region73: #{mlm_forward.1} parent=1 // pred_fallthru
      _
    // Predicated region
    $region74: #{mlm_forward.1} parent=1 // pred_check
      _
    $region75: #{mlm_forward.1} parent=1 // pred_check_branch
      %257 = sbr.rel (0) target = $region77
    $region76: #{mlm_forward.1} parent=1 // pred_region
      %259 = vsyncadd [#allocation20], 0
      %s261 = sshll.u32 %s37, 4
      %s262 = int_to_ptr.hbm [resolvable:$true] %s261
      %s263 = sshll.u32 [#allocation19], 4
      %s264 = int_to_ptr.vmem [resolvable:$true] %s263
      %266 = dma.hbm_to_vmem [thread:$0]  %s262, 16, %s264, [#allocation20]
    $region77: #{mlm_forward.1} parent=1 // pred_fallthru
      _
    // Predicated region
    $region78: #{mlm_forward.1} parent=1 // pred_check
      _
    $region79: #{mlm_forward.1} parent=1 // pred_check_branch
      %268 = sbr.rel (0) target = $region81
    $region80: #{mlm_forward.1} parent=1 // pred_region
      %270 = vsyncadd [#allocation20], 0
      %s272 = sshll.u32 %s39, 4
      %s273 = int_to_ptr.hbm [resolvable:$true] %s272
      %s274 = sshll.u32 [#allocation21], 4
      %s275 = int_to_ptr.vmem [resolvable:$true] %s274
      %277 = dma.hbm_to_vmem [thread:$0]  %s273, 16, %s275, [#allocation20]
    $region81: #{mlm_forward.1} parent=1 // pred_fallthru
      _
    // Predicated region
    $region82: #{mlm_forward.1} parent=1 // pred_check
      _
    $region83: #{mlm_forward.1} parent=1 // pred_check_branch
      %279 = sbr.rel (0) target = $region85
    $region84: #{mlm_forward.1} parent=1 // pred_region
      %281 = vsyncadd [#allocation23], 0
      %s283 = sshll.u32 %s41, 4
      %s284 = int_to_ptr.hbm [resolvable:$true] %s283
      %s285 = sshll.u32 [#allocation22], 4
      %s286 = int_to_ptr.vmem [resolvable:$true] %s285
      %288 = dma.hbm_to_vmem [thread:$0]  %s284, 16, %s286, [#allocation23]
    $region85: #{mlm_forward.1} parent=1 // pred_fallthru
      _
    // Predicated region
    $region86: #{mlm_forward.1} parent=1 // pred_check
      _
    $region87: #{mlm_forward.1} parent=1 // pred_check_branch
      %290 = sbr.rel (0) target = $region89
    $region88: #{mlm_forward.1} parent=1 // pred_region
      _
    $region89: #{mlm_forward.1} parent=1 // pred_fallthru
      _
    // Predicated region
    $region90: #{mlm_forward.1} parent=1 // pred_check
      _
    $region91: #{mlm_forward.1} parent=1 // pred_check_branch
      %292 = sbr.rel (0) target = $region93
    $region92: #{mlm_forward.1} parent=1 // pred_region
      %294 = vsyncadd [#allocation23], 0
      %s296 = sshll.u32 %s45, 4
      %s297 = int_to_ptr.hbm [resolvable:$true] %s296
      %s298 = sshll.u32 [#allocation24], 4
      %s299 = int_to_ptr.vmem [resolvable:$true] %s298
      %301 = dma.hbm_to_vmem [thread:$0]  %s297, 16, %s299, [#allocation23]
    $region93: #{mlm_forward.1} parent=1 // pred_fallthru
      _
    // Predicated region
    $region94: #{mlm_forward.1} parent=1 // pred_check
      _
    $region95: #{mlm_forward.1} parent=1 // pred_check_branch
      %303 = sbr.rel (0) target = $region97
    $region96: #{mlm_forward.1} parent=1 // pred_region
      _
    $region97: #{mlm_forward.1} parent=1 // pred_fallthru
      _
    // Predicated region
    $region98: #{mlm_forward.1} parent=1 // pred_check
      _
    $region99: #{mlm_forward.1} parent=1 // pred_check_branch
      %305 = sbr.rel (0) target = $region101
    $region100: #{mlm_forward.1} parent=1 // pred_region
      %307 = vsyncadd [#allocation26], 0
      %s309 = sshll.u32 %s49, 4
      %s310 = int_to_ptr.hbm [resolvable:$true] %s309
      %s311 = sshll.u32 [#allocation25], 4
      %s312 = int_to_ptr.vmem [resolvable:$true] %s311
      %314 = dma.hbm_to_vmem [thread:$0]  %s310, 16, %s312, [#allocation26]
    $region101: #{mlm_forward.1} parent=1 // pred_fallthru
      _
    // Predicated region
    $region102: #{mlm_forward.1} parent=1 // pred_check
      _
    $region103: #{mlm_forward.1} parent=1 // pred_check_branch
      %316 = sbr.rel (0) target = $region105
    $region104: #{mlm_forward.1} parent=1 // pred_region
      %318 = vsyncadd [#allocation26], 0
      %s320 = sshll.u32 %s51, 4
      %s321 = int_to_ptr.hbm [resolvable:$true] %s320
      %s322 = sshll.u32 [#allocation27], 4
      %s323 = int_to_ptr.vmem [resolvable:$true] %s322
      %325 = dma.hbm_to_vmem [thread:$0]  %s321, 16, %s323, [#allocation26]
    $region105: #{mlm_forward.1} parent=1 // pred_fallthru
      _
    // Predicated region
    $region106: #{mlm_forward.1} parent=1 // pred_check
      _
    $region107: #{mlm_forward.1} parent=1 // pred_check_branch
      %327 = sbr.rel (0) target = $region109
    $region108: #{mlm_forward.1} parent=1 // pred_region
      %329 = vsyncadd [#allocation29], 0
      %s331 = sshll.u32 %s53, 4
      %s332 = int_to_ptr.hbm [resolvable:$true] %s331
      %s333 = sshll.u32 [#allocation28], 4
      %s334 = int_to_ptr.vmem [resolvable:$true] %s333
      %336 = dma.hbm_to_vmem [thread:$0]  %s332, 16, %s334, [#allocation29]
    $region109: #{mlm_forward.1} parent=1 // pred_fallthru
      _
    // Predicated region
    $region110: #{mlm_forward.1} parent=1 // pred_check
      _
    $region111: #{mlm_forward.1} parent=1 // pred_check_branch
      %338 = sbr.rel (0) target = $region113
    $region112: #{mlm_forward.1} parent=1 // pred_region
      %340 = vsyncadd [#allocation29], 0
      %s342 = sshll.u32 %s55, 4
      %s343 = int_to_ptr.hbm [resolvable:$true] %s342
      %s344 = sshll.u32 [#allocation30], 4
      %s345 = int_to_ptr.vmem [resolvable:$true] %s344
      %347 = dma.hbm_to_vmem [thread:$0]  %s343, 16, %s345, [#allocation29]
    $region113: #{mlm_forward.1} parent=1 // pred_fallthru
      _
    // Predicated region
    $region114: #{mlm_forward.1} parent=1 // pred_check
      _
    $region115: #{mlm_forward.1} parent=1 // pred_check_branch
      %349 = sbr.rel (0) target = $region117
    $region116: #{mlm_forward.1} parent=1 // pred_region
      %351 = vsyncadd [#allocation32], 0
      %s353 = sshll.u32 %s57, 4
      %s354 = int_to_ptr.hbm [resolvable:$true] %s353
      %s355 = sshll.u32 [#allocation31], 4
      %s356 = int_to_ptr.vmem [resolvable:$true] %s355
      %358 = dma.hbm_to_vmem [thread:$0]  %s354, 16, %s356, [#allocation32]
    $region117: #{mlm_forward.1} parent=1 // pred_fallthru
      _
    // Predicated region
    $region118: #{mlm_forward.1} parent=1 // pred_check
      _
    $region119: #{mlm_forward.1} parent=1 // pred_check_branch
      %360 = sbr.rel (0) target = $region121
    $region120: #{mlm_forward.1} parent=1 // pred_region
      _
    $region121: #{mlm_forward.1} parent=1 // pred_fallthru
      _
    // Predicated region
    $region122: #{mlm_forward.1} parent=1 // pred_check
      _
    $region123: #{mlm_forward.1} parent=1 // pred_check_branch
      %362 = sbr.rel (0) target = $region125
    $region124: #{mlm_forward.1} parent=1 // pred_region
      _
    $region125: #{mlm_forward.1} parent=1 // pred_fallthru
      _
    // Predicated region
    $region126: #{mlm_forward.1} parent=1 // pred_check
      _
    $region127: #{mlm_forward.1} parent=1 // pred_check_branch
      %364 = sbr.rel (0) target = $region129
    $region128: #{mlm_forward.1} parent=1 // pred_region
      _
    $region129: #{mlm_forward.1} parent=1 // pred_fallthru
      _
    // Predicated region
    $region130: #{mlm_forward.1} parent=1 // pred_check
      _
    $region131: #{mlm_forward.1} parent=1 // pred_check_branch
      %366 = sbr.rel (0) target = $region133
    $region132: #{mlm_forward.1} parent=1 // pred_region
      %368 = vsyncadd [#allocation32], 0
      %s369 = sshll.u32 %s65, 4
      %s370 = int_to_ptr.hbm [resolvable:$true] %s369
      %s371 = sshll.u32 [#allocation33], 4
      %s372 = int_to_ptr.vmem [resolvable:$true] %s371
      %377 = dma.hbm_to_vmem [thread:$0]  %s370, 512, %s372, [#allocation32], 128, 128, 8
    $region133: #{mlm_forward.1} parent=1 // pred_fallthru
      _
    // Predicated region
    $region134: #{mlm_forward.1} parent=1 // pred_check
      _
    $region135: #{mlm_forward.1} parent=1 // pred_check_branch
      %379 = sbr.rel (0) target = $region137
    $region136: #{mlm_forward.1} parent=1 // pred_region
      _
    $region137: #{mlm_forward.1} parent=1 // pred_fallthru
      _
    // Predicated region
    $region138: #{mlm_forward.1} parent=1 // pred_check
      _
    $region139: #{mlm_forward.1} parent=1 // pred_check_branch
      %381 = sbr.rel (0) target = $region141
    $region140: #{mlm_forward.1} parent=1 // pred_region
      _
    $region141: #{mlm_forward.1} parent=1 // pred_fallthru
      _
    // Predicated region
    $region142: #{mlm_forward.1} parent=1 // pred_check
      _
    $region143: #{mlm_forward.1} parent=1 // pred_check_branch
      %383 = sbr.rel (0) target = $region145
    $region144: #{mlm_forward.1} parent=1 // pred_region
      _
    $region145: #{mlm_forward.1} parent=1 // pred_fallthru
      _
    // Predicated region
    $region146: #{mlm_forward.1} parent=1 // pred_check
      _
    $region147: #{mlm_forward.1} parent=1 // pred_check_branch
      %385 = sbr.rel (0) target = $region149
    $region148: #{mlm_forward.1} parent=1 // pred_region
      %387 = vsyncadd [#allocation35], 0
      %s388 = sshll.u32 %s73, 4
      %s389 = int_to_ptr.hbm [resolvable:$true] %s388
      %s390 = sshll.u32 [#allocation34], 4
      %s391 = int_to_ptr.vmem [resolvable:$true] %s390
      %396 = dma.hbm_to_vmem [thread:$0]  %s389, 256, %s391, [#allocation35], 128, 128, 8
    $region149: #{mlm_forward.1} parent=1 // pred_fallthru
      _
    // Predicated region
    $region150: #{mlm_forward.1} parent=1 // pred_check
      _
    $region151: #{mlm_forward.1} parent=1 // pred_check_branch
      %398 = sbr.rel (0) target = $region153
    $region152: #{mlm_forward.1} parent=1 // pred_region
      %400 = vsyncadd [#allocation35], 0
      %s401 = sshll.u32 %s75, 4
      %s402 = int_to_ptr.hbm [resolvable:$true] %s401
      %s403 = sshll.u32 [#allocation36], 4
      %s404 = int_to_ptr.vmem [resolvable:$true] %s403
      %409 = dma.hbm_to_vmem [thread:$0]  %s402, 512, %s404, [#allocation35], 128, 128, 8
    $region153: #{mlm_forward.1} parent=1 // pred_fallthru
      _
    // Predicated region
    $region154: #{mlm_forward.1} parent=1 // pred_check
      _
    $region155: #{mlm_forward.1} parent=1 // pred_check_branch
      %411 = sbr.rel (0) target = $region157
    $region156: #{mlm_forward.1} parent=1 // pred_region
      %413 = vsyncadd [#allocation38], 0
      %s415 = sshll.u32 %s77, 4
      %s416 = int_to_ptr.hbm [resolvable:$true] %s415
      %s417 = sshll.u32 [#allocation37], 4
      %s418 = int_to_ptr.vmem [resolvable:$true] %s417
      %420 = dma.hbm_to_vmem [thread:$0]  %s416, 16, %s418, [#allocation38]
    $region157: #{mlm_forward.1} parent=1 // pred_fallthru
      _
    // Predicated region
    $region158: #{mlm_forward.1} parent=1 // pred_check
      _
    $region159: #{mlm_forward.1} parent=1 // pred_check_branch
      %422 = sbr.rel (0) target = $region161
    $region160: #{mlm_forward.1} parent=1 // pred_region
      %424 = vsyncadd [#allocation38], 0
      %s425 = sshll.u32 %s79, 4
      %s426 = int_to_ptr.hbm [resolvable:$true] %s425
      %s427 = sshll.u32 [#allocation39], 4
      %s428 = int_to_ptr.vmem [resolvable:$true] %s427
      %433 = dma.hbm_to_vmem [thread:$0]  %s426, 512, %s428, [#allocation38], 128, 128, 8
    $region161: #{mlm_forward.1} parent=1 // pred_fallthru
      _
    // Predicated region
    $region162: #{mlm_forward.1} parent=1 // pred_check
      _
    $region163: #{mlm_forward.1} parent=1 // pred_check_branch
      %435 = sbr.rel (0) target = $region165
    $region164: #{mlm_forward.1} parent=1 // pred_region
      %437 = vsyncadd [#allocation41], 0
      %s439 = sshll.u32 %s81, 4
      %s440 = int_to_ptr.hbm [resolvable:$true] %s439
      %s441 = sshll.u32 [#allocation40], 4
      %s442 = int_to_ptr.vmem [resolvable:$true] %s441
      %444 = dma.hbm_to_vmem [thread:$0]  %s440, 16, %s442, [#allocation41]
    $region165: #{mlm_forward.1} parent=1 // pred_fallthru
      _
    // Predicated region
    $region166: #{mlm_forward.1} parent=1 // pred_check
      _
    $region167: #{mlm_forward.1} parent=1 // pred_check_branch
      %446 = sbr.rel (0) target = $region169
    $region168: #{mlm_forward.1} parent=1 // pred_region
      %448 = vsyncadd [#allocation41], 0
      %s450 = sshll.u32 %s83, 4
      %s451 = int_to_ptr.hbm [resolvable:$true] %s450
      %s452 = sshll.u32 [#allocation42], 4
      %s453 = int_to_ptr.vmem [resolvable:$true] %s452
      %455 = dma.hbm_to_vmem [thread:$0]  %s451, 16, %s453, [#allocation41]
    $region169: #{mlm_forward.1} parent=1 // pred_fallthru
      _
    // Predicated region
    $region170: #{mlm_forward.1} parent=1 // pred_check
      _
    $region171: #{mlm_forward.1} parent=1 // pred_check_branch
      %457 = sbr.rel (0) target = $region173
    $region172: #{mlm_forward.1} parent=1 // pred_region
      %459 = vsyncadd [#allocation44], 0
      %s461 = sshll.u32 %s85, 4
      %s462 = int_to_ptr.hbm [resolvable:$true] %s461
      %s463 = sshll.u32 [#allocation43], 4
      %s464 = int_to_ptr.vmem [resolvable:$true] %s463
      %466 = dma.hbm_to_vmem [thread:$0]  %s462, 16, %s464, [#allocation44]
    $region173: #{mlm_forward.1} parent=1 // pred_fallthru
      _
    // Predicated region
    $region174: #{mlm_forward.1} parent=1 // pred_check
      _
    $region175: #{mlm_forward.1} parent=1 // pred_check_branch
      %468 = sbr.rel (0) target = $region177
    $region176: #{mlm_forward.1} parent=1 // pred_region
      %470 = vsyncadd [#allocation44], 0
      %s471 = sshll.u32 %s87, 4
      %s472 = int_to_ptr.hbm [resolvable:$true] %s471
      %s473 = sshll.u32 [#allocation45], 4
      %s474 = int_to_ptr.vmem [resolvable:$true] %s473
      %479 = dma.hbm_to_vmem [thread:$0]  %s472, 512, %s474, [#allocation44], 128, 128, 8
    $region177: #{mlm_forward.1} parent=1 // pred_fallthru
      _
    // Predicated region
    $region178: #{mlm_forward.1} parent=1 // pred_check
      _
    $region179: #{mlm_forward.1} parent=1 // pred_check_branch
      %481 = sbr.rel (0) target = $region181
    $region180: #{mlm_forward.1} parent=1 // pred_region
      %483 = vsyncadd [#allocation47], 0
      %s485 = sshll.u32 %s89, 4
      %s486 = int_to_ptr.hbm [resolvable:$true] %s485
      %s487 = sshll.u32 [#allocation46], 4
      %s488 = int_to_ptr.vmem [resolvable:$true] %s487
      %490 = dma.hbm_to_vmem [thread:$0]  %s486, 16, %s488, [#allocation47]
    $region181: #{mlm_forward.1} parent=1 // pred_fallthru
      _
    // Predicated region
    $region182: #{mlm_forward.1} parent=1 // pred_check
      _
    $region183: #{mlm_forward.1} parent=1 // pred_check_branch
      %492 = sbr.rel (0) target = $region185
    $region184: #{mlm_forward.1} parent=1 // pred_region
      _
    $region185: #{mlm_forward.1} parent=1 // pred_fallthru
      _
    // Predicated region
    $region186: #{mlm_forward.1} parent=1 // pred_check
      _
    $region187: #{mlm_forward.1} parent=1 // pred_check_branch
      %494 = sbr.rel (0) target = $region189
    $region188: #{mlm_forward.1} parent=1 // pred_region
      %496 = vsyncadd [#allocation47], 0
      %s498 = sshll.u32 %s93, 4
      %s499 = int_to_ptr.hbm [resolvable:$true] %s498
      %s500 = sshll.u32 [#allocation48], 4
      %s501 = int_to_ptr.vmem [resolvable:$true] %s500
      %503 = dma.hbm_to_vmem [thread:$0]  %s499, 16, %s501, [#allocation47]
    $region189: #{mlm_forward.1} parent=1 // pred_fallthru
      _
    // Predicated region
    $region190: #{mlm_forward.1} parent=1 // pred_check
      _
    $region191: #{mlm_forward.1} parent=1 // pred_check_branch
      %505 = sbr.rel (0) target = $region193
    $region192: #{mlm_forward.1} parent=1 // pred_region
      %507 = vsyncadd [#allocation50], 0
      %s509 = sshll.u32 %s95, 4
      %s510 = int_to_ptr.hbm [resolvable:$true] %s509
      %s511 = sshll.u32 [#allocation49], 4
      %s512 = int_to_ptr.vmem [resolvable:$true] %s511
      %514 = dma.hbm_to_vmem [thread:$0]  %s510, 16, %s512, [#allocation50]
    $region193: #{mlm_forward.1} parent=1 // pred_fallthru
      _
    // Predicated region
    $region194: #{mlm_forward.1} parent=1 // pred_check
      _
    $region195: #{mlm_forward.1} parent=1 // pred_check_branch
      %516 = sbr.rel (0) target = $region197
    $region196: #{mlm_forward.1} parent=1 // pred_region
      %518 = vsyncadd [#allocation50], 0
      %s520 = sshll.u32 %s97, 4
      %s521 = int_to_ptr.hbm [resolvable:$true] %s520
      %s522 = sshll.u32 [#allocation51], 4
      %s523 = int_to_ptr.vmem [resolvable:$true] %s522
      %525 = dma.hbm_to_vmem [thread:$0]  %s521, 16, %s523, [#allocation50]
    $region197: #{mlm_forward.1} parent=1 // pred_fallthru
      _
    // Predicated region
    $region198: #{mlm_forward.1} parent=1 // pred_check
      _
    $region199: #{mlm_forward.1} parent=1 // pred_check_branch
      %527 = sbr.rel (0) target = $region201
    $region200: #{mlm_forward.1} parent=1 // pred_region
      _
    $region201: #{mlm_forward.1} parent=1 // pred_fallthru
      _
    // Predicated region
    $region202: #{mlm_forward.1} parent=1 // pred_check
      _
    $region203: #{mlm_forward.1} parent=1 // pred_check_branch
      %529 = sbr.rel (0) target = $region205
    $region204: #{mlm_forward.1} parent=1 // pred_region
      _
    $region205: #{mlm_forward.1} parent=1 // pred_fallthru
      _
    // Predicated region
    $region206: #{mlm_forward.1} parent=1 // pred_check
      _
    $region207: #{mlm_forward.1} parent=1 // pred_check_branch
      %531 = sbr.rel (0) target = $region209
    $region208: #{mlm_forward.1} parent=1 // pred_region
      %533 = dma.done [#allocation5], 16
    $region209: #{mlm_forward.1} parent=1 // pred_fallthru
      _
    // Predicated region
    $region210: #{mlm_forward.1} parent=1 // pred_check
      _
    $region211: #{mlm_forward.1} parent=1 // pred_check_branch
      %535 = sbr.rel (0) target = $region213
    $region212: #{mlm_forward.1} parent=1 // pred_region
      %537 = dma.done [#allocation4], 256
    $region213: #{mlm_forward.1} parent=1 // pred_fallthru
      _
    // Predicated region
    $region214: #{mlm_forward.1} parent=1 // pred_check
      _
    $region215: #{mlm_forward.1} parent=1 // pred_check_branch
      %539 = sbr.rel (0) target = $region217
    $region216: #{mlm_forward.1} parent=1 // pred_region
      %541 = dma.done [#allocation8], 16
    $region217: #{mlm_forward.1} parent=1 // pred_fallthru
      _
    // Predicated region
    $region218: #{mlm_forward.1} parent=1 // pred_check
      _
    $region219: #{mlm_forward.1} parent=1 // pred_check_branch
      %543 = sbr.rel (0) target = $region221
    $region220: #{mlm_forward.1} parent=1 // pred_region
      %545 = dma.done [#allocation8], 16
    $region221: #{mlm_forward.1} parent=1 // pred_fallthru
      _
    // Predicated region
    $region222: #{mlm_forward.1} parent=1 // pred_check
      _
    $region223: #{mlm_forward.1} parent=1 // pred_check_branch
      %547 = sbr.rel (0) target = $region225
    $region224: #{mlm_forward.1} parent=1 // pred_region
      %549 = dma.done [#allocation11], 16
    $region225: #{mlm_forward.1} parent=1 // pred_fallthru
      _
    // Predicated region
    $region226: #{mlm_forward.1} parent=1 // pred_check
      _
    $region227: #{mlm_forward.1} parent=1 // pred_check_branch
      %551 = sbr.rel (0) target = $region229
    $region228: #{mlm_forward.1} parent=1 // pred_region
      %553 = dma.done [#allocation11], 16
    $region229: #{mlm_forward.1} parent=1 // pred_fallthru
      _
    // Predicated region
    $region230: #{mlm_forward.1} parent=1 // pred_check
      _
    $region231: #{mlm_forward.1} parent=1 // pred_check_branch
      %555 = sbr.rel (0) target = $region233
    $region232: #{mlm_forward.1} parent=1 // pred_region
      %557 = dma.done [#allocation14], 16
    $region233: #{mlm_forward.1} parent=1 // pred_fallthru
      _
    // Predicated region
    $region234: #{mlm_forward.1} parent=1 // pred_check
      _
    $region235: #{mlm_forward.1} parent=1 // pred_check_branch
      %559 = sbr.rel (0) target = $region237
    $region236: #{mlm_forward.1} parent=1 // pred_region
      %561 = dma.done [#allocation14], 16
    $region237: #{mlm_forward.1} parent=1 // pred_fallthru
      _
    // Predicated region
    $region238: #{mlm_forward.1} parent=1 // pred_check
      _
    $region239: #{mlm_forward.1} parent=1 // pred_check_branch
      %563 = sbr.rel (0) target = $region241
    $region240: #{mlm_forward.1} parent=1 // pred_region
      %565 = dma.done [#allocation17], 16
    $region241: #{mlm_forward.1} parent=1 // pred_fallthru
      _
    // Predicated region
    $region242: #{mlm_forward.1} parent=1 // pred_check
      _
    $region243: #{mlm_forward.1} parent=1 // pred_check_branch
      %567 = sbr.rel (0) target = $region245
    $region244: #{mlm_forward.1} parent=1 // pred_region
      %569 = dma.done [#allocation17], 16
    $region245: #{mlm_forward.1} parent=1 // pred_fallthru
      _
    // Predicated region
    $region246: #{mlm_forward.1} parent=1 // pred_check
      _
    $region247: #{mlm_forward.1} parent=1 // pred_check_branch
      %571 = sbr.rel (0) target = $region249
    $region248: #{mlm_forward.1} parent=1 // pred_region
      %573 = dma.done [#allocation20], 16
    $region249: #{mlm_forward.1} parent=1 // pred_fallthru
      _
    // Predicated region
    $region250: #{mlm_forward.1} parent=1 // pred_check
      _
    $region251: #{mlm_forward.1} parent=1 // pred_check_branch
      %575 = sbr.rel (0) target = $region253
    $region252: #{mlm_forward.1} parent=1 // pred_region
      %577 = dma.done [#allocation20], 16
    $region253: #{mlm_forward.1} parent=1 // pred_fallthru
      _
    // Predicated region
    $region254: #{mlm_forward.1} parent=1 // pred_check
      _
    $region255: #{mlm_forward.1} parent=1 // pred_check_branch
      %579 = sbr.rel (0) target = $region257
    $region256: #{mlm_forward.1} parent=1 // pred_region
      %581 = dma.done [#allocation23], 16
    $region257: #{mlm_forward.1} parent=1 // pred_fallthru
      _
    // Predicated region
    $region258: #{mlm_forward.1} parent=1 // pred_check
      _
    $region259: #{mlm_forward.1} parent=1 // pred_check_branch
      %583 = sbr.rel (0) target = $region261
    $region260: #{mlm_forward.1} parent=1 // pred_region
      %585 = dma.done [#allocation23], 16
    $region261: #{mlm_forward.1} parent=1 // pred_fallthru
      _
    // Predicated region
    $region262: #{mlm_forward.1} parent=1 // pred_check
      _
    $region263: #{mlm_forward.1} parent=1 // pred_check_branch
      %587 = sbr.rel (0) target = $region265
    $region264: #{mlm_forward.1} parent=1 // pred_region
      %589 = dma.done [#allocation26], 16
    $region265: #{mlm_forward.1} parent=1 // pred_fallthru
      _
    // Predicated region
    $region266: #{mlm_forward.1} parent=1 // pred_check
      _
    $region267: #{mlm_forward.1} parent=1 // pred_check_branch
      %591 = sbr.rel (0) target = $region269
    $region268: #{mlm_forward.1} parent=1 // pred_region
      %593 = dma.done [#allocation26], 16
    $region269: #{mlm_forward.1} parent=1 // pred_fallthru
      _
    // Predicated region
    $region270: #{mlm_forward.1} parent=1 // pred_check
      _
    $region271: #{mlm_forward.1} parent=1 // pred_check_branch
      %595 = sbr.rel (0) target = $region273
    $region272: #{mlm_forward.1} parent=1 // pred_region
      %597 = dma.done [#allocation29], 16
    $region273: #{mlm_forward.1} parent=1 // pred_fallthru
      _
    // Predicated region
    $region274: #{mlm_forward.1} parent=1 // pred_check
      _
    $region275: #{mlm_forward.1} parent=1 // pred_check_branch
      %599 = sbr.rel (0) target = $region277
    $region276: #{mlm_forward.1} parent=1 // pred_region
      %601 = dma.done [#allocation29], 16
    $region277: #{mlm_forward.1} parent=1 // pred_fallthru
      _
    // Predicated region
    $region278: #{mlm_forward.1} parent=1 // pred_check
      _
    $region279: #{mlm_forward.1} parent=1 // pred_check_branch
      %603 = sbr.rel (0) target = $region281
    $region280: #{mlm_forward.1} parent=1 // pred_region
      %605 = dma.done [#allocation32], 16
    $region281: #{mlm_forward.1} parent=1 // pred_fallthru
      _
    // Predicated region
    $region282: #{mlm_forward.1} parent=1 // pred_check
      _
    $region283: #{mlm_forward.1} parent=1 // pred_check_branch
      %607 = sbr.rel (0) target = $region285
    $region284: #{mlm_forward.1} parent=1 // pred_region
      %609 = dma.done [#allocation32], 512
    $region285: #{mlm_forward.1} parent=1 // pred_fallthru
      _
    // Predicated region
    $region286: #{mlm_forward.1} parent=1 // pred_check
      _
    $region287: #{mlm_forward.1} parent=1 // pred_check_branch
      %611 = sbr.rel (0) target = $region289
    $region288: #{mlm_forward.1} parent=1 // pred_region
      %613 = dma.done [#allocation35], 256
    $region289: #{mlm_forward.1} parent=1 // pred_fallthru
      _
    // Predicated region
    $region290: #{mlm_forward.1} parent=1 // pred_check
      _
    $region291: #{mlm_forward.1} parent=1 // pred_check_branch
      %615 = sbr.rel (0) target = $region293
    $region292: #{mlm_forward.1} parent=1 // pred_region
      %617 = dma.done [#allocation35], 512
    $region293: #{mlm_forward.1} parent=1 // pred_fallthru
      _
    // Predicated region
    $region294: #{mlm_forward.1} parent=1 // pred_check
      _
    $region295: #{mlm_forward.1} parent=1 // pred_check_branch
      %619 = sbr.rel (0) target = $region297
    $region296: #{mlm_forward.1} parent=1 // pred_region
      %621 = dma.done [#allocation38], 16
    $region297: #{mlm_forward.1} parent=1 // pred_fallthru
      _
    // Predicated region
    $region298: #{mlm_forward.1} parent=1 // pred_check
      _
    $region299: #{mlm_forward.1} parent=1 // pred_check_branch
      %623 = sbr.rel (0) target = $region301
    $region300: #{mlm_forward.1} parent=1 // pred_region
      %625 = dma.done [#allocation38], 512
    $region301: #{mlm_forward.1} parent=1 // pred_fallthru
      _
    // Predicated region
    $region302: #{mlm_forward.1} parent=1 // pred_check
      _
    $region303: #{mlm_forward.1} parent=1 // pred_check_branch
      %627 = sbr.rel (0) target = $region305
    $region304: #{mlm_forward.1} parent=1 // pred_region
      %629 = dma.done [#allocation41], 16
    $region305: #{mlm_forward.1} parent=1 // pred_fallthru
      _
    // Predicated region
    $region306: #{mlm_forward.1} parent=1 // pred_check
      _
    $region307: #{mlm_forward.1} parent=1 // pred_check_branch
      %631 = sbr.rel (0) target = $region309
    $region308: #{mlm_forward.1} parent=1 // pred_region
      %633 = dma.done [#allocation41], 16
    $region309: #{mlm_forward.1} parent=1 // pred_fallthru
      _
    // Predicated region
    $region310: #{mlm_forward.1} parent=1 // pred_check
      _
    $region311: #{mlm_forward.1} parent=1 // pred_check_branch
      %635 = sbr.rel (0) target = $region313
    $region312: #{mlm_forward.1} parent=1 // pred_region
      %637 = dma.done [#allocation44], 16
    $region313: #{mlm_forward.1} parent=1 // pred_fallthru
      _
    // Predicated region
    $region314: #{mlm_forward.1} parent=1 // pred_check
      _
    $region315: #{mlm_forward.1} parent=1 // pred_check_branch
      %639 = sbr.rel (0) target = $region317
    $region316: #{mlm_forward.1} parent=1 // pred_region
      %641 = dma.done [#allocation44], 512
    $region317: #{mlm_forward.1} parent=1 // pred_fallthru
      _
    // Predicated region
    $region318: #{mlm_forward.1} parent=1 // pred_check
      _
    $region319: #{mlm_forward.1} parent=1 // pred_check_branch
      %643 = sbr.rel (0) target = $region321
    $region320: #{mlm_forward.1} parent=1 // pred_region
      %645 = dma.done [#allocation47], 16
    $region321: #{mlm_forward.1} parent=1 // pred_fallthru
      _
    // Predicated region
    $region322: #{mlm_forward.1} parent=1 // pred_check
      _
    $region323: #{mlm_forward.1} parent=1 // pred_check_branch
      %647 = sbr.rel (0) target = $region325
    $region324: #{mlm_forward.1} parent=1 // pred_region
      %649 = dma.done [#allocation47], 16
    $region325: #{mlm_forward.1} parent=1 // pred_fallthru
      _
    // Predicated region
    $region326: #{mlm_forward.1} parent=1 // pred_check
      _
    $region327: #{mlm_forward.1} parent=1 // pred_check_branch
      %651 = sbr.rel (0) target = $region329
    $region328: #{mlm_forward.1} parent=1 // pred_region
      %653 = dma.done [#allocation50], 16
    $region329: #{mlm_forward.1} parent=1 // pred_fallthru
      _
    // Predicated region
    $region330: #{mlm_forward.1} parent=1 // pred_check
      _
    $region331: #{mlm_forward.1} parent=1 // pred_check_branch
      %655 = sbr.rel (0) target = $region333
    $region332: #{mlm_forward.1} parent=1 // pred_region
      %657 = dma.done [#allocation50], 16
    $region333: #{mlm_forward.1} parent=1 // pred_fallthru
      _
    %658 = sfence
    %v659 = vld [vmem:[%s3] sm:$0xff]
    %v660 = vld [vmem:[%s3 + $0x8] sm:$0xff]
    %v661 = vld [vmem:[%s3 + $0x10] sm:$0xff]
    %v662 = vld [vmem:[%s3 + $0x18] sm:$0xff]
    %v663 = vld [vmem:[#allocation6] sm:$0xff]
    %v664 = vld [vmem:[#allocation6 + $0x8] sm:$0xff]
    %v665 = vadd.f32 %v659, %v663
    %v666 = vadd.f32 %v660, %v664
    %v667 = vadd.f32 %v661, %v663
    %v668 = vadd.f32 %v662, %v664
    %v669 = vld [vmem:[%s7] sm:$0xff]
    %v670 = vld [vmem:[%s7 + $0x8] sm:$0xff]
    %v671 = vld [vmem:[%s7 + $0x10] sm:$0xff]
    %v672 = vld [vmem:[%s7 + $0x18] sm:$0xff]
    %v673 = vld [vmem:[%s9] sm:$0x1]
    %v674 = vld [vmem:[%s11] sm:$0xff]
    %v675 = vld [vmem:[%s11 + $0x8] sm:$0xff]
    %v676 = vld [vmem:[%s11 + $0x10] sm:$0xff]
    %v677 = vld [vmem:[%s11 + $0x18] sm:$0xff]
    %v678 = vld [vmem:[#allocation7] sm:$0x1]
    %v679 = vld [vmem:[#allocation9] sm:$0x1]
    %v680 = vld [vmem:[#allocation10] sm:$0x1]
    %v681 = vld [vmem:[%s19] sm:$0xff]
    %v682 = vld [vmem:[%s19 + $0x8] sm:$0xff]
    %v683 = vld [vmem:[%s19 + $0x10] sm:$0xff]
    %v684 = vld [vmem:[%s19 + $0x18] sm:$0xff]
    %v685 = vld [vmem:[#allocation12] sm:$0x1]
    %v686 = vld [vmem:[%s23] sm:$0xff]
    %v687 = vld [vmem:[%s23 + $0x8] sm:$0xff]
    %v688 = vld [vmem:[%s23 + $0x10] sm:$0xff]
    %v689 = vld [vmem:[%s23 + $0x18] sm:$0xff]
    %v690 = vld [vmem:[%s23 + $0x20] sm:$0xff]
    %v691 = vld [vmem:[%s23 + $0x28] sm:$0xff]
    %v692 = vld [vmem:[%s23 + $0x30] sm:$0xff]
    %v693 = vld [vmem:[%s23 + $0x38] sm:$0xff]
    %v694 = vld [vmem:[#allocation13] sm:$0x1]
    %v695 = vld [vmem:[#allocation15] sm:$0x1]
    %v696 = vld [vmem:[#allocation16] sm:$0x1]
    %v698 = vperm.slane %v673, 0
    %vm700 = vcmask 261120
    %v702 = vsel %vm700, %v665, 0
    %v705 = vsel %vm700, %v666, 0
    %v708 = vsel %vm700, %v667, 0
    %v711 = vsel %vm700, %v668, 0
    %713 = vmatpush.msra.mxu0 0.0
    %714 = vmatpush.msra.mxu0 0.0
    %715 = vmatpush.msra.mxu0 0.0
    %716 = vmatpush.msra.mxu0 0.0
    %717 = vmatpush.msra.mxu0 0.0
    %718 = vmatpush.msra.mxu0 0.0
    %719 = vmatpush.msra.mxu0 0.0
    %720 = vmatpush.msra.mxu0 0.0
    %721 = vmatpush.msra.mxu0 0.0
    %722 = vmatpush.msra.mxu0 0.0
    %723 = vmatpush.msra.mxu0 0.0
    %724 = vmatpush.msra.mxu0 0.0
    %725 = vmatpush.msra.mxu0 %v672
    %726 = vmatpush.msra.mxu0 %v671
    %727 = vmatpush.msra.mxu0 %v670
    %728 = vmatpush.msra.mxu0 %v669
    %729 = vmatmul.f32.gmra.mxu0 %v702
    %v730 = vpop.f32.mrf.mxu0
    %v731 = vadd.f32 %v698, %v730
    %732 = vmatmul.f32.gmra.mxu0 %v705
    %v733 = vpop.f32.mrf.mxu0
    %v734 = vadd.f32 %v698, %v733
    %735 = vmatmul.f32.gmra.mxu0 %v708
    %v736 = vpop.f32.mrf.mxu0
    %v737 = vadd.f32 %v698, %v736
    %738 = vmatmul.f32.gmra.mxu0 %v711
    %v739 = vpop.f32.mrf.mxu0
    %v740 = vadd.f32 %v698, %v739
    %741 = vdwg.mxu0
    %744 = vrot.lane.b32.xlu0 %v731, 96
    %v745 = vpop.permute.xlu0 %744
    %746 = vrot.lane.b32.xlu0 %v734, 96
    %v747 = vpop.permute.xlu0 %746
    %vm748 = vcmask 64512
    %v749 = vsel %vm748, %v731, 0
    %v751 = vsel %vm748, %v734, 0
    %v753 = vsel %vm748, %v745, 0
    %v755 = vsel %vm748, %v747, 0
    %757 = vmatpush.xpose.msra.mxu0 0.0
    %758 = vmatpush.xpose.msra.mxu0 0.0
    %759 = vmatpush.xpose.msra.mxu0 0.0
    %760 = vmatpush.xpose.msra.mxu0 0.0
    %761 = vmatpush.xpose.msra.mxu0 0.0
    %762 = vmatpush.xpose.msra.mxu0 0.0
    %763 = vmatpush.xpose.msra.mxu0 0.0
    %764 = vmatpush.xpose.msra.mxu0 0.0
    %765 = vmatpush.xpose.msra.mxu0 0.0
    %766 = vmatpush.xpose.msra.mxu0 0.0
    %767 = vmatpush.xpose.msra.mxu0 0.0
    %768 = vmatpush.xpose.msra.mxu0 0.0
    %769 = vmatpush.xpose.msra.mxu0 0.0
    %770 = vmatpush.xpose.msra.mxu0 0.0
    %771 = vmatpush.xpose.msra.mxu0 %v755
    %772 = vmatpush.xpose.msra.mxu0 %v753
    %773 = vmatmul.f32.gmra.mxu0 %v749
    %v774 = vpop.f32.mrf.mxu0
    %v775 = vadd.f32 0.0, %v774
    %776 = vmatmul.f32.gmra.mxu0 %v751
    %v777 = vpop.f32.mrf.mxu0
    %v778 = vadd.f32 0.0, %v777
    %779 = vdwg.mxu0
    %v780 = vmul.f32 %v775, 0.35355338
    %v781 = vmul.f32 %v778, 0.35355338
    %vm782 = vcmask 130048
    %v783 = vsel %vm782, %v780, -inf
    %784 = vmax.xlane.f32.xlu0 %v783
    %v785 = vpop.xlane.xlu0 %784
    %v786 = vsel %vm782, %v781, -inf
    %787 = vmax.xlane.f32.xlu0 %v786
    %v788 = vpop.xlane.xlu0 %787
    %v789 = vsub.f32 %v780, %v785
    %v790 = vsub.f32 %v781, %v788
    %v791 = vmul.f32 %v789, 1.442695
    %v792 = vpow.pop %v791
    %v793 = vmul.f32 %v790, 1.442695
    %v794 = vpow.pop %v793
    %v795 = vsel %vm782, %v792, 0.0
    %796 = vadd.xlane.f32.xlu0 %v795
    %v797 = vpop.xlane.xlu0 %796
    %v798 = vsel %vm782, %v794, 0.0
    %799 = vadd.xlane.f32.xlu0 %v798
    %v800 = vpop.xlane.xlu0 %799
    %v801 = vrcp.pop %v797
    %v802 = vrcp.pop %v800
    %v803 = vmul.f32 %v792, %v801
    %v804 = vmul.f32 %v794, %v802
    %805 = vrot.lane.b32.xlu0 %v731, 64
    %v806 = vpop.permute.xlu0 %805
    %807 = vrot.lane.b32.xlu0 %v734, 64
    %v808 = vpop.permute.xlu0 %807
    %v812 = vsel %vm782, %v803, 0
    %v815 = vsel %vm782, %v804, 0
    %817 = vmatpush.msra.mxu0 0.0
    %818 = vmatpush.msra.mxu0 0.0
    %819 = vmatpush.msra.mxu0 0.0
    %820 = vmatpush.msra.mxu0 0.0
    %821 = vmatpush.msra.mxu0 0.0
    %822 = vmatpush.msra.mxu0 0.0
    %823 = vmatpush.msra.mxu0 0.0
    %824 = vmatpush.msra.mxu0 0.0
    %825 = vmatpush.msra.mxu0 0.0
    %826 = vmatpush.msra.mxu0 0.0
    %827 = vmatpush.msra.mxu0 0.0
    %828 = vmatpush.msra.mxu0 0.0
    %829 = vmatpush.msra.mxu0 0.0
    %830 = vmatpush.msra.mxu0 0.0
    %831 = vmatpush.msra.mxu0 %v808
    %832 = vmatpush.msra.mxu0 %v806
    %833 = vmatmul.f32.gmra.mxu0 %v812
    %v834 = vpop.f32.mrf.mxu0
    %v835 = vadd.f32 0.0, %v834
    %836 = vmatmul.f32.gmra.mxu0 %v815
    %v837 = vpop.f32.mrf.mxu0
    %v838 = vadd.f32 0.0, %v837
    %839 = vdwg.mxu0
    %840 = vrot.lane.b32.xlu0 %v731, 120
    %v841 = vpop.permute.xlu0 %840
    %842 = vrot.lane.b32.xlu0 %v734, 120
    %v843 = vpop.permute.xlu0 %842
    %844 = vrot.lane.b32.xlu0 %v731, 88
    %v845 = vpop.permute.xlu0 %844
    %846 = vrot.lane.b32.xlu0 %v734, 88
    %v847 = vpop.permute.xlu0 %846
    %v848 = vsel %vm748, %v841, 0
    %v850 = vsel %vm748, %v843, 0
    %v852 = vsel %vm748, %v845, 0
    %v854 = vsel %vm748, %v847, 0
    %856 = vmatpush.xpose.msra.mxu0 0.0
    %857 = vmatpush.xpose.msra.mxu0 0.0
    %858 = vmatpush.xpose.msra.mxu0 0.0
    %859 = vmatpush.xpose.msra.mxu0 0.0
    %860 = vmatpush.xpose.msra.mxu0 0.0
    %861 = vmatpush.xpose.msra.mxu0 0.0
    %862 = vmatpush.xpose.msra.mxu0 0.0
    %863 = vmatpush.xpose.msra.mxu0 0.0
    %864 = vmatpush.xpose.msra.mxu0 0.0
    %865 = vmatpush.xpose.msra.mxu0 0.0
    %866 = vmatpush.xpose.msra.mxu0 0.0
    %867 = vmatpush.xpose.msra.mxu0 0.0
    %868 = vmatpush.xpose.msra.mxu0 0.0
    %869 = vmatpush.xpose.msra.mxu0 0.0
    %870 = vmatpush.xpose.msra.mxu0 %v854
    %871 = vmatpush.xpose.msra.mxu0 %v852
    %872 = vmatmul.f32.gmra.mxu0 %v848
    %v873 = vpop.f32.mrf.mxu0
    %v874 = vadd.f32 0.0, %v873
    %875 = vmatmul.f32.gmra.mxu0 %v850
    %v876 = vpop.f32.mrf.mxu0
    %v877 = vadd.f32 0.0, %v876
    %878 = vdwg.mxu0
    %v879 = vmul.f32 %v874, 0.35355338
    %v880 = vmul.f32 %v877, 0.35355338
    %v881 = vsel %vm782, %v879, -inf
    %882 = vmax.xlane.f32.xlu0 %v881
    %v883 = vpop.xlane.xlu0 %882
    %v884 = vsel %vm782, %v880, -inf
    %885 = vmax.xlane.f32.xlu0 %v884
    %v886 = vpop.xlane.xlu0 %885
    %v887 = vsub.f32 %v879, %v883
    %v888 = vsub.f32 %v880, %v886
    %v889 = vmul.f32 %v887, 1.442695
    %v890 = vpow.pop %v889
    %v891 = vmul.f32 %v888, 1.442695
    %v892 = vpow.pop %v891
    %v893 = vsel %vm782, %v890, 0.0
    %894 = vadd.xlane.f32.xlu0 %v893
    %v895 = vpop.xlane.xlu0 %894
    %v896 = vsel %vm782, %v892, 0.0
    %897 = vadd.xlane.f32.xlu0 %v896
    %v898 = vpop.xlane.xlu0 %897
    %v899 = vrcp.pop %v895
    %v900 = vrcp.pop %v898
    %v901 = vmul.f32 %v890, %v899
    %v902 = vmul.f32 %v892, %v900
    %903 = vrot.lane.b32.xlu0 %v731, 56
    %v904 = vpop.permute.xlu0 %903
    %905 = vrot.lane.b32.xlu0 %v734, 56
    %v906 = vpop.permute.xlu0 %905
    %v910 = vsel %vm782, %v901, 0
    %v913 = vsel %vm782, %v902, 0
    %915 = vmatpush.msra.mxu0 0.0
    %916 = vmatpush.msra.mxu0 0.0
    %917 = vmatpush.msra.mxu0 0.0
    %918 = vmatpush.msra.mxu0 0.0
    %919 = vmatpush.msra.mxu0 0.0
    %920 = vmatpush.msra.mxu0 0.0
    %921 = vmatpush.msra.mxu0 0.0
    %922 = vmatpush.msra.mxu0 0.0
    %923 = vmatpush.msra.mxu0 0.0
    %924 = vmatpush.msra.mxu0 0.0
    %925 = vmatpush.msra.mxu0 0.0
    %926 = vmatpush.msra.mxu0 0.0
    %927 = vmatpush.msra.mxu0 0.0
    %928 = vmatpush.msra.mxu0 0.0
    %929 = vmatpush.msra.mxu0 %v906
    %930 = vmatpush.msra.mxu0 %v904
    %931 = vmatmul.f32.gmra.mxu0 %v910
    %v932 = vpop.f32.mrf.mxu0
    %v933 = vadd.f32 0.0, %v932
    %934 = vmatmul.f32.gmra.mxu0 %v913
    %v935 = vpop.f32.mrf.mxu0
    %v936 = vadd.f32 0.0, %v935
    %937 = vdwg.mxu0
    %938 = vrot.lane.b32.xlu0 %v731, 112
    %v939 = vpop.permute.xlu0 %938
    %940 = vrot.lane.b32.xlu0 %v734, 112
    %v941 = vpop.permute.xlu0 %940
    %942 = vrot.lane.b32.xlu0 %v731, 80
    %v943 = vpop.permute.xlu0 %942
    %944 = vrot.lane.b32.xlu0 %v734, 80
    %v945 = vpop.permute.xlu0 %944
    %v946 = vsel %vm748, %v939, 0
    %v948 = vsel %vm748, %v941, 0
    %v950 = vsel %vm748, %v943, 0
    %v952 = vsel %vm748, %v945, 0
    %954 = vmatpush.xpose.msra.mxu0 0.0
    %955 = vmatpush.xpose.msra.mxu0 0.0
    %956 = vmatpush.xpose.msra.mxu0 0.0
    %957 = vmatpush.xpose.msra.mxu0 0.0
    %958 = vmatpush.xpose.msra.mxu0 0.0
    %959 = vmatpush.xpose.msra.mxu0 0.0
    %960 = vmatpush.xpose.msra.mxu0 0.0
    %961 = vmatpush.xpose.msra.mxu0 0.0
    %962 = vmatpush.xpose.msra.mxu0 0.0
    %963 = vmatpush.xpose.msra.mxu0 0.0
    %964 = vmatpush.xpose.msra.mxu0 0.0
    %965 = vmatpush.xpose.msra.mxu0 0.0
    %966 = vmatpush.xpose.msra.mxu0 0.0
    %967 = vmatpush.xpose.msra.mxu0 0.0
    %968 = vmatpush.xpose.msra.mxu0 %v952
    %969 = vmatpush.xpose.msra.mxu0 %v950
    %970 = vmatmul.f32.gmra.mxu0 %v946
    %v971 = vpop.f32.mrf.mxu0
    %v972 = vadd.f32 0.0, %v971
    %973 = vmatmul.f32.gmra.mxu0 %v948
    %v974 = vpop.f32.mrf.mxu0
    %v975 = vadd.f32 0.0, %v974
    %976 = vdwg.mxu0
    %v977 = vmul.f32 %v972, 0.35355338
    %v978 = vmul.f32 %v975, 0.35355338
    %v979 = vsel %vm782, %v977, -inf
    %980 = vmax.xlane.f32.xlu0 %v979
    %v981 = vpop.xlane.xlu0 %980
    %v982 = vsel %vm782, %v978, -inf
    %983 = vmax.xlane.f32.xlu0 %v982
    %v984 = vpop.xlane.xlu0 %983
    %v985 = vsub.f32 %v977, %v981
    %v986 = vsub.f32 %v978, %v984
    %v987 = vmul.f32 %v985, 1.442695
    %v988 = vpow.pop %v987
    %v989 = vmul.f32 %v986, 1.442695
    %v990 = vpow.pop %v989
    %v991 = vsel %vm782, %v988, 0.0
    %992 = vadd.xlane.f32.xlu0 %v991
    %v993 = vpop.xlane.xlu0 %992
    %v994 = vsel %vm782, %v990, 0.0
    %995 = vadd.xlane.f32.xlu0 %v994
    %v996 = vpop.xlane.xlu0 %995
    %v997 = vrcp.pop %v993
    %v998 = vrcp.pop %v996
    %v999 = vmul.f32 %v988, %v997
    %v1000 = vmul.f32 %v990, %v998
    %1001 = vrot.lane.b32.xlu0 %v731, 48
    %v1002 = vpop.permute.xlu0 %1001
    %1003 = vrot.lane.b32.xlu0 %v734, 48
    %v1004 = vpop.permute.xlu0 %1003
    %v1008 = vsel %vm782, %v999, 0
    %v1011 = vsel %vm782, %v1000, 0
    %1013 = vmatpush.msra.mxu0 0.0
    %1014 = vmatpush.msra.mxu0 0.0
    %1015 = vmatpush.msra.mxu0 0.0
    %1016 = vmatpush.msra.mxu0 0.0
    %1017 = vmatpush.msra.mxu0 0.0
    %1018 = vmatpush.msra.mxu0 0.0
    %1019 = vmatpush.msra.mxu0 0.0
    %1020 = vmatpush.msra.mxu0 0.0
    %1021 = vmatpush.msra.mxu0 0.0
    %1022 = vmatpush.msra.mxu0 0.0
    %1023 = vmatpush.msra.mxu0 0.0
    %1024 = vmatpush.msra.mxu0 0.0
    %1025 = vmatpush.msra.mxu0 0.0
    %1026 = vmatpush.msra.mxu0 0.0
    %1027 = vmatpush.msra.mxu0 %v1004
    %1028 = vmatpush.msra.mxu0 %v1002
    %1029 = vmatmul.f32.gmra.mxu0 %v1008
    %v1030 = vpop.f32.mrf.mxu0
    %v1031 = vadd.f32 0.0, %v1030
    %1032 = vmatmul.f32.gmra.mxu0 %v1011
    %v1033 = vpop.f32.mrf.mxu0
    %v1034 = vadd.f32 0.0, %v1033
    %1035 = vdwg.mxu0
    %1036 = vrot.lane.b32.xlu0 %v731, 104
    %v1037 = vpop.permute.xlu0 %1036
    %1038 = vrot.lane.b32.xlu0 %v734, 104
    %v1039 = vpop.permute.xlu0 %1038
    %1040 = vrot.lane.b32.xlu0 %v731, 72
    %v1041 = vpop.permute.xlu0 %1040
    %1042 = vrot.lane.b32.xlu0 %v734, 72
    %v1043 = vpop.permute.xlu0 %1042
    %v1044 = vsel %vm748, %v1037, 0
    %v1046 = vsel %vm748, %v1039, 0
    %v1048 = vsel %vm748, %v1041, 0
    %v1050 = vsel %vm748, %v1043, 0
    %1052 = vmatpush.xpose.msra.mxu0 0.0
    %1053 = vmatpush.xpose.msra.mxu0 0.0
    %1054 = vmatpush.xpose.msra.mxu0 0.0
    %1055 = vmatpush.xpose.msra.mxu0 0.0
    %1056 = vmatpush.xpose.msra.mxu0 0.0
    %1057 = vmatpush.xpose.msra.mxu0 0.0
    %1058 = vmatpush.xpose.msra.mxu0 0.0
    %1059 = vmatpush.xpose.msra.mxu0 0.0
    %1060 = vmatpush.xpose.msra.mxu0 0.0
    %1061 = vmatpush.xpose.msra.mxu0 0.0
    %1062 = vmatpush.xpose.msra.mxu0 0.0
    %1063 = vmatpush.xpose.msra.mxu0 0.0
    %1064 = vmatpush.xpose.msra.mxu0 0.0
    %1065 = vmatpush.xpose.msra.mxu0 0.0
    %1066 = vmatpush.xpose.msra.mxu0 %v1050
    %1067 = vmatpush.xpose.msra.mxu0 %v1048
    %1068 = vmatmul.f32.gmra.mxu0 %v1044
    %v1069 = vpop.f32.mrf.mxu0
    %v1070 = vadd.f32 0.0, %v1069
    %1071 = vmatmul.f32.gmra.mxu0 %v1046
    %v1072 = vpop.f32.mrf.mxu0
    %v1073 = vadd.f32 0.0, %v1072
    %1074 = vdwg.mxu0
    %v1075 = vmul.f32 %v1070, 0.35355338
    %v1076 = vmul.f32 %v1073, 0.35355338
    %v1077 = vsel %vm782, %v1075, -inf
    %1078 = vmax.xlane.f32.xlu0 %v1077
    %v1079 = vpop.xlane.xlu0 %1078
    %v1080 = vsel %vm782, %v1076, -inf
    %1081 = vmax.xlane.f32.xlu0 %v1080
    %v1082 = vpop.xlane.xlu0 %1081
    %v1083 = vsub.f32 %v1075, %v1079
    %v1084 = vsub.f32 %v1076, %v1082
    %v1085 = vmul.f32 %v1083, 1.442695
    %v1086 = vpow.pop %v1085
    %v1087 = vmul.f32 %v1084, 1.442695
    %v1088 = vpow.pop %v1087
    %v1089 = vsel %vm782, %v1086, 0.0
    %1090 = vadd.xlane.f32.xlu0 %v1089
    %v1091 = vpop.xlane.xlu0 %1090
    %v1092 = vsel %vm782, %v1088, 0.0
    %1093 = vadd.xlane.f32.xlu0 %v1092
    %v1094 = vpop.xlane.xlu0 %1093
    %v1095 = vrcp.pop %v1091
    %v1096 = vrcp.pop %v1094
    %v1097 = vmul.f32 %v1086, %v1095
    %v1098 = vmul.f32 %v1088, %v1096
    %1099 = vrot.lane.b32.xlu0 %v731, 40
    %v1100 = vpop.permute.xlu0 %1099
    %1101 = vrot.lane.b32.xlu0 %v734, 40
    %v1102 = vpop.permute.xlu0 %1101
    %v1106 = vsel %vm782, %v1097, 0
    %v1109 = vsel %vm782, %v1098, 0
    %1111 = vmatpush.msra.mxu0 0.0
    %1112 = vmatpush.msra.mxu0 0.0
    %1113 = vmatpush.msra.mxu0 0.0
    %1114 = vmatpush.msra.mxu0 0.0
    %1115 = vmatpush.msra.mxu0 0.0
    %1116 = vmatpush.msra.mxu0 0.0
    %1117 = vmatpush.msra.mxu0 0.0
    %1118 = vmatpush.msra.mxu0 0.0
    %1119 = vmatpush.msra.mxu0 0.0
    %1120 = vmatpush.msra.mxu0 0.0
    %1121 = vmatpush.msra.mxu0 0.0
    %1122 = vmatpush.msra.mxu0 0.0
    %1123 = vmatpush.msra.mxu0 0.0
    %1124 = vmatpush.msra.mxu0 0.0
    %1125 = vmatpush.msra.mxu0 %v1102
    %1126 = vmatpush.msra.mxu0 %v1100
    %1127 = vmatmul.f32.gmra.mxu0 %v1106
    %v1128 = vpop.f32.mrf.mxu0
    %v1129 = vadd.f32 0.0, %v1128
    %1130 = vmatmul.f32.gmra.mxu0 %v1109
    %v1131 = vpop.f32.mrf.mxu0
    %v1132 = vadd.f32 0.0, %v1131
    %1133 = vdwg.mxu0
    %1136 = vrot.lane.b32.xlu0 %v933, 8
    %v1137 = vpop.permute.xlu0 %1136
    %1138 = vrot.lane.b32.xlu0 %v936, 8
    %v1139 = vpop.permute.xlu0 %1138
    %1144 = vrot.lane.b32.xlu0 %v1031, 16
    %v1145 = vpop.permute.xlu0 %1144
    %1146 = vrot.lane.b32.xlu0 %v1034, 16
    %v1147 = vpop.permute.xlu0 %1146
    %1152 = vrot.lane.b32.xlu0 %v1129, 24
    %v1153 = vpop.permute.xlu0 %1152
    %1154 = vrot.lane.b32.xlu0 %v1132, 24
    %v1155 = vpop.permute.xlu0 %1154
    %v1158 = vsel %vm748, %v835, %v1137
    %v1159 = vsel %vm748, %v838, %v1139
    %v1160 = vsel %vm782, %v1158, %v1145
    %v1161 = vsel %vm782, %v1159, %v1147
    %vm1162 = vcmask 195584
    %v1163 = vsel %vm1162, %v1160, %v1153
    %v1164 = vsel %vm1162, %v1161, %v1155
    %1167 = vrot.lane.b32.xlu0 %v737, 96
    %v1168 = vpop.permute.xlu0 %1167
    %1169 = vrot.lane.b32.xlu0 %v740, 96
    %v1170 = vpop.permute.xlu0 %1169
    %v1171 = vsel %vm748, %v737, 0
    %v1173 = vsel %vm748, %v740, 0
    %v1175 = vsel %vm748, %v1168, 0
    %v1177 = vsel %vm748, %v1170, 0
    %1179 = vmatpush.xpose.msra.mxu0 0.0
    %1180 = vmatpush.xpose.msra.mxu0 0.0
    %1181 = vmatpush.xpose.msra.mxu0 0.0
    %1182 = vmatpush.xpose.msra.mxu0 0.0
    %1183 = vmatpush.xpose.msra.mxu0 0.0
    %1184 = vmatpush.xpose.msra.mxu0 0.0
    %1185 = vmatpush.xpose.msra.mxu0 0.0
    %1186 = vmatpush.xpose.msra.mxu0 0.0
    %1187 = vmatpush.xpose.msra.mxu0 0.0
    %1188 = vmatpush.xpose.msra.mxu0 0.0
    %1189 = vmatpush.xpose.msra.mxu0 0.0
    %1190 = vmatpush.xpose.msra.mxu0 0.0
    %1191 = vmatpush.xpose.msra.mxu0 0.0
    %1192 = vmatpush.xpose.msra.mxu0 0.0
    %1193 = vmatpush.xpose.msra.mxu0 %v1177
    %1194 = vmatpush.xpose.msra.mxu0 %v1175
    %1195 = vmatmul.f32.gmra.mxu0 %v1171
    %v1196 = vpop.f32.mrf.mxu0
    %v1197 = vadd.f32 0.0, %v1196
    %1198 = vmatmul.f32.gmra.mxu0 %v1173
    %v1199 = vpop.f32.mrf.mxu0
    %v1200 = vadd.f32 0.0, %v1199
    %1201 = vdwg.mxu0
    %v1202 = vmul.f32 %v1197, 0.35355338
    %v1203 = vmul.f32 %v1200, 0.35355338
    %v1204 = vsel %vm782, %v1202, -inf
    %1205 = vmax.xlane.f32.xlu0 %v1204
    %v1206 = vpop.xlane.xlu0 %1205
    %v1207 = vsel %vm782, %v1203, -inf
    %1208 = vmax.xlane.f32.xlu0 %v1207
    %v1209 = vpop.xlane.xlu0 %1208
    %v1210 = vsub.f32 %v1202, %v1206
    %v1211 = vsub.f32 %v1203, %v1209
    %v1212 = vmul.f32 %v1210, 1.442695
    %v1213 = vpow.pop %v1212
    %v1214 = vmul.f32 %v1211, 1.442695
    %v1215 = vpow.pop %v1214
    %v1216 = vsel %vm782, %v1213, 0.0
    %1217 = vadd.xlane.f32.xlu0 %v1216
    %v1218 = vpop.xlane.xlu0 %1217
    %v1219 = vsel %vm782, %v1215, 0.0
    %1220 = vadd.xlane.f32.xlu0 %v1219
    %v1221 = vpop.xlane.xlu0 %1220
    %v1222 = vrcp.pop %v1218
    %v1223 = vrcp.pop %v1221
    %v1224 = vmul.f32 %v1213, %v1222
    %v1225 = vmul.f32 %v1215, %v1223
    %1226 = vrot.lane.b32.xlu0 %v737, 64
    %v1227 = vpop.permute.xlu0 %1226
    %1228 = vrot.lane.b32.xlu0 %v740, 64
    %v1229 = vpop.permute.xlu0 %1228
    %v1233 = vsel %vm782, %v1224, 0
    %v1236 = vsel %vm782, %v1225, 0
    %1238 = vmatpush.msra.mxu0 0.0
    %1239 = vmatpush.msra.mxu0 0.0
    %1240 = vmatpush.msra.mxu0 0.0
    %1241 = vmatpush.msra.mxu0 0.0
    %1242 = vmatpush.msra.mxu0 0.0
    %1243 = vmatpush.msra.mxu0 0.0
    %1244 = vmatpush.msra.mxu0 0.0
    %1245 = vmatpush.msra.mxu0 0.0
    %1246 = vmatpush.msra.mxu0 0.0
    %1247 = vmatpush.msra.mxu0 0.0
    %1248 = vmatpush.msra.mxu0 0.0
    %1249 = vmatpush.msra.mxu0 0.0
    %1250 = vmatpush.msra.mxu0 0.0
    %1251 = vmatpush.msra.mxu0 0.0
    %1252 = vmatpush.msra.mxu0 %v1229
    %1253 = vmatpush.msra.mxu0 %v1227
    %1254 = vmatmul.f32.gmra.mxu0 %v1233
    %v1255 = vpop.f32.mrf.mxu0
    %v1256 = vadd.f32 0.0, %v1255
    %1257 = vmatmul.f32.gmra.mxu0 %v1236
    %v1258 = vpop.f32.mrf.mxu0
    %v1259 = vadd.f32 0.0, %v1258
    %1260 = vdwg.mxu0
    %1261 = vrot.lane.b32.xlu0 %v737, 120
    %v1262 = vpop.permute.xlu0 %1261
    %1263 = vrot.lane.b32.xlu0 %v740, 120
    %v1264 = vpop.permute.xlu0 %1263
    %1265 = vrot.lane.b32.xlu0 %v737, 88
    %v1266 = vpop.permute.xlu0 %1265
    %1267 = vrot.lane.b32.xlu0 %v740, 88
    %v1268 = vpop.permute.xlu0 %1267
    %v1269 = vsel %vm748, %v1262, 0
    %v1271 = vsel %vm748, %v1264, 0
    %v1273 = vsel %vm748, %v1266, 0
    %v1275 = vsel %vm748, %v1268, 0
    %1277 = vmatpush.xpose.msra.mxu0 0.0
    %1278 = vmatpush.xpose.msra.mxu0 0.0
    %1279 = vmatpush.xpose.msra.mxu0 0.0
    %1280 = vmatpush.xpose.msra.mxu0 0.0
    %1281 = vmatpush.xpose.msra.mxu0 0.0
    %1282 = vmatpush.xpose.msra.mxu0 0.0
    %1283 = vmatpush.xpose.msra.mxu0 0.0
    %1284 = vmatpush.xpose.msra.mxu0 0.0
    %1285 = vmatpush.xpose.msra.mxu0 0.0
    %1286 = vmatpush.xpose.msra.mxu0 0.0
    %1287 = vmatpush.xpose.msra.mxu0 0.0
    %1288 = vmatpush.xpose.msra.mxu0 0.0
    %1289 = vmatpush.xpose.msra.mxu0 0.0
    %1290 = vmatpush.xpose.msra.mxu0 0.0
    %1291 = vmatpush.xpose.msra.mxu0 %v1275
    %1292 = vmatpush.xpose.msra.mxu0 %v1273
    %1293 = vmatmul.f32.gmra.mxu0 %v1269
    %v1294 = vpop.f32.mrf.mxu0
    %v1295 = vadd.f32 0.0, %v1294
    %1296 = vmatmul.f32.gmra.mxu0 %v1271
    %v1297 = vpop.f32.mrf.mxu0
    %v1298 = vadd.f32 0.0, %v1297
    %1299 = vdwg.mxu0
    %v1300 = vmul.f32 %v1295, 0.35355338
    %v1301 = vmul.f32 %v1298, 0.35355338
    %v1302 = vsel %vm782, %v1300, -inf
    %1303 = vmax.xlane.f32.xlu0 %v1302
    %v1304 = vpop.xlane.xlu0 %1303
    %v1305 = vsel %vm782, %v1301, -inf
    %1306 = vmax.xlane.f32.xlu0 %v1305
    %v1307 = vpop.xlane.xlu0 %1306
    %v1308 = vsub.f32 %v1300, %v1304
    %v1309 = vsub.f32 %v1301, %v1307
    %v1310 = vmul.f32 %v1308, 1.442695
    %v1311 = vpow.pop %v1310
    %v1312 = vmul.f32 %v1309, 1.442695
    %v1313 = vpow.pop %v1312
    %v1314 = vsel %vm782, %v1311, 0.0
    %1315 = vadd.xlane.f32.xlu0 %v1314
    %v1316 = vpop.xlane.xlu0 %1315
    %v1317 = vsel %vm782, %v1313, 0.0
    %1318 = vadd.xlane.f32.xlu0 %v1317
    %v1319 = vpop.xlane.xlu0 %1318
    %v1320 = vrcp.pop %v1316
    %v1321 = vrcp.pop %v1319
    %v1322 = vmul.f32 %v1311, %v1320
    %v1323 = vmul.f32 %v1313, %v1321
    %1324 = vrot.lane.b32.xlu0 %v737, 56
    %v1325 = vpop.permute.xlu0 %1324
    %1326 = vrot.lane.b32.xlu0 %v740, 56
    %v1327 = vpop.permute.xlu0 %1326
    %v1331 = vsel %vm782, %v1322, 0
    %v1334 = vsel %vm782, %v1323, 0
    %1336 = vmatpush.msra.mxu0 0.0
    %1337 = vmatpush.msra.mxu0 0.0
    %1338 = vmatpush.msra.mxu0 0.0
    %1339 = vmatpush.msra.mxu0 0.0
    %1340 = vmatpush.msra.mxu0 0.0
    %1341 = vmatpush.msra.mxu0 0.0
    %1342 = vmatpush.msra.mxu0 0.0
    %1343 = vmatpush.msra.mxu0 0.0
    %1344 = vmatpush.msra.mxu0 0.0
    %1345 = vmatpush.msra.mxu0 0.0
    %1346 = vmatpush.msra.mxu0 0.0
    %1347 = vmatpush.msra.mxu0 0.0
    %1348 = vmatpush.msra.mxu0 0.0
    %1349 = vmatpush.msra.mxu0 0.0
    %1350 = vmatpush.msra.mxu0 %v1327
    %1351 = vmatpush.msra.mxu0 %v1325
    %1352 = vmatmul.f32.gmra.mxu0 %v1331
    %v1353 = vpop.f32.mrf.mxu0
    %v1354 = vadd.f32 0.0, %v1353
    %1355 = vmatmul.f32.gmra.mxu0 %v1334
    %v1356 = vpop.f32.mrf.mxu0
    %v1357 = vadd.f32 0.0, %v1356
    %1358 = vdwg.mxu0
    %1359 = vrot.lane.b32.xlu0 %v737, 112
    %v1360 = vpop.permute.xlu0 %1359
    %1361 = vrot.lane.b32.xlu0 %v740, 112
    %v1362 = vpop.permute.xlu0 %1361
    %1363 = vrot.lane.b32.xlu0 %v737, 80
    %v1364 = vpop.permute.xlu0 %1363
    %1365 = vrot.lane.b32.xlu0 %v740, 80
    %v1366 = vpop.permute.xlu0 %1365
    %v1367 = vsel %vm748, %v1360, 0
    %v1369 = vsel %vm748, %v1362, 0
    %v1371 = vsel %vm748, %v1364, 0
    %v1373 = vsel %vm748, %v1366, 0
    %1375 = vmatpush.xpose.msra.mxu0 0.0
    %1376 = vmatpush.xpose.msra.mxu0 0.0
    %1377 = vmatpush.xpose.msra.mxu0 0.0
    %1378 = vmatpush.xpose.msra.mxu0 0.0
    %1379 = vmatpush.xpose.msra.mxu0 0.0
    %1380 = vmatpush.xpose.msra.mxu0 0.0
    %1381 = vmatpush.xpose.msra.mxu0 0.0
    %1382 = vmatpush.xpose.msra.mxu0 0.0
    %1383 = vmatpush.xpose.msra.mxu0 0.0
    %1384 = vmatpush.xpose.msra.mxu0 0.0
    %1385 = vmatpush.xpose.msra.mxu0 0.0
    %1386 = vmatpush.xpose.msra.mxu0 0.0
    %1387 = vmatpush.xpose.msra.mxu0 0.0
    %1388 = vmatpush.xpose.msra.mxu0 0.0
    %1389 = vmatpush.xpose.msra.mxu0 %v1373
    %1390 = vmatpush.xpose.msra.mxu0 %v1371
    %1391 = vmatmul.f32.gmra.mxu0 %v1367
    %v1392 = vpop.f32.mrf.mxu0
    %v1393 = vadd.f32 0.0, %v1392
    %1394 = vmatmul.f32.gmra.mxu0 %v1369
    %v1395 = vpop.f32.mrf.mxu0
    %v1396 = vadd.f32 0.0, %v1395
    %1397 = vdwg.mxu0
    %v1398 = vmul.f32 %v1393, 0.35355338
    %v1399 = vmul.f32 %v1396, 0.35355338
    %v1400 = vsel %vm782, %v1398, -inf
    %1401 = vmax.xlane.f32.xlu0 %v1400
    %v1402 = vpop.xlane.xlu0 %1401
    %v1403 = vsel %vm782, %v1399, -inf
    %1404 = vmax.xlane.f32.xlu0 %v1403
    %v1405 = vpop.xlane.xlu0 %1404
    %v1406 = vsub.f32 %v1398, %v1402
    %v1407 = vsub.f32 %v1399, %v1405
    %v1408 = vmul.f32 %v1406, 1.442695
    %v1409 = vpow.pop %v1408
    %v1410 = vmul.f32 %v1407, 1.442695
    %v1411 = vpow.pop %v1410
    %v1412 = vsel %vm782, %v1409, 0.0
    %1413 = vadd.xlane.f32.xlu0 %v1412
    %v1414 = vpop.xlane.xlu0 %1413
    %v1415 = vsel %vm782, %v1411, 0.0
    %1416 = vadd.xlane.f32.xlu0 %v1415
    %v1417 = vpop.xlane.xlu0 %1416
    %v1418 = vrcp.pop %v1414
    %v1419 = vrcp.pop %v1417
    %v1420 = vmul.f32 %v1409, %v1418
    %v1421 = vmul.f32 %v1411, %v1419
    %1422 = vrot.lane.b32.xlu0 %v737, 48
    %v1423 = vpop.permute.xlu0 %1422
    %1424 = vrot.lane.b32.xlu0 %v740, 48
    %v1425 = vpop.permute.xlu0 %1424
    %v1429 = vsel %vm782, %v1420, 0
    %v1432 = vsel %vm782, %v1421, 0
    %1434 = vmatpush.msra.mxu0 0.0
    %1435 = vmatpush.msra.mxu0 0.0
    %1436 = vmatpush.msra.mxu0 0.0
    %1437 = vmatpush.msra.mxu0 0.0
    %1438 = vmatpush.msra.mxu0 0.0
    %1439 = vmatpush.msra.mxu0 0.0
    %1440 = vmatpush.msra.mxu0 0.0
    %1441 = vmatpush.msra.mxu0 0.0
    %1442 = vmatpush.msra.mxu0 0.0
    %1443 = vmatpush.msra.mxu0 0.0
    %1444 = vmatpush.msra.mxu0 0.0
    %1445 = vmatpush.msra.mxu0 0.0
    %1446 = vmatpush.msra.mxu0 0.0
    %1447 = vmatpush.msra.mxu0 0.0
    %1448 = vmatpush.msra.mxu0 %v1425
    %1449 = vmatpush.msra.mxu0 %v1423
    %1450 = vmatmul.f32.gmra.mxu0 %v1429
    %v1451 = vpop.f32.mrf.mxu0
    %v1452 = vadd.f32 0.0, %v1451
    %1453 = vmatmul.f32.gmra.mxu0 %v1432
    %v1454 = vpop.f32.mrf.mxu0
    %v1455 = vadd.f32 0.0, %v1454
    %1456 = vdwg.mxu0
    %1457 = vrot.lane.b32.xlu0 %v737, 104
    %v1458 = vpop.permute.xlu0 %1457
    %1459 = vrot.lane.b32.xlu0 %v740, 104
    %v1460 = vpop.permute.xlu0 %1459
    %1461 = vrot.lane.b32.xlu0 %v737, 72
    %v1462 = vpop.permute.xlu0 %1461
    %1463 = vrot.lane.b32.xlu0 %v740, 72
    %v1464 = vpop.permute.xlu0 %1463
    %v1465 = vsel %vm748, %v1458, 0
    %v1467 = vsel %vm748, %v1460, 0
    %v1469 = vsel %vm748, %v1462, 0
    %v1471 = vsel %vm748, %v1464, 0
    %1473 = vmatpush.xpose.msra.mxu0 0.0
    %1474 = vmatpush.xpose.msra.mxu0 0.0
    %1475 = vmatpush.xpose.msra.mxu0 0.0
    %1476 = vmatpush.xpose.msra.mxu0 0.0
    %1477 = vmatpush.xpose.msra.mxu0 0.0
    %1478 = vmatpush.xpose.msra.mxu0 0.0
    %1479 = vmatpush.xpose.msra.mxu0 0.0
    %1480 = vmatpush.xpose.msra.mxu0 0.0
    %1481 = vmatpush.xpose.msra.mxu0 0.0
    %1482 = vmatpush.xpose.msra.mxu0 0.0
    %1483 = vmatpush.xpose.msra.mxu0 0.0
    %1484 = vmatpush.xpose.msra.mxu0 0.0
    %1485 = vmatpush.xpose.msra.mxu0 0.0
    %1486 = vmatpush.xpose.msra.mxu0 0.0
    %1487 = vmatpush.xpose.msra.mxu0 %v1471
    %1488 = vmatpush.xpose.msra.mxu0 %v1469
    %1489 = vmatmul.f32.gmra.mxu0 %v1465
    %v1490 = vpop.f32.mrf.mxu0
    %v1491 = vadd.f32 0.0, %v1490
    %1492 = vmatmul.f32.gmra.mxu0 %v1467
    %v1493 = vpop.f32.mrf.mxu0
    %v1494 = vadd.f32 0.0, %v1493
    %1495 = vdwg.mxu0
    %v1496 = vmul.f32 %v1491, 0.35355338
    %v1497 = vmul.f32 %v1494, 0.35355338
    %v1498 = vsel %vm782, %v1496, -inf
    %1499 = vmax.xlane.f32.xlu0 %v1498
    %v1500 = vpop.xlane.xlu0 %1499
    %v1501 = vsel %vm782, %v1497, -inf
    %1502 = vmax.xlane.f32.xlu0 %v1501
    %v1503 = vpop.xlane.xlu0 %1502
    %v1504 = vsub.f32 %v1496, %v1500
    %v1505 = vsub.f32 %v1497, %v1503
    %v1506 = vmul.f32 %v1504, 1.442695
    %v1507 = vpow.pop %v1506
    %v1508 = vmul.f32 %v1505, 1.442695
    %v1509 = vpow.pop %v1508
    %v1510 = vsel %vm782, %v1507, 0.0
    %1511 = vadd.xlane.f32.xlu0 %v1510
    %v1512 = vpop.xlane.xlu0 %1511
    %v1513 = vsel %vm782, %v1509, 0.0
    %1514 = vadd.xlane.f32.xlu0 %v1513
    %v1515 = vpop.xlane.xlu0 %1514
    %v1516 = vrcp.pop %v1512
    %v1517 = vrcp.pop %v1515
    %v1518 = vmul.f32 %v1507, %v1516
    %v1519 = vmul.f32 %v1509, %v1517
    %1520 = vrot.lane.b32.xlu0 %v737, 40
    %v1521 = vpop.permute.xlu0 %1520
    %1522 = vrot.lane.b32.xlu0 %v740, 40
    %v1523 = vpop.permute.xlu0 %1522
    %v1527 = vsel %vm782, %v1518, 0
    %v1530 = vsel %vm782, %v1519, 0
    %1532 = vmatpush.msra.mxu0 0.0
    %1533 = vmatpush.msra.mxu0 0.0
    %1534 = vmatpush.msra.mxu0 0.0
    %1535 = vmatpush.msra.mxu0 0.0
    %1536 = vmatpush.msra.mxu0 0.0
    %1537 = vmatpush.msra.mxu0 0.0
    %1538 = vmatpush.msra.mxu0 0.0
    %1539 = vmatpush.msra.mxu0 0.0
    %1540 = vmatpush.msra.mxu0 0.0
    %1541 = vmatpush.msra.mxu0 0.0
    %1542 = vmatpush.msra.mxu0 0.0
    %1543 = vmatpush.msra.mxu0 0.0
    %1544 = vmatpush.msra.mxu0 0.0
    %1545 = vmatpush.msra.mxu0 0.0
    %1546 = vmatpush.msra.mxu0 %v1523
    %1547 = vmatpush.msra.mxu0 %v1521
    %1548 = vmatmul.f32.gmra.mxu0 %v1527
    %v1549 = vpop.f32.mrf.mxu0
    %v1550 = vadd.f32 0.0, %v1549
    %1551 = vmatmul.f32.gmra.mxu0 %v1530
    %v1552 = vpop.f32.mrf.mxu0
    %v1553 = vadd.f32 0.0, %v1552
    %1554 = vdwg.mxu0
    %1557 = vrot.lane.b32.xlu0 %v1354, 8
    %v1558 = vpop.permute.xlu0 %1557
    %1559 = vrot.lane.b32.xlu0 %v1357, 8
    %v1560 = vpop.permute.xlu0 %1559
    %1565 = vrot.lane.b32.xlu0 %v1452, 16
    %v1566 = vpop.permute.xlu0 %1565
    %1567 = vrot.lane.b32.xlu0 %v1455, 16
    %v1568 = vpop.permute.xlu0 %1567
    %1573 = vrot.lane.b32.xlu0 %v1550, 24
    %v1574 = vpop.permute.xlu0 %1573
    %1575 = vrot.lane.b32.xlu0 %v1553, 24
    %v1576 = vpop.permute.xlu0 %1575
    %v1579 = vsel %vm748, %v1256, %v1558
    %v1580 = vsel %vm748, %v1259, %v1560
    %v1581 = vsel %vm782, %v1579, %v1566
    %v1582 = vsel %vm782, %v1580, %v1568
    %v1583 = vsel %vm1162, %v1581, %v1574
    %v1584 = vsel %vm1162, %v1582, %v1576
    %v1586 = vperm.slane %v678, 0
    %v1589 = vsel %vm700, %v1163, 0
    %v1592 = vsel %vm700, %v1164, 0
    %v1595 = vsel %vm700, %v1583, 0
    %v1598 = vsel %vm700, %v1584, 0
    %1600 = vmatpush.msra.mxu0 0.0
    %1601 = vmatpush.msra.mxu0 0.0
    %1602 = vmatpush.msra.mxu0 0.0
    %1603 = vmatpush.msra.mxu0 0.0
    %1604 = vmatpush.msra.mxu0 0.0
    %1605 = vmatpush.msra.mxu0 0.0
    %1606 = vmatpush.msra.mxu0 0.0
    %1607 = vmatpush.msra.mxu0 0.0
    %1608 = vmatpush.msra.mxu0 0.0
    %1609 = vmatpush.msra.mxu0 0.0
    %1610 = vmatpush.msra.mxu0 0.0
    %1611 = vmatpush.msra.mxu0 0.0
    %1612 = vmatpush.msra.mxu0 %v677
    %1613 = vmatpush.msra.mxu0 %v676
    %1614 = vmatpush.msra.mxu0 %v675
    %1615 = vmatpush.msra.mxu0 %v674
    %1616 = vmatmul.f32.gmra.mxu0 %v1589
    %v1617 = vpop.f32.mrf.mxu0
    %v1618 = vadd.f32 %v1586, %v1617
    %1619 = vmatmul.f32.gmra.mxu0 %v1592
    %v1620 = vpop.f32.mrf.mxu0
    %v1621 = vadd.f32 %v1586, %v1620
    %1622 = vmatmul.f32.gmra.mxu0 %v1595
    %v1623 = vpop.f32.mrf.mxu0
    %v1624 = vadd.f32 %v1586, %v1623
    %1625 = vmatmul.f32.gmra.mxu0 %v1598
    %v1626 = vpop.f32.mrf.mxu0
    %v1627 = vadd.f32 %v1586, %v1626
    %1628 = vdwg.mxu0
    %v1629 = vadd.f32 %v1618, %v665
    %v1630 = vadd.f32 %v1621, %v666
    %v1631 = vadd.f32 %v1624, %v667
    %v1632 = vadd.f32 %v1627, %v668
    %v1633 = vsel %vm700, %v1629, 0.0
    %1634 = vadd.xlane.f32.xlu0 %v1633
    %v1635 = vpop.xlane.xlu0 %1634
    %v1636 = vsel %vm700, %v1630, 0.0
    %1637 = vadd.xlane.f32.xlu0 %v1636
    %v1638 = vpop.xlane.xlu0 %1637
    %v1639 = vsel %vm700, %v1631, 0.0
    %1640 = vadd.xlane.f32.xlu0 %v1639
    %v1641 = vpop.xlane.xlu0 %1640
    %v1642 = vsel %vm700, %v1632, 0.0
    %1643 = vadd.xlane.f32.xlu0 %v1642
    %v1644 = vpop.xlane.xlu0 %1643
    %v1645 = vrcp.pop 32.0
    %v1646 = vmul.f32 32.0, %v1645
    %v1647 = vsub.f32 1.0, %v1646
    %v1648 = vmul.f32 %v1645, %v1647
    %v1649 = vadd.f32 %v1645, %v1648
    %vm1650 = vweird.f32 %v1645
    %v1651 = vsel %vm1650, %v1645, %v1649
    %v1652 = vmul.f32 %v1635, %v1651
    %v1653 = vmul.f32 %v1638, %v1651
    %v1654 = vmul.f32 %v1641, %v1651
    %v1655 = vmul.f32 %v1644, %v1651
    %v1656 = vsub.f32 %v1629, %v1652
    %v1657 = vsub.f32 %v1630, %v1653
    %v1658 = vsub.f32 %v1631, %v1654
    %v1659 = vsub.f32 %v1632, %v1655
    %v1660 = vmul.f32 %v1656, %v1656
    %v1661 = vmul.f32 %v1657, %v1657
    %v1662 = vmul.f32 %v1658, %v1658
    %v1663 = vmul.f32 %v1659, %v1659
    %v1664 = vsel %vm700, %v1660, 0.0
    %1665 = vadd.xlane.f32.xlu0 %v1664
    %v1666 = vpop.xlane.xlu0 %1665
    %v1667 = vsel %vm700, %v1661, 0.0
    %1668 = vadd.xlane.f32.xlu0 %v1667
    %v1669 = vpop.xlane.xlu0 %1668
    %v1670 = vsel %vm700, %v1662, 0.0
    %1671 = vadd.xlane.f32.xlu0 %v1670
    %v1672 = vpop.xlane.xlu0 %1671
    %v1673 = vsel %vm700, %v1663, 0.0
    %1674 = vadd.xlane.f32.xlu0 %v1673
    %v1675 = vpop.xlane.xlu0 %1674
    %v1676 = vmul.f32 %v1666, %v1651
    %v1677 = vmul.f32 %v1669, %v1651
    %v1678 = vmul.f32 %v1672, %v1651
    %v1679 = vmul.f32 %v1675, %v1651
    %v1680 = vadd.f32 %v1676, 1e-05
    %v1681 = vadd.f32 %v1677, 1e-05
    %v1682 = vadd.f32 %v1678, 1e-05
    %v1683 = vadd.f32 %v1679, 1e-05
    %v1684 = vrsqrt.pop %v1680
    %v1685 = vmul.f32 %v1684, %v1680
    %v1686 = vmul.f32 %v1685, %v1684
    %v1687 = vmul.f32 0.5, %v1686
    %v1688 = vsub.f32 1.5, %v1687
    %v1689 = vmul.f32 %v1684, %v1688
    %vm1690 = vweird.f32 %v1680
    %vm1691 = vweird.f32 %v1684
    %vm1692 = vmor %vm1690, %vm1691
    %v1693 = vsel %vm1692, %v1684, %v1689
    %v1694 = vrsqrt.pop %v1681
    %v1695 = vmul.f32 %v1694, %v1681
    %v1696 = vmul.f32 %v1695, %v1694
    %v1697 = vmul.f32 0.5, %v1696
    %v1698 = vsub.f32 1.5, %v1697
    %v1699 = vmul.f32 %v1694, %v1698
    %vm1700 = vweird.f32 %v1681
    %vm1701 = vweird.f32 %v1694
    %vm1702 = vmor %vm1700, %vm1701
    %v1703 = vsel %vm1702, %v1694, %v1699
    %v1704 = vrsqrt.pop %v1682
    %v1705 = vmul.f32 %v1704, %v1682
    %v1706 = vmul.f32 %v1705, %v1704
    %v1707 = vmul.f32 0.5, %v1706
    %v1708 = vsub.f32 1.5, %v1707
    %v1709 = vmul.f32 %v1704, %v1708
    %vm1710 = vweird.f32 %v1682
    %vm1711 = vweird.f32 %v1704
    %vm1712 = vmor %vm1710, %vm1711
    %v1713 = vsel %vm1712, %v1704, %v1709
    %v1714 = vrsqrt.pop %v1683
    %v1715 = vmul.f32 %v1714, %v1683
    %v1716 = vmul.f32 %v1715, %v1714
    %v1717 = vmul.f32 0.5, %v1716
    %v1718 = vsub.f32 1.5, %v1717
    %v1719 = vmul.f32 %v1714, %v1718
    %vm1720 = vweird.f32 %v1683
    %vm1721 = vweird.f32 %v1714
    %vm1722 = vmor %vm1720, %vm1721
    %v1723 = vsel %vm1722, %v1714, %v1719
    %v1724 = vmul.f32 %v1656, %v1693
    %v1725 = vmul.f32 %v1657, %v1703
    %v1726 = vmul.f32 %v1658, %v1713
    %v1727 = vmul.f32 %v1659, %v1723
    %v1729 = vperm.slane %v679, 0
    %v1731 = vmul.f32 %v1724, %v1729
    %v1732 = vmul.f32 %v1725, %v1729
    %v1733 = vmul.f32 %v1726, %v1729
    %v1734 = vmul.f32 %v1727, %v1729
    %v1736 = vperm.slane %v680, 0
    %v1738 = vadd.f32 %v1731, %v1736
    %v1739 = vadd.f32 %v1732, %v1736
    %v1740 = vadd.f32 %v1733, %v1736
    %v1741 = vadd.f32 %v1734, %v1736
    %v1743 = vperm.slane %v685, 0
    %v1746 = vsel %vm700, %v1738, 0
    %v1749 = vsel %vm700, %v1739, 0
    %v1752 = vsel %vm700, %v1740, 0
    %v1755 = vsel %vm700, %v1741, 0
    %1757 = vmatpush.msra.mxu0 0.0
    %1758 = vmatpush.msra.mxu0 0.0
    %1759 = vmatpush.msra.mxu0 0.0
    %1760 = vmatpush.msra.mxu0 0.0
    %1761 = vmatpush.msra.mxu0 0.0
    %1762 = vmatpush.msra.mxu0 0.0
    %1763 = vmatpush.msra.mxu0 0.0
    %1764 = vmatpush.msra.mxu0 0.0
    %1765 = vmatpush.msra.mxu0 0.0
    %1766 = vmatpush.msra.mxu0 0.0
    %1767 = vmatpush.msra.mxu0 0.0
    %1768 = vmatpush.msra.mxu0 0.0
    %1769 = vmatpush.msra.mxu0 %v684
    %1770 = vmatpush.msra.mxu0 %v683
    %1771 = vmatpush.msra.mxu0 %v682
    %1772 = vmatpush.msra.mxu0 %v681
    %1773 = vmatmul.f32.gmra.mxu0 %v1746
    %v1774 = vpop.f32.mrf.mxu0
    %v1775 = vadd.f32 %v1743, %v1774
    %1776 = vmatmul.f32.gmra.mxu0 %v1749
    %v1777 = vpop.f32.mrf.mxu0
    %v1778 = vadd.f32 %v1743, %v1777
    %1779 = vmatmul.f32.gmra.mxu0 %v1752
    %v1780 = vpop.f32.mrf.mxu0
    %v1781 = vadd.f32 %v1743, %v1780
    %1782 = vmatmul.f32.gmra.mxu0 %v1755
    %v1783 = vpop.f32.mrf.mxu0
    %v1784 = vadd.f32 %v1743, %v1783
    %1785 = vdwg.mxu0
    %v1786 = vmax.f32 %v1775, 0.0
    %v1787 = vmax.f32 %v1778, 0.0
    %v1788 = vmax.f32 %v1781, 0.0
    %v1789 = vmax.f32 %v1784, 0.0
    %v1791 = vperm.slane %v694, 0
    %vm1793 = vcmask 523264
    %v1795 = vsel %vm1793, %v1786, 0
    %v1798 = vsel %vm1793, %v1787, 0
    %v1801 = vsel %vm1793, %v1788, 0
    %v1804 = vsel %vm1793, %v1789, 0
    %1806 = vmatpush.msra.mxu0 0.0
    %1807 = vmatpush.msra.mxu0 0.0
    %1808 = vmatpush.msra.mxu0 0.0
    %1809 = vmatpush.msra.mxu0 0.0
    %1810 = vmatpush.msra.mxu0 0.0
    %1811 = vmatpush.msra.mxu0 0.0
    %1812 = vmatpush.msra.mxu0 0.0
    %1813 = vmatpush.msra.mxu0 0.0
    %1814 = vmatpush.msra.mxu0 %v693
    %1815 = vmatpush.msra.mxu0 %v692
    %1816 = vmatpush.msra.mxu0 %v691
    %1817 = vmatpush.msra.mxu0 %v690
    %1818 = vmatpush.msra.mxu0 %v689
    %1819 = vmatpush.msra.mxu0 %v688
    %1820 = vmatpush.msra.mxu0 %v687
    %1821 = vmatpush.msra.mxu0 %v686
    %1822 = vmatmul.f32.gmra.mxu0 %v1795
    %v1823 = vpop.f32.mrf.mxu0
    %v1824 = vadd.f32 %v1791, %v1823
    %1825 = vmatmul.f32.gmra.mxu0 %v1798
    %v1826 = vpop.f32.mrf.mxu0
    %v1827 = vadd.f32 %v1791, %v1826
    %1828 = vmatmul.f32.gmra.mxu0 %v1801
    %v1829 = vpop.f32.mrf.mxu0
    %v1830 = vadd.f32 %v1791, %v1829
    %1831 = vmatmul.f32.gmra.mxu0 %v1804
    %v1832 = vpop.f32.mrf.mxu0
    %v1833 = vadd.f32 %v1791, %v1832
    %1834 = vdwg.mxu0
    %v1835 = vadd.f32 %v1824, %v1738
    %v1836 = vadd.f32 %v1827, %v1739
    %v1837 = vadd.f32 %v1830, %v1740
    %v1838 = vadd.f32 %v1833, %v1741
    %v1839 = vsel %vm700, %v1835, 0.0
    %1840 = vadd.xlane.f32.xlu0 %v1839
    %v1841 = vpop.xlane.xlu0 %1840
    %v1842 = vsel %vm700, %v1836, 0.0
    %1843 = vadd.xlane.f32.xlu0 %v1842
    %v1844 = vpop.xlane.xlu0 %1843
    %v1845 = vsel %vm700, %v1837, 0.0
    %1846 = vadd.xlane.f32.xlu0 %v1845
    %v1847 = vpop.xlane.xlu0 %1846
    %v1848 = vsel %vm700, %v1838, 0.0
    %1849 = vadd.xlane.f32.xlu0 %v1848
    %v1850 = vpop.xlane.xlu0 %1849
    %v1851 = vmul.f32 %v1841, %v1651
    %v1852 = vmul.f32 %v1844, %v1651
    %v1853 = vmul.f32 %v1847, %v1651
    %v1854 = vmul.f32 %v1850, %v1651
    %v1855 = vsub.f32 %v1835, %v1851
    %v1856 = vsub.f32 %v1836, %v1852
    %v1857 = vsub.f32 %v1837, %v1853
    %v1858 = vsub.f32 %v1838, %v1854
    %v1859 = vmul.f32 %v1855, %v1855
    %v1860 = vmul.f32 %v1856, %v1856
    %v1861 = vmul.f32 %v1857, %v1857
    %v1862 = vmul.f32 %v1858, %v1858
    %v1863 = vsel %vm700, %v1859, 0.0
    %1864 = vadd.xlane.f32.xlu0 %v1863
    %v1865 = vpop.xlane.xlu0 %1864
    %v1866 = vsel %vm700, %v1860, 0.0
    %1867 = vadd.xlane.f32.xlu0 %v1866
    %v1868 = vpop.xlane.xlu0 %1867
    %v1869 = vsel %vm700, %v1861, 0.0
    %1870 = vadd.xlane.f32.xlu0 %v1869
    %v1871 = vpop.xlane.xlu0 %1870
    %v1872 = vsel %vm700, %v1862, 0.0
    %1873 = vadd.xlane.f32.xlu0 %v1872
    %v1874 = vpop.xlane.xlu0 %1873
    %v1875 = vmul.f32 %v1865, %v1651
    %v1876 = vmul.f32 %v1868, %v1651
    %v1877 = vmul.f32 %v1871, %v1651
    %v1878 = vmul.f32 %v1874, %v1651
    %v1879 = vadd.f32 %v1875, 1e-05
    %v1880 = vadd.f32 %v1876, 1e-05
    %v1881 = vadd.f32 %v1877, 1e-05
    %v1882 = vadd.f32 %v1878, 1e-05
    %v1883 = vrsqrt.pop %v1879
    %v1884 = vmul.f32 %v1883, %v1879
    %v1885 = vmul.f32 %v1884, %v1883
    %v1886 = vmul.f32 0.5, %v1885
    %v1887 = vsub.f32 1.5, %v1886
    %v1888 = vmul.f32 %v1883, %v1887
    %vm1889 = vweird.f32 %v1879
    %vm1890 = vweird.f32 %v1883
    %vm1891 = vmor %vm1889, %vm1890
    %v1892 = vsel %vm1891, %v1883, %v1888
    %v1893 = vrsqrt.pop %v1880
    %v1894 = vmul.f32 %v1893, %v1880
    %v1895 = vmul.f32 %v1894, %v1893
    %v1896 = vmul.f32 0.5, %v1895
    %v1897 = vsub.f32 1.5, %v1896
    %v1898 = vmul.f32 %v1893, %v1897
    %vm1899 = vweird.f32 %v1880
    %vm1900 = vweird.f32 %v1893
    %vm1901 = vmor %vm1899, %vm1900
    %v1902 = vsel %vm1901, %v1893, %v1898
    %v1903 = vrsqrt.pop %v1881
    %v1904 = vmul.f32 %v1903, %v1881
    %v1905 = vmul.f32 %v1904, %v1903
    %v1906 = vmul.f32 0.5, %v1905
    %v1907 = vsub.f32 1.5, %v1906
    %v1908 = vmul.f32 %v1903, %v1907
    %vm1909 = vweird.f32 %v1881
    %vm1910 = vweird.f32 %v1903
    %vm1911 = vmor %vm1909, %vm1910
    %v1912 = vsel %vm1911, %v1903, %v1908
    %v1913 = vrsqrt.pop %v1882
    %v1914 = vmul.f32 %v1913, %v1882
    %v1915 = vmul.f32 %v1914, %v1913
    %v1916 = vmul.f32 0.5, %v1915
    %v1917 = vsub.f32 1.5, %v1916
    %v1918 = vmul.f32 %v1913, %v1917
    %vm1919 = vweird.f32 %v1882
    %vm1920 = vweird.f32 %v1913
    %vm1921 = vmor %vm1919, %vm1920
    %v1922 = vsel %vm1921, %v1913, %v1918
    %v1923 = vmul.f32 %v1855, %v1892
    %v1924 = vmul.f32 %v1856, %v1902
    %v1925 = vmul.f32 %v1857, %v1912
    %v1926 = vmul.f32 %v1858, %v1922
    %v1928 = vperm.slane %v695, 0
    %v1930 = vmul.f32 %v1923, %v1928
    %v1931 = vmul.f32 %v1924, %v1928
    %v1932 = vmul.f32 %v1925, %v1928
    %v1933 = vmul.f32 %v1926, %v1928
    %v1935 = vperm.slane %v696, 0
    %v1937 = vadd.f32 %v1930, %v1935
    %v1938 = vadd.f32 %v1931, %v1935
    %v1939 = vadd.f32 %v1932, %v1935
    %v1940 = vadd.f32 %v1933, %v1935
    %v1941 = vld [vmem:[%s31] sm:$0xff]
    %v1942 = vld [vmem:[%s31 + $0x8] sm:$0xff]
    %v1943 = vld [vmem:[%s31 + $0x10] sm:$0xff]
    %v1944 = vld [vmem:[%s31 + $0x18] sm:$0xff]
    %v1945 = vld [vmem:[#allocation18] sm:$0x1]
    %v1946 = vld [vmem:[%s35] sm:$0xff]
    %v1947 = vld [vmem:[%s35 + $0x8] sm:$0xff]
    %v1948 = vld [vmem:[%s35 + $0x10] sm:$0xff]
    %v1949 = vld [vmem:[%s35 + $0x18] sm:$0xff]
    %v1950 = vld [vmem:[#allocation19] sm:$0x1]
    %v1951 = vld [vmem:[#allocation21] sm:$0x1]
    %v1952 = vld [vmem:[#allocation22] sm:$0x1]
    %v1953 = vld [vmem:[%s43] sm:$0xff]
    %v1954 = vld [vmem:[%s43 + $0x8] sm:$0xff]
    %v1955 = vld [vmem:[%s43 + $0x10] sm:$0xff]
    %v1956 = vld [vmem:[%s43 + $0x18] sm:$0xff]
    %v1957 = vld [vmem:[#allocation24] sm:$0x1]
    %v1958 = vld [vmem:[%s47] sm:$0xff]
    %v1959 = vld [vmem:[%s47 + $0x8] sm:$0xff]
    %v1960 = vld [vmem:[%s47 + $0x10] sm:$0xff]
    %v1961 = vld [vmem:[%s47 + $0x18] sm:$0xff]
    %v1962 = vld [vmem:[%s47 + $0x20] sm:$0xff]
    %v1963 = vld [vmem:[%s47 + $0x28] sm:$0xff]
    %v1964 = vld [vmem:[%s47 + $0x30] sm:$0xff]
    %v1965 = vld [vmem:[%s47 + $0x38] sm:$0xff]
    %v1966 = vld [vmem:[#allocation25] sm:$0x1]
    %v1967 = vld [vmem:[#allocation27] sm:$0x1]
    %v1968 = vld [vmem:[#allocation28] sm:$0x1]
    %v1970 = vperm.slane %v1945, 0
    %v1973 = vsel %vm700, %v1937, 0
    %v1976 = vsel %vm700, %v1938, 0
    %v1979 = vsel %vm700, %v1939, 0
    %v1982 = vsel %vm700, %v1940, 0
    %1984 = vmatpush.msra.mxu0 0.0
    %1985 = vmatpush.msra.mxu0 0.0
    %1986 = vmatpush.msra.mxu0 0.0
    %1987 = vmatpush.msra.mxu0 0.0
    %1988 = vmatpush.msra.mxu0 0.0
    %1989 = vmatpush.msra.mxu0 0.0
    %1990 = vmatpush.msra.mxu0 0.0
    %1991 = vmatpush.msra.mxu0 0.0
    %1992 = vmatpush.msra.mxu0 0.0
    %1993 = vmatpush.msra.mxu0 0.0
    %1994 = vmatpush.msra.mxu0 0.0
    %1995 = vmatpush.msra.mxu0 0.0
    %1996 = vmatpush.msra.mxu0 %v1944
    %1997 = vmatpush.msra.mxu0 %v1943
    %1998 = vmatpush.msra.mxu0 %v1942
    %1999 = vmatpush.msra.mxu0 %v1941
    %2000 = vmatmul.f32.gmra.mxu0 %v1973
    %v2001 = vpop.f32.mrf.mxu0
    %v2002 = vadd.f32 %v1970, %v2001
    %2003 = vmatmul.f32.gmra.mxu0 %v1976
    %v2004 = vpop.f32.mrf.mxu0
    %v2005 = vadd.f32 %v1970, %v2004
    %2006 = vmatmul.f32.gmra.mxu0 %v1979
    %v2007 = vpop.f32.mrf.mxu0
    %v2008 = vadd.f32 %v1970, %v2007
    %2009 = vmatmul.f32.gmra.mxu0 %v1982
    %v2010 = vpop.f32.mrf.mxu0
    %v2011 = vadd.f32 %v1970, %v2010
    %2012 = vdwg.mxu0
    %2015 = vrot.lane.b32.xlu0 %v2002, 96
    %v2016 = vpop.permute.xlu0 %2015
    %2017 = vrot.lane.b32.xlu0 %v2005, 96
    %v2018 = vpop.permute.xlu0 %2017
    %v2019 = vsel %vm748, %v2002, 0
    %v2021 = vsel %vm748, %v2005, 0
    %v2023 = vsel %vm748, %v2016, 0
    %v2025 = vsel %vm748, %v2018, 0
    %2027 = vmatpush.xpose.msra.mxu0 0.0
    %2028 = vmatpush.xpose.msra.mxu0 0.0
    %2029 = vmatpush.xpose.msra.mxu0 0.0
    %2030 = vmatpush.xpose.msra.mxu0 0.0
    %2031 = vmatpush.xpose.msra.mxu0 0.0
    %2032 = vmatpush.xpose.msra.mxu0 0.0
    %2033 = vmatpush.xpose.msra.mxu0 0.0
    %2034 = vmatpush.xpose.msra.mxu0 0.0
    %2035 = vmatpush.xpose.msra.mxu0 0.0
    %2036 = vmatpush.xpose.msra.mxu0 0.0
    %2037 = vmatpush.xpose.msra.mxu0 0.0
    %2038 = vmatpush.xpose.msra.mxu0 0.0
    %2039 = vmatpush.xpose.msra.mxu0 0.0
    %2040 = vmatpush.xpose.msra.mxu0 0.0
    %2041 = vmatpush.xpose.msra.mxu0 %v2025
    %2042 = vmatpush.xpose.msra.mxu0 %v2023
    %2043 = vmatmul.f32.gmra.mxu0 %v2019
    %v2044 = vpop.f32.mrf.mxu0
    %v2045 = vadd.f32 0.0, %v2044
    %2046 = vmatmul.f32.gmra.mxu0 %v2021
    %v2047 = vpop.f32.mrf.mxu0
    %v2048 = vadd.f32 0.0, %v2047
    %2049 = vdwg.mxu0
    %v2050 = vmul.f32 %v2045, 0.35355338
    %v2051 = vmul.f32 %v2048, 0.35355338
    %v2052 = vsel %vm782, %v2050, -inf
    %2053 = vmax.xlane.f32.xlu0 %v2052
    %v2054 = vpop.xlane.xlu0 %2053
    %v2055 = vsel %vm782, %v2051, -inf
    %2056 = vmax.xlane.f32.xlu0 %v2055
    %v2057 = vpop.xlane.xlu0 %2056
    %v2058 = vsub.f32 %v2050, %v2054
    %v2059 = vsub.f32 %v2051, %v2057
    %v2060 = vmul.f32 %v2058, 1.442695
    %v2061 = vpow.pop %v2060
    %v2062 = vmul.f32 %v2059, 1.442695
    %v2063 = vpow.pop %v2062
    %v2064 = vsel %vm782, %v2061, 0.0
    %2065 = vadd.xlane.f32.xlu0 %v2064
    %v2066 = vpop.xlane.xlu0 %2065
    %v2067 = vsel %vm782, %v2063, 0.0
    %2068 = vadd.xlane.f32.xlu0 %v2067
    %v2069 = vpop.xlane.xlu0 %2068
    %v2070 = vrcp.pop %v2066
    %v2071 = vrcp.pop %v2069
    %v2072 = vmul.f32 %v2061, %v2070
    %v2073 = vmul.f32 %v2063, %v2071
    %2074 = vrot.lane.b32.xlu0 %v2002, 64
    %v2075 = vpop.permute.xlu0 %2074
    %2076 = vrot.lane.b32.xlu0 %v2005, 64
    %v2077 = vpop.permute.xlu0 %2076
    %v2081 = vsel %vm782, %v2072, 0
    %v2084 = vsel %vm782, %v2073, 0
    %2086 = vmatpush.msra.mxu0 0.0
    %2087 = vmatpush.msra.mxu0 0.0
    %2088 = vmatpush.msra.mxu0 0.0
    %2089 = vmatpush.msra.mxu0 0.0
    %2090 = vmatpush.msra.mxu0 0.0
    %2091 = vmatpush.msra.mxu0 0.0
    %2092 = vmatpush.msra.mxu0 0.0
    %2093 = vmatpush.msra.mxu0 0.0
    %2094 = vmatpush.msra.mxu0 0.0
    %2095 = vmatpush.msra.mxu0 0.0
    %2096 = vmatpush.msra.mxu0 0.0
    %2097 = vmatpush.msra.mxu0 0.0
    %2098 = vmatpush.msra.mxu0 0.0
    %2099 = vmatpush.msra.mxu0 0.0
    %2100 = vmatpush.msra.mxu0 %v2077
    %2101 = vmatpush.msra.mxu0 %v2075
    %2102 = vmatmul.f32.gmra.mxu0 %v2081
    %v2103 = vpop.f32.mrf.mxu0
    %v2104 = vadd.f32 0.0, %v2103
    %2105 = vmatmul.f32.gmra.mxu0 %v2084
    %v2106 = vpop.f32.mrf.mxu0
    %v2107 = vadd.f32 0.0, %v2106
    %2108 = vdwg.mxu0
    %2109 = vrot.lane.b32.xlu0 %v2002, 120
    %v2110 = vpop.permute.xlu0 %2109
    %2111 = vrot.lane.b32.xlu0 %v2005, 120
    %v2112 = vpop.permute.xlu0 %2111
    %2113 = vrot.lane.b32.xlu0 %v2002, 88
    %v2114 = vpop.permute.xlu0 %2113
    %2115 = vrot.lane.b32.xlu0 %v2005, 88
    %v2116 = vpop.permute.xlu0 %2115
    %v2117 = vsel %vm748, %v2110, 0
    %v2119 = vsel %vm748, %v2112, 0
    %v2121 = vsel %vm748, %v2114, 0
    %v2123 = vsel %vm748, %v2116, 0
    %2125 = vmatpush.xpose.msra.mxu0 0.0
    %2126 = vmatpush.xpose.msra.mxu0 0.0
    %2127 = vmatpush.xpose.msra.mxu0 0.0
    %2128 = vmatpush.xpose.msra.mxu0 0.0
    %2129 = vmatpush.xpose.msra.mxu0 0.0
    %2130 = vmatpush.xpose.msra.mxu0 0.0
    %2131 = vmatpush.xpose.msra.mxu0 0.0
    %2132 = vmatpush.xpose.msra.mxu0 0.0
    %2133 = vmatpush.xpose.msra.mxu0 0.0
    %2134 = vmatpush.xpose.msra.mxu0 0.0
    %2135 = vmatpush.xpose.msra.mxu0 0.0
    %2136 = vmatpush.xpose.msra.mxu0 0.0
    %2137 = vmatpush.xpose.msra.mxu0 0.0
    %2138 = vmatpush.xpose.msra.mxu0 0.0
    %2139 = vmatpush.xpose.msra.mxu0 %v2123
    %2140 = vmatpush.xpose.msra.mxu0 %v2121
    %2141 = vmatmul.f32.gmra.mxu0 %v2117
    %v2142 = vpop.f32.mrf.mxu0
    %v2143 = vadd.f32 0.0, %v2142
    %2144 = vmatmul.f32.gmra.mxu0 %v2119
    %v2145 = vpop.f32.mrf.mxu0
    %v2146 = vadd.f32 0.0, %v2145
    %2147 = vdwg.mxu0
    %v2148 = vmul.f32 %v2143, 0.35355338
    %v2149 = vmul.f32 %v2146, 0.35355338
    %v2150 = vsel %vm782, %v2148, -inf
    %2151 = vmax.xlane.f32.xlu0 %v2150
    %v2152 = vpop.xlane.xlu0 %2151
    %v2153 = vsel %vm782, %v2149, -inf
    %2154 = vmax.xlane.f32.xlu0 %v2153
    %v2155 = vpop.xlane.xlu0 %2154
    %v2156 = vsub.f32 %v2148, %v2152
    %v2157 = vsub.f32 %v2149, %v2155
    %v2158 = vmul.f32 %v2156, 1.442695
    %v2159 = vpow.pop %v2158
    %v2160 = vmul.f32 %v2157, 1.442695
    %v2161 = vpow.pop %v2160
    %v2162 = vsel %vm782, %v2159, 0.0
    %2163 = vadd.xlane.f32.xlu0 %v2162
    %v2164 = vpop.xlane.xlu0 %2163
    %v2165 = vsel %vm782, %v2161, 0.0
    %2166 = vadd.xlane.f32.xlu0 %v2165
    %v2167 = vpop.xlane.xlu0 %2166
    %v2168 = vrcp.pop %v2164
    %v2169 = vrcp.pop %v2167
    %v2170 = vmul.f32 %v2159, %v2168
    %v2171 = vmul.f32 %v2161, %v2169
    %2172 = vrot.lane.b32.xlu0 %v2002, 56
    %v2173 = vpop.permute.xlu0 %2172
    %2174 = vrot.lane.b32.xlu0 %v2005, 56
    %v2175 = vpop.permute.xlu0 %2174
    %v2179 = vsel %vm782, %v2170, 0
    %v2182 = vsel %vm782, %v2171, 0
    %2184 = vmatpush.msra.mxu0 0.0
    %2185 = vmatpush.msra.mxu0 0.0
    %2186 = vmatpush.msra.mxu0 0.0
    %2187 = vmatpush.msra.mxu0 0.0
    %2188 = vmatpush.msra.mxu0 0.0
    %2189 = vmatpush.msra.mxu0 0.0
    %2190 = vmatpush.msra.mxu0 0.0
    %2191 = vmatpush.msra.mxu0 0.0
    %2192 = vmatpush.msra.mxu0 0.0
    %2193 = vmatpush.msra.mxu0 0.0
    %2194 = vmatpush.msra.mxu0 0.0
    %2195 = vmatpush.msra.mxu0 0.0
    %2196 = vmatpush.msra.mxu0 0.0
    %2197 = vmatpush.msra.mxu0 0.0
    %2198 = vmatpush.msra.mxu0 %v2175
    %2199 = vmatpush.msra.mxu0 %v2173
    %2200 = vmatmul.f32.gmra.mxu0 %v2179
    %v2201 = vpop.f32.mrf.mxu0
    %v2202 = vadd.f32 0.0, %v2201
    %2203 = vmatmul.f32.gmra.mxu0 %v2182
    %v2204 = vpop.f32.mrf.mxu0
    %v2205 = vadd.f32 0.0, %v2204
    %2206 = vdwg.mxu0
    %2207 = vrot.lane.b32.xlu0 %v2002, 112
    %v2208 = vpop.permute.xlu0 %2207
    %2209 = vrot.lane.b32.xlu0 %v2005, 112
    %v2210 = vpop.permute.xlu0 %2209
    %2211 = vrot.lane.b32.xlu0 %v2002, 80
    %v2212 = vpop.permute.xlu0 %2211
    %2213 = vrot.lane.b32.xlu0 %v2005, 80
    %v2214 = vpop.permute.xlu0 %2213
    %v2215 = vsel %vm748, %v2208, 0
    %v2217 = vsel %vm748, %v2210, 0
    %v2219 = vsel %vm748, %v2212, 0
    %v2221 = vsel %vm748, %v2214, 0
    %2223 = vmatpush.xpose.msra.mxu0 0.0
    %2224 = vmatpush.xpose.msra.mxu0 0.0
    %2225 = vmatpush.xpose.msra.mxu0 0.0
    %2226 = vmatpush.xpose.msra.mxu0 0.0
    %2227 = vmatpush.xpose.msra.mxu0 0.0
    %2228 = vmatpush.xpose.msra.mxu0 0.0
    %2229 = vmatpush.xpose.msra.mxu0 0.0
    %2230 = vmatpush.xpose.msra.mxu0 0.0
    %2231 = vmatpush.xpose.msra.mxu0 0.0
    %2232 = vmatpush.xpose.msra.mxu0 0.0
    %2233 = vmatpush.xpose.msra.mxu0 0.0
    %2234 = vmatpush.xpose.msra.mxu0 0.0
    %2235 = vmatpush.xpose.msra.mxu0 0.0
    %2236 = vmatpush.xpose.msra.mxu0 0.0
    %2237 = vmatpush.xpose.msra.mxu0 %v2221
    %2238 = vmatpush.xpose.msra.mxu0 %v2219
    %2239 = vmatmul.f32.gmra.mxu0 %v2215
    %v2240 = vpop.f32.mrf.mxu0
    %v2241 = vadd.f32 0.0, %v2240
    %2242 = vmatmul.f32.gmra.mxu0 %v2217
    %v2243 = vpop.f32.mrf.mxu0
    %v2244 = vadd.f32 0.0, %v2243
    %2245 = vdwg.mxu0
    %v2246 = vmul.f32 %v2241, 0.35355338
    %v2247 = vmul.f32 %v2244, 0.35355338
    %v2248 = vsel %vm782, %v2246, -inf
    %2249 = vmax.xlane.f32.xlu0 %v2248
    %v2250 = vpop.xlane.xlu0 %2249
    %v2251 = vsel %vm782, %v2247, -inf
    %2252 = vmax.xlane.f32.xlu0 %v2251
    %v2253 = vpop.xlane.xlu0 %2252
    %v2254 = vsub.f32 %v2246, %v2250
    %v2255 = vsub.f32 %v2247, %v2253
    %v2256 = vmul.f32 %v2254, 1.442695
    %v2257 = vpow.pop %v2256
    %v2258 = vmul.f32 %v2255, 1.442695
    %v2259 = vpow.pop %v2258
    %v2260 = vsel %vm782, %v2257, 0.0
    %2261 = vadd.xlane.f32.xlu0 %v2260
    %v2262 = vpop.xlane.xlu0 %2261
    %v2263 = vsel %vm782, %v2259, 0.0
    %2264 = vadd.xlane.f32.xlu0 %v2263
    %v2265 = vpop.xlane.xlu0 %2264
    %v2266 = vrcp.pop %v2262
    %v2267 = vrcp.pop %v2265
    %v2268 = vmul.f32 %v2257, %v2266
    %v2269 = vmul.f32 %v2259, %v2267
    %2270 = vrot.lane.b32.xlu0 %v2002, 48
    %v2271 = vpop.permute.xlu0 %2270
    %2272 = vrot.lane.b32.xlu0 %v2005, 48
    %v2273 = vpop.permute.xlu0 %2272
    %v2277 = vsel %vm782, %v2268, 0
    %v2280 = vsel %vm782, %v2269, 0
    %2282 = vmatpush.msra.mxu0 0.0
    %2283 = vmatpush.msra.mxu0 0.0
    %2284 = vmatpush.msra.mxu0 0.0
    %2285 = vmatpush.msra.mxu0 0.0
    %2286 = vmatpush.msra.mxu0 0.0
    %2287 = vmatpush.msra.mxu0 0.0
    %2288 = vmatpush.msra.mxu0 0.0
    %2289 = vmatpush.msra.mxu0 0.0
    %2290 = vmatpush.msra.mxu0 0.0
    %2291 = vmatpush.msra.mxu0 0.0
    %2292 = vmatpush.msra.mxu0 0.0
    %2293 = vmatpush.msra.mxu0 0.0
    %2294 = vmatpush.msra.mxu0 0.0
    %2295 = vmatpush.msra.mxu0 0.0
    %2296 = vmatpush.msra.mxu0 %v2273
    %2297 = vmatpush.msra.mxu0 %v2271
    %2298 = vmatmul.f32.gmra.mxu0 %v2277
    %v2299 = vpop.f32.mrf.mxu0
    %v2300 = vadd.f32 0.0, %v2299
    %2301 = vmatmul.f32.gmra.mxu0 %v2280
    %v2302 = vpop.f32.mrf.mxu0
    %v2303 = vadd.f32 0.0, %v2302
    %2304 = vdwg.mxu0
    %2305 = vrot.lane.b32.xlu0 %v2002, 104
    %v2306 = vpop.permute.xlu0 %2305
    %2307 = vrot.lane.b32.xlu0 %v2005, 104
    %v2308 = vpop.permute.xlu0 %2307
    %2309 = vrot.lane.b32.xlu0 %v2002, 72
    %v2310 = vpop.permute.xlu0 %2309
    %2311 = vrot.lane.b32.xlu0 %v2005, 72
    %v2312 = vpop.permute.xlu0 %2311
    %v2313 = vsel %vm748, %v2306, 0
    %v2315 = vsel %vm748, %v2308, 0
    %v2317 = vsel %vm748, %v2310, 0
    %v2319 = vsel %vm748, %v2312, 0
    %2321 = vmatpush.xpose.msra.mxu0 0.0
    %2322 = vmatpush.xpose.msra.mxu0 0.0
    %2323 = vmatpush.xpose.msra.mxu0 0.0
    %2324 = vmatpush.xpose.msra.mxu0 0.0
    %2325 = vmatpush.xpose.msra.mxu0 0.0
    %2326 = vmatpush.xpose.msra.mxu0 0.0
    %2327 = vmatpush.xpose.msra.mxu0 0.0
    %2328 = vmatpush.xpose.msra.mxu0 0.0
    %2329 = vmatpush.xpose.msra.mxu0 0.0
    %2330 = vmatpush.xpose.msra.mxu0 0.0
    %2331 = vmatpush.xpose.msra.mxu0 0.0
    %2332 = vmatpush.xpose.msra.mxu0 0.0
    %2333 = vmatpush.xpose.msra.mxu0 0.0
    %2334 = vmatpush.xpose.msra.mxu0 0.0
    %2335 = vmatpush.xpose.msra.mxu0 %v2319
    %2336 = vmatpush.xpose.msra.mxu0 %v2317
    %2337 = vmatmul.f32.gmra.mxu0 %v2313
    %v2338 = vpop.f32.mrf.mxu0
    %v2339 = vadd.f32 0.0, %v2338
    %2340 = vmatmul.f32.gmra.mxu0 %v2315
    %v2341 = vpop.f32.mrf.mxu0
    %v2342 = vadd.f32 0.0, %v2341
    %2343 = vdwg.mxu0
    %v2344 = vmul.f32 %v2339, 0.35355338
    %v2345 = vmul.f32 %v2342, 0.35355338
    %v2346 = vsel %vm782, %v2344, -inf
    %2347 = vmax.xlane.f32.xlu0 %v2346
    %v2348 = vpop.xlane.xlu0 %2347
    %v2349 = vsel %vm782, %v2345, -inf
    %2350 = vmax.xlane.f32.xlu0 %v2349
    %v2351 = vpop.xlane.xlu0 %2350
    %v2352 = vsub.f32 %v2344, %v2348
    %v2353 = vsub.f32 %v2345, %v2351
    %v2354 = vmul.f32 %v2352, 1.442695
    %v2355 = vpow.pop %v2354
    %v2356 = vmul.f32 %v2353, 1.442695
    %v2357 = vpow.pop %v2356
    %v2358 = vsel %vm782, %v2355, 0.0
    %2359 = vadd.xlane.f32.xlu0 %v2358
    %v2360 = vpop.xlane.xlu0 %2359
    %v2361 = vsel %vm782, %v2357, 0.0
    %2362 = vadd.xlane.f32.xlu0 %v2361
    %v2363 = vpop.xlane.xlu0 %2362
    %v2364 = vrcp.pop %v2360
    %v2365 = vrcp.pop %v2363
    %v2366 = vmul.f32 %v2355, %v2364
    %v2367 = vmul.f32 %v2357, %v2365
    %2368 = vrot.lane.b32.xlu0 %v2002, 40
    %v2369 = vpop.permute.xlu0 %2368
    %2370 = vrot.lane.b32.xlu0 %v2005, 40
    %v2371 = vpop.permute.xlu0 %2370
    %v2375 = vsel %vm782, %v2366, 0
    %v2378 = vsel %vm782, %v2367, 0
    %2380 = vmatpush.msra.mxu0 0.0
    %2381 = vmatpush.msra.mxu0 0.0
    %2382 = vmatpush.msra.mxu0 0.0
    %2383 = vmatpush.msra.mxu0 0.0
    %2384 = vmatpush.msra.mxu0 0.0
    %2385 = vmatpush.msra.mxu0 0.0
    %2386 = vmatpush.msra.mxu0 0.0
    %2387 = vmatpush.msra.mxu0 0.0
    %2388 = vmatpush.msra.mxu0 0.0
    %2389 = vmatpush.msra.mxu0 0.0
    %2390 = vmatpush.msra.mxu0 0.0
    %2391 = vmatpush.msra.mxu0 0.0
    %2392 = vmatpush.msra.mxu0 0.0
    %2393 = vmatpush.msra.mxu0 0.0
    %2394 = vmatpush.msra.mxu0 %v2371
    %2395 = vmatpush.msra.mxu0 %v2369
    %2396 = vmatmul.f32.gmra.mxu0 %v2375
    %v2397 = vpop.f32.mrf.mxu0
    %v2398 = vadd.f32 0.0, %v2397
    %2399 = vmatmul.f32.gmra.mxu0 %v2378
    %v2400 = vpop.f32.mrf.mxu0
    %v2401 = vadd.f32 0.0, %v2400
    %2402 = vdwg.mxu0
    %2405 = vrot.lane.b32.xlu0 %v2202, 8
    %v2406 = vpop.permute.xlu0 %2405
    %2407 = vrot.lane.b32.xlu0 %v2205, 8
    %v2408 = vpop.permute.xlu0 %2407
    %2413 = vrot.lane.b32.xlu0 %v2300, 16
    %v2414 = vpop.permute.xlu0 %2413
    %2415 = vrot.lane.b32.xlu0 %v2303, 16
    %v2416 = vpop.permute.xlu0 %2415
    %2421 = vrot.lane.b32.xlu0 %v2398, 24
    %v2422 = vpop.permute.xlu0 %2421
    %2423 = vrot.lane.b32.xlu0 %v2401, 24
    %v2424 = vpop.permute.xlu0 %2423
    %v2427 = vsel %vm748, %v2104, %v2406
    %v2428 = vsel %vm748, %v2107, %v2408
    %v2429 = vsel %vm782, %v2427, %v2414
    %v2430 = vsel %vm782, %v2428, %v2416
    %v2431 = vsel %vm1162, %v2429, %v2422
    %v2432 = vsel %vm1162, %v2430, %v2424
    %2435 = vrot.lane.b32.xlu0 %v2008, 96
    %v2436 = vpop.permute.xlu0 %2435
    %2437 = vrot.lane.b32.xlu0 %v2011, 96
    %v2438 = vpop.permute.xlu0 %2437
    %v2439 = vsel %vm748, %v2008, 0
    %v2441 = vsel %vm748, %v2011, 0
    %v2443 = vsel %vm748, %v2436, 0
    %v2445 = vsel %vm748, %v2438, 0
    %2447 = vmatpush.xpose.msra.mxu0 0.0
    %2448 = vmatpush.xpose.msra.mxu0 0.0
    %2449 = vmatpush.xpose.msra.mxu0 0.0
    %2450 = vmatpush.xpose.msra.mxu0 0.0
    %2451 = vmatpush.xpose.msra.mxu0 0.0
    %2452 = vmatpush.xpose.msra.mxu0 0.0
    %2453 = vmatpush.xpose.msra.mxu0 0.0
    %2454 = vmatpush.xpose.msra.mxu0 0.0
    %2455 = vmatpush.xpose.msra.mxu0 0.0
    %2456 = vmatpush.xpose.msra.mxu0 0.0
    %2457 = vmatpush.xpose.msra.mxu0 0.0
    %2458 = vmatpush.xpose.msra.mxu0 0.0
    %2459 = vmatpush.xpose.msra.mxu0 0.0
    %2460 = vmatpush.xpose.msra.mxu0 0.0
    %2461 = vmatpush.xpose.msra.mxu0 %v2445
    %2462 = vmatpush.xpose.msra.mxu0 %v2443
    %2463 = vmatmul.f32.gmra.mxu0 %v2439
    %v2464 = vpop.f32.mrf.mxu0
    %v2465 = vadd.f32 0.0, %v2464
    %2466 = vmatmul.f32.gmra.mxu0 %v2441
    %v2467 = vpop.f32.mrf.mxu0
    %v2468 = vadd.f32 0.0, %v2467
    %2469 = vdwg.mxu0
    %v2470 = vmul.f32 %v2465, 0.35355338
    %v2471 = vmul.f32 %v2468, 0.35355338
    %v2472 = vsel %vm782, %v2470, -inf
    %2473 = vmax.xlane.f32.xlu0 %v2472
    %v2474 = vpop.xlane.xlu0 %2473
    %v2475 = vsel %vm782, %v2471, -inf
    %2476 = vmax.xlane.f32.xlu0 %v2475
    %v2477 = vpop.xlane.xlu0 %2476
    %v2478 = vsub.f32 %v2470, %v2474
    %v2479 = vsub.f32 %v2471, %v2477
    %v2480 = vmul.f32 %v2478, 1.442695
    %v2481 = vpow.pop %v2480
    %v2482 = vmul.f32 %v2479, 1.442695
    %v2483 = vpow.pop %v2482
    %v2484 = vsel %vm782, %v2481, 0.0
    %2485 = vadd.xlane.f32.xlu0 %v2484
    %v2486 = vpop.xlane.xlu0 %2485
    %v2487 = vsel %vm782, %v2483, 0.0
    %2488 = vadd.xlane.f32.xlu0 %v2487
    %v2489 = vpop.xlane.xlu0 %2488
    %v2490 = vrcp.pop %v2486
    %v2491 = vrcp.pop %v2489
    %v2492 = vmul.f32 %v2481, %v2490
    %v2493 = vmul.f32 %v2483, %v2491
    %2494 = vrot.lane.b32.xlu0 %v2008, 64
    %v2495 = vpop.permute.xlu0 %2494
    %2496 = vrot.lane.b32.xlu0 %v2011, 64
    %v2497 = vpop.permute.xlu0 %2496
    %v2501 = vsel %vm782, %v2492, 0
    %v2504 = vsel %vm782, %v2493, 0
    %2506 = vmatpush.msra.mxu0 0.0
    %2507 = vmatpush.msra.mxu0 0.0
    %2508 = vmatpush.msra.mxu0 0.0
    %2509 = vmatpush.msra.mxu0 0.0
    %2510 = vmatpush.msra.mxu0 0.0
    %2511 = vmatpush.msra.mxu0 0.0
    %2512 = vmatpush.msra.mxu0 0.0
    %2513 = vmatpush.msra.mxu0 0.0
    %2514 = vmatpush.msra.mxu0 0.0
    %2515 = vmatpush.msra.mxu0 0.0
    %2516 = vmatpush.msra.mxu0 0.0
    %2517 = vmatpush.msra.mxu0 0.0
    %2518 = vmatpush.msra.mxu0 0.0
    %2519 = vmatpush.msra.mxu0 0.0
    %2520 = vmatpush.msra.mxu0 %v2497
    %2521 = vmatpush.msra.mxu0 %v2495
    %2522 = vmatmul.f32.gmra.mxu0 %v2501
    %v2523 = vpop.f32.mrf.mxu0
    %v2524 = vadd.f32 0.0, %v2523
    %2525 = vmatmul.f32.gmra.mxu0 %v2504
    %v2526 = vpop.f32.mrf.mxu0
    %v2527 = vadd.f32 0.0, %v2526
    %2528 = vdwg.mxu0
    %2529 = vrot.lane.b32.xlu0 %v2008, 120
    %v2530 = vpop.permute.xlu0 %2529
    %2531 = vrot.lane.b32.xlu0 %v2011, 120
    %v2532 = vpop.permute.xlu0 %2531
    %2533 = vrot.lane.b32.xlu0 %v2008, 88
    %v2534 = vpop.permute.xlu0 %2533
    %2535 = vrot.lane.b32.xlu0 %v2011, 88
    %v2536 = vpop.permute.xlu0 %2535
    %v2537 = vsel %vm748, %v2530, 0
    %v2539 = vsel %vm748, %v2532, 0
    %v2541 = vsel %vm748, %v2534, 0
    %v2543 = vsel %vm748, %v2536, 0
    %2545 = vmatpush.xpose.msra.mxu0 0.0
    %2546 = vmatpush.xpose.msra.mxu0 0.0
    %2547 = vmatpush.xpose.msra.mxu0 0.0
    %2548 = vmatpush.xpose.msra.mxu0 0.0
    %2549 = vmatpush.xpose.msra.mxu0 0.0
    %2550 = vmatpush.xpose.msra.mxu0 0.0
    %2551 = vmatpush.xpose.msra.mxu0 0.0
    %2552 = vmatpush.xpose.msra.mxu0 0.0
    %2553 = vmatpush.xpose.msra.mxu0 0.0
    %2554 = vmatpush.xpose.msra.mxu0 0.0
    %2555 = vmatpush.xpose.msra.mxu0 0.0
    %2556 = vmatpush.xpose.msra.mxu0 0.0
    %2557 = vmatpush.xpose.msra.mxu0 0.0
    %2558 = vmatpush.xpose.msra.mxu0 0.0
    %2559 = vmatpush.xpose.msra.mxu0 %v2543
    %2560 = vmatpush.xpose.msra.mxu0 %v2541
    %2561 = vmatmul.f32.gmra.mxu0 %v2537
    %v2562 = vpop.f32.mrf.mxu0
    %v2563 = vadd.f32 0.0, %v2562
    %2564 = vmatmul.f32.gmra.mxu0 %v2539
    %v2565 = vpop.f32.mrf.mxu0
    %v2566 = vadd.f32 0.0, %v2565
    %2567 = vdwg.mxu0
    %v2568 = vmul.f32 %v2563, 0.35355338
    %v2569 = vmul.f32 %v2566, 0.35355338
    %v2570 = vsel %vm782, %v2568, -inf
    %2571 = vmax.xlane.f32.xlu0 %v2570
    %v2572 = vpop.xlane.xlu0 %2571
    %v2573 = vsel %vm782, %v2569, -inf
    %2574 = vmax.xlane.f32.xlu0 %v2573
    %v2575 = vpop.xlane.xlu0 %2574
    %v2576 = vsub.f32 %v2568, %v2572
    %v2577 = vsub.f32 %v2569, %v2575
    %v2578 = vmul.f32 %v2576, 1.442695
    %v2579 = vpow.pop %v2578
    %v2580 = vmul.f32 %v2577, 1.442695
    %v2581 = vpow.pop %v2580
    %v2582 = vsel %vm782, %v2579, 0.0
    %2583 = vadd.xlane.f32.xlu0 %v2582
    %v2584 = vpop.xlane.xlu0 %2583
    %v2585 = vsel %vm782, %v2581, 0.0
    %2586 = vadd.xlane.f32.xlu0 %v2585
    %v2587 = vpop.xlane.xlu0 %2586
    %v2588 = vrcp.pop %v2584
    %v2589 = vrcp.pop %v2587
    %v2590 = vmul.f32 %v2579, %v2588
    %v2591 = vmul.f32 %v2581, %v2589
    %2592 = vrot.lane.b32.xlu0 %v2008, 56
    %v2593 = vpop.permute.xlu0 %2592
    %2594 = vrot.lane.b32.xlu0 %v2011, 56
    %v2595 = vpop.permute.xlu0 %2594
    %v2599 = vsel %vm782, %v2590, 0
    %v2602 = vsel %vm782, %v2591, 0
    %2604 = vmatpush.msra.mxu0 0.0
    %2605 = vmatpush.msra.mxu0 0.0
    %2606 = vmatpush.msra.mxu0 0.0
    %2607 = vmatpush.msra.mxu0 0.0
    %2608 = vmatpush.msra.mxu0 0.0
    %2609 = vmatpush.msra.mxu0 0.0
    %2610 = vmatpush.msra.mxu0 0.0
    %2611 = vmatpush.msra.mxu0 0.0
    %2612 = vmatpush.msra.mxu0 0.0
    %2613 = vmatpush.msra.mxu0 0.0
    %2614 = vmatpush.msra.mxu0 0.0
    %2615 = vmatpush.msra.mxu0 0.0
    %2616 = vmatpush.msra.mxu0 0.0
    %2617 = vmatpush.msra.mxu0 0.0
    %2618 = vmatpush.msra.mxu0 %v2595
    %2619 = vmatpush.msra.mxu0 %v2593
    %2620 = vmatmul.f32.gmra.mxu0 %v2599
    %v2621 = vpop.f32.mrf.mxu0
    %v2622 = vadd.f32 0.0, %v2621
    %2623 = vmatmul.f32.gmra.mxu0 %v2602
    %v2624 = vpop.f32.mrf.mxu0
    %v2625 = vadd.f32 0.0, %v2624
    %2626 = vdwg.mxu0
    %2627 = vrot.lane.b32.xlu0 %v2008, 112
    %v2628 = vpop.permute.xlu0 %2627
    %2629 = vrot.lane.b32.xlu0 %v2011, 112
    %v2630 = vpop.permute.xlu0 %2629
    %2631 = vrot.lane.b32.xlu0 %v2008, 80
    %v2632 = vpop.permute.xlu0 %2631
    %2633 = vrot.lane.b32.xlu0 %v2011, 80
    %v2634 = vpop.permute.xlu0 %2633
    %v2635 = vsel %vm748, %v2628, 0
    %v2637 = vsel %vm748, %v2630, 0
    %v2639 = vsel %vm748, %v2632, 0
    %v2641 = vsel %vm748, %v2634, 0
    %2643 = vmatpush.xpose.msra.mxu0 0.0
    %2644 = vmatpush.xpose.msra.mxu0 0.0
    %2645 = vmatpush.xpose.msra.mxu0 0.0
    %2646 = vmatpush.xpose.msra.mxu0 0.0
    %2647 = vmatpush.xpose.msra.mxu0 0.0
    %2648 = vmatpush.xpose.msra.mxu0 0.0
    %2649 = vmatpush.xpose.msra.mxu0 0.0
    %2650 = vmatpush.xpose.msra.mxu0 0.0
    %2651 = vmatpush.xpose.msra.mxu0 0.0
    %2652 = vmatpush.xpose.msra.mxu0 0.0
    %2653 = vmatpush.xpose.msra.mxu0 0.0
    %2654 = vmatpush.xpose.msra.mxu0 0.0
    %2655 = vmatpush.xpose.msra.mxu0 0.0
    %2656 = vmatpush.xpose.msra.mxu0 0.0
    %2657 = vmatpush.xpose.msra.mxu0 %v2641
    %2658 = vmatpush.xpose.msra.mxu0 %v2639
    %2659 = vmatmul.f32.gmra.mxu0 %v2635
    %v2660 = vpop.f32.mrf.mxu0
    %v2661 = vadd.f32 0.0, %v2660
    %2662 = vmatmul.f32.gmra.mxu0 %v2637
    %v2663 = vpop.f32.mrf.mxu0
    %v2664 = vadd.f32 0.0, %v2663
    %2665 = vdwg.mxu0
    %v2666 = vmul.f32 %v2661, 0.35355338
    %v2667 = vmul.f32 %v2664, 0.35355338
    %v2668 = vsel %vm782, %v2666, -inf
    %2669 = vmax.xlane.f32.xlu0 %v2668
    %v2670 = vpop.xlane.xlu0 %2669
    %v2671 = vsel %vm782, %v2667, -inf
    %2672 = vmax.xlane.f32.xlu0 %v2671
    %v2673 = vpop.xlane.xlu0 %2672
    %v2674 = vsub.f32 %v2666, %v2670
    %v2675 = vsub.f32 %v2667, %v2673
    %v2676 = vmul.f32 %v2674, 1.442695
    %v2677 = vpow.pop %v2676
    %v2678 = vmul.f32 %v2675, 1.442695
    %v2679 = vpow.pop %v2678
    %v2680 = vsel %vm782, %v2677, 0.0
    %2681 = vadd.xlane.f32.xlu0 %v2680
    %v2682 = vpop.xlane.xlu0 %2681
    %v2683 = vsel %vm782, %v2679, 0.0
    %2684 = vadd.xlane.f32.xlu0 %v2683
    %v2685 = vpop.xlane.xlu0 %2684
    %v2686 = vrcp.pop %v2682
    %v2687 = vrcp.pop %v2685
    %v2688 = vmul.f32 %v2677, %v2686
    %v2689 = vmul.f32 %v2679, %v2687
    %2690 = vrot.lane.b32.xlu0 %v2008, 48
    %v2691 = vpop.permute.xlu0 %2690
    %2692 = vrot.lane.b32.xlu0 %v2011, 48
    %v2693 = vpop.permute.xlu0 %2692
    %v2697 = vsel %vm782, %v2688, 0
    %v2700 = vsel %vm782, %v2689, 0
    %2702 = vmatpush.msra.mxu0 0.0
    %2703 = vmatpush.msra.mxu0 0.0
    %2704 = vmatpush.msra.mxu0 0.0
    %2705 = vmatpush.msra.mxu0 0.0
    %2706 = vmatpush.msra.mxu0 0.0
    %2707 = vmatpush.msra.mxu0 0.0
    %2708 = vmatpush.msra.mxu0 0.0
    %2709 = vmatpush.msra.mxu0 0.0
    %2710 = vmatpush.msra.mxu0 0.0
    %2711 = vmatpush.msra.mxu0 0.0
    %2712 = vmatpush.msra.mxu0 0.0
    %2713 = vmatpush.msra.mxu0 0.0
    %2714 = vmatpush.msra.mxu0 0.0
    %2715 = vmatpush.msra.mxu0 0.0
    %2716 = vmatpush.msra.mxu0 %v2693
    %2717 = vmatpush.msra.mxu0 %v2691
    %2718 = vmatmul.f32.gmra.mxu0 %v2697
    %v2719 = vpop.f32.mrf.mxu0
    %v2720 = vadd.f32 0.0, %v2719
    %2721 = vmatmul.f32.gmra.mxu0 %v2700
    %v2722 = vpop.f32.mrf.mxu0
    %v2723 = vadd.f32 0.0, %v2722
    %2724 = vdwg.mxu0
    %2725 = vrot.lane.b32.xlu0 %v2008, 104
    %v2726 = vpop.permute.xlu0 %2725
    %2727 = vrot.lane.b32.xlu0 %v2011, 104
    %v2728 = vpop.permute.xlu0 %2727
    %2729 = vrot.lane.b32.xlu0 %v2008, 72
    %v2730 = vpop.permute.xlu0 %2729
    %2731 = vrot.lane.b32.xlu0 %v2011, 72
    %v2732 = vpop.permute.xlu0 %2731
    %v2733 = vsel %vm748, %v2726, 0
    %v2735 = vsel %vm748, %v2728, 0
    %v2737 = vsel %vm748, %v2730, 0
    %v2739 = vsel %vm748, %v2732, 0
    %2741 = vmatpush.xpose.msra.mxu0 0.0
    %2742 = vmatpush.xpose.msra.mxu0 0.0
    %2743 = vmatpush.xpose.msra.mxu0 0.0
    %2744 = vmatpush.xpose.msra.mxu0 0.0
    %2745 = vmatpush.xpose.msra.mxu0 0.0
    %2746 = vmatpush.xpose.msra.mxu0 0.0
    %2747 = vmatpush.xpose.msra.mxu0 0.0
    %2748 = vmatpush.xpose.msra.mxu0 0.0
    %2749 = vmatpush.xpose.msra.mxu0 0.0
    %2750 = vmatpush.xpose.msra.mxu0 0.0
    %2751 = vmatpush.xpose.msra.mxu0 0.0
    %2752 = vmatpush.xpose.msra.mxu0 0.0
    %2753 = vmatpush.xpose.msra.mxu0 0.0
    %2754 = vmatpush.xpose.msra.mxu0 0.0
    %2755 = vmatpush.xpose.msra.mxu0 %v2739
    %2756 = vmatpush.xpose.msra.mxu0 %v2737
    %2757 = vmatmul.f32.gmra.mxu0 %v2733
    %v2758 = vpop.f32.mrf.mxu0
    %v2759 = vadd.f32 0.0, %v2758
    %2760 = vmatmul.f32.gmra.mxu0 %v2735
    %v2761 = vpop.f32.mrf.mxu0
    %v2762 = vadd.f32 0.0, %v2761
    %2763 = vdwg.mxu0
    %v2764 = vmul.f32 %v2759, 0.35355338
    %v2765 = vmul.f32 %v2762, 0.35355338
    %v2766 = vsel %vm782, %v2764, -inf
    %2767 = vmax.xlane.f32.xlu0 %v2766
    %v2768 = vpop.xlane.xlu0 %2767
    %v2769 = vsel %vm782, %v2765, -inf
    %2770 = vmax.xlane.f32.xlu0 %v2769
    %v2771 = vpop.xlane.xlu0 %2770
    %v2772 = vsub.f32 %v2764, %v2768
    %v2773 = vsub.f32 %v2765, %v2771
    %v2774 = vmul.f32 %v2772, 1.442695
    %v2775 = vpow.pop %v2774
    %v2776 = vmul.f32 %v2773, 1.442695
    %v2777 = vpow.pop %v2776
    %v2778 = vsel %vm782, %v2775, 0.0
    %2779 = vadd.xlane.f32.xlu0 %v2778
    %v2780 = vpop.xlane.xlu0 %2779
    %v2781 = vsel %vm782, %v2777, 0.0
    %2782 = vadd.xlane.f32.xlu0 %v2781
    %v2783 = vpop.xlane.xlu0 %2782
    %v2784 = vrcp.pop %v2780
    %v2785 = vrcp.pop %v2783
    %v2786 = vmul.f32 %v2775, %v2784
    %v2787 = vmul.f32 %v2777, %v2785
    %2788 = vrot.lane.b32.xlu0 %v2008, 40
    %v2789 = vpop.permute.xlu0 %2788
    %2790 = vrot.lane.b32.xlu0 %v2011, 40
    %v2791 = vpop.permute.xlu0 %2790
    %v2795 = vsel %vm782, %v2786, 0
    %v2798 = vsel %vm782, %v2787, 0
    %2800 = vmatpush.msra.mxu0 0.0
    %2801 = vmatpush.msra.mxu0 0.0
    %2802 = vmatpush.msra.mxu0 0.0
    %2803 = vmatpush.msra.mxu0 0.0
    %2804 = vmatpush.msra.mxu0 0.0
    %2805 = vmatpush.msra.mxu0 0.0
    %2806 = vmatpush.msra.mxu0 0.0
    %2807 = vmatpush.msra.mxu0 0.0
    %2808 = vmatpush.msra.mxu0 0.0
    %2809 = vmatpush.msra.mxu0 0.0
    %2810 = vmatpush.msra.mxu0 0.0
    %2811 = vmatpush.msra.mxu0 0.0
    %2812 = vmatpush.msra.mxu0 0.0
    %2813 = vmatpush.msra.mxu0 0.0
    %2814 = vmatpush.msra.mxu0 %v2791
    %2815 = vmatpush.msra.mxu0 %v2789
    %2816 = vmatmul.f32.gmra.mxu0 %v2795
    %v2817 = vpop.f32.mrf.mxu0
    %v2818 = vadd.f32 0.0, %v2817
    %2819 = vmatmul.f32.gmra.mxu0 %v2798
    %v2820 = vpop.f32.mrf.mxu0
    %v2821 = vadd.f32 0.0, %v2820
    %2822 = vdwg.mxu0
    %2825 = vrot.lane.b32.xlu0 %v2622, 8
    %v2826 = vpop.permute.xlu0 %2825
    %2827 = vrot.lane.b32.xlu0 %v2625, 8
    %v2828 = vpop.permute.xlu0 %2827
    %2833 = vrot.lane.b32.xlu0 %v2720, 16
    %v2834 = vpop.permute.xlu0 %2833
    %2835 = vrot.lane.b32.xlu0 %v2723, 16
    %v2836 = vpop.permute.xlu0 %2835
    %2841 = vrot.lane.b32.xlu0 %v2818, 24
    %v2842 = vpop.permute.xlu0 %2841
    %2843 = vrot.lane.b32.xlu0 %v2821, 24
    %v2844 = vpop.permute.xlu0 %2843
    %v2847 = vsel %vm748, %v2524, %v2826
    %v2848 = vsel %vm748, %v2527, %v2828
    %v2849 = vsel %vm782, %v2847, %v2834
    %v2850 = vsel %vm782, %v2848, %v2836
    %v2851 = vsel %vm1162, %v2849, %v2842
    %v2852 = vsel %vm1162, %v2850, %v2844
    %v2854 = vperm.slane %v1950, 0
    %v2857 = vsel %vm700, %v2431, 0
    %v2860 = vsel %vm700, %v2432, 0
    %v2863 = vsel %vm700, %v2851, 0
    %v2866 = vsel %vm700, %v2852, 0
    %2868 = vmatpush.msra.mxu0 0.0
    %2869 = vmatpush.msra.mxu0 0.0
    %2870 = vmatpush.msra.mxu0 0.0
    %2871 = vmatpush.msra.mxu0 0.0
    %2872 = vmatpush.msra.mxu0 0.0
    %2873 = vmatpush.msra.mxu0 0.0
    %2874 = vmatpush.msra.mxu0 0.0
    %2875 = vmatpush.msra.mxu0 0.0
    %2876 = vmatpush.msra.mxu0 0.0
    %2877 = vmatpush.msra.mxu0 0.0
    %2878 = vmatpush.msra.mxu0 0.0
    %2879 = vmatpush.msra.mxu0 0.0
    %2880 = vmatpush.msra.mxu0 %v1949
    %2881 = vmatpush.msra.mxu0 %v1948
    %2882 = vmatpush.msra.mxu0 %v1947
    %2883 = vmatpush.msra.mxu0 %v1946
    %2884 = vmatmul.f32.gmra.mxu0 %v2857
    %v2885 = vpop.f32.mrf.mxu0
    %v2886 = vadd.f32 %v2854, %v2885
    %2887 = vmatmul.f32.gmra.mxu0 %v2860
    %v2888 = vpop.f32.mrf.mxu0
    %v2889 = vadd.f32 %v2854, %v2888
    %2890 = vmatmul.f32.gmra.mxu0 %v2863
    %v2891 = vpop.f32.mrf.mxu0
    %v2892 = vadd.f32 %v2854, %v2891
    %2893 = vmatmul.f32.gmra.mxu0 %v2866
    %v2894 = vpop.f32.mrf.mxu0
    %v2895 = vadd.f32 %v2854, %v2894
    %2896 = vdwg.mxu0
    %v2897 = vadd.f32 %v2886, %v1937
    %v2898 = vadd.f32 %v2889, %v1938
    %v2899 = vadd.f32 %v2892, %v1939
    %v2900 = vadd.f32 %v2895, %v1940
    %v2901 = vsel %vm700, %v2897, 0.0
    %2902 = vadd.xlane.f32.xlu0 %v2901
    %v2903 = vpop.xlane.xlu0 %2902
    %v2904 = vsel %vm700, %v2898, 0.0
    %2905 = vadd.xlane.f32.xlu0 %v2904
    %v2906 = vpop.xlane.xlu0 %2905
    %v2907 = vsel %vm700, %v2899, 0.0
    %2908 = vadd.xlane.f32.xlu0 %v2907
    %v2909 = vpop.xlane.xlu0 %2908
    %v2910 = vsel %vm700, %v2900, 0.0
    %2911 = vadd.xlane.f32.xlu0 %v2910
    %v2912 = vpop.xlane.xlu0 %2911
    %v2913 = vmul.f32 %v2903, %v1651
    %v2914 = vmul.f32 %v2906, %v1651
    %v2915 = vmul.f32 %v2909, %v1651
    %v2916 = vmul.f32 %v2912, %v1651
    %v2917 = vsub.f32 %v2897, %v2913
    %v2918 = vsub.f32 %v2898, %v2914
    %v2919 = vsub.f32 %v2899, %v2915
    %v2920 = vsub.f32 %v2900, %v2916
    %v2921 = vmul.f32 %v2917, %v2917
    %v2922 = vmul.f32 %v2918, %v2918
    %v2923 = vmul.f32 %v2919, %v2919
    %v2924 = vmul.f32 %v2920, %v2920
    %v2925 = vsel %vm700, %v2921, 0.0
    %2926 = vadd.xlane.f32.xlu0 %v2925
    %v2927 = vpop.xlane.xlu0 %2926
    %v2928 = vsel %vm700, %v2922, 0.0
    %2929 = vadd.xlane.f32.xlu0 %v2928
    %v2930 = vpop.xlane.xlu0 %2929
    %v2931 = vsel %vm700, %v2923, 0.0
    %2932 = vadd.xlane.f32.xlu0 %v2931
    %v2933 = vpop.xlane.xlu0 %2932
    %v2934 = vsel %vm700, %v2924, 0.0
    %2935 = vadd.xlane.f32.xlu0 %v2934
    %v2936 = vpop.xlane.xlu0 %2935
    %v2937 = vmul.f32 %v2927, %v1651
    %v2938 = vmul.f32 %v2930, %v1651
    %v2939 = vmul.f32 %v2933, %v1651
    %v2940 = vmul.f32 %v2936, %v1651
    %v2941 = vadd.f32 %v2937, 1e-05
    %v2942 = vadd.f32 %v2938, 1e-05
    %v2943 = vadd.f32 %v2939, 1e-05
    %v2944 = vadd.f32 %v2940, 1e-05
    %v2945 = vrsqrt.pop %v2941
    %v2946 = vmul.f32 %v2945, %v2941
    %v2947 = vmul.f32 %v2946, %v2945
    %v2948 = vmul.f32 0.5, %v2947
    %v2949 = vsub.f32 1.5, %v2948
    %v2950 = vmul.f32 %v2945, %v2949
    %vm2951 = vweird.f32 %v2941
    %vm2952 = vweird.f32 %v2945
    %vm2953 = vmor %vm2951, %vm2952
    %v2954 = vsel %vm2953, %v2945, %v2950
    %v2955 = vrsqrt.pop %v2942
    %v2956 = vmul.f32 %v2955, %v2942
    %v2957 = vmul.f32 %v2956, %v2955
    %v2958 = vmul.f32 0.5, %v2957
    %v2959 = vsub.f32 1.5, %v2958
    %v2960 = vmul.f32 %v2955, %v2959
    %vm2961 = vweird.f32 %v2942
    %vm2962 = vweird.f32 %v2955
    %vm2963 = vmor %vm2961, %vm2962
    %v2964 = vsel %vm2963, %v2955, %v2960
    %v2965 = vrsqrt.pop %v2943
    %v2966 = vmul.f32 %v2965, %v2943
    %v2967 = vmul.f32 %v2966, %v2965
    %v2968 = vmul.f32 0.5, %v2967
    %v2969 = vsub.f32 1.5, %v2968
    %v2970 = vmul.f32 %v2965, %v2969
    %vm2971 = vweird.f32 %v2943
    %vm2972 = vweird.f32 %v2965
    %vm2973 = vmor %vm2971, %vm2972
    %v2974 = vsel %vm2973, %v2965, %v2970
    %v2975 = vrsqrt.pop %v2944
    %v2976 = vmul.f32 %v2975, %v2944
    %v2977 = vmul.f32 %v2976, %v2975
    %v2978 = vmul.f32 0.5, %v2977
    %v2979 = vsub.f32 1.5, %v2978
    %v2980 = vmul.f32 %v2975, %v2979
    %vm2981 = vweird.f32 %v2944
    %vm2982 = vweird.f32 %v2975
    %vm2983 = vmor %vm2981, %vm2982
    %v2984 = vsel %vm2983, %v2975, %v2980
    %v2985 = vmul.f32 %v2917, %v2954
    %v2986 = vmul.f32 %v2918, %v2964
    %v2987 = vmul.f32 %v2919, %v2974
    %v2988 = vmul.f32 %v2920, %v2984
    %v2990 = vperm.slane %v1951, 0
    %v2992 = vmul.f32 %v2985, %v2990
    %v2993 = vmul.f32 %v2986, %v2990
    %v2994 = vmul.f32 %v2987, %v2990
    %v2995 = vmul.f32 %v2988, %v2990
    %v2997 = vperm.slane %v1952, 0
    %v2999 = vadd.f32 %v2992, %v2997
    %v3000 = vadd.f32 %v2993, %v2997
    %v3001 = vadd.f32 %v2994, %v2997
    %v3002 = vadd.f32 %v2995, %v2997
    %v3004 = vperm.slane %v1957, 0
    %v3007 = vsel %vm700, %v2999, 0
    %v3010 = vsel %vm700, %v3000, 0
    %v3013 = vsel %vm700, %v3001, 0
    %v3016 = vsel %vm700, %v3002, 0
    %3018 = vmatpush.msra.mxu0 0.0
    %3019 = vmatpush.msra.mxu0 0.0
    %3020 = vmatpush.msra.mxu0 0.0
    %3021 = vmatpush.msra.mxu0 0.0
    %3022 = vmatpush.msra.mxu0 0.0
    %3023 = vmatpush.msra.mxu0 0.0
    %3024 = vmatpush.msra.mxu0 0.0
    %3025 = vmatpush.msra.mxu0 0.0
    %3026 = vmatpush.msra.mxu0 0.0
    %3027 = vmatpush.msra.mxu0 0.0
    %3028 = vmatpush.msra.mxu0 0.0
    %3029 = vmatpush.msra.mxu0 0.0
    %3030 = vmatpush.msra.mxu0 %v1956
    %3031 = vmatpush.msra.mxu0 %v1955
    %3032 = vmatpush.msra.mxu0 %v1954
    %3033 = vmatpush.msra.mxu0 %v1953
    %3034 = vmatmul.f32.gmra.mxu0 %v3007
    %v3035 = vpop.f32.mrf.mxu0
    %v3036 = vadd.f32 %v3004, %v3035
    %3037 = vmatmul.f32.gmra.mxu0 %v3010
    %v3038 = vpop.f32.mrf.mxu0
    %v3039 = vadd.f32 %v3004, %v3038
    %3040 = vmatmul.f32.gmra.mxu0 %v3013
    %v3041 = vpop.f32.mrf.mxu0
    %v3042 = vadd.f32 %v3004, %v3041
    %3043 = vmatmul.f32.gmra.mxu0 %v3016
    %v3044 = vpop.f32.mrf.mxu0
    %v3045 = vadd.f32 %v3004, %v3044
    %3046 = vdwg.mxu0
    %v3047 = vmax.f32 %v3036, 0.0
    %v3048 = vmax.f32 %v3039, 0.0
    %v3049 = vmax.f32 %v3042, 0.0
    %v3050 = vmax.f32 %v3045, 0.0
    %v3052 = vperm.slane %v1966, 0
    %v3055 = vsel %vm1793, %v3047, 0
    %v3058 = vsel %vm1793, %v3048, 0
    %v3061 = vsel %vm1793, %v3049, 0
    %v3064 = vsel %vm1793, %v3050, 0
    %3066 = vmatpush.msra.mxu0 0.0
    %3067 = vmatpush.msra.mxu0 0.0
    %3068 = vmatpush.msra.mxu0 0.0
    %3069 = vmatpush.msra.mxu0 0.0
    %3070 = vmatpush.msra.mxu0 0.0
    %3071 = vmatpush.msra.mxu0 0.0
    %3072 = vmatpush.msra.mxu0 0.0
    %3073 = vmatpush.msra.mxu0 0.0
    %3074 = vmatpush.msra.mxu0 %v1965
    %3075 = vmatpush.msra.mxu0 %v1964
    %3076 = vmatpush.msra.mxu0 %v1963
    %3077 = vmatpush.msra.mxu0 %v1962
    %3078 = vmatpush.msra.mxu0 %v1961
    %3079 = vmatpush.msra.mxu0 %v1960
    %3080 = vmatpush.msra.mxu0 %v1959
    %3081 = vmatpush.msra.mxu0 %v1958
    %3082 = vmatmul.f32.gmra.mxu0 %v3055
    %v3083 = vpop.f32.mrf.mxu0
    %v3084 = vadd.f32 %v3052, %v3083
    %3085 = vmatmul.f32.gmra.mxu0 %v3058
    %v3086 = vpop.f32.mrf.mxu0
    %v3087 = vadd.f32 %v3052, %v3086
    %3088 = vmatmul.f32.gmra.mxu0 %v3061
    %v3089 = vpop.f32.mrf.mxu0
    %v3090 = vadd.f32 %v3052, %v3089
    %3091 = vmatmul.f32.gmra.mxu0 %v3064
    %v3092 = vpop.f32.mrf.mxu0
    %v3093 = vadd.f32 %v3052, %v3092
    %3094 = vdwg.mxu0
    %v3095 = vadd.f32 %v3084, %v2999
    %v3096 = vadd.f32 %v3087, %v3000
    %v3097 = vadd.f32 %v3090, %v3001
    %v3098 = vadd.f32 %v3093, %v3002
    %v3099 = vsel %vm700, %v3095, 0.0
    %3100 = vadd.xlane.f32.xlu0 %v3099
    %v3101 = vpop.xlane.xlu0 %3100
    %v3102 = vsel %vm700, %v3096, 0.0
    %3103 = vadd.xlane.f32.xlu0 %v3102
    %v3104 = vpop.xlane.xlu0 %3103
    %v3105 = vsel %vm700, %v3097, 0.0
    %3106 = vadd.xlane.f32.xlu0 %v3105
    %v3107 = vpop.xlane.xlu0 %3106
    %v3108 = vsel %vm700, %v3098, 0.0
    %3109 = vadd.xlane.f32.xlu0 %v3108
    %v3110 = vpop.xlane.xlu0 %3109
    %v3111 = vmul.f32 %v3101, %v1651
    %v3112 = vmul.f32 %v3104, %v1651
    %v3113 = vmul.f32 %v3107, %v1651
    %v3114 = vmul.f32 %v3110, %v1651
    %v3115 = vsub.f32 %v3095, %v3111
    %v3116 = vsub.f32 %v3096, %v3112
    %v3117 = vsub.f32 %v3097, %v3113
    %v3118 = vsub.f32 %v3098, %v3114
    %v3119 = vmul.f32 %v3115, %v3115
    %v3120 = vmul.f32 %v3116, %v3116
    %v3121 = vmul.f32 %v3117, %v3117
    %v3122 = vmul.f32 %v3118, %v3118
    %v3123 = vsel %vm700, %v3119, 0.0
    %3124 = vadd.xlane.f32.xlu0 %v3123
    %v3125 = vpop.xlane.xlu0 %3124
    %v3126 = vsel %vm700, %v3120, 0.0
    %3127 = vadd.xlane.f32.xlu0 %v3126
    %v3128 = vpop.xlane.xlu0 %3127
    %v3129 = vsel %vm700, %v3121, 0.0
    %3130 = vadd.xlane.f32.xlu0 %v3129
    %v3131 = vpop.xlane.xlu0 %3130
    %v3132 = vsel %vm700, %v3122, 0.0
    %3133 = vadd.xlane.f32.xlu0 %v3132
    %v3134 = vpop.xlane.xlu0 %3133
    %v3135 = vmul.f32 %v3125, %v1651
    %v3136 = vmul.f32 %v3128, %v1651
    %v3137 = vmul.f32 %v3131, %v1651
    %v3138 = vmul.f32 %v3134, %v1651
    %v3139 = vadd.f32 %v3135, 1e-05
    %v3140 = vadd.f32 %v3136, 1e-05
    %v3141 = vadd.f32 %v3137, 1e-05
    %v3142 = vadd.f32 %v3138, 1e-05
    %v3143 = vrsqrt.pop %v3139
    %v3144 = vmul.f32 %v3143, %v3139
    %v3145 = vmul.f32 %v3144, %v3143
    %v3146 = vmul.f32 0.5, %v3145
    %v3147 = vsub.f32 1.5, %v3146
    %v3148 = vmul.f32 %v3143, %v3147
    %vm3149 = vweird.f32 %v3139
    %vm3150 = vweird.f32 %v3143
    %vm3151 = vmor %vm3149, %vm3150
    %v3152 = vsel %vm3151, %v3143, %v3148
    %v3153 = vrsqrt.pop %v3140
    %v3154 = vmul.f32 %v3153, %v3140
    %v3155 = vmul.f32 %v3154, %v3153
    %v3156 = vmul.f32 0.5, %v3155
    %v3157 = vsub.f32 1.5, %v3156
    %v3158 = vmul.f32 %v3153, %v3157
    %vm3159 = vweird.f32 %v3140
    %vm3160 = vweird.f32 %v3153
    %vm3161 = vmor %vm3159, %vm3160
    %v3162 = vsel %vm3161, %v3153, %v3158
    %v3163 = vrsqrt.pop %v3141
    %v3164 = vmul.f32 %v3163, %v3141
    %v3165 = vmul.f32 %v3164, %v3163
    %v3166 = vmul.f32 0.5, %v3165
    %v3167 = vsub.f32 1.5, %v3166
    %v3168 = vmul.f32 %v3163, %v3167
    %vm3169 = vweird.f32 %v3141
    %vm3170 = vweird.f32 %v3163
    %vm3171 = vmor %vm3169, %vm3170
    %v3172 = vsel %vm3171, %v3163, %v3168
    %v3173 = vrsqrt.pop %v3142
    %v3174 = vmul.f32 %v3173, %v3142
    %v3175 = vmul.f32 %v3174, %v3173
    %v3176 = vmul.f32 0.5, %v3175
    %v3177 = vsub.f32 1.5, %v3176
    %v3178 = vmul.f32 %v3173, %v3177
    %vm3179 = vweird.f32 %v3142
    %vm3180 = vweird.f32 %v3173
    %vm3181 = vmor %vm3179, %vm3180
    %v3182 = vsel %vm3181, %v3173, %v3178
    %v3183 = vmul.f32 %v3115, %v3152
    %v3184 = vmul.f32 %v3116, %v3162
    %v3185 = vmul.f32 %v3117, %v3172
    %v3186 = vmul.f32 %v3118, %v3182
    %v3188 = vperm.slane %v1967, 0
    %v3190 = vmul.f32 %v3183, %v3188
    %v3191 = vmul.f32 %v3184, %v3188
    %v3192 = vmul.f32 %v3185, %v3188
    %v3193 = vmul.f32 %v3186, %v3188
    %v3195 = vperm.slane %v1968, 0
    %v3197 = vadd.f32 %v3190, %v3195
    %v3198 = vadd.f32 %v3191, %v3195
    %v3199 = vadd.f32 %v3192, %v3195
    %v3200 = vadd.f32 %v3193, %v3195
    %v3201 = vld [vmem:[#allocation30] sm:$0x1]
    %v3202 = vld [vmem:[#allocation31] sm:$0x1]
    %v3203 = vsel %vm700, %v3197, 0.0
    %3204 = vadd.xlane.f32.xlu0 %v3203
    %v3205 = vpop.xlane.xlu0 %3204
    %v3206 = vsel %vm700, %v3198, 0.0
    %3207 = vadd.xlane.f32.xlu0 %v3206
    %v3208 = vpop.xlane.xlu0 %3207
    %v3209 = vsel %vm700, %v3199, 0.0
    %3210 = vadd.xlane.f32.xlu0 %v3209
    %v3211 = vpop.xlane.xlu0 %3210
    %v3212 = vsel %vm700, %v3200, 0.0
    %3213 = vadd.xlane.f32.xlu0 %v3212
    %v3214 = vpop.xlane.xlu0 %3213
    %v3215 = vmul.f32 %v3205, %v1651
    %v3216 = vmul.f32 %v3208, %v1651
    %v3217 = vmul.f32 %v3211, %v1651
    %v3218 = vmul.f32 %v3214, %v1651
    %v3219 = vsub.f32 %v3197, %v3215
    %v3220 = vsub.f32 %v3198, %v3216
    %v3221 = vsub.f32 %v3199, %v3217
    %v3222 = vsub.f32 %v3200, %v3218
    %v3223 = vmul.f32 %v3219, %v3219
    %v3224 = vmul.f32 %v3220, %v3220
    %v3225 = vmul.f32 %v3221, %v3221
    %v3226 = vmul.f32 %v3222, %v3222
    %v3227 = vsel %vm700, %v3223, 0.0
    %3228 = vadd.xlane.f32.xlu0 %v3227
    %v3229 = vpop.xlane.xlu0 %3228
    %v3230 = vsel %vm700, %v3224, 0.0
    %3231 = vadd.xlane.f32.xlu0 %v3230
    %v3232 = vpop.xlane.xlu0 %3231
    %v3233 = vsel %vm700, %v3225, 0.0
    %3234 = vadd.xlane.f32.xlu0 %v3233
    %v3235 = vpop.xlane.xlu0 %3234
    %v3236 = vsel %vm700, %v3226, 0.0
    %3237 = vadd.xlane.f32.xlu0 %v3236
    %v3238 = vpop.xlane.xlu0 %3237
    %v3239 = vmul.f32 %v3229, %v1651
    %v3240 = vmul.f32 %v3232, %v1651
    %v3241 = vmul.f32 %v3235, %v1651
    %v3242 = vmul.f32 %v3238, %v1651
    %v3243 = vadd.f32 %v3239, 1e-06
    %v3244 = vadd.f32 %v3240, 1e-06
    %v3245 = vadd.f32 %v3241, 1e-06
    %v3246 = vadd.f32 %v3242, 1e-06
    %v3247 = vrsqrt.pop %v3243
    %v3248 = vmul.f32 %v3247, %v3243
    %v3249 = vmul.f32 %v3248, %v3247
    %v3250 = vmul.f32 0.5, %v3249
    %v3251 = vsub.f32 1.5, %v3250
    %v3252 = vmul.f32 %v3247, %v3251
    %vm3253 = vweird.f32 %v3243
    %vm3254 = vweird.f32 %v3247
    %vm3255 = vmor %vm3253, %vm3254
    %v3256 = vsel %vm3255, %v3247, %v3252
    %v3257 = vrsqrt.pop %v3244
    %v3258 = vmul.f32 %v3257, %v3244
    %v3259 = vmul.f32 %v3258, %v3257
    %v3260 = vmul.f32 0.5, %v3259
    %v3261 = vsub.f32 1.5, %v3260
    %v3262 = vmul.f32 %v3257, %v3261
    %vm3263 = vweird.f32 %v3244
    %vm3264 = vweird.f32 %v3257
    %vm3265 = vmor %vm3263, %vm3264
    %v3266 = vsel %vm3265, %v3257, %v3262
    %v3267 = vrsqrt.pop %v3245
    %v3268 = vmul.f32 %v3267, %v3245
    %v3269 = vmul.f32 %v3268, %v3267
    %v3270 = vmul.f32 0.5, %v3269
    %v3271 = vsub.f32 1.5, %v3270
    %v3272 = vmul.f32 %v3267, %v3271
    %vm3273 = vweird.f32 %v3245
    %vm3274 = vweird.f32 %v3267
    %vm3275 = vmor %vm3273, %vm3274
    %v3276 = vsel %vm3275, %v3267, %v3272
    %v3277 = vrsqrt.pop %v3246
    %v3278 = vmul.f32 %v3277, %v3246
    %v3279 = vmul.f32 %v3278, %v3277
    %v3280 = vmul.f32 0.5, %v3279
    %v3281 = vsub.f32 1.5, %v3280
    %v3282 = vmul.f32 %v3277, %v3281
    %vm3283 = vweird.f32 %v3246
    %vm3284 = vweird.f32 %v3277
    %vm3285 = vmor %vm3283, %vm3284
    %v3286 = vsel %vm3285, %v3277, %v3282
    %v3287 = vmul.f32 %v3219, %v3256
    %v3288 = vmul.f32 %v3220, %v3266
    %v3289 = vmul.f32 %v3221, %v3276
    %v3290 = vmul.f32 %v3222, %v3286
    %v3292 = vperm.slane %v3201, 0
    %v3294 = vmul.f32 %v3287, %v3292
    %v3295 = vmul.f32 %v3288, %v3292
    %v3296 = vmul.f32 %v3289, %v3292
    %v3297 = vmul.f32 %v3290, %v3292
    %v3299 = vperm.slane %v3202, 0
    %v3301 = vadd.f32 %v3294, %v3299
    %v3302 = vadd.f32 %v3295, %v3299
    %v3303 = vadd.f32 %v3296, %v3299
    %v3304 = vadd.f32 %v3297, %v3299
    %v3305 = vld [vmem:[#allocation33] sm:$0xff]
    %v3306 = vld [vmem:[#allocation33 + $0x8] sm:$0xff]
    %v3307 = vld [vmem:[#allocation33 + $0x10] sm:$0xff]
    %v3308 = vld [vmem:[#allocation33 + $0x18] sm:$0xff]
    %v3309 = vld [vmem:[%s67] sm:$0x1]
    %v3311 = vperm.slane %v3309, 0
    %v3314 = vsel %vm700, %v3301, 0
    %v3317 = vsel %vm700, %v3302, 0
    %v3320 = vsel %vm700, %v3303, 0
    %v3323 = vsel %vm700, %v3304, 0
    %3325 = vmatpush.msra.mxu0 0.0
    %3326 = vmatpush.msra.mxu0 0.0
    %3327 = vmatpush.msra.mxu0 0.0
    %3328 = vmatpush.msra.mxu0 0.0
    %3329 = vmatpush.msra.mxu0 0.0
    %3330 = vmatpush.msra.mxu0 0.0
    %3331 = vmatpush.msra.mxu0 0.0
    %3332 = vmatpush.msra.mxu0 0.0
    %3333 = vmatpush.msra.mxu0 0.0
    %3334 = vmatpush.msra.mxu0 0.0
    %3335 = vmatpush.msra.mxu0 0.0
    %3336 = vmatpush.msra.mxu0 0.0
    %3337 = vmatpush.msra.mxu0 %v3308
    %3338 = vmatpush.msra.mxu0 %v3307
    %3339 = vmatpush.msra.mxu0 %v3306
    %3340 = vmatpush.msra.mxu0 %v3305
    %3341 = vmatmul.f32.gmra.mxu0 %v3314
    %v3342 = vpop.f32.mrf.mxu0
    %v3343 = vadd.f32 %v3311, %v3342
    %3344 = vmatmul.f32.gmra.mxu0 %v3317
    %v3345 = vpop.f32.mrf.mxu0
    %v3346 = vadd.f32 %v3311, %v3345
    %3347 = vmatmul.f32.gmra.mxu0 %v3320
    %v3348 = vpop.f32.mrf.mxu0
    %v3349 = vadd.f32 %v3311, %v3348
    %3350 = vmatmul.f32.gmra.mxu0 %v3323
    %v3351 = vpop.f32.mrf.mxu0
    %v3352 = vadd.f32 %v3311, %v3351
    %3353 = vdwg.mxu0
    %v3354 = vld [vmem:[%s59] sm:$0xff]
    %v3355 = vld [vmem:[%s59 + $0x8] sm:$0xff]
    %v3356 = vld [vmem:[%s59 + $0x10] sm:$0xff]
    %v3357 = vld [vmem:[%s59 + $0x18] sm:$0x1]
    %v3358 = vlaneseq
    %v3359 = vshrl.u32 %v3358, 7
    %v3360 = vadd.s32 %v3359, 8
    %v3361 = vadd.s32 %v3359, 16
    %v3362 = vadd.s32 %v3359, 24
    %v3363 = vld [vmem:[%s61] sm:$0xff]
    %v3364 = vld [vmem:[%s61 + $0x8] sm:$0xff]
    %v3365 = vld [vmem:[%s63] sm:$0xff]
    %v3366 = vld [vmem:[%s63 + $0x8] sm:$0xff]
    %v3367 = vld [vmem:[%s69] sm:$0x1]
    %v3368 = vld [vmem:[#allocation2] sm:$0x1]
    %s3369 = sld [smem:[#allocation3]]
    %v3370 = vstv %s3369
    %vm3371 = vcmp.eq.s32.totalorder %v3359, %v3370
    %vm3372 = vcmp.eq.s32.totalorder %v3360, %v3370
    %vm3373 = vcmp.eq.s32.totalorder %v3361, %v3370
    %vm3374 = vcmp.eq.s32.totalorder %v3362, %v3370
    %v3375 = vsel %vm3371, 1, 0
    %v3376 = vsel %vm3372, 1, 0
    %v3377 = vsel %vm3373, 1, 0
    %v3378 = vsel %vm3374, 1, 0
    %v3379 = vcvt.s32.f32 %v3375
    %v3380 = vcvt.s32.f32 %v3376
    %v3381 = vcvt.s32.f32 %v3377
    %v3382 = vcvt.s32.f32 %v3378
    %v3383 = vmul.f32 %v3379, %v3354
    %v3384 = vmul.f32 %v3380, %v3355
    %v3385 = vmul.f32 %v3381, %v3356
    %v3386 = vmul.f32 %v3382, %v3357
    %v3387 = vsel %vm700, %v3383, 0.0
    %v3388 = vsel %vm700, %v3384, 0.0
    %v3389 = vadd.f32 %v3387, %v3388
    %v3390 = vsel %vm700, %v3385, 0.0
    %v3391 = vadd.f32 %v3389, %v3390
    %vm3392 = vcmask 253952
    %v3393 = vsel %vm3392, %v3386, 0.0
    %v3394 = vadd.f32 %v3391, %v3393
    %v3395 = vrot.slane %v3394, 4
    %v3396 = vadd.f32 %v3394, %v3395
    %v3397 = vrot.slane %v3396, 2
    %v3398 = vadd.f32 %v3396, %v3397
    %v3399 = vrot.slane %v3398, 1
    %v3400 = vadd.f32 %v3398, %v3399
    %3402 = vset.pattern.permute.xlu0 0
    %3403 = vperm.xlu0 %3402, %v3363
    %v3404 = vpop.permute.xlu0 %3403
    %3407 = vset.pattern.permute.xlu0 0
    %3408 = vperm.xlu0 %3407, %v3364
    %v3409 = vpop.permute.xlu0 %3408
    %v3411 = vmul.f32 %v3404, %v3400
    %v3412 = vmul.f32 %v3409, %v3400
    %3414 = vset.pattern.permute.xlu0 0
    %3415 = vperm.xlu0 %3414, %v3365
    %v3416 = vpop.permute.xlu0 %3415
    %3419 = vset.pattern.permute.xlu0 0
    %3420 = vperm.xlu0 %3419, %v3366
    %v3421 = vpop.permute.xlu0 %3420
    %v3423 = vadd.f32 %v3411, %v3416
    %v3424 = vadd.f32 %v3412, %v3421
    %v3425 = vadd.f32 %v3423, %v3343
    %v3426 = vadd.f32 %v3424, %v3346
    %v3427 = vtanh.pop %v3425
    %v3428 = vtanh.pop %v3426
    %v3430 = vperm.slane %v3367, 0
    %v3432 = vmul.f32 %v3427, %v3430
    %v3433 = vmul.f32 %v3428, %v3430
    %v3434 = vsel %vm700, %v3432, 0.0
    %3435 = vadd.xlane.f32.xlu0 %v3434
    %v3436 = vpop.xlane.xlu0 %3435
    %v3437 = vsel %vm700, %v3433, 0.0
    %3438 = vadd.xlane.f32.xlu0 %v3437
    %v3439 = vpop.xlane.xlu0 %3438
    %v3441 = vperm.slane %v3368, 0
    %v3443 = vadd.f32 %v3436, %v3441
    %v3444 = vadd.f32 %v3439, %v3441
    %v3445 = vxor.u32 %v3443, 2147483648
    %v3446 = vxor.u32 %v3444, 2147483648
    %v3447 = vmul.f32 %v3445, 1.442695
    %v3448 = vpow.pop %v3447
    %v3449 = vmul.f32 %v3446, 1.442695
    %v3450 = vpow.pop %v3449
    %v3451 = vadd.f32 %v3448, 1.0
    %v3452 = vadd.f32 %v3450, 1.0
    %v3453 = vrcp.pop %v3451
    %v3454 = vmul.f32 %v3451, %v3453
    %v3455 = vsub.f32 1.0, %v3454
    %v3456 = vmul.f32 %v3453, %v3455
    %v3457 = vadd.f32 %v3453, %v3456
    %vm3458 = vweird.f32 %v3451
    %vm3459 = vweird.f32 %v3453
    %vm3460 = vmor %vm3458, %vm3459
    %v3461 = vsel %vm3460, %v3453, %v3457
    %v3462 = vand.u32 2147483647, %v3451
    %vm3463 = vcmp.eq.f32.partialorder %v3462, 8.507059e+37
    %v3464 = vand.u32 %v3451, 2147483648
    %v3465 = vor.u32 1.1754944e-38, %v3464
    %v3466 = vsel %vm3463, %v3465, %v3461
    %v3467 = vmul.f32 1.0, %v3466
    %v3468 = vrcp.pop %v3452
    %v3469 = vmul.f32 %v3452, %v3468
    %v3470 = vsub.f32 1.0, %v3469
    %v3471 = vmul.f32 %v3468, %v3470
    %v3472 = vadd.f32 %v3468, %v3471
    %vm3473 = vweird.f32 %v3452
    %vm3474 = vweird.f32 %v3468
    %vm3475 = vmor %vm3473, %vm3474
    %v3476 = vsel %vm3475, %v3468, %v3472
    %v3477 = vand.u32 2147483647, %v3452
    %vm3478 = vcmp.eq.f32.partialorder %v3477, 8.507059e+37
    %v3479 = vand.u32 %v3452, 2147483648
    %v3480 = vor.u32 1.1754944e-38, %v3479
    %v3481 = vsel %vm3478, %v3480, %v3476
    %v3482 = vmul.f32 1.0, %v3481
    %v3483 = vsub.f32 1.0, %v3467
    %v3484 = vsub.f32 1.0, %v3482
    %3486 = vset.pattern.permute.xlu0 0
    %3487 = vperm.xlu0 %3486, %v3483
    %v3488 = vpop.permute.xlu0 %3487
    %3491 = vset.pattern.permute.xlu0 0
    %3492 = vperm.xlu0 %3491, %v3484
    %v3493 = vpop.permute.xlu0 %3492
    %v3495 = vmul.f32 %v659, %v3488
    %v3496 = vmul.f32 %v660, %v3493
    %3498 = vset.pattern.permute.xlu0 0
    %3499 = vperm.xlu0 %3498, %v3467
    %v3500 = vpop.permute.xlu0 %3499
    %3503 = vset.pattern.permute.xlu0 0
    %3504 = vperm.xlu0 %3503, %v3482
    %v3505 = vpop.permute.xlu0 %3504
    %v3507 = vmul.f32 %v659, %v3500
    %v3508 = vmul.f32 %v660, %v3505
    %s3509 = sld [smem:[#allocation3 + $0x1]]
    %v3510 = vstv %s3509
    %vm3511 = vcmp.eq.s32.totalorder %v3359, %v3510
    %vm3512 = vcmp.eq.s32.totalorder %v3360, %v3510
    %vm3513 = vcmp.eq.s32.totalorder %v3361, %v3510
    %vm3514 = vcmp.eq.s32.totalorder %v3362, %v3510
    %v3515 = vsel %vm3511, 1, 0
    %v3516 = vsel %vm3512, 1, 0
    %v3517 = vsel %vm3513, 1, 0
    %v3518 = vsel %vm3514, 1, 0
    %v3519 = vcvt.s32.f32 %v3515
    %v3520 = vcvt.s32.f32 %v3516
    %v3521 = vcvt.s32.f32 %v3517
    %v3522 = vcvt.s32.f32 %v3518
    %v3523 = vmul.f32 %v3519, %v3354
    %v3524 = vmul.f32 %v3520, %v3355
    %v3525 = vmul.f32 %v3521, %v3356
    %v3526 = vmul.f32 %v3522, %v3357
    %v3527 = vsel %vm700, %v3523, 0.0
    %v3528 = vsel %vm700, %v3524, 0.0
    %v3529 = vadd.f32 %v3527, %v3528
    %v3530 = vsel %vm700, %v3525, 0.0
    %v3531 = vadd.f32 %v3529, %v3530
    %v3532 = vsel %vm3392, %v3526, 0.0
    %v3533 = vadd.f32 %v3531, %v3532
    %v3534 = vrot.slane %v3533, 4
    %v3535 = vadd.f32 %v3533, %v3534
    %v3536 = vrot.slane %v3535, 2
    %v3537 = vadd.f32 %v3535, %v3536
    %v3538 = vrot.slane %v3537, 1
    %v3539 = vadd.f32 %v3537, %v3538
    %v3540 = vmul.f32 %v3404, %v3539
    %v3541 = vmul.f32 %v3409, %v3539
    %v3542 = vadd.f32 %v3540, %v3416
    %v3543 = vadd.f32 %v3541, %v3421
    %v3544 = vadd.f32 %v3542, %v3349
    %v3545 = vadd.f32 %v3543, %v3352
    %v3546 = vtanh.pop %v3544
    %v3547 = vtanh.pop %v3545
    %v3548 = vmul.f32 %v3546, %v3430
    %v3549 = vmul.f32 %v3547, %v3430
    %v3550 = vsel %vm700, %v3548, 0.0
    %3551 = vadd.xlane.f32.xlu0 %v3550
    %v3552 = vpop.xlane.xlu0 %3551
    %v3553 = vsel %vm700, %v3549, 0.0
    %3554 = vadd.xlane.f32.xlu0 %v3553
    %v3555 = vpop.xlane.xlu0 %3554
    %v3556 = vadd.f32 %v3552, %v3441
    %v3557 = vadd.f32 %v3555, %v3441
    %v3558 = vxor.u32 %v3556, 2147483648
    %v3559 = vxor.u32 %v3557, 2147483648
    %v3560 = vmul.f32 %v3558, 1.442695
    %v3561 = vpow.pop %v3560
    %v3562 = vmul.f32 %v3559, 1.442695
    %v3563 = vpow.pop %v3562
    %v3564 = vadd.f32 %v3561, 1.0
    %v3565 = vadd.f32 %v3563, 1.0
    %v3566 = vrcp.pop %v3564
    %v3567 = vmul.f32 %v3564, %v3566
    %v3568 = vsub.f32 1.0, %v3567
    %v3569 = vmul.f32 %v3566, %v3568
    %v3570 = vadd.f32 %v3566, %v3569
    %vm3571 = vweird.f32 %v3564
    %vm3572 = vweird.f32 %v3566
    %vm3573 = vmor %vm3571, %vm3572
    %v3574 = vsel %vm3573, %v3566, %v3570
    %v3575 = vand.u32 2147483647, %v3564
    %vm3576 = vcmp.eq.f32.partialorder %v3575, 8.507059e+37
    %v3577 = vand.u32 %v3564, 2147483648
    %v3578 = vor.u32 1.1754944e-38, %v3577
    %v3579 = vsel %vm3576, %v3578, %v3574
    %v3580 = vmul.f32 1.0, %v3579
    %v3581 = vrcp.pop %v3565
    %v3582 = vmul.f32 %v3565, %v3581
    %v3583 = vsub.f32 1.0, %v3582
    %v3584 = vmul.f32 %v3581, %v3583
    %v3585 = vadd.f32 %v3581, %v3584
    %vm3586 = vweird.f32 %v3565
    %vm3587 = vweird.f32 %v3581
    %vm3588 = vmor %vm3586, %vm3587
    %v3589 = vsel %vm3588, %v3581, %v3585
    %v3590 = vand.u32 2147483647, %v3565
    %vm3591 = vcmp.eq.f32.partialorder %v3590, 8.507059e+37
    %v3592 = vand.u32 %v3565, 2147483648
    %v3593 = vor.u32 1.1754944e-38, %v3592
    %v3594 = vsel %vm3591, %v3593, %v3589
    %v3595 = vmul.f32 1.0, %v3594
    %v3596 = vsub.f32 1.0, %v3580
    %v3597 = vsub.f32 1.0, %v3595
    %3599 = vset.pattern.permute.xlu0 0
    %3600 = vperm.xlu0 %3599, %v3596
    %v3601 = vpop.permute.xlu0 %3600
    %3604 = vset.pattern.permute.xlu0 0
    %3605 = vperm.xlu0 %3604, %v3597
    %v3606 = vpop.permute.xlu0 %3605
    %v3608 = vmul.f32 %v661, %v3601
    %v3609 = vmul.f32 %v662, %v3606
    %3611 = vset.pattern.permute.xlu0 0
    %3612 = vperm.xlu0 %3611, %v3580
    %v3613 = vpop.permute.xlu0 %3612
    %3616 = vset.pattern.permute.xlu0 0
    %3617 = vperm.xlu0 %3616, %v3595
    %v3618 = vpop.permute.xlu0 %3617
    %v3620 = vmul.f32 %v661, %v3613
    %v3621 = vmul.f32 %v662, %v3618
    %vm3622 = vcmask 7168
    %3623 = vst.msk [vmem:[%s105] sm:$0xff] %vm3622, %v3467
    %3624 = vst.msk [vmem:[%s105 + $0x8] sm:$0xff] %vm3622, %v3482
    %3625 = vst.msk [vmem:[%s105 + $0x10] sm:$0xff] %vm3622, %v3580
    %3626 = vst.msk [vmem:[%s105 + $0x18] sm:$0xff] %vm3622, %v3595
    %v3627 = vld [vmem:[#allocation34] sm:$0xff]
    %v3628 = vld [vmem:[#allocation34 + $0x8] sm:$0xff]
    %v3629 = vadd.f32 %v3495, %v3627
    %v3630 = vadd.f32 %v3496, %v3628
    %v3631 = vadd.f32 %v3608, %v3627
    %v3632 = vadd.f32 %v3609, %v3628
    %v3633 = vadd.f32 %v3507, %v3627
    %v3634 = vadd.f32 %v3508, %v3628
    %v3635 = vadd.f32 %v3620, %v3627
    %v3636 = vadd.f32 %v3621, %v3628
    %v3637 = vld [vmem:[#allocation36] sm:$0xff]
    %v3638 = vld [vmem:[#allocation36 + $0x8] sm:$0xff]
    %v3639 = vld [vmem:[#allocation36 + $0x10] sm:$0xff]
    %v3640 = vld [vmem:[#allocation36 + $0x18] sm:$0xff]
    %v3641 = vld [vmem:[#allocation37] sm:$0x1]
    %v3642 = vld [vmem:[#allocation39] sm:$0xff]
    %v3643 = vld [vmem:[#allocation39 + $0x8] sm:$0xff]
    %v3644 = vld [vmem:[#allocation39 + $0x10] sm:$0xff]
    %v3645 = vld [vmem:[#allocation39 + $0x18] sm:$0xff]
    %v3646 = vld [vmem:[#allocation40] sm:$0x1]
    %v3647 = vld [vmem:[#allocation42] sm:$0x1]
    %v3648 = vld [vmem:[#allocation43] sm:$0x1]
    %v3649 = vld [vmem:[#allocation45] sm:$0xff]
    %v3650 = vld [vmem:[#allocation45 + $0x8] sm:$0xff]
    %v3651 = vld [vmem:[#allocation45 + $0x10] sm:$0xff]
    %v3652 = vld [vmem:[#allocation45 + $0x18] sm:$0xff]
    %v3653 = vld [vmem:[#allocation46] sm:$0x1]
    %v3654 = vld [vmem:[%s91] sm:$0xff]
    %v3655 = vld [vmem:[%s91 + $0x8] sm:$0xff]
    %v3656 = vld [vmem:[%s91 + $0x10] sm:$0xff]
    %v3657 = vld [vmem:[%s91 + $0x18] sm:$0xff]
    %v3658 = vld [vmem:[%s91 + $0x20] sm:$0xff]
    %v3659 = vld [vmem:[%s91 + $0x28] sm:$0xff]
    %v3660 = vld [vmem:[%s91 + $0x30] sm:$0xff]
    %v3661 = vld [vmem:[%s91 + $0x38] sm:$0xff]
    %v3662 = vld [vmem:[#allocation48] sm:$0x1]
    %v3663 = vld [vmem:[#allocation49] sm:$0x1]
    %v3664 = vld [vmem:[#allocation51] sm:$0x1]
    %v3666 = vperm.slane %v3641, 0
    %v3669 = vsel %vm700, %v3629, 0
    %v3672 = vsel %vm700, %v3630, 0
    %v3675 = vsel %vm700, %v3631, 0
    %v3678 = vsel %vm700, %v3632, 0
    %v3681 = vsel %vm700, %v3633, 0
    %v3684 = vsel %vm700, %v3634, 0
    %v3687 = vsel %vm700, %v3635, 0
    %v3690 = vsel %vm700, %v3636, 0
    %3692 = vmatpush.msra.mxu0 0.0
    %3693 = vmatpush.msra.mxu0 0.0
    %3694 = vmatpush.msra.mxu0 0.0
    %3695 = vmatpush.msra.mxu0 0.0
    %3696 = vmatpush.msra.mxu0 0.0
    %3697 = vmatpush.msra.mxu0 0.0
    %3698 = vmatpush.msra.mxu0 0.0
    %3699 = vmatpush.msra.mxu0 0.0
    %3700 = vmatpush.msra.mxu0 0.0
    %3701 = vmatpush.msra.mxu0 0.0
    %3702 = vmatpush.msra.mxu0 0.0
    %3703 = vmatpush.msra.mxu0 0.0
    %3704 = vmatpush.msra.mxu0 %v3640
    %3705 = vmatpush.msra.mxu0 %v3639
    %3706 = vmatpush.msra.mxu0 %v3638
    %3707 = vmatpush.msra.mxu0 %v3637
    %3708 = vmatmul.f32.gmra.mxu0 %v3669
    %v3709 = vpop.f32.mrf.mxu0
    %v3710 = vadd.f32 %v3666, %v3709
    %3711 = vmatmul.f32.gmra.mxu0 %v3672
    %v3712 = vpop.f32.mrf.mxu0
    %v3713 = vadd.f32 %v3666, %v3712
    %3714 = vmatmul.f32.gmra.mxu0 %v3675
    %v3715 = vpop.f32.mrf.mxu0
    %v3716 = vadd.f32 %v3666, %v3715
    %3717 = vmatmul.f32.gmra.mxu0 %v3678
    %v3718 = vpop.f32.mrf.mxu0
    %v3719 = vadd.f32 %v3666, %v3718
    %3720 = vmatmul.f32.gmra.mxu0 %v3681
    %v3721 = vpop.f32.mrf.mxu0
    %v3722 = vadd.f32 %v3666, %v3721
    %3723 = vmatmul.f32.gmra.mxu0 %v3684
    %v3724 = vpop.f32.mrf.mxu0
    %v3725 = vadd.f32 %v3666, %v3724
    %3726 = vmatmul.f32.gmra.mxu0 %v3687
    %v3727 = vpop.f32.mrf.mxu0
    %v3728 = vadd.f32 %v3666, %v3727
    %3729 = vmatmul.f32.gmra.mxu0 %v3690
    %v3730 = vpop.f32.mrf.mxu0
    %v3731 = vadd.f32 %v3666, %v3730
    %3732 = vdwg.mxu0
    %3735 = vrot.lane.b32.xlu0 %v3710, 96
    %v3736 = vpop.permute.xlu0 %3735
    %3737 = vrot.lane.b32.xlu0 %v3713, 96
    %v3738 = vpop.permute.xlu0 %3737
    %v3739 = vsel %vm748, %v3710, 0
    %v3741 = vsel %vm748, %v3713, 0
    %v3743 = vsel %vm748, %v3736, 0
    %v3745 = vsel %vm748, %v3738, 0
    %3747 = vmatpush.xpose.msra.mxu0 0.0
    %3748 = vmatpush.xpose.msra.mxu0 0.0
    %3749 = vmatpush.xpose.msra.mxu0 0.0
    %3750 = vmatpush.xpose.msra.mxu0 0.0
    %3751 = vmatpush.xpose.msra.mxu0 0.0
    %3752 = vmatpush.xpose.msra.mxu0 0.0
    %3753 = vmatpush.xpose.msra.mxu0 0.0
    %3754 = vmatpush.xpose.msra.mxu0 0.0
    %3755 = vmatpush.xpose.msra.mxu0 0.0
    %3756 = vmatpush.xpose.msra.mxu0 0.0
    %3757 = vmatpush.xpose.msra.mxu0 0.0
    %3758 = vmatpush.xpose.msra.mxu0 0.0
    %3759 = vmatpush.xpose.msra.mxu0 0.0
    %3760 = vmatpush.xpose.msra.mxu0 0.0
    %3761 = vmatpush.xpose.msra.mxu0 %v3745
    %3762 = vmatpush.xpose.msra.mxu0 %v3743
    %3763 = vmatmul.f32.gmra.mxu0 %v3739
    %v3764 = vpop.f32.mrf.mxu0
    %v3765 = vadd.f32 0.0, %v3764
    %3766 = vmatmul.f32.gmra.mxu0 %v3741
    %v3767 = vpop.f32.mrf.mxu0
    %v3768 = vadd.f32 0.0, %v3767
    %3769 = vdwg.mxu0
    %v3770 = vmul.f32 %v3765, 0.35355338
    %v3771 = vmul.f32 %v3768, 0.35355338
    %v3772 = vsel %vm782, %v3770, -inf
    %3773 = vmax.xlane.f32.xlu0 %v3772
    %v3774 = vpop.xlane.xlu0 %3773
    %v3775 = vsel %vm782, %v3771, -inf
    %3776 = vmax.xlane.f32.xlu0 %v3775
    %v3777 = vpop.xlane.xlu0 %3776
    %v3778 = vsub.f32 %v3770, %v3774
    %v3779 = vsub.f32 %v3771, %v3777
    %v3780 = vmul.f32 %v3778, 1.442695
    %v3781 = vpow.pop %v3780
    %v3782 = vmul.f32 %v3779, 1.442695
    %v3783 = vpow.pop %v3782
    %v3784 = vsel %vm782, %v3781, 0.0
    %3785 = vadd.xlane.f32.xlu0 %v3784
    %v3786 = vpop.xlane.xlu0 %3785
    %v3787 = vsel %vm782, %v3783, 0.0
    %3788 = vadd.xlane.f32.xlu0 %v3787
    %v3789 = vpop.xlane.xlu0 %3788
    %v3790 = vrcp.pop %v3786
    %v3791 = vrcp.pop %v3789
    %v3792 = vmul.f32 %v3781, %v3790
    %v3793 = vmul.f32 %v3783, %v3791
    %3794 = vrot.lane.b32.xlu0 %v3710, 64
    %v3795 = vpop.permute.xlu0 %3794
    %3796 = vrot.lane.b32.xlu0 %v3713, 64
    %v3797 = vpop.permute.xlu0 %3796
    %v3801 = vsel %vm782, %v3792, 0
    %v3804 = vsel %vm782, %v3793, 0
    %3806 = vmatpush.msra.mxu0 0.0
    %3807 = vmatpush.msra.mxu0 0.0
    %3808 = vmatpush.msra.mxu0 0.0
    %3809 = vmatpush.msra.mxu0 0.0
    %3810 = vmatpush.msra.mxu0 0.0
    %3811 = vmatpush.msra.mxu0 0.0
    %3812 = vmatpush.msra.mxu0 0.0
    %3813 = vmatpush.msra.mxu0 0.0
    %3814 = vmatpush.msra.mxu0 0.0
    %3815 = vmatpush.msra.mxu0 0.0
    %3816 = vmatpush.msra.mxu0 0.0
    %3817 = vmatpush.msra.mxu0 0.0
    %3818 = vmatpush.msra.mxu0 0.0
    %3819 = vmatpush.msra.mxu0 0.0
    %3820 = vmatpush.msra.mxu0 %v3797
    %3821 = vmatpush.msra.mxu0 %v3795
    %3822 = vmatmul.f32.gmra.mxu0 %v3801
    %v3823 = vpop.f32.mrf.mxu0
    %v3824 = vadd.f32 0.0, %v3823
    %3825 = vmatmul.f32.gmra.mxu0 %v3804
    %v3826 = vpop.f32.mrf.mxu0
    %v3827 = vadd.f32 0.0, %v3826
    %3828 = vdwg.mxu0
    %3829 = vrot.lane.b32.xlu0 %v3710, 120
    %v3830 = vpop.permute.xlu0 %3829
    %3831 = vrot.lane.b32.xlu0 %v3713, 120
    %v3832 = vpop.permute.xlu0 %3831
    %3833 = vrot.lane.b32.xlu0 %v3710, 88
    %v3834 = vpop.permute.xlu0 %3833
    %3835 = vrot.lane.b32.xlu0 %v3713, 88
    %v3836 = vpop.permute.xlu0 %3835
    %v3837 = vsel %vm748, %v3830, 0
    %v3839 = vsel %vm748, %v3832, 0
    %v3841 = vsel %vm748, %v3834, 0
    %v3843 = vsel %vm748, %v3836, 0
    %3845 = vmatpush.xpose.msra.mxu0 0.0
    %3846 = vmatpush.xpose.msra.mxu0 0.0
    %3847 = vmatpush.xpose.msra.mxu0 0.0
    %3848 = vmatpush.xpose.msra.mxu0 0.0
    %3849 = vmatpush.xpose.msra.mxu0 0.0
    %3850 = vmatpush.xpose.msra.mxu0 0.0
    %3851 = vmatpush.xpose.msra.mxu0 0.0
    %3852 = vmatpush.xpose.msra.mxu0 0.0
    %3853 = vmatpush.xpose.msra.mxu0 0.0
    %3854 = vmatpush.xpose.msra.mxu0 0.0
    %3855 = vmatpush.xpose.msra.mxu0 0.0
    %3856 = vmatpush.xpose.msra.mxu0 0.0
    %3857 = vmatpush.xpose.msra.mxu0 0.0
    %3858 = vmatpush.xpose.msra.mxu0 0.0
    %3859 = vmatpush.xpose.msra.mxu0 %v3843
    %3860 = vmatpush.xpose.msra.mxu0 %v3841
    %3861 = vmatmul.f32.gmra.mxu0 %v3837
    %v3862 = vpop.f32.mrf.mxu0
    %v3863 = vadd.f32 0.0, %v3862
    %3864 = vmatmul.f32.gmra.mxu0 %v3839
    %v3865 = vpop.f32.mrf.mxu0
    %v3866 = vadd.f32 0.0, %v3865
    %3867 = vdwg.mxu0
    %v3868 = vmul.f32 %v3863, 0.35355338
    %v3869 = vmul.f32 %v3866, 0.35355338
    %v3870 = vsel %vm782, %v3868, -inf
    %3871 = vmax.xlane.f32.xlu0 %v3870
    %v3872 = vpop.xlane.xlu0 %3871
    %v3873 = vsel %vm782, %v3869, -inf
    %3874 = vmax.xlane.f32.xlu0 %v3873
    %v3875 = vpop.xlane.xlu0 %3874
    %v3876 = vsub.f32 %v3868, %v3872
    %v3877 = vsub.f32 %v3869, %v3875
    %v3878 = vmul.f32 %v3876, 1.442695
    %v3879 = vpow.pop %v3878
    %v3880 = vmul.f32 %v3877, 1.442695
    %v3881 = vpow.pop %v3880
    %v3882 = vsel %vm782, %v3879, 0.0
    %3883 = vadd.xlane.f32.xlu0 %v3882
    %v3884 = vpop.xlane.xlu0 %3883
    %v3885 = vsel %vm782, %v3881, 0.0
    %3886 = vadd.xlane.f32.xlu0 %v3885
    %v3887 = vpop.xlane.xlu0 %3886
    %v3888 = vrcp.pop %v3884
    %v3889 = vrcp.pop %v3887
    %v3890 = vmul.f32 %v3879, %v3888
    %v3891 = vmul.f32 %v3881, %v3889
    %3892 = vrot.lane.b32.xlu0 %v3710, 56
    %v3893 = vpop.permute.xlu0 %3892
    %3894 = vrot.lane.b32.xlu0 %v3713, 56
    %v3895 = vpop.permute.xlu0 %3894
    %v3899 = vsel %vm782, %v3890, 0
    %v3902 = vsel %vm782, %v3891, 0
    %3904 = vmatpush.msra.mxu0 0.0
    %3905 = vmatpush.msra.mxu0 0.0
    %3906 = vmatpush.msra.mxu0 0.0
    %3907 = vmatpush.msra.mxu0 0.0
    %3908 = vmatpush.msra.mxu0 0.0
    %3909 = vmatpush.msra.mxu0 0.0
    %3910 = vmatpush.msra.mxu0 0.0
    %3911 = vmatpush.msra.mxu0 0.0
    %3912 = vmatpush.msra.mxu0 0.0
    %3913 = vmatpush.msra.mxu0 0.0
    %3914 = vmatpush.msra.mxu0 0.0
    %3915 = vmatpush.msra.mxu0 0.0
    %3916 = vmatpush.msra.mxu0 0.0
    %3917 = vmatpush.msra.mxu0 0.0
    %3918 = vmatpush.msra.mxu0 %v3895
    %3919 = vmatpush.msra.mxu0 %v3893
    %3920 = vmatmul.f32.gmra.mxu0 %v3899
    %v3921 = vpop.f32.mrf.mxu0
    %v3922 = vadd.f32 0.0, %v3921
    %3923 = vmatmul.f32.gmra.mxu0 %v3902
    %v3924 = vpop.f32.mrf.mxu0
    %v3925 = vadd.f32 0.0, %v3924
    %3926 = vdwg.mxu0
    %3927 = vrot.lane.b32.xlu0 %v3710, 112
    %v3928 = vpop.permute.xlu0 %3927
    %3929 = vrot.lane.b32.xlu0 %v3713, 112
    %v3930 = vpop.permute.xlu0 %3929
    %3931 = vrot.lane.b32.xlu0 %v3710, 80
    %v3932 = vpop.permute.xlu0 %3931
    %3933 = vrot.lane.b32.xlu0 %v3713, 80
    %v3934 = vpop.permute.xlu0 %3933
    %v3935 = vsel %vm748, %v3928, 0
    %v3937 = vsel %vm748, %v3930, 0
    %v3939 = vsel %vm748, %v3932, 0
    %v3941 = vsel %vm748, %v3934, 0
    %3943 = vmatpush.xpose.msra.mxu0 0.0
    %3944 = vmatpush.xpose.msra.mxu0 0.0
    %3945 = vmatpush.xpose.msra.mxu0 0.0
    %3946 = vmatpush.xpose.msra.mxu0 0.0
    %3947 = vmatpush.xpose.msra.mxu0 0.0
    %3948 = vmatpush.xpose.msra.mxu0 0.0
    %3949 = vmatpush.xpose.msra.mxu0 0.0
    %3950 = vmatpush.xpose.msra.mxu0 0.0
    %3951 = vmatpush.xpose.msra.mxu0 0.0
    %3952 = vmatpush.xpose.msra.mxu0 0.0
    %3953 = vmatpush.xpose.msra.mxu0 0.0
    %3954 = vmatpush.xpose.msra.mxu0 0.0
    %3955 = vmatpush.xpose.msra.mxu0 0.0
    %3956 = vmatpush.xpose.msra.mxu0 0.0
    %3957 = vmatpush.xpose.msra.mxu0 %v3941
    %3958 = vmatpush.xpose.msra.mxu0 %v3939
    %3959 = vmatmul.f32.gmra.mxu0 %v3935
    %v3960 = vpop.f32.mrf.mxu0
    %v3961 = vadd.f32 0.0, %v3960
    %3962 = vmatmul.f32.gmra.mxu0 %v3937
    %v3963 = vpop.f32.mrf.mxu0
    %v3964 = vadd.f32 0.0, %v3963
    %3965 = vdwg.mxu0
    %v3966 = vmul.f32 %v3961, 0.35355338
    %v3967 = vmul.f32 %v3964, 0.35355338
    %v3968 = vsel %vm782, %v3966, -inf
    %3969 = vmax.xlane.f32.xlu0 %v3968
    %v3970 = vpop.xlane.xlu0 %3969
    %v3971 = vsel %vm782, %v3967, -inf
    %3972 = vmax.xlane.f32.xlu0 %v3971
    %v3973 = vpop.xlane.xlu0 %3972
    %v3974 = vsub.f32 %v3966, %v3970
    %v3975 = vsub.f32 %v3967, %v3973
    %v3976 = vmul.f32 %v3974, 1.442695
    %v3977 = vpow.pop %v3976
    %v3978 = vmul.f32 %v3975, 1.442695
    %v3979 = vpow.pop %v3978
    %v3980 = vsel %vm782, %v3977, 0.0
    %3981 = vadd.xlane.f32.xlu0 %v3980
    %v3982 = vpop.xlane.xlu0 %3981
    %v3983 = vsel %vm782, %v3979, 0.0
    %3984 = vadd.xlane.f32.xlu0 %v3983
    %v3985 = vpop.xlane.xlu0 %3984
    %v3986 = vrcp.pop %v3982
    %v3987 = vrcp.pop %v3985
    %v3988 = vmul.f32 %v3977, %v3986
    %v3989 = vmul.f32 %v3979, %v3987
    %3990 = vrot.lane.b32.xlu0 %v3710, 48
    %v3991 = vpop.permute.xlu0 %3990
    %3992 = vrot.lane.b32.xlu0 %v3713, 48
    %v3993 = vpop.permute.xlu0 %3992
    %v3997 = vsel %vm782, %v3988, 0
    %v4000 = vsel %vm782, %v3989, 0
    %4002 = vmatpush.msra.mxu0 0.0
    %4003 = vmatpush.msra.mxu0 0.0
    %4004 = vmatpush.msra.mxu0 0.0
    %4005 = vmatpush.msra.mxu0 0.0
    %4006 = vmatpush.msra.mxu0 0.0
    %4007 = vmatpush.msra.mxu0 0.0
    %4008 = vmatpush.msra.mxu0 0.0
    %4009 = vmatpush.msra.mxu0 0.0
    %4010 = vmatpush.msra.mxu0 0.0
    %4011 = vmatpush.msra.mxu0 0.0
    %4012 = vmatpush.msra.mxu0 0.0
    %4013 = vmatpush.msra.mxu0 0.0
    %4014 = vmatpush.msra.mxu0 0.0
    %4015 = vmatpush.msra.mxu0 0.0
    %4016 = vmatpush.msra.mxu0 %v3993
    %4017 = vmatpush.msra.mxu0 %v3991
    %4018 = vmatmul.f32.gmra.mxu0 %v3997
    %v4019 = vpop.f32.mrf.mxu0
    %v4020 = vadd.f32 0.0, %v4019
    %4021 = vmatmul.f32.gmra.mxu0 %v4000
    %v4022 = vpop.f32.mrf.mxu0
    %v4023 = vadd.f32 0.0, %v4022
    %4024 = vdwg.mxu0
    %4025 = vrot.lane.b32.xlu0 %v3710, 104
    %v4026 = vpop.permute.xlu0 %4025
    %4027 = vrot.lane.b32.xlu0 %v3713, 104
    %v4028 = vpop.permute.xlu0 %4027
    %4029 = vrot.lane.b32.xlu0 %v3710, 72
    %v4030 = vpop.permute.xlu0 %4029
    %4031 = vrot.lane.b32.xlu0 %v3713, 72
    %v4032 = vpop.permute.xlu0 %4031
    %v4033 = vsel %vm748, %v4026, 0
    %v4035 = vsel %vm748, %v4028, 0
    %v4037 = vsel %vm748, %v4030, 0
    %v4039 = vsel %vm748, %v4032, 0
    %4041 = vmatpush.xpose.msra.mxu0 0.0
    %4042 = vmatpush.xpose.msra.mxu0 0.0
    %4043 = vmatpush.xpose.msra.mxu0 0.0
    %4044 = vmatpush.xpose.msra.mxu0 0.0
    %4045 = vmatpush.xpose.msra.mxu0 0.0
    %4046 = vmatpush.xpose.msra.mxu0 0.0
    %4047 = vmatpush.xpose.msra.mxu0 0.0
    %4048 = vmatpush.xpose.msra.mxu0 0.0
    %4049 = vmatpush.xpose.msra.mxu0 0.0
    %4050 = vmatpush.xpose.msra.mxu0 0.0
    %4051 = vmatpush.xpose.msra.mxu0 0.0
    %4052 = vmatpush.xpose.msra.mxu0 0.0
    %4053 = vmatpush.xpose.msra.mxu0 0.0
    %4054 = vmatpush.xpose.msra.mxu0 0.0
    %4055 = vmatpush.xpose.msra.mxu0 %v4039
    %4056 = vmatpush.xpose.msra.mxu0 %v4037
    %4057 = vmatmul.f32.gmra.mxu0 %v4033
    %v4058 = vpop.f32.mrf.mxu0
    %v4059 = vadd.f32 0.0, %v4058
    %4060 = vmatmul.f32.gmra.mxu0 %v4035
    %v4061 = vpop.f32.mrf.mxu0
    %v4062 = vadd.f32 0.0, %v4061
    %4063 = vdwg.mxu0
    %v4064 = vmul.f32 %v4059, 0.35355338
    %v4065 = vmul.f32 %v4062, 0.35355338
    %v4066 = vsel %vm782, %v4064, -inf
    %4067 = vmax.xlane.f32.xlu0 %v4066
    %v4068 = vpop.xlane.xlu0 %4067
    %v4069 = vsel %vm782, %v4065, -inf
    %4070 = vmax.xlane.f32.xlu0 %v4069
    %v4071 = vpop.xlane.xlu0 %4070
    %v4072 = vsub.f32 %v4064, %v4068
    %v4073 = vsub.f32 %v4065, %v4071
    %v4074 = vmul.f32 %v4072, 1.442695
    %v4075 = vpow.pop %v4074
    %v4076 = vmul.f32 %v4073, 1.442695
    %v4077 = vpow.pop %v4076
    %v4078 = vsel %vm782, %v4075, 0.0
    %4079 = vadd.xlane.f32.xlu0 %v4078
    %v4080 = vpop.xlane.xlu0 %4079
    %v4081 = vsel %vm782, %v4077, 0.0
    %4082 = vadd.xlane.f32.xlu0 %v4081
    %v4083 = vpop.xlane.xlu0 %4082
    %v4084 = vrcp.pop %v4080
    %v4085 = vrcp.pop %v4083
    %v4086 = vmul.f32 %v4075, %v4084
    %v4087 = vmul.f32 %v4077, %v4085
    %4088 = vrot.lane.b32.xlu0 %v3710, 40
    %v4089 = vpop.permute.xlu0 %4088
    %4090 = vrot.lane.b32.xlu0 %v3713, 40
    %v4091 = vpop.permute.xlu0 %4090
    %v4095 = vsel %vm782, %v4086, 0
    %v4098 = vsel %vm782, %v4087, 0
    %4100 = vmatpush.msra.mxu0 0.0
    %4101 = vmatpush.msra.mxu0 0.0
    %4102 = vmatpush.msra.mxu0 0.0
    %4103 = vmatpush.msra.mxu0 0.0
    %4104 = vmatpush.msra.mxu0 0.0
    %4105 = vmatpush.msra.mxu0 0.0
    %4106 = vmatpush.msra.mxu0 0.0
    %4107 = vmatpush.msra.mxu0 0.0
    %4108 = vmatpush.msra.mxu0 0.0
    %4109 = vmatpush.msra.mxu0 0.0
    %4110 = vmatpush.msra.mxu0 0.0
    %4111 = vmatpush.msra.mxu0 0.0
    %4112 = vmatpush.msra.mxu0 0.0
    %4113 = vmatpush.msra.mxu0 0.0
    %4114 = vmatpush.msra.mxu0 %v4091
    %4115 = vmatpush.msra.mxu0 %v4089
    %4116 = vmatmul.f32.gmra.mxu0 %v4095
    %v4117 = vpop.f32.mrf.mxu0
    %v4118 = vadd.f32 0.0, %v4117
    %4119 = vmatmul.f32.gmra.mxu0 %v4098
    %v4120 = vpop.f32.mrf.mxu0
    %v4121 = vadd.f32 0.0, %v4120
    %4122 = vdwg.mxu0
    %4125 = vrot.lane.b32.xlu0 %v3922, 8
    %v4126 = vpop.permute.xlu0 %4125
    %4127 = vrot.lane.b32.xlu0 %v3925, 8
    %v4128 = vpop.permute.xlu0 %4127
    %4133 = vrot.lane.b32.xlu0 %v4020, 16
    %v4134 = vpop.permute.xlu0 %4133
    %4135 = vrot.lane.b32.xlu0 %v4023, 16
    %v4136 = vpop.permute.xlu0 %4135
    %4141 = vrot.lane.b32.xlu0 %v4118, 24
    %v4142 = vpop.permute.xlu0 %4141
    %4143 = vrot.lane.b32.xlu0 %v4121, 24
    %v4144 = vpop.permute.xlu0 %4143
    %v4147 = vsel %vm748, %v3824, %v4126
    %v4148 = vsel %vm748, %v3827, %v4128
    %v4149 = vsel %vm782, %v4147, %v4134
    %v4150 = vsel %vm782, %v4148, %v4136
    %v4151 = vsel %vm1162, %v4149, %v4142
    %v4152 = vsel %vm1162, %v4150, %v4144
    %4155 = vrot.lane.b32.xlu0 %v3716, 96
    %v4156 = vpop.permute.xlu0 %4155
    %4157 = vrot.lane.b32.xlu0 %v3719, 96
    %v4158 = vpop.permute.xlu0 %4157
    %v4159 = vsel %vm748, %v3716, 0
    %v4161 = vsel %vm748, %v3719, 0
    %v4163 = vsel %vm748, %v4156, 0
    %v4165 = vsel %vm748, %v4158, 0
    %4167 = vmatpush.xpose.msra.mxu0 0.0
    %4168 = vmatpush.xpose.msra.mxu0 0.0
    %4169 = vmatpush.xpose.msra.mxu0 0.0
    %4170 = vmatpush.xpose.msra.mxu0 0.0
    %4171 = vmatpush.xpose.msra.mxu0 0.0
    %4172 = vmatpush.xpose.msra.mxu0 0.0
    %4173 = vmatpush.xpose.msra.mxu0 0.0
    %4174 = vmatpush.xpose.msra.mxu0 0.0
    %4175 = vmatpush.xpose.msra.mxu0 0.0
    %4176 = vmatpush.xpose.msra.mxu0 0.0
    %4177 = vmatpush.xpose.msra.mxu0 0.0
    %4178 = vmatpush.xpose.msra.mxu0 0.0
    %4179 = vmatpush.xpose.msra.mxu0 0.0
    %4180 = vmatpush.xpose.msra.mxu0 0.0
    %4181 = vmatpush.xpose.msra.mxu0 %v4165
    %4182 = vmatpush.xpose.msra.mxu0 %v4163
    %4183 = vmatmul.f32.gmra.mxu0 %v4159
    %v4184 = vpop.f32.mrf.mxu0
    %v4185 = vadd.f32 0.0, %v4184
    %4186 = vmatmul.f32.gmra.mxu0 %v4161
    %v4187 = vpop.f32.mrf.mxu0
    %v4188 = vadd.f32 0.0, %v4187
    %4189 = vdwg.mxu0
    %v4190 = vmul.f32 %v4185, 0.35355338
    %v4191 = vmul.f32 %v4188, 0.35355338
    %v4192 = vsel %vm782, %v4190, -inf
    %4193 = vmax.xlane.f32.xlu0 %v4192
    %v4194 = vpop.xlane.xlu0 %4193
    %v4195 = vsel %vm782, %v4191, -inf
    %4196 = vmax.xlane.f32.xlu0 %v4195
    %v4197 = vpop.xlane.xlu0 %4196
    %v4198 = vsub.f32 %v4190, %v4194
    %v4199 = vsub.f32 %v4191, %v4197
    %v4200 = vmul.f32 %v4198, 1.442695
    %v4201 = vpow.pop %v4200
    %v4202 = vmul.f32 %v4199, 1.442695
    %v4203 = vpow.pop %v4202
    %v4204 = vsel %vm782, %v4201, 0.0
    %4205 = vadd.xlane.f32.xlu0 %v4204
    %v4206 = vpop.xlane.xlu0 %4205
    %v4207 = vsel %vm782, %v4203, 0.0
    %4208 = vadd.xlane.f32.xlu0 %v4207
    %v4209 = vpop.xlane.xlu0 %4208
    %v4210 = vrcp.pop %v4206
    %v4211 = vrcp.pop %v4209
    %v4212 = vmul.f32 %v4201, %v4210
    %v4213 = vmul.f32 %v4203, %v4211
    %4214 = vrot.lane.b32.xlu0 %v3716, 64
    %v4215 = vpop.permute.xlu0 %4214
    %4216 = vrot.lane.b32.xlu0 %v3719, 64
    %v4217 = vpop.permute.xlu0 %4216
    %v4221 = vsel %vm782, %v4212, 0
    %v4224 = vsel %vm782, %v4213, 0
    %4226 = vmatpush.msra.mxu0 0.0
    %4227 = vmatpush.msra.mxu0 0.0
    %4228 = vmatpush.msra.mxu0 0.0
    %4229 = vmatpush.msra.mxu0 0.0
    %4230 = vmatpush.msra.mxu0 0.0
    %4231 = vmatpush.msra.mxu0 0.0
    %4232 = vmatpush.msra.mxu0 0.0
    %4233 = vmatpush.msra.mxu0 0.0
    %4234 = vmatpush.msra.mxu0 0.0
    %4235 = vmatpush.msra.mxu0 0.0
    %4236 = vmatpush.msra.mxu0 0.0
    %4237 = vmatpush.msra.mxu0 0.0
    %4238 = vmatpush.msra.mxu0 0.0
    %4239 = vmatpush.msra.mxu0 0.0
    %4240 = vmatpush.msra.mxu0 %v4217
    %4241 = vmatpush.msra.mxu0 %v4215
    %4242 = vmatmul.f32.gmra.mxu0 %v4221
    %v4243 = vpop.f32.mrf.mxu0
    %v4244 = vadd.f32 0.0, %v4243
    %4245 = vmatmul.f32.gmra.mxu0 %v4224
    %v4246 = vpop.f32.mrf.mxu0
    %v4247 = vadd.f32 0.0, %v4246
    %4248 = vdwg.mxu0
    %4249 = vrot.lane.b32.xlu0 %v3716, 120
    %v4250 = vpop.permute.xlu0 %4249
    %4251 = vrot.lane.b32.xlu0 %v3719, 120
    %v4252 = vpop.permute.xlu0 %4251
    %4253 = vrot.lane.b32.xlu0 %v3716, 88
    %v4254 = vpop.permute.xlu0 %4253
    %4255 = vrot.lane.b32.xlu0 %v3719, 88
    %v4256 = vpop.permute.xlu0 %4255
    %v4257 = vsel %vm748, %v4250, 0
    %v4259 = vsel %vm748, %v4252, 0
    %v4261 = vsel %vm748, %v4254, 0
    %v4263 = vsel %vm748, %v4256, 0
    %4265 = vmatpush.xpose.msra.mxu0 0.0
    %4266 = vmatpush.xpose.msra.mxu0 0.0
    %4267 = vmatpush.xpose.msra.mxu0 0.0
    %4268 = vmatpush.xpose.msra.mxu0 0.0
    %4269 = vmatpush.xpose.msra.mxu0 0.0
    %4270 = vmatpush.xpose.msra.mxu0 0.0
    %4271 = vmatpush.xpose.msra.mxu0 0.0
    %4272 = vmatpush.xpose.msra.mxu0 0.0
    %4273 = vmatpush.xpose.msra.mxu0 0.0
    %4274 = vmatpush.xpose.msra.mxu0 0.0
    %4275 = vmatpush.xpose.msra.mxu0 0.0
    %4276 = vmatpush.xpose.msra.mxu0 0.0
    %4277 = vmatpush.xpose.msra.mxu0 0.0
    %4278 = vmatpush.xpose.msra.mxu0 0.0
    %4279 = vmatpush.xpose.msra.mxu0 %v4263
    %4280 = vmatpush.xpose.msra.mxu0 %v4261
    %4281 = vmatmul.f32.gmra.mxu0 %v4257
    %v4282 = vpop.f32.mrf.mxu0
    %v4283 = vadd.f32 0.0, %v4282
    %4284 = vmatmul.f32.gmra.mxu0 %v4259
    %v4285 = vpop.f32.mrf.mxu0
    %v4286 = vadd.f32 0.0, %v4285
    %4287 = vdwg.mxu0
    %v4288 = vmul.f32 %v4283, 0.35355338
    %v4289 = vmul.f32 %v4286, 0.35355338
    %v4290 = vsel %vm782, %v4288, -inf
    %4291 = vmax.xlane.f32.xlu0 %v4290
    %v4292 = vpop.xlane.xlu0 %4291
    %v4293 = vsel %vm782, %v4289, -inf
    %4294 = vmax.xlane.f32.xlu0 %v4293
    %v4295 = vpop.xlane.xlu0 %4294
    %v4296 = vsub.f32 %v4288, %v4292
    %v4297 = vsub.f32 %v4289, %v4295
    %v4298 = vmul.f32 %v4296, 1.442695
    %v4299 = vpow.pop %v4298
    %v4300 = vmul.f32 %v4297, 1.442695
    %v4301 = vpow.pop %v4300
    %v4302 = vsel %vm782, %v4299, 0.0
    %4303 = vadd.xlane.f32.xlu0 %v4302
    %v4304 = vpop.xlane.xlu0 %4303
    %v4305 = vsel %vm782, %v4301, 0.0
    %4306 = vadd.xlane.f32.xlu0 %v4305
    %v4307 = vpop.xlane.xlu0 %4306
    %v4308 = vrcp.pop %v4304
    %v4309 = vrcp.pop %v4307
    %v4310 = vmul.f32 %v4299, %v4308
    %v4311 = vmul.f32 %v4301, %v4309
    %4312 = vrot.lane.b32.xlu0 %v3716, 56
    %v4313 = vpop.permute.xlu0 %4312
    %4314 = vrot.lane.b32.xlu0 %v3719, 56
    %v4315 = vpop.permute.xlu0 %4314
    %v4319 = vsel %vm782, %v4310, 0
    %v4322 = vsel %vm782, %v4311, 0
    %4324 = vmatpush.msra.mxu0 0.0
    %4325 = vmatpush.msra.mxu0 0.0
    %4326 = vmatpush.msra.mxu0 0.0
    %4327 = vmatpush.msra.mxu0 0.0
    %4328 = vmatpush.msra.mxu0 0.0
    %4329 = vmatpush.msra.mxu0 0.0
    %4330 = vmatpush.msra.mxu0 0.0
    %4331 = vmatpush.msra.mxu0 0.0
    %4332 = vmatpush.msra.mxu0 0.0
    %4333 = vmatpush.msra.mxu0 0.0
    %4334 = vmatpush.msra.mxu0 0.0
    %4335 = vmatpush.msra.mxu0 0.0
    %4336 = vmatpush.msra.mxu0 0.0
    %4337 = vmatpush.msra.mxu0 0.0
    %4338 = vmatpush.msra.mxu0 %v4315
    %4339 = vmatpush.msra.mxu0 %v4313
    %4340 = vmatmul.f32.gmra.mxu0 %v4319
    %v4341 = vpop.f32.mrf.mxu0
    %v4342 = vadd.f32 0.0, %v4341
    %4343 = vmatmul.f32.gmra.mxu0 %v4322
    %v4344 = vpop.f32.mrf.mxu0
    %v4345 = vadd.f32 0.0, %v4344
    %4346 = vdwg.mxu0
    %4347 = vrot.lane.b32.xlu0 %v3716, 112
    %v4348 = vpop.permute.xlu0 %4347
    %4349 = vrot.lane.b32.xlu0 %v3719, 112
    %v4350 = vpop.permute.xlu0 %4349
    %4351 = vrot.lane.b32.xlu0 %v3716, 80
    %v4352 = vpop.permute.xlu0 %4351
    %4353 = vrot.lane.b32.xlu0 %v3719, 80
    %v4354 = vpop.permute.xlu0 %4353
    %v4355 = vsel %vm748, %v4348, 0
    %v4357 = vsel %vm748, %v4350, 0
    %v4359 = vsel %vm748, %v4352, 0
    %v4361 = vsel %vm748, %v4354, 0
    %4363 = vmatpush.xpose.msra.mxu0 0.0
    %4364 = vmatpush.xpose.msra.mxu0 0.0
    %4365 = vmatpush.xpose.msra.mxu0 0.0
    %4366 = vmatpush.xpose.msra.mxu0 0.0
    %4367 = vmatpush.xpose.msra.mxu0 0.0
    %4368 = vmatpush.xpose.msra.mxu0 0.0
    %4369 = vmatpush.xpose.msra.mxu0 0.0
    %4370 = vmatpush.xpose.msra.mxu0 0.0
    %4371 = vmatpush.xpose.msra.mxu0 0.0
    %4372 = vmatpush.xpose.msra.mxu0 0.0
    %4373 = vmatpush.xpose.msra.mxu0 0.0
    %4374 = vmatpush.xpose.msra.mxu0 0.0
    %4375 = vmatpush.xpose.msra.mxu0 0.0
    %4376 = vmatpush.xpose.msra.mxu0 0.0
    %4377 = vmatpush.xpose.msra.mxu0 %v4361
    %4378 = vmatpush.xpose.msra.mxu0 %v4359
    %4379 = vmatmul.f32.gmra.mxu0 %v4355
    %v4380 = vpop.f32.mrf.mxu0
    %v4381 = vadd.f32 0.0, %v4380
    %4382 = vmatmul.f32.gmra.mxu0 %v4357
    %v4383 = vpop.f32.mrf.mxu0
    %v4384 = vadd.f32 0.0, %v4383
    %4385 = vdwg.mxu0
    %v4386 = vmul.f32 %v4381, 0.35355338
    %v4387 = vmul.f32 %v4384, 0.35355338
    %v4388 = vsel %vm782, %v4386, -inf
    %4389 = vmax.xlane.f32.xlu0 %v4388
    %v4390 = vpop.xlane.xlu0 %4389
    %v4391 = vsel %vm782, %v4387, -inf
    %4392 = vmax.xlane.f32.xlu0 %v4391
    %v4393 = vpop.xlane.xlu0 %4392
    %v4394 = vsub.f32 %v4386, %v4390
    %v4395 = vsub.f32 %v4387, %v4393
    %v4396 = vmul.f32 %v4394, 1.442695
    %v4397 = vpow.pop %v4396
    %v4398 = vmul.f32 %v4395, 1.442695
    %v4399 = vpow.pop %v4398
    %v4400 = vsel %vm782, %v4397, 0.0
    %4401 = vadd.xlane.f32.xlu0 %v4400
    %v4402 = vpop.xlane.xlu0 %4401
    %v4403 = vsel %vm782, %v4399, 0.0
    %4404 = vadd.xlane.f32.xlu0 %v4403
    %v4405 = vpop.xlane.xlu0 %4404
    %v4406 = vrcp.pop %v4402
    %v4407 = vrcp.pop %v4405
    %v4408 = vmul.f32 %v4397, %v4406
    %v4409 = vmul.f32 %v4399, %v4407
    %4410 = vrot.lane.b32.xlu0 %v3716, 48
    %v4411 = vpop.permute.xlu0 %4410
    %4412 = vrot.lane.b32.xlu0 %v3719, 48
    %v4413 = vpop.permute.xlu0 %4412
    %v4417 = vsel %vm782, %v4408, 0
    %v4420 = vsel %vm782, %v4409, 0
    %4422 = vmatpush.msra.mxu0 0.0
    %4423 = vmatpush.msra.mxu0 0.0
    %4424 = vmatpush.msra.mxu0 0.0
    %4425 = vmatpush.msra.mxu0 0.0
    %4426 = vmatpush.msra.mxu0 0.0
    %4427 = vmatpush.msra.mxu0 0.0
    %4428 = vmatpush.msra.mxu0 0.0
    %4429 = vmatpush.msra.mxu0 0.0
    %4430 = vmatpush.msra.mxu0 0.0
    %4431 = vmatpush.msra.mxu0 0.0
    %4432 = vmatpush.msra.mxu0 0.0
    %4433 = vmatpush.msra.mxu0 0.0
    %4434 = vmatpush.msra.mxu0 0.0
    %4435 = vmatpush.msra.mxu0 0.0
    %4436 = vmatpush.msra.mxu0 %v4413
    %4437 = vmatpush.msra.mxu0 %v4411
    %4438 = vmatmul.f32.gmra.mxu0 %v4417
    %v4439 = vpop.f32.mrf.mxu0
    %v4440 = vadd.f32 0.0, %v4439
    %4441 = vmatmul.f32.gmra.mxu0 %v4420
    %v4442 = vpop.f32.mrf.mxu0
    %v4443 = vadd.f32 0.0, %v4442
    %4444 = vdwg.mxu0
    %4445 = vrot.lane.b32.xlu0 %v3716, 104
    %v4446 = vpop.permute.xlu0 %4445
    %4447 = vrot.lane.b32.xlu0 %v3719, 104
    %v4448 = vpop.permute.xlu0 %4447
    %4449 = vrot.lane.b32.xlu0 %v3716, 72
    %v4450 = vpop.permute.xlu0 %4449
    %4451 = vrot.lane.b32.xlu0 %v3719, 72
    %v4452 = vpop.permute.xlu0 %4451
    %v4453 = vsel %vm748, %v4446, 0
    %v4455 = vsel %vm748, %v4448, 0
    %v4457 = vsel %vm748, %v4450, 0
    %v4459 = vsel %vm748, %v4452, 0
    %4461 = vmatpush.xpose.msra.mxu0 0.0
    %4462 = vmatpush.xpose.msra.mxu0 0.0
    %4463 = vmatpush.xpose.msra.mxu0 0.0
    %4464 = vmatpush.xpose.msra.mxu0 0.0
    %4465 = vmatpush.xpose.msra.mxu0 0.0
    %4466 = vmatpush.xpose.msra.mxu0 0.0
    %4467 = vmatpush.xpose.msra.mxu0 0.0
    %4468 = vmatpush.xpose.msra.mxu0 0.0
    %4469 = vmatpush.xpose.msra.mxu0 0.0
    %4470 = vmatpush.xpose.msra.mxu0 0.0
    %4471 = vmatpush.xpose.msra.mxu0 0.0
    %4472 = vmatpush.xpose.msra.mxu0 0.0
    %4473 = vmatpush.xpose.msra.mxu0 0.0
    %4474 = vmatpush.xpose.msra.mxu0 0.0
    %4475 = vmatpush.xpose.msra.mxu0 %v4459
    %4476 = vmatpush.xpose.msra.mxu0 %v4457
    %4477 = vmatmul.f32.gmra.mxu0 %v4453
    %v4478 = vpop.f32.mrf.mxu0
    %v4479 = vadd.f32 0.0, %v4478
    %4480 = vmatmul.f32.gmra.mxu0 %v4455
    %v4481 = vpop.f32.mrf.mxu0
    %v4482 = vadd.f32 0.0, %v4481
    %4483 = vdwg.mxu0
    %v4484 = vmul.f32 %v4479, 0.35355338
    %v4485 = vmul.f32 %v4482, 0.35355338
    %v4486 = vsel %vm782, %v4484, -inf
    %4487 = vmax.xlane.f32.xlu0 %v4486
    %v4488 = vpop.xlane.xlu0 %4487
    %v4489 = vsel %vm782, %v4485, -inf
    %4490 = vmax.xlane.f32.xlu0 %v4489
    %v4491 = vpop.xlane.xlu0 %4490
    %v4492 = vsub.f32 %v4484, %v4488
    %v4493 = vsub.f32 %v4485, %v4491
    %v4494 = vmul.f32 %v4492, 1.442695
    %v4495 = vpow.pop %v4494
    %v4496 = vmul.f32 %v4493, 1.442695
    %v4497 = vpow.pop %v4496
    %v4498 = vsel %vm782, %v4495, 0.0
    %4499 = vadd.xlane.f32.xlu0 %v4498
    %v4500 = vpop.xlane.xlu0 %4499
    %v4501 = vsel %vm782, %v4497, 0.0
    %4502 = vadd.xlane.f32.xlu0 %v4501
    %v4503 = vpop.xlane.xlu0 %4502
    %v4504 = vrcp.pop %v4500
    %v4505 = vrcp.pop %v4503
    %v4506 = vmul.f32 %v4495, %v4504
    %v4507 = vmul.f32 %v4497, %v4505
    %4508 = vrot.lane.b32.xlu0 %v3716, 40
    %v4509 = vpop.permute.xlu0 %4508
    %4510 = vrot.lane.b32.xlu0 %v3719, 40
    %v4511 = vpop.permute.xlu0 %4510
    %v4515 = vsel %vm782, %v4506, 0
    %v4518 = vsel %vm782, %v4507, 0
    %4520 = vmatpush.msra.mxu0 0.0
    %4521 = vmatpush.msra.mxu0 0.0
    %4522 = vmatpush.msra.mxu0 0.0
    %4523 = vmatpush.msra.mxu0 0.0
    %4524 = vmatpush.msra.mxu0 0.0
    %4525 = vmatpush.msra.mxu0 0.0
    %4526 = vmatpush.msra.mxu0 0.0
    %4527 = vmatpush.msra.mxu0 0.0
    %4528 = vmatpush.msra.mxu0 0.0
    %4529 = vmatpush.msra.mxu0 0.0
    %4530 = vmatpush.msra.mxu0 0.0
    %4531 = vmatpush.msra.mxu0 0.0
    %4532 = vmatpush.msra.mxu0 0.0
    %4533 = vmatpush.msra.mxu0 0.0
    %4534 = vmatpush.msra.mxu0 %v4511
    %4535 = vmatpush.msra.mxu0 %v4509
    %4536 = vmatmul.f32.gmra.mxu0 %v4515
    %v4537 = vpop.f32.mrf.mxu0
    %v4538 = vadd.f32 0.0, %v4537
    %4539 = vmatmul.f32.gmra.mxu0 %v4518
    %v4540 = vpop.f32.mrf.mxu0
    %v4541 = vadd.f32 0.0, %v4540
    %4542 = vdwg.mxu0
    %4545 = vrot.lane.b32.xlu0 %v4342, 8
    %v4546 = vpop.permute.xlu0 %4545
    %4547 = vrot.lane.b32.xlu0 %v4345, 8
    %v4548 = vpop.permute.xlu0 %4547
    %4553 = vrot.lane.b32.xlu0 %v4440, 16
    %v4554 = vpop.permute.xlu0 %4553
    %4555 = vrot.lane.b32.xlu0 %v4443, 16
    %v4556 = vpop.permute.xlu0 %4555
    %4561 = vrot.lane.b32.xlu0 %v4538, 24
    %v4562 = vpop.permute.xlu0 %4561
    %4563 = vrot.lane.b32.xlu0 %v4541, 24
    %v4564 = vpop.permute.xlu0 %4563
    %v4567 = vsel %vm748, %v4244, %v4546
    %v4568 = vsel %vm748, %v4247, %v4548
    %v4569 = vsel %vm782, %v4567, %v4554
    %v4570 = vsel %vm782, %v4568, %v4556
    %v4571 = vsel %vm1162, %v4569, %v4562
    %v4572 = vsel %vm1162, %v4570, %v4564
    %4575 = vrot.lane.b32.xlu0 %v3722, 96
    %v4576 = vpop.permute.xlu0 %4575
    %4577 = vrot.lane.b32.xlu0 %v3725, 96
    %v4578 = vpop.permute.xlu0 %4577
    %v4579 = vsel %vm748, %v3722, 0
    %v4581 = vsel %vm748, %v3725, 0
    %v4583 = vsel %vm748, %v4576, 0
    %v4585 = vsel %vm748, %v4578, 0
    %4587 = vmatpush.xpose.msra.mxu0 0.0
    %4588 = vmatpush.xpose.msra.mxu0 0.0
    %4589 = vmatpush.xpose.msra.mxu0 0.0
    %4590 = vmatpush.xpose.msra.mxu0 0.0
    %4591 = vmatpush.xpose.msra.mxu0 0.0
    %4592 = vmatpush.xpose.msra.mxu0 0.0
    %4593 = vmatpush.xpose.msra.mxu0 0.0
    %4594 = vmatpush.xpose.msra.mxu0 0.0
    %4595 = vmatpush.xpose.msra.mxu0 0.0
    %4596 = vmatpush.xpose.msra.mxu0 0.0
    %4597 = vmatpush.xpose.msra.mxu0 0.0
    %4598 = vmatpush.xpose.msra.mxu0 0.0
    %4599 = vmatpush.xpose.msra.mxu0 0.0
    %4600 = vmatpush.xpose.msra.mxu0 0.0
    %4601 = vmatpush.xpose.msra.mxu0 %v4585
    %4602 = vmatpush.xpose.msra.mxu0 %v4583
    %4603 = vmatmul.f32.gmra.mxu0 %v4579
    %v4604 = vpop.f32.mrf.mxu0
    %v4605 = vadd.f32 0.0, %v4604
    %4606 = vmatmul.f32.gmra.mxu0 %v4581
    %v4607 = vpop.f32.mrf.mxu0
    %v4608 = vadd.f32 0.0, %v4607
    %4609 = vdwg.mxu0
    %v4610 = vmul.f32 %v4605, 0.35355338
    %v4611 = vmul.f32 %v4608, 0.35355338
    %v4612 = vsel %vm782, %v4610, -inf
    %4613 = vmax.xlane.f32.xlu0 %v4612
    %v4614 = vpop.xlane.xlu0 %4613
    %v4615 = vsel %vm782, %v4611, -inf
    %4616 = vmax.xlane.f32.xlu0 %v4615
    %v4617 = vpop.xlane.xlu0 %4616
    %v4618 = vsub.f32 %v4610, %v4614
    %v4619 = vsub.f32 %v4611, %v4617
    %v4620 = vmul.f32 %v4618, 1.442695
    %v4621 = vpow.pop %v4620
    %v4622 = vmul.f32 %v4619, 1.442695
    %v4623 = vpow.pop %v4622
    %v4624 = vsel %vm782, %v4621, 0.0
    %4625 = vadd.xlane.f32.xlu0 %v4624
    %v4626 = vpop.xlane.xlu0 %4625
    %v4627 = vsel %vm782, %v4623, 0.0
    %4628 = vadd.xlane.f32.xlu0 %v4627
    %v4629 = vpop.xlane.xlu0 %4628
    %v4630 = vrcp.pop %v4626
    %v4631 = vrcp.pop %v4629
    %v4632 = vmul.f32 %v4621, %v4630
    %v4633 = vmul.f32 %v4623, %v4631
    %4634 = vrot.lane.b32.xlu0 %v3722, 64
    %v4635 = vpop.permute.xlu0 %4634
    %4636 = vrot.lane.b32.xlu0 %v3725, 64
    %v4637 = vpop.permute.xlu0 %4636
    %v4641 = vsel %vm782, %v4632, 0
    %v4644 = vsel %vm782, %v4633, 0
    %4646 = vmatpush.msra.mxu0 0.0
    %4647 = vmatpush.msra.mxu0 0.0
    %4648 = vmatpush.msra.mxu0 0.0
    %4649 = vmatpush.msra.mxu0 0.0
    %4650 = vmatpush.msra.mxu0 0.0
    %4651 = vmatpush.msra.mxu0 0.0
    %4652 = vmatpush.msra.mxu0 0.0
    %4653 = vmatpush.msra.mxu0 0.0
    %4654 = vmatpush.msra.mxu0 0.0
    %4655 = vmatpush.msra.mxu0 0.0
    %4656 = vmatpush.msra.mxu0 0.0
    %4657 = vmatpush.msra.mxu0 0.0
    %4658 = vmatpush.msra.mxu0 0.0
    %4659 = vmatpush.msra.mxu0 0.0
    %4660 = vmatpush.msra.mxu0 %v4637
    %4661 = vmatpush.msra.mxu0 %v4635
    %4662 = vmatmul.f32.gmra.mxu0 %v4641
    %v4663 = vpop.f32.mrf.mxu0
    %v4664 = vadd.f32 0.0, %v4663
    %4665 = vmatmul.f32.gmra.mxu0 %v4644
    %v4666 = vpop.f32.mrf.mxu0
    %v4667 = vadd.f32 0.0, %v4666
    %4668 = vdwg.mxu0
    %4669 = vrot.lane.b32.xlu0 %v3722, 120
    %v4670 = vpop.permute.xlu0 %4669
    %4671 = vrot.lane.b32.xlu0 %v3725, 120
    %v4672 = vpop.permute.xlu0 %4671
    %4673 = vrot.lane.b32.xlu0 %v3722, 88
    %v4674 = vpop.permute.xlu0 %4673
    %4675 = vrot.lane.b32.xlu0 %v3725, 88
    %v4676 = vpop.permute.xlu0 %4675
    %v4677 = vsel %vm748, %v4670, 0
    %v4679 = vsel %vm748, %v4672, 0
    %v4681 = vsel %vm748, %v4674, 0
    %v4683 = vsel %vm748, %v4676, 0
    %4685 = vmatpush.xpose.msra.mxu0 0.0
    %4686 = vmatpush.xpose.msra.mxu0 0.0
    %4687 = vmatpush.xpose.msra.mxu0 0.0
    %4688 = vmatpush.xpose.msra.mxu0 0.0
    %4689 = vmatpush.xpose.msra.mxu0 0.0
    %4690 = vmatpush.xpose.msra.mxu0 0.0
    %4691 = vmatpush.xpose.msra.mxu0 0.0
    %4692 = vmatpush.xpose.msra.mxu0 0.0
    %4693 = vmatpush.xpose.msra.mxu0 0.0
    %4694 = vmatpush.xpose.msra.mxu0 0.0
    %4695 = vmatpush.xpose.msra.mxu0 0.0
    %4696 = vmatpush.xpose.msra.mxu0 0.0
    %4697 = vmatpush.xpose.msra.mxu0 0.0
    %4698 = vmatpush.xpose.msra.mxu0 0.0
    %4699 = vmatpush.xpose.msra.mxu0 %v4683
    %4700 = vmatpush.xpose.msra.mxu0 %v4681
    %4701 = vmatmul.f32.gmra.mxu0 %v4677
    %v4702 = vpop.f32.mrf.mxu0
    %v4703 = vadd.f32 0.0, %v4702
    %4704 = vmatmul.f32.gmra.mxu0 %v4679
    %v4705 = vpop.f32.mrf.mxu0
    %v4706 = vadd.f32 0.0, %v4705
    %4707 = vdwg.mxu0
    %v4708 = vmul.f32 %v4703, 0.35355338
    %v4709 = vmul.f32 %v4706, 0.35355338
    %v4710 = vsel %vm782, %v4708, -inf
    %4711 = vmax.xlane.f32.xlu0 %v4710
    %v4712 = vpop.xlane.xlu0 %4711
    %v4713 = vsel %vm782, %v4709, -inf
    %4714 = vmax.xlane.f32.xlu0 %v4713
    %v4715 = vpop.xlane.xlu0 %4714
    %v4716 = vsub.f32 %v4708, %v4712
    %v4717 = vsub.f32 %v4709, %v4715
    %v4718 = vmul.f32 %v4716, 1.442695
    %v4719 = vpow.pop %v4718
    %v4720 = vmul.f32 %v4717, 1.442695
    %v4721 = vpow.pop %v4720
    %v4722 = vsel %vm782, %v4719, 0.0
    %4723 = vadd.xlane.f32.xlu0 %v4722
    %v4724 = vpop.xlane.xlu0 %4723
    %v4725 = vsel %vm782, %v4721, 0.0
    %4726 = vadd.xlane.f32.xlu0 %v4725
    %v4727 = vpop.xlane.xlu0 %4726
    %v4728 = vrcp.pop %v4724
    %v4729 = vrcp.pop %v4727
    %v4730 = vmul.f32 %v4719, %v4728
    %v4731 = vmul.f32 %v4721, %v4729
    %4732 = vrot.lane.b32.xlu0 %v3722, 56
    %v4733 = vpop.permute.xlu0 %4732
    %4734 = vrot.lane.b32.xlu0 %v3725, 56
    %v4735 = vpop.permute.xlu0 %4734
    %v4739 = vsel %vm782, %v4730, 0
    %v4742 = vsel %vm782, %v4731, 0
    %4744 = vmatpush.msra.mxu0 0.0
    %4745 = vmatpush.msra.mxu0 0.0
    %4746 = vmatpush.msra.mxu0 0.0
    %4747 = vmatpush.msra.mxu0 0.0
    %4748 = vmatpush.msra.mxu0 0.0
    %4749 = vmatpush.msra.mxu0 0.0
    %4750 = vmatpush.msra.mxu0 0.0
    %4751 = vmatpush.msra.mxu0 0.0
    %4752 = vmatpush.msra.mxu0 0.0
    %4753 = vmatpush.msra.mxu0 0.0
    %4754 = vmatpush.msra.mxu0 0.0
    %4755 = vmatpush.msra.mxu0 0.0
    %4756 = vmatpush.msra.mxu0 0.0
    %4757 = vmatpush.msra.mxu0 0.0
    %4758 = vmatpush.msra.mxu0 %v4735
    %4759 = vmatpush.msra.mxu0 %v4733
    %4760 = vmatmul.f32.gmra.mxu0 %v4739
    %v4761 = vpop.f32.mrf.mxu0
    %v4762 = vadd.f32 0.0, %v4761
    %4763 = vmatmul.f32.gmra.mxu0 %v4742
    %v4764 = vpop.f32.mrf.mxu0
    %v4765 = vadd.f32 0.0, %v4764
    %4766 = vdwg.mxu0
    %4767 = vrot.lane.b32.xlu0 %v3722, 112
    %v4768 = vpop.permute.xlu0 %4767
    %4769 = vrot.lane.b32.xlu0 %v3725, 112
    %v4770 = vpop.permute.xlu0 %4769
    %4771 = vrot.lane.b32.xlu0 %v3722, 80
    %v4772 = vpop.permute.xlu0 %4771
    %4773 = vrot.lane.b32.xlu0 %v3725, 80
    %v4774 = vpop.permute.xlu0 %4773
    %v4775 = vsel %vm748, %v4768, 0
    %v4777 = vsel %vm748, %v4770, 0
    %v4779 = vsel %vm748, %v4772, 0
    %v4781 = vsel %vm748, %v4774, 0
    %4783 = vmatpush.xpose.msra.mxu0 0.0
    %4784 = vmatpush.xpose.msra.mxu0 0.0
    %4785 = vmatpush.xpose.msra.mxu0 0.0
    %4786 = vmatpush.xpose.msra.mxu0 0.0
    %4787 = vmatpush.xpose.msra.mxu0 0.0
    %4788 = vmatpush.xpose.msra.mxu0 0.0
    %4789 = vmatpush.xpose.msra.mxu0 0.0
    %4790 = vmatpush.xpose.msra.mxu0 0.0
    %4791 = vmatpush.xpose.msra.mxu0 0.0
    %4792 = vmatpush.xpose.msra.mxu0 0.0
    %4793 = vmatpush.xpose.msra.mxu0 0.0
    %4794 = vmatpush.xpose.msra.mxu0 0.0
    %4795 = vmatpush.xpose.msra.mxu0 0.0
    %4796 = vmatpush.xpose.msra.mxu0 0.0
    %4797 = vmatpush.xpose.msra.mxu0 %v4781
    %4798 = vmatpush.xpose.msra.mxu0 %v4779
    %4799 = vmatmul.f32.gmra.mxu0 %v4775
    %v4800 = vpop.f32.mrf.mxu0
    %v4801 = vadd.f32 0.0, %v4800
    %4802 = vmatmul.f32.gmra.mxu0 %v4777
    %v4803 = vpop.f32.mrf.mxu0
    %v4804 = vadd.f32 0.0, %v4803
    %4805 = vdwg.mxu0
    %v4806 = vmul.f32 %v4801, 0.35355338
    %v4807 = vmul.f32 %v4804, 0.35355338
    %v4808 = vsel %vm782, %v4806, -inf
    %4809 = vmax.xlane.f32.xlu0 %v4808
    %v4810 = vpop.xlane.xlu0 %4809
    %v4811 = vsel %vm782, %v4807, -inf
    %4812 = vmax.xlane.f32.xlu0 %v4811
    %v4813 = vpop.xlane.xlu0 %4812
    %v4814 = vsub.f32 %v4806, %v4810
    %v4815 = vsub.f32 %v4807, %v4813
    %v4816 = vmul.f32 %v4814, 1.442695
    %v4817 = vpow.pop %v4816
    %v4818 = vmul.f32 %v4815, 1.442695
    %v4819 = vpow.pop %v4818
    %v4820 = vsel %vm782, %v4817, 0.0
    %4821 = vadd.xlane.f32.xlu0 %v4820
    %v4822 = vpop.xlane.xlu0 %4821
    %v4823 = vsel %vm782, %v4819, 0.0
    %4824 = vadd.xlane.f32.xlu0 %v4823
    %v4825 = vpop.xlane.xlu0 %4824
    %v4826 = vrcp.pop %v4822
    %v4827 = vrcp.pop %v4825
    %v4828 = vmul.f32 %v4817, %v4826
    %v4829 = vmul.f32 %v4819, %v4827
    %4830 = vrot.lane.b32.xlu0 %v3722, 48
    %v4831 = vpop.permute.xlu0 %4830
    %4832 = vrot.lane.b32.xlu0 %v3725, 48
    %v4833 = vpop.permute.xlu0 %4832
    %v4837 = vsel %vm782, %v4828, 0
    %v4840 = vsel %vm782, %v4829, 0
    %4842 = vmatpush.msra.mxu0 0.0
    %4843 = vmatpush.msra.mxu0 0.0
    %4844 = vmatpush.msra.mxu0 0.0
    %4845 = vmatpush.msra.mxu0 0.0
    %4846 = vmatpush.msra.mxu0 0.0
    %4847 = vmatpush.msra.mxu0 0.0
    %4848 = vmatpush.msra.mxu0 0.0
    %4849 = vmatpush.msra.mxu0 0.0
    %4850 = vmatpush.msra.mxu0 0.0
    %4851 = vmatpush.msra.mxu0 0.0
    %4852 = vmatpush.msra.mxu0 0.0
    %4853 = vmatpush.msra.mxu0 0.0
    %4854 = vmatpush.msra.mxu0 0.0
    %4855 = vmatpush.msra.mxu0 0.0
    %4856 = vmatpush.msra.mxu0 %v4833
    %4857 = vmatpush.msra.mxu0 %v4831
    %4858 = vmatmul.f32.gmra.mxu0 %v4837
    %v4859 = vpop.f32.mrf.mxu0
    %v4860 = vadd.f32 0.0, %v4859
    %4861 = vmatmul.f32.gmra.mxu0 %v4840
    %v4862 = vpop.f32.mrf.mxu0
    %v4863 = vadd.f32 0.0, %v4862
    %4864 = vdwg.mxu0
    %4865 = vrot.lane.b32.xlu0 %v3722, 104
    %v4866 = vpop.permute.xlu0 %4865
    %4867 = vrot.lane.b32.xlu0 %v3725, 104
    %v4868 = vpop.permute.xlu0 %4867
    %4869 = vrot.lane.b32.xlu0 %v3722, 72
    %v4870 = vpop.permute.xlu0 %4869
    %4871 = vrot.lane.b32.xlu0 %v3725, 72
    %v4872 = vpop.permute.xlu0 %4871
    %v4873 = vsel %vm748, %v4866, 0
    %v4875 = vsel %vm748, %v4868, 0
    %v4877 = vsel %vm748, %v4870, 0
    %v4879 = vsel %vm748, %v4872, 0
    %4881 = vmatpush.xpose.msra.mxu0 0.0
    %4882 = vmatpush.xpose.msra.mxu0 0.0
    %4883 = vmatpush.xpose.msra.mxu0 0.0
    %4884 = vmatpush.xpose.msra.mxu0 0.0
    %4885 = vmatpush.xpose.msra.mxu0 0.0
    %4886 = vmatpush.xpose.msra.mxu0 0.0
    %4887 = vmatpush.xpose.msra.mxu0 0.0
    %4888 = vmatpush.xpose.msra.mxu0 0.0
    %4889 = vmatpush.xpose.msra.mxu0 0.0
    %4890 = vmatpush.xpose.msra.mxu0 0.0
    %4891 = vmatpush.xpose.msra.mxu0 0.0
    %4892 = vmatpush.xpose.msra.mxu0 0.0
    %4893 = vmatpush.xpose.msra.mxu0 0.0
    %4894 = vmatpush.xpose.msra.mxu0 0.0
    %4895 = vmatpush.xpose.msra.mxu0 %v4879
    %4896 = vmatpush.xpose.msra.mxu0 %v4877
    %4897 = vmatmul.f32.gmra.mxu0 %v4873
    %v4898 = vpop.f32.mrf.mxu0
    %v4899 = vadd.f32 0.0, %v4898
    %4900 = vmatmul.f32.gmra.mxu0 %v4875
    %v4901 = vpop.f32.mrf.mxu0
    %v4902 = vadd.f32 0.0, %v4901
    %4903 = vdwg.mxu0
    %v4904 = vmul.f32 %v4899, 0.35355338
    %v4905 = vmul.f32 %v4902, 0.35355338
    %v4906 = vsel %vm782, %v4904, -inf
    %4907 = vmax.xlane.f32.xlu0 %v4906
    %v4908 = vpop.xlane.xlu0 %4907
    %v4909 = vsel %vm782, %v4905, -inf
    %4910 = vmax.xlane.f32.xlu0 %v4909
    %v4911 = vpop.xlane.xlu0 %4910
    %v4912 = vsub.f32 %v4904, %v4908
    %v4913 = vsub.f32 %v4905, %v4911
    %v4914 = vmul.f32 %v4912, 1.442695
    %v4915 = vpow.pop %v4914
    %v4916 = vmul.f32 %v4913, 1.442695
    %v4917 = vpow.pop %v4916
    %v4918 = vsel %vm782, %v4915, 0.0
    %4919 = vadd.xlane.f32.xlu0 %v4918
    %v4920 = vpop.xlane.xlu0 %4919
    %v4921 = vsel %vm782, %v4917, 0.0
    %4922 = vadd.xlane.f32.xlu0 %v4921
    %v4923 = vpop.xlane.xlu0 %4922
    %v4924 = vrcp.pop %v4920
    %v4925 = vrcp.pop %v4923
    %v4926 = vmul.f32 %v4915, %v4924
    %v4927 = vmul.f32 %v4917, %v4925
    %4928 = vrot.lane.b32.xlu0 %v3722, 40
    %v4929 = vpop.permute.xlu0 %4928
    %4930 = vrot.lane.b32.xlu0 %v3725, 40
    %v4931 = vpop.permute.xlu0 %4930
    %v4935 = vsel %vm782, %v4926, 0
    %v4938 = vsel %vm782, %v4927, 0
    %4940 = vmatpush.msra.mxu0 0.0
    %4941 = vmatpush.msra.mxu0 0.0
    %4942 = vmatpush.msra.mxu0 0.0
    %4943 = vmatpush.msra.mxu0 0.0
    %4944 = vmatpush.msra.mxu0 0.0
    %4945 = vmatpush.msra.mxu0 0.0
    %4946 = vmatpush.msra.mxu0 0.0
    %4947 = vmatpush.msra.mxu0 0.0
    %4948 = vmatpush.msra.mxu0 0.0
    %4949 = vmatpush.msra.mxu0 0.0
    %4950 = vmatpush.msra.mxu0 0.0
    %4951 = vmatpush.msra.mxu0 0.0
    %4952 = vmatpush.msra.mxu0 0.0
    %4953 = vmatpush.msra.mxu0 0.0
    %4954 = vmatpush.msra.mxu0 %v4931
    %4955 = vmatpush.msra.mxu0 %v4929
    %4956 = vmatmul.f32.gmra.mxu0 %v4935
    %v4957 = vpop.f32.mrf.mxu0
    %v4958 = vadd.f32 0.0, %v4957
    %4959 = vmatmul.f32.gmra.mxu0 %v4938
    %v4960 = vpop.f32.mrf.mxu0
    %v4961 = vadd.f32 0.0, %v4960
    %4962 = vdwg.mxu0
    %4965 = vrot.lane.b32.xlu0 %v4762, 8
    %v4966 = vpop.permute.xlu0 %4965
    %4967 = vrot.lane.b32.xlu0 %v4765, 8
    %v4968 = vpop.permute.xlu0 %4967
    %4973 = vrot.lane.b32.xlu0 %v4860, 16
    %v4974 = vpop.permute.xlu0 %4973
    %4975 = vrot.lane.b32.xlu0 %v4863, 16
    %v4976 = vpop.permute.xlu0 %4975
    %4981 = vrot.lane.b32.xlu0 %v4958, 24
    %v4982 = vpop.permute.xlu0 %4981
    %4983 = vrot.lane.b32.xlu0 %v4961, 24
    %v4984 = vpop.permute.xlu0 %4983
    %v4987 = vsel %vm748, %v4664, %v4966
    %v4988 = vsel %vm748, %v4667, %v4968
    %v4989 = vsel %vm782, %v4987, %v4974
    %v4990 = vsel %vm782, %v4988, %v4976
    %v4991 = vsel %vm1162, %v4989, %v4982
    %v4992 = vsel %vm1162, %v4990, %v4984
    %4995 = vrot.lane.b32.xlu0 %v3728, 96
    %v4996 = vpop.permute.xlu0 %4995
    %4997 = vrot.lane.b32.xlu0 %v3731, 96
    %v4998 = vpop.permute.xlu0 %4997
    %v4999 = vsel %vm748, %v3728, 0
    %v5001 = vsel %vm748, %v3731, 0
    %v5003 = vsel %vm748, %v4996, 0
    %v5005 = vsel %vm748, %v4998, 0
    %5007 = vmatpush.xpose.msra.mxu0 0.0
    %5008 = vmatpush.xpose.msra.mxu0 0.0
    %5009 = vmatpush.xpose.msra.mxu0 0.0
    %5010 = vmatpush.xpose.msra.mxu0 0.0
    %5011 = vmatpush.xpose.msra.mxu0 0.0
    %5012 = vmatpush.xpose.msra.mxu0 0.0
    %5013 = vmatpush.xpose.msra.mxu0 0.0
    %5014 = vmatpush.xpose.msra.mxu0 0.0
    %5015 = vmatpush.xpose.msra.mxu0 0.0
    %5016 = vmatpush.xpose.msra.mxu0 0.0
    %5017 = vmatpush.xpose.msra.mxu0 0.0
    %5018 = vmatpush.xpose.msra.mxu0 0.0
    %5019 = vmatpush.xpose.msra.mxu0 0.0
    %5020 = vmatpush.xpose.msra.mxu0 0.0
    %5021 = vmatpush.xpose.msra.mxu0 %v5005
    %5022 = vmatpush.xpose.msra.mxu0 %v5003
    %5023 = vmatmul.f32.gmra.mxu0 %v4999
    %v5024 = vpop.f32.mrf.mxu0
    %v5025 = vadd.f32 0.0, %v5024
    %5026 = vmatmul.f32.gmra.mxu0 %v5001
    %v5027 = vpop.f32.mrf.mxu0
    %v5028 = vadd.f32 0.0, %v5027
    %5029 = vdwg.mxu0
    %v5030 = vmul.f32 %v5025, 0.35355338
    %v5031 = vmul.f32 %v5028, 0.35355338
    %v5032 = vsel %vm782, %v5030, -inf
    %5033 = vmax.xlane.f32.xlu0 %v5032
    %v5034 = vpop.xlane.xlu0 %5033
    %v5035 = vsel %vm782, %v5031, -inf
    %5036 = vmax.xlane.f32.xlu0 %v5035
    %v5037 = vpop.xlane.xlu0 %5036
    %v5038 = vsub.f32 %v5030, %v5034
    %v5039 = vsub.f32 %v5031, %v5037
    %v5040 = vmul.f32 %v5038, 1.442695
    %v5041 = vpow.pop %v5040
    %v5042 = vmul.f32 %v5039, 1.442695
    %v5043 = vpow.pop %v5042
    %v5044 = vsel %vm782, %v5041, 0.0
    %5045 = vadd.xlane.f32.xlu0 %v5044
    %v5046 = vpop.xlane.xlu0 %5045
    %v5047 = vsel %vm782, %v5043, 0.0
    %5048 = vadd.xlane.f32.xlu0 %v5047
    %v5049 = vpop.xlane.xlu0 %5048
    %v5050 = vrcp.pop %v5046
    %v5051 = vrcp.pop %v5049
    %v5052 = vmul.f32 %v5041, %v5050
    %v5053 = vmul.f32 %v5043, %v5051
    %5054 = vrot.lane.b32.xlu0 %v3728, 64
    %v5055 = vpop.permute.xlu0 %5054
    %5056 = vrot.lane.b32.xlu0 %v3731, 64
    %v5057 = vpop.permute.xlu0 %5056
    %v5061 = vsel %vm782, %v5052, 0
    %v5064 = vsel %vm782, %v5053, 0
    %5066 = vmatpush.msra.mxu0 0.0
    %5067 = vmatpush.msra.mxu0 0.0
    %5068 = vmatpush.msra.mxu0 0.0
    %5069 = vmatpush.msra.mxu0 0.0
    %5070 = vmatpush.msra.mxu0 0.0
    %5071 = vmatpush.msra.mxu0 0.0
    %5072 = vmatpush.msra.mxu0 0.0
    %5073 = vmatpush.msra.mxu0 0.0
    %5074 = vmatpush.msra.mxu0 0.0
    %5075 = vmatpush.msra.mxu0 0.0
    %5076 = vmatpush.msra.mxu0 0.0
    %5077 = vmatpush.msra.mxu0 0.0
    %5078 = vmatpush.msra.mxu0 0.0
    %5079 = vmatpush.msra.mxu0 0.0
    %5080 = vmatpush.msra.mxu0 %v5057
    %5081 = vmatpush.msra.mxu0 %v5055
    %5082 = vmatmul.f32.gmra.mxu0 %v5061
    %v5083 = vpop.f32.mrf.mxu0
    %v5084 = vadd.f32 0.0, %v5083
    %5085 = vmatmul.f32.gmra.mxu0 %v5064
    %v5086 = vpop.f32.mrf.mxu0
    %v5087 = vadd.f32 0.0, %v5086
    %5088 = vdwg.mxu0
    %5089 = vrot.lane.b32.xlu0 %v3728, 120
    %v5090 = vpop.permute.xlu0 %5089
    %5091 = vrot.lane.b32.xlu0 %v3731, 120
    %v5092 = vpop.permute.xlu0 %5091
    %5093 = vrot.lane.b32.xlu0 %v3728, 88
    %v5094 = vpop.permute.xlu0 %5093
    %5095 = vrot.lane.b32.xlu0 %v3731, 88
    %v5096 = vpop.permute.xlu0 %5095
    %v5097 = vsel %vm748, %v5090, 0
    %v5099 = vsel %vm748, %v5092, 0
    %v5101 = vsel %vm748, %v5094, 0
    %v5103 = vsel %vm748, %v5096, 0
    %5105 = vmatpush.xpose.msra.mxu0 0.0
    %5106 = vmatpush.xpose.msra.mxu0 0.0
    %5107 = vmatpush.xpose.msra.mxu0 0.0
    %5108 = vmatpush.xpose.msra.mxu0 0.0
    %5109 = vmatpush.xpose.msra.mxu0 0.0
    %5110 = vmatpush.xpose.msra.mxu0 0.0
    %5111 = vmatpush.xpose.msra.mxu0 0.0
    %5112 = vmatpush.xpose.msra.mxu0 0.0
    %5113 = vmatpush.xpose.msra.mxu0 0.0
    %5114 = vmatpush.xpose.msra.mxu0 0.0
    %5115 = vmatpush.xpose.msra.mxu0 0.0
    %5116 = vmatpush.xpose.msra.mxu0 0.0
    %5117 = vmatpush.xpose.msra.mxu0 0.0
    %5118 = vmatpush.xpose.msra.mxu0 0.0
    %5119 = vmatpush.xpose.msra.mxu0 %v5103
    %5120 = vmatpush.xpose.msra.mxu0 %v5101
    %5121 = vmatmul.f32.gmra.mxu0 %v5097
    %v5122 = vpop.f32.mrf.mxu0
    %v5123 = vadd.f32 0.0, %v5122
    %5124 = vmatmul.f32.gmra.mxu0 %v5099
    %v5125 = vpop.f32.mrf.mxu0
    %v5126 = vadd.f32 0.0, %v5125
    %5127 = vdwg.mxu0
    %v5128 = vmul.f32 %v5123, 0.35355338
    %v5129 = vmul.f32 %v5126, 0.35355338
    %v5130 = vsel %vm782, %v5128, -inf
    %5131 = vmax.xlane.f32.xlu0 %v5130
    %v5132 = vpop.xlane.xlu0 %5131
    %v5133 = vsel %vm782, %v5129, -inf
    %5134 = vmax.xlane.f32.xlu0 %v5133
    %v5135 = vpop.xlane.xlu0 %5134
    %v5136 = vsub.f32 %v5128, %v5132
    %v5137 = vsub.f32 %v5129, %v5135
    %v5138 = vmul.f32 %v5136, 1.442695
    %v5139 = vpow.pop %v5138
    %v5140 = vmul.f32 %v5137, 1.442695
    %v5141 = vpow.pop %v5140
    %v5142 = vsel %vm782, %v5139, 0.0
    %5143 = vadd.xlane.f32.xlu0 %v5142
    %v5144 = vpop.xlane.xlu0 %5143
    %v5145 = vsel %vm782, %v5141, 0.0
    %5146 = vadd.xlane.f32.xlu0 %v5145
    %v5147 = vpop.xlane.xlu0 %5146
    %v5148 = vrcp.pop %v5144
    %v5149 = vrcp.pop %v5147
    %v5150 = vmul.f32 %v5139, %v5148
    %v5151 = vmul.f32 %v5141, %v5149
    %5152 = vrot.lane.b32.xlu0 %v3728, 56
    %v5153 = vpop.permute.xlu0 %5152
    %5154 = vrot.lane.b32.xlu0 %v3731, 56
    %v5155 = vpop.permute.xlu0 %5154
    %v5159 = vsel %vm782, %v5150, 0
    %v5162 = vsel %vm782, %v5151, 0
    %5164 = vmatpush.msra.mxu0 0.0
    %5165 = vmatpush.msra.mxu0 0.0
    %5166 = vmatpush.msra.mxu0 0.0
    %5167 = vmatpush.msra.mxu0 0.0
    %5168 = vmatpush.msra.mxu0 0.0
    %5169 = vmatpush.msra.mxu0 0.0
    %5170 = vmatpush.msra.mxu0 0.0
    %5171 = vmatpush.msra.mxu0 0.0
    %5172 = vmatpush.msra.mxu0 0.0
    %5173 = vmatpush.msra.mxu0 0.0
    %5174 = vmatpush.msra.mxu0 0.0
    %5175 = vmatpush.msra.mxu0 0.0
    %5176 = vmatpush.msra.mxu0 0.0
    %5177 = vmatpush.msra.mxu0 0.0
    %5178 = vmatpush.msra.mxu0 %v5155
    %5179 = vmatpush.msra.mxu0 %v5153
    %5180 = vmatmul.f32.gmra.mxu0 %v5159
    %v5181 = vpop.f32.mrf.mxu0
    %v5182 = vadd.f32 0.0, %v5181
    %5183 = vmatmul.f32.gmra.mxu0 %v5162
    %v5184 = vpop.f32.mrf.mxu0
    %v5185 = vadd.f32 0.0, %v5184
    %5186 = vdwg.mxu0
    %5187 = vrot.lane.b32.xlu0 %v3728, 112
    %v5188 = vpop.permute.xlu0 %5187
    %5189 = vrot.lane.b32.xlu0 %v3731, 112
    %v5190 = vpop.permute.xlu0 %5189
    %5191 = vrot.lane.b32.xlu0 %v3728, 80
    %v5192 = vpop.permute.xlu0 %5191
    %5193 = vrot.lane.b32.xlu0 %v3731, 80
    %v5194 = vpop.permute.xlu0 %5193
    %v5195 = vsel %vm748, %v5188, 0
    %v5197 = vsel %vm748, %v5190, 0
    %v5199 = vsel %vm748, %v5192, 0
    %v5201 = vsel %vm748, %v5194, 0
    %5203 = vmatpush.xpose.msra.mxu0 0.0
    %5204 = vmatpush.xpose.msra.mxu0 0.0
    %5205 = vmatpush.xpose.msra.mxu0 0.0
    %5206 = vmatpush.xpose.msra.mxu0 0.0
    %5207 = vmatpush.xpose.msra.mxu0 0.0
    %5208 = vmatpush.xpose.msra.mxu0 0.0
    %5209 = vmatpush.xpose.msra.mxu0 0.0
    %5210 = vmatpush.xpose.msra.mxu0 0.0
    %5211 = vmatpush.xpose.msra.mxu0 0.0
    %5212 = vmatpush.xpose.msra.mxu0 0.0
    %5213 = vmatpush.xpose.msra.mxu0 0.0
    %5214 = vmatpush.xpose.msra.mxu0 0.0
    %5215 = vmatpush.xpose.msra.mxu0 0.0
    %5216 = vmatpush.xpose.msra.mxu0 0.0
    %5217 = vmatpush.xpose.msra.mxu0 %v5201
    %5218 = vmatpush.xpose.msra.mxu0 %v5199
    %5219 = vmatmul.f32.gmra.mxu0 %v5195
    %v5220 = vpop.f32.mrf.mxu0
    %v5221 = vadd.f32 0.0, %v5220
    %5222 = vmatmul.f32.gmra.mxu0 %v5197
    %v5223 = vpop.f32.mrf.mxu0
    %v5224 = vadd.f32 0.0, %v5223
    %5225 = vdwg.mxu0
    %v5226 = vmul.f32 %v5221, 0.35355338
    %v5227 = vmul.f32 %v5224, 0.35355338
    %v5228 = vsel %vm782, %v5226, -inf
    %5229 = vmax.xlane.f32.xlu0 %v5228
    %v5230 = vpop.xlane.xlu0 %5229
    %v5231 = vsel %vm782, %v5227, -inf
    %5232 = vmax.xlane.f32.xlu0 %v5231
    %v5233 = vpop.xlane.xlu0 %5232
    %v5234 = vsub.f32 %v5226, %v5230
    %v5235 = vsub.f32 %v5227, %v5233
    %v5236 = vmul.f32 %v5234, 1.442695
    %v5237 = vpow.pop %v5236
    %v5238 = vmul.f32 %v5235, 1.442695
    %v5239 = vpow.pop %v5238
    %v5240 = vsel %vm782, %v5237, 0.0
    %5241 = vadd.xlane.f32.xlu0 %v5240
    %v5242 = vpop.xlane.xlu0 %5241
    %v5243 = vsel %vm782, %v5239, 0.0
    %5244 = vadd.xlane.f32.xlu0 %v5243
    %v5245 = vpop.xlane.xlu0 %5244
    %v5246 = vrcp.pop %v5242
    %v5247 = vrcp.pop %v5245
    %v5248 = vmul.f32 %v5237, %v5246
    %v5249 = vmul.f32 %v5239, %v5247
    %5250 = vrot.lane.b32.xlu0 %v3728, 48
    %v5251 = vpop.permute.xlu0 %5250
    %5252 = vrot.lane.b32.xlu0 %v3731, 48
    %v5253 = vpop.permute.xlu0 %5252
    %v5257 = vsel %vm782, %v5248, 0
    %v5260 = vsel %vm782, %v5249, 0
    %5262 = vmatpush.msra.mxu0 0.0
    %5263 = vmatpush.msra.mxu0 0.0
    %5264 = vmatpush.msra.mxu0 0.0
    %5265 = vmatpush.msra.mxu0 0.0
    %5266 = vmatpush.msra.mxu0 0.0
    %5267 = vmatpush.msra.mxu0 0.0
    %5268 = vmatpush.msra.mxu0 0.0
    %5269 = vmatpush.msra.mxu0 0.0
    %5270 = vmatpush.msra.mxu0 0.0
    %5271 = vmatpush.msra.mxu0 0.0
    %5272 = vmatpush.msra.mxu0 0.0
    %5273 = vmatpush.msra.mxu0 0.0
    %5274 = vmatpush.msra.mxu0 0.0
    %5275 = vmatpush.msra.mxu0 0.0
    %5276 = vmatpush.msra.mxu0 %v5253
    %5277 = vmatpush.msra.mxu0 %v5251
    %5278 = vmatmul.f32.gmra.mxu0 %v5257
    %v5279 = vpop.f32.mrf.mxu0
    %v5280 = vadd.f32 0.0, %v5279
    %5281 = vmatmul.f32.gmra.mxu0 %v5260
    %v5282 = vpop.f32.mrf.mxu0
    %v5283 = vadd.f32 0.0, %v5282
    %5284 = vdwg.mxu0
    %5285 = vrot.lane.b32.xlu0 %v3728, 104
    %v5286 = vpop.permute.xlu0 %5285
    %5287 = vrot.lane.b32.xlu0 %v3731, 104
    %v5288 = vpop.permute.xlu0 %5287
    %5289 = vrot.lane.b32.xlu0 %v3728, 72
    %v5290 = vpop.permute.xlu0 %5289
    %5291 = vrot.lane.b32.xlu0 %v3731, 72
    %v5292 = vpop.permute.xlu0 %5291
    %v5293 = vsel %vm748, %v5286, 0
    %v5295 = vsel %vm748, %v5288, 0
    %v5297 = vsel %vm748, %v5290, 0
    %v5299 = vsel %vm748, %v5292, 0
    %5301 = vmatpush.xpose.msra.mxu0 0.0
    %5302 = vmatpush.xpose.msra.mxu0 0.0
    %5303 = vmatpush.xpose.msra.mxu0 0.0
    %5304 = vmatpush.xpose.msra.mxu0 0.0
    %5305 = vmatpush.xpose.msra.mxu0 0.0
    %5306 = vmatpush.xpose.msra.mxu0 0.0
    %5307 = vmatpush.xpose.msra.mxu0 0.0
    %5308 = vmatpush.xpose.msra.mxu0 0.0
    %5309 = vmatpush.xpose.msra.mxu0 0.0
    %5310 = vmatpush.xpose.msra.mxu0 0.0
    %5311 = vmatpush.xpose.msra.mxu0 0.0
    %5312 = vmatpush.xpose.msra.mxu0 0.0
    %5313 = vmatpush.xpose.msra.mxu0 0.0
    %5314 = vmatpush.xpose.msra.mxu0 0.0
    %5315 = vmatpush.xpose.msra.mxu0 %v5299
    %5316 = vmatpush.xpose.msra.mxu0 %v5297
    %5317 = vmatmul.f32.gmra.mxu0 %v5293
    %v5318 = vpop.f32.mrf.mxu0
    %v5319 = vadd.f32 0.0, %v5318
    %5320 = vmatmul.f32.gmra.mxu0 %v5295
    %v5321 = vpop.f32.mrf.mxu0
    %v5322 = vadd.f32 0.0, %v5321
    %5323 = vdwg.mxu0
    %v5324 = vmul.f32 %v5319, 0.35355338
    %v5325 = vmul.f32 %v5322, 0.35355338
    %v5326 = vsel %vm782, %v5324, -inf
    %5327 = vmax.xlane.f32.xlu0 %v5326
    %v5328 = vpop.xlane.xlu0 %5327
    %v5329 = vsel %vm782, %v5325, -inf
    %5330 = vmax.xlane.f32.xlu0 %v5329
    %v5331 = vpop.xlane.xlu0 %5330
    %v5332 = vsub.f32 %v5324, %v5328
    %v5333 = vsub.f32 %v5325, %v5331
    %v5334 = vmul.f32 %v5332, 1.442695
    %v5335 = vpow.pop %v5334
    %v5336 = vmul.f32 %v5333, 1.442695
    %v5337 = vpow.pop %v5336
    %v5338 = vsel %vm782, %v5335, 0.0
    %5339 = vadd.xlane.f32.xlu0 %v5338
    %v5340 = vpop.xlane.xlu0 %5339
    %v5341 = vsel %vm782, %v5337, 0.0
    %5342 = vadd.xlane.f32.xlu0 %v5341
    %v5343 = vpop.xlane.xlu0 %5342
    %v5344 = vrcp.pop %v5340
    %v5345 = vrcp.pop %v5343
    %v5346 = vmul.f32 %v5335, %v5344
    %v5347 = vmul.f32 %v5337, %v5345
    %5348 = vrot.lane.b32.xlu0 %v3728, 40
    %v5349 = vpop.permute.xlu0 %5348
    %5350 = vrot.lane.b32.xlu0 %v3731, 40
    %v5351 = vpop.permute.xlu0 %5350
    %v5355 = vsel %vm782, %v5346, 0
    %v5358 = vsel %vm782, %v5347, 0
    %5360 = vmatpush.msra.mxu0 0.0
    %5361 = vmatpush.msra.mxu0 0.0
    %5362 = vmatpush.msra.mxu0 0.0
    %5363 = vmatpush.msra.mxu0 0.0
    %5364 = vmatpush.msra.mxu0 0.0
    %5365 = vmatpush.msra.mxu0 0.0
    %5366 = vmatpush.msra.mxu0 0.0
    %5367 = vmatpush.msra.mxu0 0.0
    %5368 = vmatpush.msra.mxu0 0.0
    %5369 = vmatpush.msra.mxu0 0.0
    %5370 = vmatpush.msra.mxu0 0.0
    %5371 = vmatpush.msra.mxu0 0.0
    %5372 = vmatpush.msra.mxu0 0.0
    %5373 = vmatpush.msra.mxu0 0.0
    %5374 = vmatpush.msra.mxu0 %v5351
    %5375 = vmatpush.msra.mxu0 %v5349
    %5376 = vmatmul.f32.gmra.mxu0 %v5355
    %v5377 = vpop.f32.mrf.mxu0
    %v5378 = vadd.f32 0.0, %v5377
    %5379 = vmatmul.f32.gmra.mxu0 %v5358
    %v5380 = vpop.f32.mrf.mxu0
    %v5381 = vadd.f32 0.0, %v5380
    %5382 = vdwg.mxu0
    %5385 = vrot.lane.b32.xlu0 %v5182, 8
    %v5386 = vpop.permute.xlu0 %5385
    %5387 = vrot.lane.b32.xlu0 %v5185, 8
    %v5388 = vpop.permute.xlu0 %5387
    %5393 = vrot.lane.b32.xlu0 %v5280, 16
    %v5394 = vpop.permute.xlu0 %5393
    %5395 = vrot.lane.b32.xlu0 %v5283, 16
    %v5396 = vpop.permute.xlu0 %5395
    %5401 = vrot.lane.b32.xlu0 %v5378, 24
    %v5402 = vpop.permute.xlu0 %5401
    %5403 = vrot.lane.b32.xlu0 %v5381, 24
    %v5404 = vpop.permute.xlu0 %5403
    %v5407 = vsel %vm748, %v5084, %v5386
    %v5408 = vsel %vm748, %v5087, %v5388
    %v5409 = vsel %vm782, %v5407, %v5394
    %v5410 = vsel %vm782, %v5408, %v5396
    %v5411 = vsel %vm1162, %v5409, %v5402
    %v5412 = vsel %vm1162, %v5410, %v5404
    %v5414 = vperm.slane %v3646, 0
    %v5417 = vsel %vm700, %v4151, 0
    %v5420 = vsel %vm700, %v4152, 0
    %v5423 = vsel %vm700, %v4571, 0
    %v5426 = vsel %vm700, %v4572, 0
    %v5429 = vsel %vm700, %v4991, 0
    %v5432 = vsel %vm700, %v4992, 0
    %v5435 = vsel %vm700, %v5411, 0
    %v5438 = vsel %vm700, %v5412, 0
    %5440 = vmatpush.msra.mxu0 0.0
    %5441 = vmatpush.msra.mxu0 0.0
    %5442 = vmatpush.msra.mxu0 0.0
    %5443 = vmatpush.msra.mxu0 0.0
    %5444 = vmatpush.msra.mxu0 0.0
    %5445 = vmatpush.msra.mxu0 0.0
    %5446 = vmatpush.msra.mxu0 0.0
    %5447 = vmatpush.msra.mxu0 0.0
    %5448 = vmatpush.msra.mxu0 0.0
    %5449 = vmatpush.msra.mxu0 0.0
    %5450 = vmatpush.msra.mxu0 0.0
    %5451 = vmatpush.msra.mxu0 0.0
    %5452 = vmatpush.msra.mxu0 %v3645
    %5453 = vmatpush.msra.mxu0 %v3644
    %5454 = vmatpush.msra.mxu0 %v3643
    %5455 = vmatpush.msra.mxu0 %v3642
    %5456 = vmatmul.f32.gmra.mxu0 %v5417
    %v5457 = vpop.f32.mrf.mxu0
    %v5458 = vadd.f32 %v5414, %v5457
    %5459 = vmatmul.f32.gmra.mxu0 %v5420
    %v5460 = vpop.f32.mrf.mxu0
    %v5461 = vadd.f32 %v5414, %v5460
    %5462 = vmatmul.f32.gmra.mxu0 %v5423
    %v5463 = vpop.f32.mrf.mxu0
    %v5464 = vadd.f32 %v5414, %v5463
    %5465 = vmatmul.f32.gmra.mxu0 %v5426
    %v5466 = vpop.f32.mrf.mxu0
    %v5467 = vadd.f32 %v5414, %v5466
    %5468 = vmatmul.f32.gmra.mxu0 %v5429
    %v5469 = vpop.f32.mrf.mxu0
    %v5470 = vadd.f32 %v5414, %v5469
    %5471 = vmatmul.f32.gmra.mxu0 %v5432
    %v5472 = vpop.f32.mrf.mxu0
    %v5473 = vadd.f32 %v5414, %v5472
    %5474 = vmatmul.f32.gmra.mxu0 %v5435
    %v5475 = vpop.f32.mrf.mxu0
    %v5476 = vadd.f32 %v5414, %v5475
    %5477 = vmatmul.f32.gmra.mxu0 %v5438
    %v5478 = vpop.f32.mrf.mxu0
    %v5479 = vadd.f32 %v5414, %v5478
    %5480 = vdwg.mxu0
    %v5481 = vadd.f32 %v5458, %v3629
    %v5482 = vadd.f32 %v5461, %v3630
    %v5483 = vadd.f32 %v5464, %v3631
    %v5484 = vadd.f32 %v5467, %v3632
    %v5485 = vadd.f32 %v5470, %v3633
    %v5486 = vadd.f32 %v5473, %v3634
    %v5487 = vadd.f32 %v5476, %v3635
    %v5488 = vadd.f32 %v5479, %v3636
    %v5489 = vsel %vm700, %v5481, 0.0
    %5490 = vadd.xlane.f32.xlu0 %v5489
    %v5491 = vpop.xlane.xlu0 %5490
    %v5492 = vsel %vm700, %v5482, 0.0
    %5493 = vadd.xlane.f32.xlu0 %v5492
    %v5494 = vpop.xlane.xlu0 %5493
    %v5495 = vsel %vm700, %v5483, 0.0
    %5496 = vadd.xlane.f32.xlu0 %v5495
    %v5497 = vpop.xlane.xlu0 %5496
    %v5498 = vsel %vm700, %v5484, 0.0
    %5499 = vadd.xlane.f32.xlu0 %v5498
    %v5500 = vpop.xlane.xlu0 %5499
    %v5501 = vsel %vm700, %v5485, 0.0
    %5502 = vadd.xlane.f32.xlu0 %v5501
    %v5503 = vpop.xlane.xlu0 %5502
    %v5504 = vsel %vm700, %v5486, 0.0
    %5505 = vadd.xlane.f32.xlu0 %v5504
    %v5506 = vpop.xlane.xlu0 %5505
    %v5507 = vsel %vm700, %v5487, 0.0
    %5508 = vadd.xlane.f32.xlu0 %v5507
    %v5509 = vpop.xlane.xlu0 %5508
    %v5510 = vsel %vm700, %v5488, 0.0
    %5511 = vadd.xlane.f32.xlu0 %v5510
    %v5512 = vpop.xlane.xlu0 %5511
    %v5513 = vmul.f32 %v5491, %v1651
    %v5514 = vmul.f32 %v5494, %v1651
    %v5515 = vmul.f32 %v5497, %v1651
    %v5516 = vmul.f32 %v5500, %v1651
    %v5517 = vmul.f32 %v5503, %v1651
    %v5518 = vmul.f32 %v5506, %v1651
    %v5519 = vmul.f32 %v5509, %v1651
    %v5520 = vmul.f32 %v5512, %v1651
    %v5521 = vsub.f32 %v5481, %v5513
    %v5522 = vsub.f32 %v5482, %v5514
    %v5523 = vsub.f32 %v5483, %v5515
    %v5524 = vsub.f32 %v5484, %v5516
    %v5525 = vsub.f32 %v5485, %v5517
    %v5526 = vsub.f32 %v5486, %v5518
    %v5527 = vsub.f32 %v5487, %v5519
    %v5528 = vsub.f32 %v5488, %v5520
    %v5529 = vmul.f32 %v5521, %v5521
    %v5530 = vmul.f32 %v5522, %v5522
    %v5531 = vmul.f32 %v5523, %v5523
    %v5532 = vmul.f32 %v5524, %v5524
    %v5533 = vmul.f32 %v5525, %v5525
    %v5534 = vmul.f32 %v5526, %v5526
    %v5535 = vmul.f32 %v5527, %v5527
    %v5536 = vmul.f32 %v5528, %v5528
    %v5537 = vsel %vm700, %v5529, 0.0
    %5538 = vadd.xlane.f32.xlu0 %v5537
    %v5539 = vpop.xlane.xlu0 %5538
    %v5540 = vsel %vm700, %v5530, 0.0
    %5541 = vadd.xlane.f32.xlu0 %v5540
    %v5542 = vpop.xlane.xlu0 %5541
    %v5543 = vsel %vm700, %v5531, 0.0
    %5544 = vadd.xlane.f32.xlu0 %v5543
    %v5545 = vpop.xlane.xlu0 %5544
    %v5546 = vsel %vm700, %v5532, 0.0
    %5547 = vadd.xlane.f32.xlu0 %v5546
    %v5548 = vpop.xlane.xlu0 %5547
    %v5549 = vsel %vm700, %v5533, 0.0
    %5550 = vadd.xlane.f32.xlu0 %v5549
    %v5551 = vpop.xlane.xlu0 %5550
    %v5552 = vsel %vm700, %v5534, 0.0
    %5553 = vadd.xlane.f32.xlu0 %v5552
    %v5554 = vpop.xlane.xlu0 %5553
    %v5555 = vsel %vm700, %v5535, 0.0
    %5556 = vadd.xlane.f32.xlu0 %v5555
    %v5557 = vpop.xlane.xlu0 %5556
    %v5558 = vsel %vm700, %v5536, 0.0
    %5559 = vadd.xlane.f32.xlu0 %v5558
    %v5560 = vpop.xlane.xlu0 %5559
    %v5561 = vmul.f32 %v5539, %v1651
    %v5562 = vmul.f32 %v5542, %v1651
    %v5563 = vmul.f32 %v5545, %v1651
    %v5564 = vmul.f32 %v5548, %v1651
    %v5565 = vmul.f32 %v5551, %v1651
    %v5566 = vmul.f32 %v5554, %v1651
    %v5567 = vmul.f32 %v5557, %v1651
    %v5568 = vmul.f32 %v5560, %v1651
    %v5569 = vadd.f32 %v5561, 1e-05
    %v5570 = vadd.f32 %v5562, 1e-05
    %v5571 = vadd.f32 %v5563, 1e-05
    %v5572 = vadd.f32 %v5564, 1e-05
    %v5573 = vadd.f32 %v5565, 1e-05
    %v5574 = vadd.f32 %v5566, 1e-05
    %v5575 = vadd.f32 %v5567, 1e-05
    %v5576 = vadd.f32 %v5568, 1e-05
    %v5577 = vrsqrt.pop %v5569
    %v5578 = vmul.f32 %v5577, %v5569
    %v5579 = vmul.f32 %v5578, %v5577
    %v5580 = vmul.f32 0.5, %v5579
    %v5581 = vsub.f32 1.5, %v5580
    %v5582 = vmul.f32 %v5577, %v5581
    %vm5583 = vweird.f32 %v5569
    %vm5584 = vweird.f32 %v5577
    %vm5585 = vmor %vm5583, %vm5584
    %v5586 = vsel %vm5585, %v5577, %v5582
    %v5587 = vrsqrt.pop %v5570
    %v5588 = vmul.f32 %v5587, %v5570
    %v5589 = vmul.f32 %v5588, %v5587
    %v5590 = vmul.f32 0.5, %v5589
    %v5591 = vsub.f32 1.5, %v5590
    %v5592 = vmul.f32 %v5587, %v5591
    %vm5593 = vweird.f32 %v5570
    %vm5594 = vweird.f32 %v5587
    %vm5595 = vmor %vm5593, %vm5594
    %v5596 = vsel %vm5595, %v5587, %v5592
    %v5597 = vrsqrt.pop %v5571
    %v5598 = vmul.f32 %v5597, %v5571
    %v5599 = vmul.f32 %v5598, %v5597
    %v5600 = vmul.f32 0.5, %v5599
    %v5601 = vsub.f32 1.5, %v5600
    %v5602 = vmul.f32 %v5597, %v5601
    %vm5603 = vweird.f32 %v5571
    %vm5604 = vweird.f32 %v5597
    %vm5605 = vmor %vm5603, %vm5604
    %v5606 = vsel %vm5605, %v5597, %v5602
    %v5607 = vrsqrt.pop %v5572
    %v5608 = vmul.f32 %v5607, %v5572
    %v5609 = vmul.f32 %v5608, %v5607
    %v5610 = vmul.f32 0.5, %v5609
    %v5611 = vsub.f32 1.5, %v5610
    %v5612 = vmul.f32 %v5607, %v5611
    %vm5613 = vweird.f32 %v5572
    %vm5614 = vweird.f32 %v5607
    %vm5615 = vmor %vm5613, %vm5614
    %v5616 = vsel %vm5615, %v5607, %v5612
    %v5617 = vrsqrt.pop %v5573
    %v5618 = vmul.f32 %v5617, %v5573
    %v5619 = vmul.f32 %v5618, %v5617
    %v5620 = vmul.f32 0.5, %v5619
    %v5621 = vsub.f32 1.5, %v5620
    %v5622 = vmul.f32 %v5617, %v5621
    %vm5623 = vweird.f32 %v5573
    %vm5624 = vweird.f32 %v5617
    %vm5625 = vmor %vm5623, %vm5624
    %v5626 = vsel %vm5625, %v5617, %v5622
    %v5627 = vrsqrt.pop %v5574
    %v5628 = vmul.f32 %v5627, %v5574
    %v5629 = vmul.f32 %v5628, %v5627
    %v5630 = vmul.f32 0.5, %v5629
    %v5631 = vsub.f32 1.5, %v5630
    %v5632 = vmul.f32 %v5627, %v5631
    %vm5633 = vweird.f32 %v5574
    %vm5634 = vweird.f32 %v5627
    %vm5635 = vmor %vm5633, %vm5634
    %v5636 = vsel %vm5635, %v5627, %v5632
    %v5637 = vrsqrt.pop %v5575
    %v5638 = vmul.f32 %v5637, %v5575
    %v5639 = vmul.f32 %v5638, %v5637
    %v5640 = vmul.f32 0.5, %v5639
    %v5641 = vsub.f32 1.5, %v5640
    %v5642 = vmul.f32 %v5637, %v5641
    %vm5643 = vweird.f32 %v5575
    %vm5644 = vweird.f32 %v5637
    %vm5645 = vmor %vm5643, %vm5644
    %v5646 = vsel %vm5645, %v5637, %v5642
    %v5647 = vrsqrt.pop %v5576
    %v5648 = vmul.f32 %v5647, %v5576
    %v5649 = vmul.f32 %v5648, %v5647
    %v5650 = vmul.f32 0.5, %v5649
    %v5651 = vsub.f32 1.5, %v5650
    %v5652 = vmul.f32 %v5647, %v5651
    %vm5653 = vweird.f32 %v5576
    %vm5654 = vweird.f32 %v5647
    %vm5655 = vmor %vm5653, %vm5654
    %v5656 = vsel %vm5655, %v5647, %v5652
    %v5657 = vmul.f32 %v5521, %v5586
    %v5658 = vmul.f32 %v5522, %v5596
    %v5659 = vmul.f32 %v5523, %v5606
    %v5660 = vmul.f32 %v5524, %v5616
    %v5661 = vmul.f32 %v5525, %v5626
    %v5662 = vmul.f32 %v5526, %v5636
    %v5663 = vmul.f32 %v5527, %v5646
    %v5664 = vmul.f32 %v5528, %v5656
    %v5666 = vperm.slane %v3647, 0
    %v5668 = vmul.f32 %v5657, %v5666
    %v5669 = vmul.f32 %v5658, %v5666
    %v5670 = vmul.f32 %v5659, %v5666
    %v5671 = vmul.f32 %v5660, %v5666
    %v5672 = vmul.f32 %v5661, %v5666
    %v5673 = vmul.f32 %v5662, %v5666
    %v5674 = vmul.f32 %v5663, %v5666
    %v5675 = vmul.f32 %v5664, %v5666
    %v5677 = vperm.slane %v3648, 0
    %v5679 = vadd.f32 %v5668, %v5677
    %v5680 = vadd.f32 %v5669, %v5677
    %v5681 = vadd.f32 %v5670, %v5677
    %v5682 = vadd.f32 %v5671, %v5677
    %v5683 = vadd.f32 %v5672, %v5677
    %v5684 = vadd.f32 %v5673, %v5677
    %v5685 = vadd.f32 %v5674, %v5677
    %v5686 = vadd.f32 %v5675, %v5677
    %v5688 = vperm.slane %v3653, 0
    %v5691 = vsel %vm700, %v5679, 0
    %v5694 = vsel %vm700, %v5680, 0
    %v5697 = vsel %vm700, %v5681, 0
    %v5700 = vsel %vm700, %v5682, 0
    %v5703 = vsel %vm700, %v5683, 0
    %v5706 = vsel %vm700, %v5684, 0
    %v5709 = vsel %vm700, %v5685, 0
    %v5712 = vsel %vm700, %v5686, 0
    %5714 = vmatpush.msra.mxu0 0.0
    %5715 = vmatpush.msra.mxu0 0.0
    %5716 = vmatpush.msra.mxu0 0.0
    %5717 = vmatpush.msra.mxu0 0.0
    %5718 = vmatpush.msra.mxu0 0.0
    %5719 = vmatpush.msra.mxu0 0.0
    %5720 = vmatpush.msra.mxu0 0.0
    %5721 = vmatpush.msra.mxu0 0.0
    %5722 = vmatpush.msra.mxu0 0.0
    %5723 = vmatpush.msra.mxu0 0.0
    %5724 = vmatpush.msra.mxu0 0.0
    %5725 = vmatpush.msra.mxu0 0.0
    %5726 = vmatpush.msra.mxu0 %v3652
    %5727 = vmatpush.msra.mxu0 %v3651
    %5728 = vmatpush.msra.mxu0 %v3650
    %5729 = vmatpush.msra.mxu0 %v3649
    %5730 = vmatmul.f32.gmra.mxu0 %v5691
    %v5731 = vpop.f32.mrf.mxu0
    %v5732 = vadd.f32 %v5688, %v5731
    %5733 = vmatmul.f32.gmra.mxu0 %v5694
    %v5734 = vpop.f32.mrf.mxu0
    %v5735 = vadd.f32 %v5688, %v5734
    %5736 = vmatmul.f32.gmra.mxu0 %v5697
    %v5737 = vpop.f32.mrf.mxu0
    %v5738 = vadd.f32 %v5688, %v5737
    %5739 = vmatmul.f32.gmra.mxu0 %v5700
    %v5740 = vpop.f32.mrf.mxu0
    %v5741 = vadd.f32 %v5688, %v5740
    %5742 = vmatmul.f32.gmra.mxu0 %v5703
    %v5743 = vpop.f32.mrf.mxu0
    %v5744 = vadd.f32 %v5688, %v5743
    %5745 = vmatmul.f32.gmra.mxu0 %v5706
    %v5746 = vpop.f32.mrf.mxu0
    %v5747 = vadd.f32 %v5688, %v5746
    %5748 = vmatmul.f32.gmra.mxu0 %v5709
    %v5749 = vpop.f32.mrf.mxu0
    %v5750 = vadd.f32 %v5688, %v5749
    %5751 = vmatmul.f32.gmra.mxu0 %v5712
    %v5752 = vpop.f32.mrf.mxu0
    %v5753 = vadd.f32 %v5688, %v5752
    %5754 = vdwg.mxu0
    %v5755 = vmax.f32 %v5732, 0.0
    %v5756 = vmax.f32 %v5735, 0.0
    %v5757 = vmax.f32 %v5738, 0.0
    %v5758 = vmax.f32 %v5741, 0.0
    %v5759 = vmax.f32 %v5744, 0.0
    %v5760 = vmax.f32 %v5747, 0.0
    %v5761 = vmax.f32 %v5750, 0.0
    %v5762 = vmax.f32 %v5753, 0.0
    %v5764 = vperm.slane %v3662, 0
    %v5767 = vsel %vm1793, %v5755, 0
    %v5770 = vsel %vm1793, %v5756, 0
    %v5773 = vsel %vm1793, %v5757, 0
    %v5776 = vsel %vm1793, %v5758, 0
    %v5779 = vsel %vm1793, %v5759, 0
    %v5782 = vsel %vm1793, %v5760, 0
    %v5785 = vsel %vm1793, %v5761, 0
    %v5788 = vsel %vm1793, %v5762, 0
    %5790 = vmatpush.msra.mxu0 0.0
    %5791 = vmatpush.msra.mxu0 0.0
    %5792 = vmatpush.msra.mxu0 0.0
    %5793 = vmatpush.msra.mxu0 0.0
    %5794 = vmatpush.msra.mxu0 0.0
    %5795 = vmatpush.msra.mxu0 0.0
    %5796 = vmatpush.msra.mxu0 0.0
    %5797 = vmatpush.msra.mxu0 0.0
    %5798 = vmatpush.msra.mxu0 %v3661
    %5799 = vmatpush.msra.mxu0 %v3660
    %5800 = vmatpush.msra.mxu0 %v3659
    %5801 = vmatpush.msra.mxu0 %v3658
    %5802 = vmatpush.msra.mxu0 %v3657
    %5803 = vmatpush.msra.mxu0 %v3656
    %5804 = vmatpush.msra.mxu0 %v3655
    %5805 = vmatpush.msra.mxu0 %v3654
    %5806 = vmatmul.f32.gmra.mxu0 %v5767
    %v5807 = vpop.f32.mrf.mxu0
    %v5808 = vadd.f32 %v5764, %v5807
    %5809 = vmatmul.f32.gmra.mxu0 %v5770
    %v5810 = vpop.f32.mrf.mxu0
    %v5811 = vadd.f32 %v5764, %v5810
    %5812 = vmatmul.f32.gmra.mxu0 %v5773
    %v5813 = vpop.f32.mrf.mxu0
    %v5814 = vadd.f32 %v5764, %v5813
    %5815 = vmatmul.f32.gmra.mxu0 %v5776
    %v5816 = vpop.f32.mrf.mxu0
    %v5817 = vadd.f32 %v5764, %v5816
    %5818 = vmatmul.f32.gmra.mxu0 %v5779
    %v5819 = vpop.f32.mrf.mxu0
    %v5820 = vadd.f32 %v5764, %v5819
    %5821 = vmatmul.f32.gmra.mxu0 %v5782
    %v5822 = vpop.f32.mrf.mxu0
    %v5823 = vadd.f32 %v5764, %v5822
    %5824 = vmatmul.f32.gmra.mxu0 %v5785
    %v5825 = vpop.f32.mrf.mxu0
    %v5826 = vadd.f32 %v5764, %v5825
    %5827 = vmatmul.f32.gmra.mxu0 %v5788
    %v5828 = vpop.f32.mrf.mxu0
    %v5829 = vadd.f32 %v5764, %v5828
    %5830 = vdwg.mxu0
    %v5831 = vadd.f32 %v5808, %v5679
    %v5832 = vadd.f32 %v5811, %v5680
    %v5833 = vadd.f32 %v5814, %v5681
    %v5834 = vadd.f32 %v5817, %v5682
    %v5835 = vadd.f32 %v5820, %v5683
    %v5836 = vadd.f32 %v5823, %v5684
    %v5837 = vadd.f32 %v5826, %v5685
    %v5838 = vadd.f32 %v5829, %v5686
    %v5839 = vsel %vm700, %v5831, 0.0
    %5840 = vadd.xlane.f32.xlu0 %v5839
    %v5841 = vpop.xlane.xlu0 %5840
    %v5842 = vsel %vm700, %v5832, 0.0
    %5843 = vadd.xlane.f32.xlu0 %v5842
    %v5844 = vpop.xlane.xlu0 %5843
    %v5845 = vsel %vm700, %v5833, 0.0
    %5846 = vadd.xlane.f32.xlu0 %v5845
    %v5847 = vpop.xlane.xlu0 %5846
    %v5848 = vsel %vm700, %v5834, 0.0
    %5849 = vadd.xlane.f32.xlu0 %v5848
    %v5850 = vpop.xlane.xlu0 %5849
    %v5851 = vsel %vm700, %v5835, 0.0
    %5852 = vadd.xlane.f32.xlu0 %v5851
    %v5853 = vpop.xlane.xlu0 %5852
    %v5854 = vsel %vm700, %v5836, 0.0
    %5855 = vadd.xlane.f32.xlu0 %v5854
    %v5856 = vpop.xlane.xlu0 %5855
    %v5857 = vsel %vm700, %v5837, 0.0
    %5858 = vadd.xlane.f32.xlu0 %v5857
    %v5859 = vpop.xlane.xlu0 %5858
    %v5860 = vsel %vm700, %v5838, 0.0
    %5861 = vadd.xlane.f32.xlu0 %v5860
    %v5862 = vpop.xlane.xlu0 %5861
    %v5863 = vmul.f32 %v5841, %v1651
    %v5864 = vmul.f32 %v5844, %v1651
    %v5865 = vmul.f32 %v5847, %v1651
    %v5866 = vmul.f32 %v5850, %v1651
    %v5867 = vmul.f32 %v5853, %v1651
    %v5868 = vmul.f32 %v5856, %v1651
    %v5869 = vmul.f32 %v5859, %v1651
    %v5870 = vmul.f32 %v5862, %v1651
    %v5871 = vsub.f32 %v5831, %v5863
    %v5872 = vsub.f32 %v5832, %v5864
    %v5873 = vsub.f32 %v5833, %v5865
    %v5874 = vsub.f32 %v5834, %v5866
    %v5875 = vsub.f32 %v5835, %v5867
    %v5876 = vsub.f32 %v5836, %v5868
    %v5877 = vsub.f32 %v5837, %v5869
    %v5878 = vsub.f32 %v5838, %v5870
    %v5879 = vmul.f32 %v5871, %v5871
    %v5880 = vmul.f32 %v5872, %v5872
    %v5881 = vmul.f32 %v5873, %v5873
    %v5882 = vmul.f32 %v5874, %v5874
    %v5883 = vmul.f32 %v5875, %v5875
    %v5884 = vmul.f32 %v5876, %v5876
    %v5885 = vmul.f32 %v5877, %v5877
    %v5886 = vmul.f32 %v5878, %v5878
    %v5887 = vsel %vm700, %v5879, 0.0
    %5888 = vadd.xlane.f32.xlu0 %v5887
    %v5889 = vpop.xlane.xlu0 %5888
    %v5890 = vsel %vm700, %v5880, 0.0
    %5891 = vadd.xlane.f32.xlu0 %v5890
    %v5892 = vpop.xlane.xlu0 %5891
    %v5893 = vsel %vm700, %v5881, 0.0
    %5894 = vadd.xlane.f32.xlu0 %v5893
    %v5895 = vpop.xlane.xlu0 %5894
    %v5896 = vsel %vm700, %v5882, 0.0
    %5897 = vadd.xlane.f32.xlu0 %v5896
    %v5898 = vpop.xlane.xlu0 %5897
    %v5899 = vsel %vm700, %v5883, 0.0
    %5900 = vadd.xlane.f32.xlu0 %v5899
    %v5901 = vpop.xlane.xlu0 %5900
    %v5902 = vsel %vm700, %v5884, 0.0
    %5903 = vadd.xlane.f32.xlu0 %v5902
    %v5904 = vpop.xlane.xlu0 %5903
    %v5905 = vsel %vm700, %v5885, 0.0
    %5906 = vadd.xlane.f32.xlu0 %v5905
    %v5907 = vpop.xlane.xlu0 %5906
    %v5908 = vsel %vm700, %v5886, 0.0
    %5909 = vadd.xlane.f32.xlu0 %v5908
    %v5910 = vpop.xlane.xlu0 %5909
    %v5911 = vmul.f32 %v5889, %v1651
    %v5912 = vmul.f32 %v5892, %v1651
    %v5913 = vmul.f32 %v5895, %v1651
    %v5914 = vmul.f32 %v5898, %v1651
    %v5915 = vmul.f32 %v5901, %v1651
    %v5916 = vmul.f32 %v5904, %v1651
    %v5917 = vmul.f32 %v5907, %v1651
    %v5918 = vmul.f32 %v5910, %v1651
    %v5919 = vadd.f32 %v5911, 1e-05
    %v5920 = vadd.f32 %v5912, 1e-05
    %v5921 = vadd.f32 %v5913, 1e-05
    %v5922 = vadd.f32 %v5914, 1e-05
    %v5923 = vadd.f32 %v5915, 1e-05
    %v5924 = vadd.f32 %v5916, 1e-05
    %v5925 = vadd.f32 %v5917, 1e-05
    %v5926 = vadd.f32 %v5918, 1e-05
    %v5927 = vrsqrt.pop %v5919
    %v5928 = vmul.f32 %v5927, %v5919
    %v5929 = vmul.f32 %v5928, %v5927
    %v5930 = vmul.f32 0.5, %v5929
    %v5931 = vsub.f32 1.5, %v5930
    %v5932 = vmul.f32 %v5927, %v5931
    %vm5933 = vweird.f32 %v5919
    %vm5934 = vweird.f32 %v5927
    %vm5935 = vmor %vm5933, %vm5934
    %v5936 = vsel %vm5935, %v5927, %v5932
    %v5937 = vrsqrt.pop %v5920
    %v5938 = vmul.f32 %v5937, %v5920
    %v5939 = vmul.f32 %v5938, %v5937
    %v5940 = vmul.f32 0.5, %v5939
    %v5941 = vsub.f32 1.5, %v5940
    %v5942 = vmul.f32 %v5937, %v5941
    %vm5943 = vweird.f32 %v5920
    %vm5944 = vweird.f32 %v5937
    %vm5945 = vmor %vm5943, %vm5944
    %v5946 = vsel %vm5945, %v5937, %v5942
    %v5947 = vrsqrt.pop %v5921
    %v5948 = vmul.f32 %v5947, %v5921
    %v5949 = vmul.f32 %v5948, %v5947
    %v5950 = vmul.f32 0.5, %v5949
    %v5951 = vsub.f32 1.5, %v5950
    %v5952 = vmul.f32 %v5947, %v5951
    %vm5953 = vweird.f32 %v5921
    %vm5954 = vweird.f32 %v5947
    %vm5955 = vmor %vm5953, %vm5954
    %v5956 = vsel %vm5955, %v5947, %v5952
    %v5957 = vrsqrt.pop %v5922
    %v5958 = vmul.f32 %v5957, %v5922
    %v5959 = vmul.f32 %v5958, %v5957
    %v5960 = vmul.f32 0.5, %v5959
    %v5961 = vsub.f32 1.5, %v5960
    %v5962 = vmul.f32 %v5957, %v5961
    %vm5963 = vweird.f32 %v5922
    %vm5964 = vweird.f32 %v5957
    %vm5965 = vmor %vm5963, %vm5964
    %v5966 = vsel %vm5965, %v5957, %v5962
    %v5967 = vrsqrt.pop %v5923
    %v5968 = vmul.f32 %v5967, %v5923
    %v5969 = vmul.f32 %v5968, %v5967
    %v5970 = vmul.f32 0.5, %v5969
    %v5971 = vsub.f32 1.5, %v5970
    %v5972 = vmul.f32 %v5967, %v5971
    %vm5973 = vweird.f32 %v5923
    %vm5974 = vweird.f32 %v5967
    %vm5975 = vmor %vm5973, %vm5974
    %v5976 = vsel %vm5975, %v5967, %v5972
    %v5977 = vrsqrt.pop %v5924
    %v5978 = vmul.f32 %v5977, %v5924
    %v5979 = vmul.f32 %v5978, %v5977
    %v5980 = vmul.f32 0.5, %v5979
    %v5981 = vsub.f32 1.5, %v5980
    %v5982 = vmul.f32 %v5977, %v5981
    %vm5983 = vweird.f32 %v5924
    %vm5984 = vweird.f32 %v5977
    %vm5985 = vmor %vm5983, %vm5984
    %v5986 = vsel %vm5985, %v5977, %v5982
    %v5987 = vrsqrt.pop %v5925
    %v5988 = vmul.f32 %v5987, %v5925
    %v5989 = vmul.f32 %v5988, %v5987
    %v5990 = vmul.f32 0.5, %v5989
    %v5991 = vsub.f32 1.5, %v5990
    %v5992 = vmul.f32 %v5987, %v5991
    %vm5993 = vweird.f32 %v5925
    %vm5994 = vweird.f32 %v5987
    %vm5995 = vmor %vm5993, %vm5994
    %v5996 = vsel %vm5995, %v5987, %v5992
    %v5997 = vrsqrt.pop %v5926
    %v5998 = vmul.f32 %v5997, %v5926
    %v5999 = vmul.f32 %v5998, %v5997
    %v6000 = vmul.f32 0.5, %v5999
    %v6001 = vsub.f32 1.5, %v6000
    %v6002 = vmul.f32 %v5997, %v6001
    %vm6003 = vweird.f32 %v5926
    %vm6004 = vweird.f32 %v5997
    %vm6005 = vmor %vm6003, %vm6004
    %v6006 = vsel %vm6005, %v5997, %v6002
    %v6007 = vmul.f32 %v5871, %v5936
    %v6008 = vmul.f32 %v5872, %v5946
    %v6009 = vmul.f32 %v5873, %v5956
    %v6010 = vmul.f32 %v5874, %v5966
    %v6011 = vmul.f32 %v5875, %v5976
    %v6012 = vmul.f32 %v5876, %v5986
    %v6013 = vmul.f32 %v5877, %v5996
    %v6014 = vmul.f32 %v5878, %v6006
    %v6016 = vperm.slane %v3663, 0
    %v6018 = vmul.f32 %v6007, %v6016
    %v6019 = vmul.f32 %v6008, %v6016
    %v6020 = vmul.f32 %v6009, %v6016
    %v6021 = vmul.f32 %v6010, %v6016
    %v6022 = vmul.f32 %v6011, %v6016
    %v6023 = vmul.f32 %v6012, %v6016
    %v6024 = vmul.f32 %v6013, %v6016
    %v6025 = vmul.f32 %v6014, %v6016
    %v6027 = vperm.slane %v3664, 0
    %v6029 = vadd.f32 %v6018, %v6027
    %v6030 = vadd.f32 %v6019, %v6027
    %v6031 = vadd.f32 %v6020, %v6027
    %v6032 = vadd.f32 %v6021, %v6027
    %v6033 = vadd.f32 %v6022, %v6027
    %v6034 = vadd.f32 %v6023, %v6027
    %v6035 = vadd.f32 %v6024, %v6027
    %v6036 = vadd.f32 %v6025, %v6027
    %v6037 = vld [vmem:[%s99] sm:$0x1]
    %v6038 = vld [vmem:[%s101] sm:$0x1]
    %v6039 = vsel %vm700, %v6029, 0.0
    %6040 = vadd.xlane.f32.xlu0 %v6039
    %v6041 = vpop.xlane.xlu0 %6040
    %v6042 = vsel %vm700, %v6030, 0.0
    %6043 = vadd.xlane.f32.xlu0 %v6042
    %v6044 = vpop.xlane.xlu0 %6043
    %v6045 = vsel %vm700, %v6031, 0.0
    %6046 = vadd.xlane.f32.xlu0 %v6045
    %v6047 = vpop.xlane.xlu0 %6046
    %v6048 = vsel %vm700, %v6032, 0.0
    %6049 = vadd.xlane.f32.xlu0 %v6048
    %v6050 = vpop.xlane.xlu0 %6049
    %v6051 = vsel %vm700, %v6033, 0.0
    %6052 = vadd.xlane.f32.xlu0 %v6051
    %v6053 = vpop.xlane.xlu0 %6052
    %v6054 = vsel %vm700, %v6034, 0.0
    %6055 = vadd.xlane.f32.xlu0 %v6054
    %v6056 = vpop.xlane.xlu0 %6055
    %v6057 = vsel %vm700, %v6035, 0.0
    %6058 = vadd.xlane.f32.xlu0 %v6057
    %v6059 = vpop.xlane.xlu0 %6058
    %v6060 = vsel %vm700, %v6036, 0.0
    %6061 = vadd.xlane.f32.xlu0 %v6060
    %v6062 = vpop.xlane.xlu0 %6061
    %v6063 = vmul.f32 %v6041, %v1651
    %v6064 = vmul.f32 %v6044, %v1651
    %v6065 = vmul.f32 %v6047, %v1651
    %v6066 = vmul.f32 %v6050, %v1651
    %v6067 = vmul.f32 %v6053, %v1651
    %v6068 = vmul.f32 %v6056, %v1651
    %v6069 = vmul.f32 %v6059, %v1651
    %v6070 = vmul.f32 %v6062, %v1651
    %v6071 = vsub.f32 %v6029, %v6063
    %v6072 = vsub.f32 %v6030, %v6064
    %v6073 = vsub.f32 %v6031, %v6065
    %v6074 = vsub.f32 %v6032, %v6066
    %v6075 = vsub.f32 %v6033, %v6067
    %v6076 = vsub.f32 %v6034, %v6068
    %v6077 = vsub.f32 %v6035, %v6069
    %v6078 = vsub.f32 %v6036, %v6070
    %v6079 = vmul.f32 %v6071, %v6071
    %v6080 = vmul.f32 %v6072, %v6072
    %v6081 = vmul.f32 %v6073, %v6073
    %v6082 = vmul.f32 %v6074, %v6074
    %v6083 = vmul.f32 %v6075, %v6075
    %v6084 = vmul.f32 %v6076, %v6076
    %v6085 = vmul.f32 %v6077, %v6077
    %v6086 = vmul.f32 %v6078, %v6078
    %v6087 = vsel %vm700, %v6079, 0.0
    %6088 = vadd.xlane.f32.xlu0 %v6087
    %v6089 = vpop.xlane.xlu0 %6088
    %v6090 = vsel %vm700, %v6080, 0.0
    %6091 = vadd.xlane.f32.xlu0 %v6090
    %v6092 = vpop.xlane.xlu0 %6091
    %v6093 = vsel %vm700, %v6081, 0.0
    %6094 = vadd.xlane.f32.xlu0 %v6093
    %v6095 = vpop.xlane.xlu0 %6094
    %v6096 = vsel %vm700, %v6082, 0.0
    %6097 = vadd.xlane.f32.xlu0 %v6096
    %v6098 = vpop.xlane.xlu0 %6097
    %v6099 = vsel %vm700, %v6083, 0.0
    %6100 = vadd.xlane.f32.xlu0 %v6099
    %v6101 = vpop.xlane.xlu0 %6100
    %v6102 = vsel %vm700, %v6084, 0.0
    %6103 = vadd.xlane.f32.xlu0 %v6102
    %v6104 = vpop.xlane.xlu0 %6103
    %v6105 = vsel %vm700, %v6085, 0.0
    %6106 = vadd.xlane.f32.xlu0 %v6105
    %v6107 = vpop.xlane.xlu0 %6106
    %v6108 = vsel %vm700, %v6086, 0.0
    %6109 = vadd.xlane.f32.xlu0 %v6108
    %v6110 = vpop.xlane.xlu0 %6109
    %v6111 = vmul.f32 %v6089, %v1651
    %v6112 = vmul.f32 %v6092, %v1651
    %v6113 = vmul.f32 %v6095, %v1651
    %v6114 = vmul.f32 %v6098, %v1651
    %v6115 = vmul.f32 %v6101, %v1651
    %v6116 = vmul.f32 %v6104, %v1651
    %v6117 = vmul.f32 %v6107, %v1651
    %v6118 = vmul.f32 %v6110, %v1651
    %v6119 = vadd.f32 %v6111, 1e-06
    %v6120 = vadd.f32 %v6112, 1e-06
    %v6121 = vadd.f32 %v6113, 1e-06
    %v6122 = vadd.f32 %v6114, 1e-06
    %v6123 = vadd.f32 %v6115, 1e-06
    %v6124 = vadd.f32 %v6116, 1e-06
    %v6125 = vadd.f32 %v6117, 1e-06
    %v6126 = vadd.f32 %v6118, 1e-06
    %v6127 = vrsqrt.pop %v6119
    %v6128 = vmul.f32 %v6127, %v6119
    %v6129 = vmul.f32 %v6128, %v6127
    %v6130 = vmul.f32 0.5, %v6129
    %v6131 = vsub.f32 1.5, %v6130
    %v6132 = vmul.f32 %v6127, %v6131
    %vm6133 = vweird.f32 %v6119
    %vm6134 = vweird.f32 %v6127
    %vm6135 = vmor %vm6133, %vm6134
    %v6136 = vsel %vm6135, %v6127, %v6132
    %v6137 = vrsqrt.pop %v6120
    %v6138 = vmul.f32 %v6137, %v6120
    %v6139 = vmul.f32 %v6138, %v6137
    %v6140 = vmul.f32 0.5, %v6139
    %v6141 = vsub.f32 1.5, %v6140
    %v6142 = vmul.f32 %v6137, %v6141
    %vm6143 = vweird.f32 %v6120
    %vm6144 = vweird.f32 %v6137
    %vm6145 = vmor %vm6143, %vm6144
    %v6146 = vsel %vm6145, %v6137, %v6142
    %v6147 = vrsqrt.pop %v6121
    %v6148 = vmul.f32 %v6147, %v6121
    %v6149 = vmul.f32 %v6148, %v6147
    %v6150 = vmul.f32 0.5, %v6149
    %v6151 = vsub.f32 1.5, %v6150
    %v6152 = vmul.f32 %v6147, %v6151
    %vm6153 = vweird.f32 %v6121
    %vm6154 = vweird.f32 %v6147
    %vm6155 = vmor %vm6153, %vm6154
    %v6156 = vsel %vm6155, %v6147, %v6152
    %v6157 = vrsqrt.pop %v6122
    %v6158 = vmul.f32 %v6157, %v6122
    %v6159 = vmul.f32 %v6158, %v6157
    %v6160 = vmul.f32 0.5, %v6159
    %v6161 = vsub.f32 1.5, %v6160
    %v6162 = vmul.f32 %v6157, %v6161
    %vm6163 = vweird.f32 %v6122
    %vm6164 = vweird.f32 %v6157
    %vm6165 = vmor %vm6163, %vm6164
    %v6166 = vsel %vm6165, %v6157, %v6162
    %v6167 = vrsqrt.pop %v6123
    %v6168 = vmul.f32 %v6167, %v6123
    %v6169 = vmul.f32 %v6168, %v6167
    %v6170 = vmul.f32 0.5, %v6169
    %v6171 = vsub.f32 1.5, %v6170
    %v6172 = vmul.f32 %v6167, %v6171
    %vm6173 = vweird.f32 %v6123
    %vm6174 = vweird.f32 %v6167
    %vm6175 = vmor %vm6173, %vm6174
    %v6176 = vsel %vm6175, %v6167, %v6172
    %v6177 = vrsqrt.pop %v6124
    %v6178 = vmul.f32 %v6177, %v6124
    %v6179 = vmul.f32 %v6178, %v6177
    %v6180 = vmul.f32 0.5, %v6179
    %v6181 = vsub.f32 1.5, %v6180
    %v6182 = vmul.f32 %v6177, %v6181
    %vm6183 = vweird.f32 %v6124
    %vm6184 = vweird.f32 %v6177
    %vm6185 = vmor %vm6183, %vm6184
    %v6186 = vsel %vm6185, %v6177, %v6182
    %v6187 = vrsqrt.pop %v6125
    %v6188 = vmul.f32 %v6187, %v6125
    %v6189 = vmul.f32 %v6188, %v6187
    %v6190 = vmul.f32 0.5, %v6189
    %v6191 = vsub.f32 1.5, %v6190
    %v6192 = vmul.f32 %v6187, %v6191
    %vm6193 = vweird.f32 %v6125
    %vm6194 = vweird.f32 %v6187
    %vm6195 = vmor %vm6193, %vm6194
    %v6196 = vsel %vm6195, %v6187, %v6192
    %v6197 = vrsqrt.pop %v6126
    %v6198 = vmul.f32 %v6197, %v6126
    %v6199 = vmul.f32 %v6198, %v6197
    %v6200 = vmul.f32 0.5, %v6199
    %v6201 = vsub.f32 1.5, %v6200
    %v6202 = vmul.f32 %v6197, %v6201
    %vm6203 = vweird.f32 %v6126
    %vm6204 = vweird.f32 %v6197
    %vm6205 = vmor %vm6203, %vm6204
    %v6206 = vsel %vm6205, %v6197, %v6202
    %v6207 = vmul.f32 %v6071, %v6136
    %v6208 = vmul.f32 %v6072, %v6146
    %v6209 = vmul.f32 %v6073, %v6156
    %v6210 = vmul.f32 %v6074, %v6166
    %v6211 = vmul.f32 %v6075, %v6176
    %v6212 = vmul.f32 %v6076, %v6186
    %v6213 = vmul.f32 %v6077, %v6196
    %v6214 = vmul.f32 %v6078, %v6206
    %v6216 = vperm.slane %v6037, 0
    %v6218 = vmul.f32 %v6207, %v6216
    %v6219 = vmul.f32 %v6208, %v6216
    %v6220 = vmul.f32 %v6209, %v6216
    %v6221 = vmul.f32 %v6210, %v6216
    %v6222 = vmul.f32 %v6211, %v6216
    %v6223 = vmul.f32 %v6212, %v6216
    %v6224 = vmul.f32 %v6213, %v6216
    %v6225 = vmul.f32 %v6214, %v6216
    %v6227 = vperm.slane %v6038, 0
    %v6229 = vadd.f32 %v6218, %v6227
    %v6230 = vadd.f32 %v6219, %v6227
    %v6231 = vadd.f32 %v6220, %v6227
    %v6232 = vadd.f32 %v6221, %v6227
    %v6233 = vadd.f32 %v6222, %v6227
    %v6234 = vadd.f32 %v6223, %v6227
    %v6235 = vadd.f32 %v6224, %v6227
    %v6236 = vadd.f32 %v6225, %v6227
    %6237 = vst.msk [vmem:[%s103] sm:$0xff] %vm700, %v6229
    %6238 = vst.msk [vmem:[%s103 + $0x8] sm:$0xff] %vm700, %v6230
    %6239 = vst.msk [vmem:[%s103 + $0x10] sm:$0xff] %vm700, %v6231
    %6240 = vst.msk [vmem:[%s103 + $0x18] sm:$0xff] %vm700, %v6232
    %6241 = vst.msk [vmem:[%s103 + $0x20] sm:$0xff] %vm700, %v6233
    %6242 = vst.msk [vmem:[%s103 + $0x28] sm:$0xff] %vm700, %v6234
    %6243 = vst.msk [vmem:[%s103 + $0x30] sm:$0xff] %vm700, %v6235
    %6244 = vst.msk [vmem:[%s103 + $0x38] sm:$0xff] %vm700, %v6236
    // Predicated region
    $region334: #{mlm_forward.1} parent=1 // pred_check
      _
    $region335: #{mlm_forward.1} parent=1 // pred_check_branch
      %6246 = sbr.rel (0) target = $region337
    $region336: #{mlm_forward.1} parent=1 // pred_region
      _
    $region337: #{mlm_forward.1} parent=1 // pred_fallthru
      _
    // Predicated region
    $region338: #{mlm_forward.1} parent=1 // pred_check
      _
    $region339: #{mlm_forward.1} parent=1 // pred_check_branch
      %6248 = sbr.rel (0) target = $region341
    $region340: #{mlm_forward.1} parent=1 // pred_region
      _
    $region341: #{mlm_forward.1} parent=1 // pred_fallthru
      _
    // Predicated region
    $region342: #{mlm_forward.1} parent=1 // pred_check
      _
    $region343: #{mlm_forward.1} parent=1 // pred_check_branch
      %6250 = sbr.rel (0) target = $region345
    $region344: #{mlm_forward.1} parent=1 // pred_region
      _
    $region345: #{mlm_forward.1} parent=1 // pred_fallthru
      _
    // Predicated region
    $region346: #{mlm_forward.1} parent=1 // pred_check
      _
    $region347: #{mlm_forward.1} parent=1 // pred_check_branch
      %6252 = sbr.rel (0) target = $region349
    $region348: #{mlm_forward.1} parent=1 // pred_region
      _
    $region349: #{mlm_forward.1} parent=1 // pred_fallthru
      _
    %6253 = vsyncpa [#allocation4], 1
    %6254 = vsyncpa [#allocation8], 1
    %6255 = vsyncpa [#allocation11], 1
    %6256 = vsyncpa [#allocation14], 1
    %6257 = vsyncpa [#allocation17], 1
    %6258 = vsyncpa [#allocation20], 1
    %6259 = vsyncpa [#allocation23], 1
    %6260 = vsyncpa [#allocation26], 1
    %6261 = vsyncpa [#allocation29], 1
    %6262 = vsyncpa [#allocation32], 1
    %6263 = vsyncpa [#allocation35], 1
    %6264 = vsyncpa [#allocation38], 1
    %6265 = vsyncpa [#allocation41], 1
    %6266 = vsyncpa [#allocation44], 1
    %6267 = vsyncpa [#allocation47], 1
    %6268 = vsyncpa [#allocation50], 1
    %6269 = vsyncpa [#allocation5], 1

</llo_original>
